<compile_context>
chip_gen: v7x
topology: tpu7x:2x2x1
jax: 0.10.0
libtpu: 0.0.40
codegen_flags: <defaults>
</compile_context>

<pallas_src>
import functools

import jax
import jax.numpy as jnp
from jax.experimental import pallas as pl
from jax.experimental.pallas import tpu as pltpu


def _round_up(x, m):
    return ((x + m - 1) // m) * m


# ------------------------------- fused kernel ------------------------------- #

def _resblock_kernel(xp_ref, w1_ref, w2_ref, b1_ref, b2_ref, o_ref, q_ref, *, H, W):
    """Fused ResBlock for one image.

    xp_ref: (PR, C)     zero-padded input, flattened row-major over (1+H+bot, W+2)
    w*_ref: (9*C, C)    conv weights, tap-major rows: row ((dy*3+dx)*C + cin), col cout
    b*_ref: (1, C)
    o_ref : (H*Wp, C)   wide-grid output (2 wrap columns per row dropped in the wrapper)
    q_ref : (Q_ROWS, C) VMEM scratch holding zero-padded relu(conv1(x))
    """
    C = b1_ref.shape[-1]
    Wp = W + 2                      # padded width
    R = H * Wp                      # rows of the "wide" output grid (valid cols: 0..W-1)
    QOFF_X = Wp + 1                 # xp flat offset of padded position (1, 1)
    LEAD_Q = (-(Wp + 1)) % 8        # leading scratch rows so the q interior is 8-aligned
    QOFF_Q = LEAD_Q + Wp + 1        # q flat offset of the interior (multiple of 8)
    Q_ROWS = q_ref.shape[0]

    def conv3x3(src_ref, w_ref, base):
        # Nine accumulating (R, C) x (C, C) MXU dots -- no im2col lane concat, no temp.
        acc = None
        t = 0
        for dy in range(3):
            for dx in range(3):
                tap = src_ref[pl.ds(base + dy * Wp + dx, R), :]
                w_t = w_ref[pl.ds(t * C, C), :]
                d = jnp.dot(tap, w_t, preferred_element_type=jnp.float32)
                acc = d if acc is None else acc + d
                t += 1
        return acc

    # ---- conv1 + bias + ReLU ----
    h = jnp.maximum(conv3x3(xp_ref, w1_ref, 0) + b1_ref[...], 0.0)
    # Zero the 2 out-of-image "wrap" columns of the wide grid; they become conv2's padding.
    col = jax.lax.broadcasted_iota(jnp.int32, (R, C), 0) % Wp
    h = jnp.where(col < W, h, 0.0)

    # Stage relu(conv1(x)) into VMEM scratch.  Only the padding border needs zeros --
    # the interior [QOFF_Q, QOFF_Q+R) is fully overwritten every step.
    q_ref[pl.ds(0, QOFF_Q), :] = jnp.zeros((QOFF_Q, C), jnp.float32)
    q_ref[pl.ds(QOFF_Q + R, Q_ROWS - QOFF_Q - R), :] = jnp.zeros(
        (Q_ROWS - QOFF_Q - R, C), jnp.float32)
    q_ref[pl.ds(QOFF_Q, R), :] = h          # 8-aligned, largest store in the kernel

    # ---- conv2 + bias + residual add ----
    y = conv3x3(q_ref, w2_ref, LEAD_Q) + b2_ref[...]
    y = y + xp_ref[pl.ds(QOFF_X, R), :].astype(jnp.float32)

    # Store the wide grid directly (no in-kernel reshape/relayout).
    o_ref[...] = y.astype(o_ref.dtype)


# --------------------------------- wrapper ---------------------------------- #

@jax.jit
def resblock_forward(params, x_nhwc):
    """x_nhwc: (N, H, W, C) float32. Returns x + conv2(relu(conv1(x)))."""
    N, H, W, C = x_nhwc.shape
    Wp = W + 2
    R = H * Wp

    # ONE pad of the NHWC input: 1 halo row/col on top/left/right, `bot` bottom rows so
    # the flat slab has headroom for the (dy=2, dx=2) tap and (when possible) 8-aligned
    # flat row count.
    bot = 2
    for extra in range(8):
        if ((H + 1 + 2 + extra) * Wp) % 8 == 0:
            bot = 2 + extra
            break
    PR = (H + 1 + bot) * Wp
    # Static headroom check: VMEM reads have no runtime bounds check.
    assert PR >= (H + 2) * Wp + 2, (PR, H, W)

    xp = jnp.pad(x_nhwc, ((0, 0), (1, bot), (1, 1), (0, 0))).reshape(N, PR, C)

    w1 = params["w1"].reshape(9 * C, C)    # HWIO (3,3,C,C) -> (9C, C), tap-major rows
    w2 = params["w2"].reshape(9 * C, C)
    b1 = params["b1"].reshape(1, C)
    b2 = params["b2"].reshape(1, C)

    LEAD_Q = (-(Wp + 1)) % 8
    Q_ROWS = _round_up(LEAD_Q + (H + 2) * Wp + 2, 8)

    kernel = functools.partial(_resblock_kernel, H=H, W=W)
    out = pl.pallas_call(
        kernel,
        out_shape=jax.ShapeDtypeStruct((N, R, C), x_nhwc.dtype),
        grid=(N,),
        in_specs=[
            pl.BlockSpec((None, PR, C), lambda n: (n, 0, 0)),
            pl.BlockSpec((9 * C, C), lambda n: (0, 0)),
            pl.BlockSpec((9 * C, C), lambda n: (0, 0)),
            pl.BlockSpec((1, C), lambda n: (0, 0)),
            pl.BlockSpec((1, C), lambda n: (0, 0)),
        ],
        out_specs=pl.BlockSpec((None, R, C), lambda n: (n, 0, 0)),
        scratch_shapes=[pltpu.VMEM((Q_ROWS, C), jnp.float32)],
        compiler_params=pltpu.CompilerParams(
            dimension_semantics=("parallel",)),
    )(xp, w1, w2, b1, b2)

    # Drop the 2 wrap columns per row and recover NHWC (cheap XLA slice, outside kernel).
    return out.reshape(N, H, Wp, C)[:, :, :W, :]


# ------------------------------- parameters --------------------------------- #

def init_params(key, nf=32):
    """Deterministic synthetic weights with the same shapes as _ResBlock(nf)."""
    k1, k2, k3, k4 = jax.random.split(key, 4)
    scale = 1.0 / jnp.sqrt(jnp.float32(nf * 9))
    return {
        "w1": jax.random.normal(k1, (3, 3, nf, nf), jnp.float32) * scale,
        "b1": jax.random.normal(k2, (nf,), jnp.float32) * 0.01,
        "w2": jax.random.normal(k3, (3, 3, nf, nf), jnp.float32) * scale,
        "b2": jax.random.normal(k4, (nf,), jnp.float32) * 0.01,
    }


# ---------------------------- pure-JAX reference ----------------------------- #

def resblock_ref(params, x_nhwc):
    def conv(x, w, b):
        y = jax.lax.conv_general_dilated(
            x, w, window_strides=(1, 1), padding=((1, 1), (1, 1)),
            dimension_numbers=("NHWC", "HWIO", "NHWC"))
        return y + b[None, None, None, :]
    h = jnp.maximum(conv(x_nhwc, params["w1"], params["b1"]), 0.0)
    return x_nhwc + conv(h, params["w2"], params["b2"])


# ----------------------------------- main ------------------------------------ #

if __name__ == "__main__":
    key = jax.random.PRNGKey(0)
    k_x, k_p = jax.random.split(key)

    # PyTorch-style NCHW input: (batch=2, nf=32, H=16, W=16)
    N, C, H, W = 2, 32, 16, 16
    x_nchw = jax.random.normal(k_x, (N, C, H, W), jnp.float32)
    x_nhwc = jnp.transpose(x_nchw, (0, 2, 3, 1))      # NHWC inside the kernel

    params = init_params(k_p, nf=C)

    out_nhwc = resblock_forward(params, x_nhwc)
    out_nchw = jnp.transpose(out_nhwc, (0, 3, 1, 2))
    jax.block_until_ready(out_nchw)

    ref_nhwc = resblock_ref(params, x_nhwc)
    assert out_nchw.shape == (N, C, H, W), out_nchw.shape
    assert jnp.allclose(out_nhwc, ref_nhwc, atol=1e-4, rtol=1e-4), (
        float(jnp.max(jnp.abs(out_nhwc - ref_nhwc))))

    print("KERNEL_OK")
</pallas_src>

<mosaic_0001>
module attributes {stable_mosaic.version = 11 : i64} {
  func.func @_resblock_kernel(%arg0: i32, %arg1: memref<1x360x32xf32, #tpu.memory_space<vmem>>, %arg2: memref<288x32xf32, #tpu.memory_space<vmem>>, %arg3: memref<288x32xf32, #tpu.memory_space<vmem>>, %arg4: memref<1x32xf32, #tpu.memory_space<vmem>>, %arg5: memref<1x32xf32, #tpu.memory_space<vmem>>, %arg6: memref<1x288x32xf32, #tpu.memory_space<vmem>>, %arg7: memref<336x32xf32, #tpu.memory_space<vmem>>) attributes {dimension_semantics = [#tpu.dimension_semantics<parallel>], iteration_bounds = array<i64: 2>, scalar_prefetch = 0 : i64, scratch_operands = 1 : i64, tpu.core_type = #tpu.core_type<tc>, window_params = [{transform_indices = @transform_0, window_bounds = array<i64: 1, 360, 32>}, {pipeline_mode = #tpu.pipeline_mode<synchronous>, transform_indices = @transform_1, window_bounds = array<i64: 288, 32>}, {pipeline_mode = #tpu.pipeline_mode<synchronous>, transform_indices = @transform_2, window_bounds = array<i64: 288, 32>}, {pipeline_mode = #tpu.pipeline_mode<synchronous>, transform_indices = @transform_3, window_bounds = array<i64: 1, 32>}, {pipeline_mode = #tpu.pipeline_mode<synchronous>, transform_indices = @transform_4, window_bounds = array<i64: 1, 32>}, {transform_indices = @transform_5, window_bounds = array<i64: 1, 288, 32>}]} {
    %c0 = arith.constant 0 : index
    %c0_0 = arith.constant 0 : index
    %c0_1 = arith.constant 0 : index
    %0 = vector.load %arg1[%c0, %c0_0, %c0_1] : memref<1x360x32xf32, #tpu.memory_space<vmem>>, vector<1x288x32xf32>
    %1 = vector.shape_cast %0 : vector<1x288x32xf32> to vector<288x32xf32>
    %c0_2 = arith.constant 0 : index
    %c0_3 = arith.constant 0 : index
    %2 = vector.load %arg2[%c0_2, %c0_3] : memref<288x32xf32, #tpu.memory_space<vmem>>, vector<32x32xf32>
    %cst = arith.constant dense<0.000000e+00> : vector<288x32xf32>
    %3 = tpu.matmul %1, %2, %cst {dimension_numbers = #tpu.dot_dimension_numbers<[1], [0], [0], [1], [0, 0, 1, 1], [], []>} : vector<288x32xf32>, vector<32x32xf32>, vector<288x32xf32> -> vector<288x32xf32>
    %c0_4 = arith.constant 0 : index
    %c1 = arith.constant 1 : index
    %c0_5 = arith.constant 0 : index
    %4 = vector.load %arg1[%c0_4, %c1, %c0_5] : memref<1x360x32xf32, #tpu.memory_space<vmem>>, vector<1x288x32xf32>
    %5 = vector.shape_cast %4 : vector<1x288x32xf32> to vector<288x32xf32>
    %c32 = arith.constant 32 : index
    %c0_6 = arith.constant 0 : index
    %6 = vector.load %arg2[%c32, %c0_6] : memref<288x32xf32, #tpu.memory_space<vmem>>, vector<32x32xf32>
    %cst_7 = arith.constant dense<0.000000e+00> : vector<288x32xf32>
    %7 = tpu.matmul %5, %6, %cst_7 {dimension_numbers = #tpu.dot_dimension_numbers<[1], [0], [0], [1], [0, 0, 1, 1], [], []>} : vector<288x32xf32>, vector<32x32xf32>, vector<288x32xf32> -> vector<288x32xf32>
    %8 = arith.addf %3, %7 : vector<288x32xf32>
    %c0_8 = arith.constant 0 : index
    %c2 = arith.constant 2 : index
    %c0_9 = arith.constant 0 : index
    %9 = vector.load %arg1[%c0_8, %c2, %c0_9] : memref<1x360x32xf32, #tpu.memory_space<vmem>>, vector<1x288x32xf32>
    %10 = vector.shape_cast %9 : vector<1x288x32xf32> to vector<288x32xf32>
    %c64 = arith.constant 64 : index
    %c0_10 = arith.constant 0 : index
    %11 = vector.load %arg2[%c64, %c0_10] : memref<288x32xf32, #tpu.memory_space<vmem>>, vector<32x32xf32>
    %cst_11 = arith.constant dense<0.000000e+00> : vector<288x32xf32>
    %12 = tpu.matmul %10, %11, %cst_11 {dimension_numbers = #tpu.dot_dimension_numbers<[1], [0], [0], [1], [0, 0, 1, 1], [], []>} : vector<288x32xf32>, vector<32x32xf32>, vector<288x32xf32> -> vector<288x32xf32>
    %13 = arith.addf %8, %12 : vector<288x32xf32>
    %c0_12 = arith.constant 0 : index
    %c18 = arith.constant 18 : index
    %c0_13 = arith.constant 0 : index
    %14 = vector.load %arg1[%c0_12, %c18, %c0_13] : memref<1x360x32xf32, #tpu.memory_space<vmem>>, vector<1x288x32xf32>
    %15 = vector.shape_cast %14 : vector<1x288x32xf32> to vector<288x32xf32>
    %c96 = arith.constant 96 : index
    %c0_14 = arith.constant 0 : index
    %16 = vector.load %arg2[%c96, %c0_14] : memref<288x32xf32, #tpu.memory_space<vmem>>, vector<32x32xf32>
    %cst_15 = arith.constant dense<0.000000e+00> : vector<288x32xf32>
    %17 = tpu.matmul %15, %16, %cst_15 {dimension_numbers = #tpu.dot_dimension_numbers<[1], [0], [0], [1], [0, 0, 1, 1], [], []>} : vector<288x32xf32>, vector<32x32xf32>, vector<288x32xf32> -> vector<288x32xf32>
    %18 = arith.addf %13, %17 : vector<288x32xf32>
    %c0_16 = arith.constant 0 : index
    %c19 = arith.constant 19 : index
    %c0_17 = arith.constant 0 : index
    %19 = vector.load %arg1[%c0_16, %c19, %c0_17] : memref<1x360x32xf32, #tpu.memory_space<vmem>>, vector<1x288x32xf32>
    %20 = vector.shape_cast %19 : vector<1x288x32xf32> to vector<288x32xf32>
    %c128 = arith.constant 128 : index
    %c0_18 = arith.constant 0 : index
    %21 = vector.load %arg2[%c128, %c0_18] : memref<288x32xf32, #tpu.memory_space<vmem>>, vector<32x32xf32>
    %cst_19 = arith.constant dense<0.000000e+00> : vector<288x32xf32>
    %22 = tpu.matmul %20, %21, %cst_19 {dimension_numbers = #tpu.dot_dimension_numbers<[1], [0], [0], [1], [0, 0, 1, 1], [], []>} : vector<288x32xf32>, vector<32x32xf32>, vector<288x32xf32> -> vector<288x32xf32>
    %23 = arith.addf %18, %22 : vector<288x32xf32>
    %c0_20 = arith.constant 0 : index
    %c20 = arith.constant 20 : index
    %c0_21 = arith.constant 0 : index
    %24 = vector.load %arg1[%c0_20, %c20, %c0_21] : memref<1x360x32xf32, #tpu.memory_space<vmem>>, vector<1x288x32xf32>
    %25 = vector.shape_cast %24 : vector<1x288x32xf32> to vector<288x32xf32>
    %c160 = arith.constant 160 : index
    %c0_22 = arith.constant 0 : index
    %26 = vector.load %arg2[%c160, %c0_22] : memref<288x32xf32, #tpu.memory_space<vmem>>, vector<32x32xf32>
    %cst_23 = arith.constant dense<0.000000e+00> : vector<288x32xf32>
    %27 = tpu.matmul %25, %26, %cst_23 {dimension_numbers = #tpu.dot_dimension_numbers<[1], [0], [0], [1], [0, 0, 1, 1], [], []>} : vector<288x32xf32>, vector<32x32xf32>, vector<288x32xf32> -> vector<288x32xf32>
    %28 = arith.addf %23, %27 : vector<288x32xf32>
    %c0_24 = arith.constant 0 : index
    %c36 = arith.constant 36 : index
    %c0_25 = arith.constant 0 : index
    %29 = vector.load %arg1[%c0_24, %c36, %c0_25] : memref<1x360x32xf32, #tpu.memory_space<vmem>>, vector<1x288x32xf32>
    %30 = vector.shape_cast %29 : vector<1x288x32xf32> to vector<288x32xf32>
    %c192 = arith.constant 192 : index
    %c0_26 = arith.constant 0 : index
    %31 = vector.load %arg2[%c192, %c0_26] : memref<288x32xf32, #tpu.memory_space<vmem>>, vector<32x32xf32>
    %cst_27 = arith.constant dense<0.000000e+00> : vector<288x32xf32>
    %32 = tpu.matmul %30, %31, %cst_27 {dimension_numbers = #tpu.dot_dimension_numbers<[1], [0], [0], [1], [0, 0, 1, 1], [], []>} : vector<288x32xf32>, vector<32x32xf32>, vector<288x32xf32> -> vector<288x32xf32>
    %33 = arith.addf %28, %32 : vector<288x32xf32>
    %c0_28 = arith.constant 0 : index
    %c37 = arith.constant 37 : index
    %c0_29 = arith.constant 0 : index
    %34 = vector.load %arg1[%c0_28, %c37, %c0_29] : memref<1x360x32xf32, #tpu.memory_space<vmem>>, vector<1x288x32xf32>
    %35 = vector.shape_cast %34 : vector<1x288x32xf32> to vector<288x32xf32>
    %c224 = arith.constant 224 : index
    %c0_30 = arith.constant 0 : index
    %36 = vector.load %arg2[%c224, %c0_30] : memref<288x32xf32, #tpu.memory_space<vmem>>, vector<32x32xf32>
    %cst_31 = arith.constant dense<0.000000e+00> : vector<288x32xf32>
    %37 = tpu.matmul %35, %36, %cst_31 {dimension_numbers = #tpu.dot_dimension_numbers<[1], [0], [0], [1], [0, 0, 1, 1], [], []>} : vector<288x32xf32>, vector<32x32xf32>, vector<288x32xf32> -> vector<288x32xf32>
    %38 = arith.addf %33, %37 : vector<288x32xf32>
    %c0_32 = arith.constant 0 : index
    %c38 = arith.constant 38 : index
    %c0_33 = arith.constant 0 : index
    %39 = vector.load %arg1[%c0_32, %c38, %c0_33] : memref<1x360x32xf32, #tpu.memory_space<vmem>>, vector<1x288x32xf32>
    %40 = vector.shape_cast %39 : vector<1x288x32xf32> to vector<288x32xf32>
    %c256 = arith.constant 256 : index
    %c0_34 = arith.constant 0 : index
    %41 = vector.load %arg2[%c256, %c0_34] : memref<288x32xf32, #tpu.memory_space<vmem>>, vector<32x32xf32>
    %cst_35 = arith.constant dense<0.000000e+00> : vector<288x32xf32>
    %42 = tpu.matmul %40, %41, %cst_35 {dimension_numbers = #tpu.dot_dimension_numbers<[1], [0], [0], [1], [0, 0, 1, 1], [], []>} : vector<288x32xf32>, vector<32x32xf32>, vector<288x32xf32> -> vector<288x32xf32>
    %43 = arith.addf %38, %42 : vector<288x32xf32>
    %c0_36 = arith.constant 0 : index
    %c0_37 = arith.constant 0 : index
    %44 = vector.load %arg4[%c0_36, %c0_37] : memref<1x32xf32, #tpu.memory_space<vmem>>, vector<1x32xf32>
    %45 = vector.broadcast %44 : vector<1x32xf32> to vector<288x32xf32>
    %46 = arith.addf %43, %45 : vector<288x32xf32>
    %cst_38 = arith.constant 0.000000e+00 : f32
    %47 = vector.broadcast %cst_38 : f32 to vector<288x32xf32>
    %48 = arith.maximumf %46, %47 : vector<288x32xf32>
    %49 = tpu.iota {dimensions = array<i32: 0>} : vector<288x32xi32>
    %c18_i32 = arith.constant 18 : i32
    %c0_i32 = arith.constant 0 : i32
    %50 = arith.cmpi eq, %c18_i32, %c0_i32 : i32
    %c1_i32 = arith.constant 1 : i32
    %51 = arith.select %50, %c1_i32, %c18_i32 : i32
    %52 = vector.broadcast %51 : i32 to vector<288x32xi32>
    %53 = arith.remsi %49, %52 : vector<288x32xi32>
    %c0_i32_39 = arith.constant 0 : i32
    %54 = vector.broadcast %c0_i32_39 : i32 to vector<288x32xi32>
    %55 = arith.cmpi ne, %53, %54 : vector<288x32xi32>
    %c0_i32_40 = arith.constant 0 : i32
    %56 = vector.broadcast %c0_i32_40 : i32 to vector<288x32xi32>
    %57 = arith.cmpi slt, %53, %56 : vector<288x32xi32>
    %c0_i32_41 = arith.constant 0 : i32
    %58 = arith.cmpi slt, %51, %c0_i32_41 : i32
    %59 = vector.broadcast %58 : i1 to vector<288x32xi1>
    %60 = vector.broadcast %59 : vector<288x32xi1> to vector<288x32xi1>
    %61 = arith.xori %57, %60 : vector<288x32xi1>
    %62 = arith.andi %61, %55 : vector<288x32xi1>
    %63 = vector.broadcast %51 : i32 to vector<288x32xi32>
    %64 = arith.addi %53, %63 : vector<288x32xi32>
    %65 = arith.select %62, %64, %53 : vector<288x32xi1>, vector<288x32xi32>
    %c16_i32 = arith.constant 16 : i32
    %66 = vector.broadcast %c16_i32 : i32 to vector<288x32xi32>
    %67 = arith.cmpi slt, %65, %66 : vector<288x32xi32>
    %cst_42 = arith.constant 0.000000e+00 : f32
    %68 = vector.broadcast %cst_42 : f32 to vector<288x32xf32>
    %69 = arith.select %67, %48, %68 : vector<288x32xi1>, vector<288x32xf32>
    %cst_43 = arith.constant 0.000000e+00 : f32
    %70 = vector.broadcast %cst_43 : f32 to vector<24x32xf32>
    %c0_44 = arith.constant 0 : index
    %c0_45 = arith.constant 0 : index
    %71 = vector.load %arg7[%c0_44, %c0_45] : memref<336x32xf32, #tpu.memory_space<vmem>>, vector<24x32xf32>
    tpu.vector_store %arg7[%c0_44, %c0_45], %70 {strides = array<i32>} : memref<336x32xf32, #tpu.memory_space<vmem>>, vector<24x32xf32>,
    %cst_46 = arith.constant 0.000000e+00 : f32
    %72 = vector.broadcast %cst_46 : f32 to vector<24x32xf32>
    %c312 = arith.constant 312 : index
    %c0_47 = arith.constant 0 : index
    %73 = vector.load %arg7[%c312, %c0_47] : memref<336x32xf32, #tpu.memory_space<vmem>>, vector<24x32xf32>
    tpu.vector_store %arg7[%c312, %c0_47], %72 {strides = array<i32>} : memref<336x32xf32, #tpu.memory_space<vmem>>, vector<24x32xf32>,
    %c24 = arith.constant 24 : index
    %c0_48 = arith.constant 0 : index
    %74 = vector.load %arg7[%c24, %c0_48] : memref<336x32xf32, #tpu.memory_space<vmem>>, vector<288x32xf32>
    tpu.vector_store %arg7[%c24, %c0_48], %69 {strides = array<i32>} : memref<336x32xf32, #tpu.memory_space<vmem>>, vector<288x32xf32>,
    %c5 = arith.constant 5 : index
    %c0_49 = arith.constant 0 : index
    %75 = vector.load %arg7[%c5, %c0_49] : memref<336x32xf32, #tpu.memory_space<vmem>>, vector<288x32xf32>
    %c0_50 = arith.constant 0 : index
    %c0_51 = arith.constant 0 : index
    %76 = vector.load %arg3[%c0_50, %c0_51] : memref<288x32xf32, #tpu.memory_space<vmem>>, vector<32x32xf32>
    %cst_52 = arith.constant dense<0.000000e+00> : vector<288x32xf32>
    %77 = tpu.matmul %75, %76, %cst_52 {dimension_numbers = #tpu.dot_dimension_numbers<[1], [0], [0], [1], [0, 0, 1, 1], [], []>} : vector<288x32xf32>, vector<32x32xf32>, vector<288x32xf32> -> vector<288x32xf32>
    %c6 = arith.constant 6 : index
    %c0_53 = arith.constant 0 : index
    %78 = vector.load %arg7[%c6, %c0_53] : memref<336x32xf32, #tpu.memory_space<vmem>>, vector<288x32xf32>
    %c32_54 = arith.constant 32 : index
    %c0_55 = arith.constant 0 : index
    %79 = vector.load %arg3[%c32_54, %c0_55] : memref<288x32xf32, #tpu.memory_space<vmem>>, vector<32x32xf32>
    %cst_56 = arith.constant dense<0.000000e+00> : vector<288x32xf32>
    %80 = tpu.matmul %78, %79, %cst_56 {dimension_numbers = #tpu.dot_dimension_numbers<[1], [0], [0], [1], [0, 0, 1, 1], [], []>} : vector<288x32xf32>, vector<32x32xf32>, vector<288x32xf32> -> vector<288x32xf32>
    %81 = arith.addf %77, %80 : vector<288x32xf32>
    %c7 = arith.constant 7 : index
    %c0_57 = arith.constant 0 : index
    %82 = vector.load %arg7[%c7, %c0_57] : memref<336x32xf32, #tpu.memory_space<vmem>>, vector<288x32xf32>
    %c64_58 = arith.constant 64 : index
    %c0_59 = arith.constant 0 : index
    %83 = vector.load %arg3[%c64_58, %c0_59] : memref<288x32xf32, #tpu.memory_space<vmem>>, vector<32x32xf32>
    %cst_60 = arith.constant dense<0.000000e+00> : vector<288x32xf32>
    %84 = tpu.matmul %82, %83, %cst_60 {dimension_numbers = #tpu.dot_dimension_numbers<[1], [0], [0], [1], [0, 0, 1, 1], [], []>} : vector<288x32xf32>, vector<32x32xf32>, vector<288x32xf32> -> vector<288x32xf32>
    %85 = arith.addf %81, %84 : vector<288x32xf32>
    %c23 = arith.constant 23 : index
    %c0_61 = arith.constant 0 : index
    %86 = vector.load %arg7[%c23, %c0_61] : memref<336x32xf32, #tpu.memory_space<vmem>>, vector<288x32xf32>
    %c96_62 = arith.constant 96 : index
    %c0_63 = arith.constant 0 : index
    %87 = vector.load %arg3[%c96_62, %c0_63] : memref<288x32xf32, #tpu.memory_space<vmem>>, vector<32x32xf32>
    %cst_64 = arith.constant dense<0.000000e+00> : vector<288x32xf32>
    %88 = tpu.matmul %86, %87, %cst_64 {dimension_numbers = #tpu.dot_dimension_numbers<[1], [0], [0], [1], [0, 0, 1, 1], [], []>} : vector<288x32xf32>, vector<32x32xf32>, vector<288x32xf32> -> vector<288x32xf32>
    %89 = arith.addf %85, %88 : vector<288x32xf32>
    %c24_65 = arith.constant 24 : index
    %c0_66 = arith.constant 0 : index
    %90 = vector.load %arg7[%c24_65, %c0_66] : memref<336x32xf32, #tpu.memory_space<vmem>>, vector<288x32xf32>
    %c128_67 = arith.constant 128 : index
    %c0_68 = arith.constant 0 : index
    %91 = vector.load %arg3[%c128_67, %c0_68] : memref<288x32xf32, #tpu.memory_space<vmem>>, vector<32x32xf32>
    %cst_69 = arith.constant dense<0.000000e+00> : vector<288x32xf32>
    %92 = tpu.matmul %90, %91, %cst_69 {dimension_numbers = #tpu.dot_dimension_numbers<[1], [0], [0], [1], [0, 0, 1, 1], [], []>} : vector<288x32xf32>, vector<32x32xf32>, vector<288x32xf32> -> vector<288x32xf32>
    %93 = arith.addf %89, %92 : vector<288x32xf32>
    %c25 = arith.constant 25 : index
    %c0_70 = arith.constant 0 : index
    %94 = vector.load %arg7[%c25, %c0_70] : memref<336x32xf32, #tpu.memory_space<vmem>>, vector<288x32xf32>
    %c160_71 = arith.constant 160 : index
    %c0_72 = arith.constant 0 : index
    %95 = vector.load %arg3[%c160_71, %c0_72] : memref<288x32xf32, #tpu.memory_space<vmem>>, vector<32x32xf32>
    %cst_73 = arith.constant dense<0.000000e+00> : vector<288x32xf32>
    %96 = tpu.matmul %94, %95, %cst_73 {dimension_numbers = #tpu.dot_dimension_numbers<[1], [0], [0], [1], [0, 0, 1, 1], [], []>} : vector<288x32xf32>, vector<32x32xf32>, vector<288x32xf32> -> vector<288x32xf32>
    %97 = arith.addf %93, %96 : vector<288x32xf32>
    %c41 = arith.constant 41 : index
    %c0_74 = arith.constant 0 : index
    %98 = vector.load %arg7[%c41, %c0_74] : memref<336x32xf32, #tpu.memory_space<vmem>>, vector<288x32xf32>
    %c192_75 = arith.constant 192 : index
    %c0_76 = arith.constant 0 : index
    %99 = vector.load %arg3[%c192_75, %c0_76] : memref<288x32xf32, #tpu.memory_space<vmem>>, vector<32x32xf32>
    %cst_77 = arith.constant dense<0.000000e+00> : vector<288x32xf32>
    %100 = tpu.matmul %98, %99, %cst_77 {dimension_numbers = #tpu.dot_dimension_numbers<[1], [0], [0], [1], [0, 0, 1, 1], [], []>} : vector<288x32xf32>, vector<32x32xf32>, vector<288x32xf32> -> vector<288x32xf32>
    %101 = arith.addf %97, %100 : vector<288x32xf32>
    %c42 = arith.constant 42 : index
    %c0_78 = arith.constant 0 : index
    %102 = vector.load %arg7[%c42, %c0_78] : memref<336x32xf32, #tpu.memory_space<vmem>>, vector<288x32xf32>
    %c224_79 = arith.constant 224 : index
    %c0_80 = arith.constant 0 : index
    %103 = vector.load %arg3[%c224_79, %c0_80] : memref<288x32xf32, #tpu.memory_space<vmem>>, vector<32x32xf32>
    %cst_81 = arith.constant dense<0.000000e+00> : vector<288x32xf32>
    %104 = tpu.matmul %102, %103, %cst_81 {dimension_numbers = #tpu.dot_dimension_numbers<[1], [0], [0], [1], [0, 0, 1, 1], [], []>} : vector<288x32xf32>, vector<32x32xf32>, vector<288x32xf32> -> vector<288x32xf32>
    %105 = arith.addf %101, %104 : vector<288x32xf32>
    %c43 = arith.constant 43 : index
    %c0_82 = arith.constant 0 : index
    %106 = vector.load %arg7[%c43, %c0_82] : memref<336x32xf32, #tpu.memory_space<vmem>>, vector<288x32xf32>
    %c256_83 = arith.constant 256 : index
    %c0_84 = arith.constant 0 : index
    %107 = vector.load %arg3[%c256_83, %c0_84] : memref<288x32xf32, #tpu.memory_space<vmem>>, vector<32x32xf32>
    %cst_85 = arith.constant dense<0.000000e+00> : vector<288x32xf32>
    %108 = tpu.matmul %106, %107, %cst_85 {dimension_numbers = #tpu.dot_dimension_numbers<[1], [0], [0], [1], [0, 0, 1, 1], [], []>} : vector<288x32xf32>, vector<32x32xf32>, vector<288x32xf32> -> vector<288x32xf32>
    %109 = arith.addf %105, %108 : vector<288x32xf32>
    %c0_86 = arith.constant 0 : index
    %c0_87 = arith.constant 0 : index
    %110 = vector.load %arg5[%c0_86, %c0_87] : memref<1x32xf32, #tpu.memory_space<vmem>>, vector<1x32xf32>
    %111 = vector.broadcast %110 : vector<1x32xf32> to vector<288x32xf32>
    %112 = arith.addf %109, %111 : vector<288x32xf32>
    %c0_88 = arith.constant 0 : index
    %c19_89 = arith.constant 19 : index
    %c0_90 = arith.constant 0 : index
    %113 = vector.load %arg1[%c0_88, %c19_89, %c0_90] : memref<1x360x32xf32, #tpu.memory_space<vmem>>, vector<1x288x32xf32>
    %114 = vector.shape_cast %113 : vector<1x288x32xf32> to vector<288x32xf32>
    %115 = arith.addf %112, %114 : vector<288x32xf32>
    %c0_91 = arith.constant 0 : index
    %c0_92 = arith.constant 0 : index
    %c0_93 = arith.constant 0 : index
    %116 = vector.load %arg6[%c0_91, %c0_92, %c0_93] : memref<1x288x32xf32, #tpu.memory_space<vmem>>, vector<1x288x32xf32>
    %117 = vector.shape_cast %116 : vector<1x288x32xf32> to vector<288x32xf32>
    %118 = vector.shape_cast %115 : vector<288x32xf32> to vector<1x288x32xf32>
    tpu.vector_store %arg6[%c0_91, %c0_92, %c0_93], %118 {strides = array<i32>} : memref<1x288x32xf32, #tpu.memory_space<vmem>>, vector<1x288x32xf32>,
    return
  }
  func.func @transform_0(%arg0: i32) -> (i32, i32, i32) {
    %c0_i32 = arith.constant 0 : i32
    %c0_i32_0 = arith.constant 0 : i32
    %c0_i32_1 = arith.constant 0 : i32
    return %arg0, %c0_i32, %c0_i32_0 : i32, i32, i32
  }
  func.func @transform_1(%arg0: i32) -> (i32, i32) {
    %c0_i32 = arith.constant 0 : i32
    %c0_i32_0 = arith.constant 0 : i32
    %c0_i32_1 = arith.constant 0 : i32
    return %c0_i32, %c0_i32_0 : i32, i32
  }
  func.func @transform_2(%arg0: i32) -> (i32, i32) {
    %c0_i32 = arith.constant 0 : i32
    %c0_i32_0 = arith.constant 0 : i32
    %c0_i32_1 = arith.constant 0 : i32
    return %c0_i32, %c0_i32_0 : i32, i32
  }
  func.func @transform_3(%arg0: i32) -> (i32, i32) {
    %c0_i32 = arith.constant 0 : i32
    %c0_i32_0 = arith.constant 0 : i32
    %c0_i32_1 = arith.constant 0 : i32
    return %c0_i32, %c0_i32_0 : i32, i32
  }
  func.func @transform_4(%arg0: i32) -> (i32, i32) {
    %c0_i32 = arith.constant 0 : i32
    %c0_i32_0 = arith.constant 0 : i32
    %c0_i32_1 = arith.constant 0 : i32
    return %c0_i32, %c0_i32_0 : i32, i32
  }
  func.func @transform_5(%arg0: i32) -> (i32, i32, i32) {
    %c0_i32 = arith.constant 0 : i32
    %c0_i32_0 = arith.constant 0 : i32
    %c0_i32_1 = arith.constant 0 : i32
    return %arg0, %c0_i32, %c0_i32_0 : i32, i32, i32
  }
}

</mosaic_0001>

<llo_original>
// kernel: resblock_forward.1
$region0: #{resblock_forward.1}
  #allocation0 [shape = 'u32[]', space=smem, size = 0x4, offset = 0x4, fixed_abs, tag = 'smem constant byte address 0x4 - core index']
  #allocation1 [shape = 'u32[144,128]{1,0:T(1,128)}', space=vmem, size = 0x12000, scoped, tag = 'internal scratch']
  #allocation2 [shape = 'f32[336,32]{1,0:T(8,128)}', space=vmem, size = 0x2a000, scoped, tag = 'scratch operand']
  %s0 = inlined_call_operand.vmem [shape: f32[2,360,32], index: 0, kind: input, shape index: {}]
  %s1 = inlined_call_operand.vmem [shape: f32[288,32], index: 1, kind: input, shape index: {}]
  %s2 = inlined_call_operand.vmem [shape: f32[288,32], index: 2, kind: input, shape index: {}]
  %s3 = inlined_call_operand.vmem [shape: f32[1,32], index: 3, kind: input, shape index: {}]
  %s4 = inlined_call_operand.vmem [shape: f32[1,32], index: 4, kind: input, shape index: {}]
  %s5 = inlined_call_operand.vmem [shape: f32[2,288,32], index: 5, kind: output, shape index: {}]
  %s6 = sld [smem:[#allocation0]]
  $region53: #{resblock_forward.1} parent=0
    _
  %s8 = ssub.s32 1, %s6
  %s9 = scalar_select 0, %s8, %s6
  loop: start=0, step=1, limit=4
  $region2: #{resblock_forward.1} parent=0 // loop_pre_header
    _
  $region3: #{resblock_forward.1} parent=0 // loop_header
    %s11 = sphi 0, %s15
    %p12 = scmp.ge.s32.totalorder %s11, 4
    %s21 = sphi 0, %s23
    %s24 = sphi 0, %s21
    %s25 = sphi 0, %s24
    %s41 = sphi 0, %s25
    %s45 = sphi 0, %s45
    %s47 = sphi 0, %s45
    %s48 = sphi 0, %s47
    %s62 = sphi 0, %s48
    %s66 = sphi 0, %s66
    %s68 = sphi 0, %s66
    %s69 = sphi 0, %s68
    %s83 = sphi 0, %s69
    %s87 = sphi 0, %s87
    %s89 = sphi 0, %s87
    %s90 = sphi 0, %s89
    %s104 = sphi 0, %s90
    %s108 = sphi 0, %s108
    %s110 = sphi 0, %s108
    %s111 = sphi 0, %s110
    %s125 = sphi 0, %s111
    %s131 = sphi 0, %s133
    %s134 = sphi 0, %s131
    %s135 = sphi 0, %s134
    %s151 = sphi 0, %s135
  $region4: #{resblock_forward.1} parent=0 // loop_header_branch
    %14 = sbr.rel (%p12) target = $region8
  $region5: #{resblock_forward.1} parent=0 // loop_body
    %s16 = ssub.s32 %s11, 1
    %s17 = ssub.s32 %s11, 2
    %s18 = sadd.s32 %s11, 1
    %s19 = ssub.s32 %s11, %s18
    %p20 = scmp.eq.s32.totalorder %s19, 0
    %s22 = sadd.s32 %s21, 1
    %s23 = scalar_select %p20, %s21, %s22
    %p26 = pneg %p20
    %p27 = scmp.eq.s32.totalorder %s11, 1
    %p28 = por %p26, %p27
    %p29 = scmp.ne.s32.totalorder %s21, %s24
    %p30 = scmp.eq.s32.totalorder %s11, 0
    %p31 = por %p29, %p30
    %p32 = scmp.ne.s32.totalorder %s21, %s24
    %p33 = scmp.eq.s32.totalorder %s16, 1
    %p34 = por %p32, %p33
    %p35 = scmp.ne.s32.totalorder %s24, %s25
    %p36 = scmp.eq.s32.totalorder %s16, 0
    %p37 = por %p35, %p36
    %p38 = scmp.ne.s32.totalorder %s24, %s25
    %p39 = scmp.eq.s32.totalorder %s17, 1
    %p40 = por %p38, %p39
    %p42 = scmp.ne.s32.totalorder %s25, %s41
    %p43 = scmp.eq.s32.totalorder %s17, 0
    %p44 = por %p42, %p43
    %s46 = sadd.s32 %s45, 1
    %p49 = scmp.eq.s32.totalorder %s11, 1
    %p50 = scmp.ne.s32.totalorder %s45, %s47
    %p51 = scmp.eq.s32.totalorder %s11, 0
    %p52 = por %p50, %p51
    %p53 = scmp.ne.s32.totalorder %s45, %s47
    %p54 = scmp.eq.s32.totalorder %s16, 1
    %p55 = por %p53, %p54
    %p56 = scmp.ne.s32.totalorder %s47, %s48
    %p57 = scmp.eq.s32.totalorder %s16, 0
    %p58 = por %p56, %p57
    %p59 = scmp.ne.s32.totalorder %s47, %s48
    %p60 = scmp.eq.s32.totalorder %s17, 1
    %p61 = por %p59, %p60
    %p63 = scmp.ne.s32.totalorder %s48, %s62
    %p64 = scmp.eq.s32.totalorder %s17, 0
    %p65 = por %p63, %p64
    %s67 = sadd.s32 %s66, 1
    %p70 = scmp.eq.s32.totalorder %s11, 1
    %p71 = scmp.ne.s32.totalorder %s66, %s68
    %p72 = scmp.eq.s32.totalorder %s11, 0
    %p73 = por %p71, %p72
    %p74 = scmp.ne.s32.totalorder %s66, %s68
    %p75 = scmp.eq.s32.totalorder %s16, 1
    %p76 = por %p74, %p75
    %p77 = scmp.ne.s32.totalorder %s68, %s69
    %p78 = scmp.eq.s32.totalorder %s16, 0
    %p79 = por %p77, %p78
    %p80 = scmp.ne.s32.totalorder %s68, %s69
    %p81 = scmp.eq.s32.totalorder %s17, 1
    %p82 = por %p80, %p81
    %p84 = scmp.ne.s32.totalorder %s69, %s83
    %p85 = scmp.eq.s32.totalorder %s17, 0
    %p86 = por %p84, %p85
    %s88 = sadd.s32 %s87, 1
    %p91 = scmp.eq.s32.totalorder %s11, 1
    %p92 = scmp.ne.s32.totalorder %s87, %s89
    %p93 = scmp.eq.s32.totalorder %s11, 0
    %p94 = por %p92, %p93
    %p95 = scmp.ne.s32.totalorder %s87, %s89
    %p96 = scmp.eq.s32.totalorder %s16, 1
    %p97 = por %p95, %p96
    %p98 = scmp.ne.s32.totalorder %s89, %s90
    %p99 = scmp.eq.s32.totalorder %s16, 0
    %p100 = por %p98, %p99
    %p101 = scmp.ne.s32.totalorder %s89, %s90
    %p102 = scmp.eq.s32.totalorder %s17, 1
    %p103 = por %p101, %p102
    %p105 = scmp.ne.s32.totalorder %s90, %s104
    %p106 = scmp.eq.s32.totalorder %s17, 0
    %p107 = por %p105, %p106
    %s109 = sadd.s32 %s108, 1
    %p112 = scmp.eq.s32.totalorder %s11, 1
    %p113 = scmp.ne.s32.totalorder %s108, %s110
    %p114 = scmp.eq.s32.totalorder %s11, 0
    %p115 = por %p113, %p114
    %p116 = scmp.ne.s32.totalorder %s108, %s110
    %p117 = scmp.eq.s32.totalorder %s16, 1
    %p118 = por %p116, %p117
    %p119 = scmp.ne.s32.totalorder %s110, %s111
    %p120 = scmp.eq.s32.totalorder %s16, 0
    %p121 = por %p119, %p120
    %p122 = scmp.ne.s32.totalorder %s110, %s111
    %p123 = scmp.eq.s32.totalorder %s17, 1
    %p124 = por %p122, %p123
    %p126 = scmp.ne.s32.totalorder %s111, %s125
    %p127 = scmp.eq.s32.totalorder %s17, 0
    %p128 = por %p126, %p127
    %s129 = ssub.s32 %s11, %s18
    %p130 = scmp.eq.s32.totalorder %s129, 0
    %s132 = sadd.s32 %s131, 1
    %s133 = scalar_select %p130, %s131, %s132
    %p136 = pneg %p130
    %p137 = scmp.eq.s32.totalorder %s11, 1
    %p138 = por %p136, %p137
    %p139 = scmp.ne.s32.totalorder %s131, %s134
    %p140 = scmp.eq.s32.totalorder %s11, 0
    %p141 = por %p139, %p140
    %p142 = scmp.ne.s32.totalorder %s131, %s134
    %p143 = scmp.eq.s32.totalorder %s16, 1
    %p144 = por %p142, %p143
    %p145 = scmp.ne.s32.totalorder %s134, %s135
    %p146 = scmp.eq.s32.totalorder %s16, 0
    %p147 = por %p145, %p146
    %p148 = scmp.ne.s32.totalorder %s134, %s135
    %p149 = scmp.eq.s32.totalorder %s17, 1
    %p150 = por %p148, %p149
    %p152 = scmp.ne.s32.totalorder %s135, %s151
    %p153 = scmp.eq.s32.totalorder %s17, 0
    %p154 = por %p152, %p153
    %p155 = scmp.le.s32.totalorder 1, %s11
    %p156 = scmp.lt.s32.totalorder %s11, 3
    %p157 = pnand %p155, %p156
    %p158 = pneg %p157
    // Predicated region
    $region9: #{resblock_forward.1} parent=5 // pred_check
      _
    $region10: #{resblock_forward.1} parent=5 // pred_check_branch
      %160 = sbr.rel (%p157) target = $region12
    $region11: #{resblock_forward.1} parent=5 // pred_region
      %s161 = ssub.s32 %s11, 1
      // Predicated region
      $region13: #{resblock_forward.1} parent=11 // pred_check
        %p162 = pneg %p58
      $region14: #{resblock_forward.1} parent=11 // pred_check_branch
        %164 = sbr.rel (%p162) target = $region16
      $region15: #{resblock_forward.1} parent=11 // pred_region
        _
      $region16: #{resblock_forward.1} parent=11 // pred_fallthru
        _
      // Predicated region
      $region17: #{resblock_forward.1} parent=11 // pred_check
        %p165 = pneg %p79
      $region18: #{resblock_forward.1} parent=11 // pred_check_branch
        %167 = sbr.rel (%p165) target = $region20
      $region19: #{resblock_forward.1} parent=11 // pred_region
        _
      $region20: #{resblock_forward.1} parent=11 // pred_fallthru
        _
      // Predicated region
      $region21: #{resblock_forward.1} parent=11 // pred_check
        %p168 = pneg %p100
      $region22: #{resblock_forward.1} parent=11 // pred_check_branch
        %170 = sbr.rel (%p168) target = $region24
      $region23: #{resblock_forward.1} parent=11 // pred_region
        _
      $region24: #{resblock_forward.1} parent=11 // pred_fallthru
        _
      // Predicated region
      $region25: #{resblock_forward.1} parent=11 // pred_check
        %p171 = pneg %p121
      $region26: #{resblock_forward.1} parent=11 // pred_check_branch
        %173 = sbr.rel (%p171) target = $region28
      $region27: #{resblock_forward.1} parent=11 // pred_region
        _
      $region28: #{resblock_forward.1} parent=11 // pred_fallthru
        _
    $region12: #{resblock_forward.1} parent=5 // pred_fallthru
      _
    %p174 = scmp.lt.s32.totalorder %s11, 2
    // Predicated region
    $region29: #{resblock_forward.1} parent=5 // pred_check
      %p175 = pneg %p174
    $region30: #{resblock_forward.1} parent=5 // pred_check_branch
      %177 = sbr.rel (%p175) target = $region32
    $region31: #{resblock_forward.1} parent=5 // pred_region
      // Predicated region
      $region33: #{resblock_forward.1} parent=31 // pred_check
        %p178 = pneg %p31
      $region34: #{resblock_forward.1} parent=31 // pred_check_branch
        %180 = sbr.rel (%p178) target = $region36
      $region35: #{resblock_forward.1} parent=31 // pred_region
        %p181 = scmp.lt.s32.totalorder %s11, 1
        %s182 = scalar_select %p181, %s11, 1
        %s183 = smul.addr %s182, 45
        %s184 = smul.addr %s183, 8
        %s185 = scalar_lea.vmem %s0, %s184
      $region36: #{resblock_forward.1} parent=31 // pred_fallthru
        _
    $region32: #{resblock_forward.1} parent=5 // pred_fallthru
      _
    %p186 = scmp.le.s32.totalorder 1, %s11
    %p187 = scmp.lt.s32.totalorder %s11, 3
    %p188 = pnand %p186, %p187
    %p189 = pneg %p188
    // Predicated region
    $region37: #{resblock_forward.1} parent=5 // pred_check
      _
    $region38: #{resblock_forward.1} parent=5 // pred_check_branch
      %191 = sbr.rel (%p188) target = $region40
    $region39: #{resblock_forward.1} parent=5 // pred_region
      %s192 = ssub.s32 %s11, 1
      %p193 = scmp.lt.s32.totalorder %s16, 1
      %s194 = scalar_select %p193, %s16, 1
      %s195 = smul.addr %s194, 45
      %s196 = smul.addr %s195, 8
      %s197 = scalar_lea.vmem %s0, %s196
      %p198 = pneg %p37
      %p199 = pneg %p34
      %p200 = pneg %p58
      %p201 = pneg %p55
      %p202 = pneg %p79
      %p203 = pneg %p76
      %p204 = pneg %p100
      %p205 = pneg %p97
      %p206 = pneg %p121
      %p207 = pneg %p118
      %p208 = pneg %p147
      %p209 = pneg %p144
      %p210 = scmp.lt.s32.totalorder %s16, 1
      %s211 = scalar_select %p210, %s16, 1
      %s212 = smul.addr %s211, 36
      %s213 = smul.addr %s212, 8
      %s214 = scalar_lea.vmem %s5, %s213
      %p215 = scmp.lt.s32.totalorder %s16, 1
      %s216 = scalar_select %p215, %s16, 1
      %s217 = smul.addr %s216, 45
      %s218 = smul.addr %s217, 8
      %s219 = scalar_lea.vmem %s0, %s218
      %p220 = scmp.lt.s32.totalorder %s16, 1
      %s221 = scalar_select %p220, %s16, 1
      %s222 = smul.addr %s221, 36
      %s223 = smul.addr %s222, 8
      %s224 = scalar_lea.vmem %s5, %s223
      %v225 = vld [vmem:[%s219] sm:$0xff]
      %v226 = vld [vmem:[%s219 + $0x8] sm:$0xff]
      %v227 = vld [vmem:[%s219 + $0x10] sm:$0xff]
      %v228 = vld [vmem:[%s219 + $0x18] sm:$0xff]
      %v229 = vld [vmem:[%s219 + $0x20] sm:$0xff]
      %v230 = vld [vmem:[%s219 + $0x28] sm:$0xff]
      %v231 = vld [vmem:[%s219 + $0x30] sm:$0xff]
      %v232 = vld [vmem:[%s219 + $0x38] sm:$0xff]
      %v233 = vld [vmem:[%s219 + $0x40] sm:$0xff]
      %v234 = vld [vmem:[%s219 + $0x48] sm:$0xff]
      %v235 = vld [vmem:[%s219 + $0x50] sm:$0xff]
      %v236 = vld [vmem:[%s219 + $0x58] sm:$0xff]
      %v237 = vld [vmem:[%s219 + $0x60] sm:$0xff]
      %v238 = vld [vmem:[%s219 + $0x68] sm:$0xff]
      %v239 = vld [vmem:[%s219 + $0x70] sm:$0xff]
      %v240 = vld [vmem:[%s219 + $0x78] sm:$0xff]
      %v241 = vld [vmem:[%s219 + $0x80] sm:$0xff]
      %v242 = vld [vmem:[%s219 + $0x88] sm:$0xff]
      %v243 = vld [vmem:[%s219 + $0x90] sm:$0xff]
      %v244 = vld [vmem:[%s219 + $0x98] sm:$0xff]
      %v245 = vld [vmem:[%s219 + $0xa0] sm:$0xff]
      %v246 = vld [vmem:[%s219 + $0xa8] sm:$0xff]
      %v247 = vld [vmem:[%s219 + $0xb0] sm:$0xff]
      %v248 = vld [vmem:[%s219 + $0xb8] sm:$0xff]
      %v249 = vld [vmem:[%s219 + $0xc0] sm:$0xff]
      %v250 = vld [vmem:[%s219 + $0xc8] sm:$0xff]
      %v251 = vld [vmem:[%s219 + $0xd0] sm:$0xff]
      %v252 = vld [vmem:[%s219 + $0xd8] sm:$0xff]
      %v253 = vld [vmem:[%s219 + $0xe0] sm:$0xff]
      %v254 = vld [vmem:[%s219 + $0xe8] sm:$0xff]
      %v255 = vld [vmem:[%s219 + $0xf0] sm:$0xff]
      %v256 = vld [vmem:[%s219 + $0xf8] sm:$0xff]
      %v257 = vld [vmem:[%s219 + $0x100] sm:$0xff]
      %v258 = vld [vmem:[%s219 + $0x108] sm:$0xff]
      %v259 = vld [vmem:[%s219 + $0x110] sm:$0xff]
      %v260 = vld [vmem:[%s219 + $0x118] sm:$0xff]
      %v261 = vld [vmem:[%s1] sm:$0xff]
      %v262 = vld [vmem:[%s1 + $0x8] sm:$0xff]
      %v263 = vld [vmem:[%s1 + $0x10] sm:$0xff]
      %v264 = vld [vmem:[%s1 + $0x18] sm:$0xff]
      %v265 = vld [vmem:[%s219 + $0x1] sm:$0xff]
      %v266 = vld [vmem:[%s219 + $0x9] sm:$0xff]
      %v267 = vld [vmem:[%s219 + $0x11] sm:$0xff]
      %v268 = vld [vmem:[%s219 + $0x19] sm:$0xff]
      %v269 = vld [vmem:[%s219 + $0x21] sm:$0xff]
      %v270 = vld [vmem:[%s219 + $0x29] sm:$0xff]
      %v271 = vld [vmem:[%s219 + $0x31] sm:$0xff]
      %v272 = vld [vmem:[%s219 + $0x39] sm:$0xff]
      %v273 = vld [vmem:[%s219 + $0x41] sm:$0xff]
      %v274 = vld [vmem:[%s219 + $0x49] sm:$0xff]
      %v275 = vld [vmem:[%s219 + $0x51] sm:$0xff]
      %v276 = vld [vmem:[%s219 + $0x59] sm:$0xff]
      %v277 = vld [vmem:[%s219 + $0x61] sm:$0xff]
      %v278 = vld [vmem:[%s219 + $0x69] sm:$0xff]
      %v279 = vld [vmem:[%s219 + $0x71] sm:$0xff]
      %v280 = vld [vmem:[%s219 + $0x79] sm:$0xff]
      %v281 = vld [vmem:[%s219 + $0x81] sm:$0xff]
      %v282 = vld [vmem:[%s219 + $0x89] sm:$0xff]
      %v283 = vld [vmem:[%s219 + $0x91] sm:$0xff]
      %v284 = vld [vmem:[%s219 + $0x99] sm:$0xff]
      %v285 = vld [vmem:[%s219 + $0xa1] sm:$0xff]
      %v286 = vld [vmem:[%s219 + $0xa9] sm:$0xff]
      %v287 = vld [vmem:[%s219 + $0xb1] sm:$0xff]
      %v288 = vld [vmem:[%s219 + $0xb9] sm:$0xff]
      %v289 = vld [vmem:[%s219 + $0xc1] sm:$0xff]
      %v290 = vld [vmem:[%s219 + $0xc9] sm:$0xff]
      %v291 = vld [vmem:[%s219 + $0xd1] sm:$0xff]
      %v292 = vld [vmem:[%s219 + $0xd9] sm:$0xff]
      %v293 = vld [vmem:[%s219 + $0xe1] sm:$0xff]
      %v294 = vld [vmem:[%s219 + $0xe9] sm:$0xff]
      %v295 = vld [vmem:[%s219 + $0xf1] sm:$0xff]
      %v296 = vld [vmem:[%s219 + $0xf9] sm:$0xff]
      %v297 = vld [vmem:[%s219 + $0x101] sm:$0xff]
      %v298 = vld [vmem:[%s219 + $0x109] sm:$0xff]
      %v299 = vld [vmem:[%s219 + $0x111] sm:$0xff]
      %v300 = vld [vmem:[%s219 + $0x119] sm:$0xff]
      %v301 = vld [vmem:[%s1 + $0x20] sm:$0xff]
      %v302 = vld [vmem:[%s1 + $0x28] sm:$0xff]
      %v303 = vld [vmem:[%s1 + $0x30] sm:$0xff]
      %v304 = vld [vmem:[%s1 + $0x38] sm:$0xff]
      %vm305 = vcmask 261120
      %v307 = vsel %vm305, %v265, 0
      %v310 = vsel %vm305, %v266, 0
      %v313 = vsel %vm305, %v267, 0
      %v316 = vsel %vm305, %v268, 0
      %v319 = vsel %vm305, %v269, 0
      %v322 = vsel %vm305, %v270, 0
      %v325 = vsel %vm305, %v271, 0
      %v328 = vsel %vm305, %v272, 0
      %v331 = vsel %vm305, %v273, 0
      %v334 = vsel %vm305, %v274, 0
      %v337 = vsel %vm305, %v275, 0
      %v340 = vsel %vm305, %v276, 0
      %v343 = vsel %vm305, %v277, 0
      %v346 = vsel %vm305, %v278, 0
      %v349 = vsel %vm305, %v279, 0
      %v352 = vsel %vm305, %v280, 0
      %v355 = vsel %vm305, %v281, 0
      %v358 = vsel %vm305, %v282, 0
      %v361 = vsel %vm305, %v283, 0
      %v364 = vsel %vm305, %v284, 0
      %v367 = vsel %vm305, %v285, 0
      %v370 = vsel %vm305, %v286, 0
      %v373 = vsel %vm305, %v287, 0
      %v376 = vsel %vm305, %v288, 0
      %v379 = vsel %vm305, %v289, 0
      %v382 = vsel %vm305, %v290, 0
      %v385 = vsel %vm305, %v291, 0
      %v388 = vsel %vm305, %v292, 0
      %v391 = vsel %vm305, %v293, 0
      %v394 = vsel %vm305, %v294, 0
      %v397 = vsel %vm305, %v295, 0
      %v400 = vsel %vm305, %v296, 0
      %v403 = vsel %vm305, %v297, 0
      %v406 = vsel %vm305, %v298, 0
      %v409 = vsel %vm305, %v299, 0
      %v412 = vsel %vm305, %v300, 0
      %414 = vmatprep.subr.mxu0 0.0
      %415 = vmatpush1.msra.mxu0 %v301
      %416 = vmatprep.subr.mxu0 0.0
      %417 = vmatpush1.msra.mxu0 %v302
      %418 = vmatprep.subr.mxu0 0.0
      %419 = vmatpush1.msra.mxu0 %v303
      %420 = vmatprep.subr.mxu0 0.0
      %421 = vmatpush1.msra.mxu0 %v304
      %422 = vmatprep.subr.mxu0 0.0
      %423 = vmatpush1.msra.mxu0 0.0
      %424 = vmatprep.subr.mxu0 0.0
      %425 = vmatpush1.msra.mxu0 0.0
      %426 = vmatprep.subr.mxu0 0.0
      %427 = vmatpush1.msra.mxu0 0.0
      %428 = vmatprep.subr.mxu0 0.0
      %429 = vmatpush1.msra.mxu0 0.0
      %430 = vmatprep.subr.mxu0 0.0
      %431 = vmatpush1.msra.mxu0 0.0
      %432 = vmatprep.subr.mxu0 0.0
      %433 = vmatpush1.msra.mxu0 0.0
      %434 = vmatprep.subr.mxu0 0.0
      %435 = vmatpush1.msra.mxu0 0.0
      %436 = vmatprep.subr.mxu0 0.0
      %437 = vmatpush1.msra.mxu0 0.0
      %438 = vmatprep.subr.mxu0 0.0
      %439 = vmatpush1.msra.mxu0 0.0
      %440 = vmatprep.subr.mxu0 0.0
      %441 = vmatpush1.msra.mxu0 0.0
      %442 = vmatprep.subr.mxu0 0.0
      %443 = vmatpush1.msra.mxu0 0.0
      %444 = vmatprep.subr.mxu0 0.0
      %445 = vmatpush1.msra.mxu0 0.0
      %446 = vmatprep.subr.mxu0 0.0
      %447 = vmatpush1.msra.mxu0 0.0
      %448 = vmatprep.subr.mxu0 0.0
      %449 = vmatpush1.msra.mxu0 0.0
      %450 = vmatprep.subr.mxu0 0.0
      %451 = vmatpush1.msra.mxu0 0.0
      %452 = vmatprep.subr.mxu0 0.0
      %453 = vmatpush1.msra.mxu0 0.0
      %454 = vmatprep.subr.mxu0 0.0
      %455 = vmatpush1.msra.mxu0 0.0
      %456 = vmatprep.subr.mxu0 0.0
      %457 = vmatpush1.msra.mxu0 0.0
      %458 = vmatprep.subr.mxu0 0.0
      %459 = vmatpush1.msra.mxu0 0.0
      %460 = vmatprep.subr.mxu0 0.0
      %461 = vmatpush1.msra.mxu0 0.0
      %462 = vmatprep.subr.mxu0 0.0
      %463 = vmatpush1.msra.mxu0 0.0
      %464 = vmatprep.subr.mxu0 0.0
      %465 = vmatpush1.msra.mxu0 0.0
      %466 = vmatprep.subr.mxu0 0.0
      %467 = vmatpush1.msra.mxu0 0.0
      %468 = vmatprep.subr.mxu0 0.0
      %469 = vmatpush1.msra.mxu0 0.0
      %470 = vmatprep.subr.mxu0 0.0
      %471 = vmatpush1.msra.mxu0 0.0
      %472 = vmatprep.subr.mxu0 0.0
      %473 = vmatpush1.msra.mxu0 0.0
      %474 = vmatprep.subr.mxu0 0.0
      %475 = vmatpush1.msra.mxu0 0.0
      %476 = vmatprep.subr.mxu0 0.0
      %477 = vmatpush1.msra.mxu0 0.0
      %478 = vmatprep.mubr.f32.mxu0 0.0
      %479 = vmatmul.mubr.f32.gmra.mrb[0].mxu0 %v307
      %v480 = vpop.f32.mrb[0].mxu0
      %v481 = vadd.f32 0.0, %v480
      %v482 = vpop.f32.mrb[0].mxu0
      %483 = vmatprep.mubr.f32.mxu0 0.0
      %484 = vmatmul.mubr.f32.gmra.mrb[0].mxu0 %v310
      %v485 = vpop.f32.mrb[0].mxu0
      %v486 = vadd.f32 0.0, %v485
      %v487 = vpop.f32.mrb[0].mxu0
      %488 = vmatprep.mubr.f32.mxu0 0.0
      %489 = vmatmul.mubr.f32.gmra.mrb[0].mxu0 %v313
      %v490 = vpop.f32.mrb[0].mxu0
      %v491 = vadd.f32 0.0, %v490
      %v492 = vpop.f32.mrb[0].mxu0
      %493 = vmatprep.mubr.f32.mxu0 0.0
      %494 = vmatmul.mubr.f32.gmra.mrb[0].mxu0 %v316
      %v495 = vpop.f32.mrb[0].mxu0
      %v496 = vadd.f32 0.0, %v495
      %v497 = vpop.f32.mrb[0].mxu0
      %498 = vmatprep.mubr.f32.mxu0 0.0
      %499 = vmatmul.mubr.f32.gmra.mrb[0].mxu0 %v319
      %v500 = vpop.f32.mrb[0].mxu0
      %v501 = vadd.f32 0.0, %v500
      %v502 = vpop.f32.mrb[0].mxu0
      %503 = vmatprep.mubr.f32.mxu0 0.0
      %504 = vmatmul.mubr.f32.gmra.mrb[0].mxu0 %v322
      %v505 = vpop.f32.mrb[0].mxu0
      %v506 = vadd.f32 0.0, %v505
      %v507 = vpop.f32.mrb[0].mxu0
      %508 = vmatprep.mubr.f32.mxu0 0.0
      %509 = vmatmul.mubr.f32.gmra.mrb[0].mxu0 %v325
      %v510 = vpop.f32.mrb[0].mxu0
      %v511 = vadd.f32 0.0, %v510
      %v512 = vpop.f32.mrb[0].mxu0
      %513 = vmatprep.mubr.f32.mxu0 0.0
      %514 = vmatmul.mubr.f32.gmra.mrb[0].mxu0 %v328
      %v515 = vpop.f32.mrb[0].mxu0
      %v516 = vadd.f32 0.0, %v515
      %v517 = vpop.f32.mrb[0].mxu0
      %518 = vmatprep.mubr.f32.mxu0 0.0
      %519 = vmatmul.mubr.f32.gmra.mrb[0].mxu0 %v331
      %v520 = vpop.f32.mrb[0].mxu0
      %v521 = vadd.f32 0.0, %v520
      %v522 = vpop.f32.mrb[0].mxu0
      %523 = vmatprep.mubr.f32.mxu0 0.0
      %524 = vmatmul.mubr.f32.gmra.mrb[0].mxu0 %v334
      %v525 = vpop.f32.mrb[0].mxu0
      %v526 = vadd.f32 0.0, %v525
      %v527 = vpop.f32.mrb[0].mxu0
      %528 = vmatprep.mubr.f32.mxu0 0.0
      %529 = vmatmul.mubr.f32.gmra.mrb[0].mxu0 %v337
      %v530 = vpop.f32.mrb[0].mxu0
      %v531 = vadd.f32 0.0, %v530
      %v532 = vpop.f32.mrb[0].mxu0
      %533 = vmatprep.mubr.f32.mxu0 0.0
      %534 = vmatmul.mubr.f32.gmra.mrb[0].mxu0 %v340
      %v535 = vpop.f32.mrb[0].mxu0
      %v536 = vadd.f32 0.0, %v535
      %v537 = vpop.f32.mrb[0].mxu0
      %538 = vmatprep.mubr.f32.mxu0 0.0
      %539 = vmatmul.mubr.f32.gmra.mrb[0].mxu0 %v343
      %v540 = vpop.f32.mrb[0].mxu0
      %v541 = vadd.f32 0.0, %v540
      %v542 = vpop.f32.mrb[0].mxu0
      %543 = vmatprep.mubr.f32.mxu0 0.0
      %544 = vmatmul.mubr.f32.gmra.mrb[0].mxu0 %v346
      %v545 = vpop.f32.mrb[0].mxu0
      %v546 = vadd.f32 0.0, %v545
      %v547 = vpop.f32.mrb[0].mxu0
      %548 = vmatprep.mubr.f32.mxu0 0.0
      %549 = vmatmul.mubr.f32.gmra.mrb[0].mxu0 %v349
      %v550 = vpop.f32.mrb[0].mxu0
      %v551 = vadd.f32 0.0, %v550
      %v552 = vpop.f32.mrb[0].mxu0
      %553 = vmatprep.mubr.f32.mxu0 0.0
      %554 = vmatmul.mubr.f32.gmra.mrb[0].mxu0 %v352
      %v555 = vpop.f32.mrb[0].mxu0
      %v556 = vadd.f32 0.0, %v555
      %v557 = vpop.f32.mrb[0].mxu0
      %558 = vmatprep.mubr.f32.mxu0 0.0
      %559 = vmatmul.mubr.f32.gmra.mrb[0].mxu0 %v355
      %v560 = vpop.f32.mrb[0].mxu0
      %v561 = vadd.f32 0.0, %v560
      %v562 = vpop.f32.mrb[0].mxu0
      %563 = vmatprep.mubr.f32.mxu0 0.0
      %564 = vmatmul.mubr.f32.gmra.mrb[0].mxu0 %v358
      %v565 = vpop.f32.mrb[0].mxu0
      %v566 = vadd.f32 0.0, %v565
      %v567 = vpop.f32.mrb[0].mxu0
      %568 = vmatprep.mubr.f32.mxu0 0.0
      %569 = vmatmul.mubr.f32.gmra.mrb[0].mxu0 %v361
      %v570 = vpop.f32.mrb[0].mxu0
      %v571 = vadd.f32 0.0, %v570
      %v572 = vpop.f32.mrb[0].mxu0
      %573 = vmatprep.mubr.f32.mxu0 0.0
      %574 = vmatmul.mubr.f32.gmra.mrb[0].mxu0 %v364
      %v575 = vpop.f32.mrb[0].mxu0
      %v576 = vadd.f32 0.0, %v575
      %v577 = vpop.f32.mrb[0].mxu0
      %578 = vmatprep.mubr.f32.mxu0 0.0
      %579 = vmatmul.mubr.f32.gmra.mrb[0].mxu0 %v367
      %v580 = vpop.f32.mrb[0].mxu0
      %v581 = vadd.f32 0.0, %v580
      %v582 = vpop.f32.mrb[0].mxu0
      %583 = vmatprep.mubr.f32.mxu0 0.0
      %584 = vmatmul.mubr.f32.gmra.mrb[0].mxu0 %v370
      %v585 = vpop.f32.mrb[0].mxu0
      %v586 = vadd.f32 0.0, %v585
      %v587 = vpop.f32.mrb[0].mxu0
      %588 = vmatprep.mubr.f32.mxu0 0.0
      %589 = vmatmul.mubr.f32.gmra.mrb[0].mxu0 %v373
      %v590 = vpop.f32.mrb[0].mxu0
      %v591 = vadd.f32 0.0, %v590
      %v592 = vpop.f32.mrb[0].mxu0
      %593 = vmatprep.mubr.f32.mxu0 0.0
      %594 = vmatmul.mubr.f32.gmra.mrb[0].mxu0 %v376
      %v595 = vpop.f32.mrb[0].mxu0
      %v596 = vadd.f32 0.0, %v595
      %v597 = vpop.f32.mrb[0].mxu0
      %598 = vmatprep.mubr.f32.mxu0 0.0
      %599 = vmatmul.mubr.f32.gmra.mrb[0].mxu0 %v379
      %v600 = vpop.f32.mrb[0].mxu0
      %v601 = vadd.f32 0.0, %v600
      %v602 = vpop.f32.mrb[0].mxu0
      %603 = vmatprep.mubr.f32.mxu0 0.0
      %604 = vmatmul.mubr.f32.gmra.mrb[0].mxu0 %v382
      %v605 = vpop.f32.mrb[0].mxu0
      %v606 = vadd.f32 0.0, %v605
      %v607 = vpop.f32.mrb[0].mxu0
      %608 = vmatprep.mubr.f32.mxu0 0.0
      %609 = vmatmul.mubr.f32.gmra.mrb[0].mxu0 %v385
      %v610 = vpop.f32.mrb[0].mxu0
      %v611 = vadd.f32 0.0, %v610
      %v612 = vpop.f32.mrb[0].mxu0
      %613 = vmatprep.mubr.f32.mxu0 0.0
      %614 = vmatmul.mubr.f32.gmra.mrb[0].mxu0 %v388
      %v615 = vpop.f32.mrb[0].mxu0
      %v616 = vadd.f32 0.0, %v615
      %v617 = vpop.f32.mrb[0].mxu0
      %618 = vmatprep.mubr.f32.mxu0 0.0
      %619 = vmatmul.mubr.f32.gmra.mrb[0].mxu0 %v391
      %v620 = vpop.f32.mrb[0].mxu0
      %v621 = vadd.f32 0.0, %v620
      %v622 = vpop.f32.mrb[0].mxu0
      %623 = vmatprep.mubr.f32.mxu0 0.0
      %624 = vmatmul.mubr.f32.gmra.mrb[0].mxu0 %v394
      %v625 = vpop.f32.mrb[0].mxu0
      %v626 = vadd.f32 0.0, %v625
      %v627 = vpop.f32.mrb[0].mxu0
      %628 = vmatprep.mubr.f32.mxu0 0.0
      %629 = vmatmul.mubr.f32.gmra.mrb[0].mxu0 %v397
      %v630 = vpop.f32.mrb[0].mxu0
      %v631 = vadd.f32 0.0, %v630
      %v632 = vpop.f32.mrb[0].mxu0
      %633 = vmatprep.mubr.f32.mxu0 0.0
      %634 = vmatmul.mubr.f32.gmra.mrb[0].mxu0 %v400
      %v635 = vpop.f32.mrb[0].mxu0
      %v636 = vadd.f32 0.0, %v635
      %v637 = vpop.f32.mrb[0].mxu0
      %638 = vmatprep.mubr.f32.mxu0 0.0
      %639 = vmatmul.mubr.f32.gmra.mrb[0].mxu0 %v403
      %v640 = vpop.f32.mrb[0].mxu0
      %v641 = vadd.f32 0.0, %v640
      %v642 = vpop.f32.mrb[0].mxu0
      %643 = vmatprep.mubr.f32.mxu0 0.0
      %644 = vmatmul.mubr.f32.gmra.mrb[0].mxu0 %v406
      %v645 = vpop.f32.mrb[0].mxu0
      %v646 = vadd.f32 0.0, %v645
      %v647 = vpop.f32.mrb[0].mxu0
      %648 = vmatprep.mubr.f32.mxu0 0.0
      %649 = vmatmul.mubr.f32.gmra.mrb[0].mxu0 %v409
      %v650 = vpop.f32.mrb[0].mxu0
      %v651 = vadd.f32 0.0, %v650
      %v652 = vpop.f32.mrb[0].mxu0
      %653 = vmatprep.mubr.f32.mxu0 0.0
      %654 = vmatmul.mubr.f32.gmra.mrb[0].mxu0 %v412
      %v655 = vpop.f32.mrb[0].mxu0
      %v656 = vadd.f32 0.0, %v655
      %v657 = vpop.f32.mrb[0].mxu0
      %658 = vdwg.mxu0
      %v660 = vsel %vm305, %v225, 0
      %v663 = vsel %vm305, %v226, 0
      %v666 = vsel %vm305, %v227, 0
      %v669 = vsel %vm305, %v228, 0
      %v672 = vsel %vm305, %v229, 0
      %v675 = vsel %vm305, %v230, 0
      %v678 = vsel %vm305, %v231, 0
      %v681 = vsel %vm305, %v232, 0
      %v684 = vsel %vm305, %v233, 0
      %v687 = vsel %vm305, %v234, 0
      %v690 = vsel %vm305, %v235, 0
      %v693 = vsel %vm305, %v236, 0
      %v696 = vsel %vm305, %v237, 0
      %v699 = vsel %vm305, %v238, 0
      %v702 = vsel %vm305, %v239, 0
      %v705 = vsel %vm305, %v240, 0
      %v708 = vsel %vm305, %v241, 0
      %v711 = vsel %vm305, %v242, 0
      %v714 = vsel %vm305, %v243, 0
      %v717 = vsel %vm305, %v244, 0
      %v720 = vsel %vm305, %v245, 0
      %v723 = vsel %vm305, %v246, 0
      %v726 = vsel %vm305, %v247, 0
      %v729 = vsel %vm305, %v248, 0
      %v732 = vsel %vm305, %v249, 0
      %v735 = vsel %vm305, %v250, 0
      %v738 = vsel %vm305, %v251, 0
      %v741 = vsel %vm305, %v252, 0
      %v744 = vsel %vm305, %v253, 0
      %v747 = vsel %vm305, %v254, 0
      %v750 = vsel %vm305, %v255, 0
      %v753 = vsel %vm305, %v256, 0
      %v756 = vsel %vm305, %v257, 0
      %v759 = vsel %vm305, %v258, 0
      %v762 = vsel %vm305, %v259, 0
      %v765 = vsel %vm305, %v260, 0
      %767 = vmatprep.subr.mxu0 0.0
      %768 = vmatpush1.msra.mxu0 %v261
      %769 = vmatprep.subr.mxu0 0.0
      %770 = vmatpush1.msra.mxu0 %v262
      %771 = vmatprep.subr.mxu0 0.0
      %772 = vmatpush1.msra.mxu0 %v263
      %773 = vmatprep.subr.mxu0 0.0
      %774 = vmatpush1.msra.mxu0 %v264
      %775 = vmatprep.subr.mxu0 0.0
      %776 = vmatpush1.msra.mxu0 0.0
      %777 = vmatprep.subr.mxu0 0.0
      %778 = vmatpush1.msra.mxu0 0.0
      %779 = vmatprep.subr.mxu0 0.0
      %780 = vmatpush1.msra.mxu0 0.0
      %781 = vmatprep.subr.mxu0 0.0
      %782 = vmatpush1.msra.mxu0 0.0
      %783 = vmatprep.subr.mxu0 0.0
      %784 = vmatpush1.msra.mxu0 0.0
      %785 = vmatprep.subr.mxu0 0.0
      %786 = vmatpush1.msra.mxu0 0.0
      %787 = vmatprep.subr.mxu0 0.0
      %788 = vmatpush1.msra.mxu0 0.0
      %789 = vmatprep.subr.mxu0 0.0
      %790 = vmatpush1.msra.mxu0 0.0
      %791 = vmatprep.subr.mxu0 0.0
      %792 = vmatpush1.msra.mxu0 0.0
      %793 = vmatprep.subr.mxu0 0.0
      %794 = vmatpush1.msra.mxu0 0.0
      %795 = vmatprep.subr.mxu0 0.0
      %796 = vmatpush1.msra.mxu0 0.0
      %797 = vmatprep.subr.mxu0 0.0
      %798 = vmatpush1.msra.mxu0 0.0
      %799 = vmatprep.subr.mxu0 0.0
      %800 = vmatpush1.msra.mxu0 0.0
      %801 = vmatprep.subr.mxu0 0.0
      %802 = vmatpush1.msra.mxu0 0.0
      %803 = vmatprep.subr.mxu0 0.0
      %804 = vmatpush1.msra.mxu0 0.0
      %805 = vmatprep.subr.mxu0 0.0
      %806 = vmatpush1.msra.mxu0 0.0
      %807 = vmatprep.subr.mxu0 0.0
      %808 = vmatpush1.msra.mxu0 0.0
      %809 = vmatprep.subr.mxu0 0.0
      %810 = vmatpush1.msra.mxu0 0.0
      %811 = vmatprep.subr.mxu0 0.0
      %812 = vmatpush1.msra.mxu0 0.0
      %813 = vmatprep.subr.mxu0 0.0
      %814 = vmatpush1.msra.mxu0 0.0
      %815 = vmatprep.subr.mxu0 0.0
      %816 = vmatpush1.msra.mxu0 0.0
      %817 = vmatprep.subr.mxu0 0.0
      %818 = vmatpush1.msra.mxu0 0.0
      %819 = vmatprep.subr.mxu0 0.0
      %820 = vmatpush1.msra.mxu0 0.0
      %821 = vmatprep.subr.mxu0 0.0
      %822 = vmatpush1.msra.mxu0 0.0
      %823 = vmatprep.subr.mxu0 0.0
      %824 = vmatpush1.msra.mxu0 0.0
      %825 = vmatprep.subr.mxu0 0.0
      %826 = vmatpush1.msra.mxu0 0.0
      %827 = vmatprep.subr.mxu0 0.0
      %828 = vmatpush1.msra.mxu0 0.0
      %829 = vmatprep.subr.mxu0 0.0
      %830 = vmatpush1.msra.mxu0 0.0
      %831 = vmatprep.mubr.f32.mxu0 0.0
      %832 = vmatmul.mubr.f32.gmra.mrb[0].mxu0 %v660
      %v833 = vpop.f32.mrb[0].mxu0
      %v834 = vadd.f32 %v481, %v833
      %v835 = vpop.f32.mrb[0].mxu0
      %836 = vmatprep.mubr.f32.mxu0 0.0
      %837 = vmatmul.mubr.f32.gmra.mrb[0].mxu0 %v663
      %v838 = vpop.f32.mrb[0].mxu0
      %v839 = vadd.f32 %v486, %v838
      %v840 = vpop.f32.mrb[0].mxu0
      %841 = vmatprep.mubr.f32.mxu0 0.0
      %842 = vmatmul.mubr.f32.gmra.mrb[0].mxu0 %v666
      %v843 = vpop.f32.mrb[0].mxu0
      %v844 = vadd.f32 %v491, %v843
      %v845 = vpop.f32.mrb[0].mxu0
      %846 = vmatprep.mubr.f32.mxu0 0.0
      %847 = vmatmul.mubr.f32.gmra.mrb[0].mxu0 %v669
      %v848 = vpop.f32.mrb[0].mxu0
      %v849 = vadd.f32 %v496, %v848
      %v850 = vpop.f32.mrb[0].mxu0
      %851 = vmatprep.mubr.f32.mxu0 0.0
      %852 = vmatmul.mubr.f32.gmra.mrb[0].mxu0 %v672
      %v853 = vpop.f32.mrb[0].mxu0
      %v854 = vadd.f32 %v501, %v853
      %v855 = vpop.f32.mrb[0].mxu0
      %856 = vmatprep.mubr.f32.mxu0 0.0
      %857 = vmatmul.mubr.f32.gmra.mrb[0].mxu0 %v675
      %v858 = vpop.f32.mrb[0].mxu0
      %v859 = vadd.f32 %v506, %v858
      %v860 = vpop.f32.mrb[0].mxu0
      %861 = vmatprep.mubr.f32.mxu0 0.0
      %862 = vmatmul.mubr.f32.gmra.mrb[0].mxu0 %v678
      %v863 = vpop.f32.mrb[0].mxu0
      %v864 = vadd.f32 %v511, %v863
      %v865 = vpop.f32.mrb[0].mxu0
      %866 = vmatprep.mubr.f32.mxu0 0.0
      %867 = vmatmul.mubr.f32.gmra.mrb[0].mxu0 %v681
      %v868 = vpop.f32.mrb[0].mxu0
      %v869 = vadd.f32 %v516, %v868
      %v870 = vpop.f32.mrb[0].mxu0
      %871 = vmatprep.mubr.f32.mxu0 0.0
      %872 = vmatmul.mubr.f32.gmra.mrb[0].mxu0 %v684
      %v873 = vpop.f32.mrb[0].mxu0
      %v874 = vadd.f32 %v521, %v873
      %v875 = vpop.f32.mrb[0].mxu0
      %876 = vmatprep.mubr.f32.mxu0 0.0
      %877 = vmatmul.mubr.f32.gmra.mrb[0].mxu0 %v687
      %v878 = vpop.f32.mrb[0].mxu0
      %v879 = vadd.f32 %v526, %v878
      %v880 = vpop.f32.mrb[0].mxu0
      %881 = vmatprep.mubr.f32.mxu0 0.0
      %882 = vmatmul.mubr.f32.gmra.mrb[0].mxu0 %v690
      %v883 = vpop.f32.mrb[0].mxu0
      %v884 = vadd.f32 %v531, %v883
      %v885 = vpop.f32.mrb[0].mxu0
      %886 = vmatprep.mubr.f32.mxu0 0.0
      %887 = vmatmul.mubr.f32.gmra.mrb[0].mxu0 %v693
      %v888 = vpop.f32.mrb[0].mxu0
      %v889 = vadd.f32 %v536, %v888
      %v890 = vpop.f32.mrb[0].mxu0
      %891 = vmatprep.mubr.f32.mxu0 0.0
      %892 = vmatmul.mubr.f32.gmra.mrb[0].mxu0 %v696
      %v893 = vpop.f32.mrb[0].mxu0
      %v894 = vadd.f32 %v541, %v893
      %v895 = vpop.f32.mrb[0].mxu0
      %896 = vmatprep.mubr.f32.mxu0 0.0
      %897 = vmatmul.mubr.f32.gmra.mrb[0].mxu0 %v699
      %v898 = vpop.f32.mrb[0].mxu0
      %v899 = vadd.f32 %v546, %v898
      %v900 = vpop.f32.mrb[0].mxu0
      %901 = vmatprep.mubr.f32.mxu0 0.0
      %902 = vmatmul.mubr.f32.gmra.mrb[0].mxu0 %v702
      %v903 = vpop.f32.mrb[0].mxu0
      %v904 = vadd.f32 %v551, %v903
      %v905 = vpop.f32.mrb[0].mxu0
      %906 = vmatprep.mubr.f32.mxu0 0.0
      %907 = vmatmul.mubr.f32.gmra.mrb[0].mxu0 %v705
      %v908 = vpop.f32.mrb[0].mxu0
      %v909 = vadd.f32 %v556, %v908
      %v910 = vpop.f32.mrb[0].mxu0
      %911 = vmatprep.mubr.f32.mxu0 0.0
      %912 = vmatmul.mubr.f32.gmra.mrb[0].mxu0 %v708
      %v913 = vpop.f32.mrb[0].mxu0
      %v914 = vadd.f32 %v561, %v913
      %v915 = vpop.f32.mrb[0].mxu0
      %916 = vmatprep.mubr.f32.mxu0 0.0
      %917 = vmatmul.mubr.f32.gmra.mrb[0].mxu0 %v711
      %v918 = vpop.f32.mrb[0].mxu0
      %v919 = vadd.f32 %v566, %v918
      %v920 = vpop.f32.mrb[0].mxu0
      %921 = vmatprep.mubr.f32.mxu0 0.0
      %922 = vmatmul.mubr.f32.gmra.mrb[0].mxu0 %v714
      %v923 = vpop.f32.mrb[0].mxu0
      %v924 = vadd.f32 %v571, %v923
      %v925 = vpop.f32.mrb[0].mxu0
      %926 = vmatprep.mubr.f32.mxu0 0.0
      %927 = vmatmul.mubr.f32.gmra.mrb[0].mxu0 %v717
      %v928 = vpop.f32.mrb[0].mxu0
      %v929 = vadd.f32 %v576, %v928
      %v930 = vpop.f32.mrb[0].mxu0
      %931 = vmatprep.mubr.f32.mxu0 0.0
      %932 = vmatmul.mubr.f32.gmra.mrb[0].mxu0 %v720
      %v933 = vpop.f32.mrb[0].mxu0
      %v934 = vadd.f32 %v581, %v933
      %v935 = vpop.f32.mrb[0].mxu0
      %936 = vmatprep.mubr.f32.mxu0 0.0
      %937 = vmatmul.mubr.f32.gmra.mrb[0].mxu0 %v723
      %v938 = vpop.f32.mrb[0].mxu0
      %v939 = vadd.f32 %v586, %v938
      %v940 = vpop.f32.mrb[0].mxu0
      %941 = vmatprep.mubr.f32.mxu0 0.0
      %942 = vmatmul.mubr.f32.gmra.mrb[0].mxu0 %v726
      %v943 = vpop.f32.mrb[0].mxu0
      %v944 = vadd.f32 %v591, %v943
      %v945 = vpop.f32.mrb[0].mxu0
      %946 = vmatprep.mubr.f32.mxu0 0.0
      %947 = vmatmul.mubr.f32.gmra.mrb[0].mxu0 %v729
      %v948 = vpop.f32.mrb[0].mxu0
      %v949 = vadd.f32 %v596, %v948
      %v950 = vpop.f32.mrb[0].mxu0
      %951 = vmatprep.mubr.f32.mxu0 0.0
      %952 = vmatmul.mubr.f32.gmra.mrb[0].mxu0 %v732
      %v953 = vpop.f32.mrb[0].mxu0
      %v954 = vadd.f32 %v601, %v953
      %v955 = vpop.f32.mrb[0].mxu0
      %956 = vmatprep.mubr.f32.mxu0 0.0
      %957 = vmatmul.mubr.f32.gmra.mrb[0].mxu0 %v735
      %v958 = vpop.f32.mrb[0].mxu0
      %v959 = vadd.f32 %v606, %v958
      %v960 = vpop.f32.mrb[0].mxu0
      %961 = vmatprep.mubr.f32.mxu0 0.0
      %962 = vmatmul.mubr.f32.gmra.mrb[0].mxu0 %v738
      %v963 = vpop.f32.mrb[0].mxu0
      %v964 = vadd.f32 %v611, %v963
      %v965 = vpop.f32.mrb[0].mxu0
      %966 = vmatprep.mubr.f32.mxu0 0.0
      %967 = vmatmul.mubr.f32.gmra.mrb[0].mxu0 %v741
      %v968 = vpop.f32.mrb[0].mxu0
      %v969 = vadd.f32 %v616, %v968
      %v970 = vpop.f32.mrb[0].mxu0
      %971 = vmatprep.mubr.f32.mxu0 0.0
      %972 = vmatmul.mubr.f32.gmra.mrb[0].mxu0 %v744
      %v973 = vpop.f32.mrb[0].mxu0
      %v974 = vadd.f32 %v621, %v973
      %v975 = vpop.f32.mrb[0].mxu0
      %976 = vmatprep.mubr.f32.mxu0 0.0
      %977 = vmatmul.mubr.f32.gmra.mrb[0].mxu0 %v747
      %v978 = vpop.f32.mrb[0].mxu0
      %v979 = vadd.f32 %v626, %v978
      %v980 = vpop.f32.mrb[0].mxu0
      %981 = vmatprep.mubr.f32.mxu0 0.0
      %982 = vmatmul.mubr.f32.gmra.mrb[0].mxu0 %v750
      %v983 = vpop.f32.mrb[0].mxu0
      %v984 = vadd.f32 %v631, %v983
      %v985 = vpop.f32.mrb[0].mxu0
      %986 = vmatprep.mubr.f32.mxu0 0.0
      %987 = vmatmul.mubr.f32.gmra.mrb[0].mxu0 %v753
      %v988 = vpop.f32.mrb[0].mxu0
      %v989 = vadd.f32 %v636, %v988
      %v990 = vpop.f32.mrb[0].mxu0
      %991 = vmatprep.mubr.f32.mxu0 0.0
      %992 = vmatmul.mubr.f32.gmra.mrb[0].mxu0 %v756
      %v993 = vpop.f32.mrb[0].mxu0
      %v994 = vadd.f32 %v641, %v993
      %v995 = vpop.f32.mrb[0].mxu0
      %996 = vmatprep.mubr.f32.mxu0 0.0
      %997 = vmatmul.mubr.f32.gmra.mrb[0].mxu0 %v759
      %v998 = vpop.f32.mrb[0].mxu0
      %v999 = vadd.f32 %v646, %v998
      %v1000 = vpop.f32.mrb[0].mxu0
      %1001 = vmatprep.mubr.f32.mxu0 0.0
      %1002 = vmatmul.mubr.f32.gmra.mrb[0].mxu0 %v762
      %v1003 = vpop.f32.mrb[0].mxu0
      %v1004 = vadd.f32 %v651, %v1003
      %v1005 = vpop.f32.mrb[0].mxu0
      %1006 = vmatprep.mubr.f32.mxu0 0.0
      %1007 = vmatmul.mubr.f32.gmra.mrb[0].mxu0 %v765
      %v1008 = vpop.f32.mrb[0].mxu0
      %v1009 = vadd.f32 %v656, %v1008
      %v1010 = vpop.f32.mrb[0].mxu0
      %1011 = vdwg.mxu0
      %v1012 = vld [vmem:[%s219 + $0x2] sm:$0xff]
      %v1013 = vld [vmem:[%s219 + $0xa] sm:$0xff]
      %v1014 = vld [vmem:[%s219 + $0x12] sm:$0xff]
      %v1015 = vld [vmem:[%s219 + $0x1a] sm:$0xff]
      %v1016 = vld [vmem:[%s219 + $0x22] sm:$0xff]
      %v1017 = vld [vmem:[%s219 + $0x2a] sm:$0xff]
      %v1018 = vld [vmem:[%s219 + $0x32] sm:$0xff]
      %v1019 = vld [vmem:[%s219 + $0x3a] sm:$0xff]
      %v1020 = vld [vmem:[%s219 + $0x42] sm:$0xff]
      %v1021 = vld [vmem:[%s219 + $0x4a] sm:$0xff]
      %v1022 = vld [vmem:[%s219 + $0x52] sm:$0xff]
      %v1023 = vld [vmem:[%s219 + $0x5a] sm:$0xff]
      %v1024 = vld [vmem:[%s219 + $0x62] sm:$0xff]
      %v1025 = vld [vmem:[%s219 + $0x6a] sm:$0xff]
      %v1026 = vld [vmem:[%s219 + $0x72] sm:$0xff]
      %v1027 = vld [vmem:[%s219 + $0x7a] sm:$0xff]
      %v1028 = vld [vmem:[%s219 + $0x82] sm:$0xff]
      %v1029 = vld [vmem:[%s219 + $0x8a] sm:$0xff]
      %v1030 = vld [vmem:[%s219 + $0x92] sm:$0xff]
      %v1031 = vld [vmem:[%s219 + $0x9a] sm:$0xff]
      %v1032 = vld [vmem:[%s219 + $0xa2] sm:$0xff]
      %v1033 = vld [vmem:[%s219 + $0xaa] sm:$0xff]
      %v1034 = vld [vmem:[%s219 + $0xb2] sm:$0xff]
      %v1035 = vld [vmem:[%s219 + $0xba] sm:$0xff]
      %v1036 = vld [vmem:[%s219 + $0xc2] sm:$0xff]
      %v1037 = vld [vmem:[%s219 + $0xca] sm:$0xff]
      %v1038 = vld [vmem:[%s219 + $0xd2] sm:$0xff]
      %v1039 = vld [vmem:[%s219 + $0xda] sm:$0xff]
      %v1040 = vld [vmem:[%s219 + $0xe2] sm:$0xff]
      %v1041 = vld [vmem:[%s219 + $0xea] sm:$0xff]
      %v1042 = vld [vmem:[%s219 + $0xf2] sm:$0xff]
      %v1043 = vld [vmem:[%s219 + $0xfa] sm:$0xff]
      %v1044 = vld [vmem:[%s219 + $0x102] sm:$0xff]
      %v1045 = vld [vmem:[%s219 + $0x10a] sm:$0xff]
      %v1046 = vld [vmem:[%s219 + $0x112] sm:$0xff]
      %v1047 = vld [vmem:[%s219 + $0x11a] sm:$0xff]
      %v1048 = vld [vmem:[%s1 + $0x40] sm:$0xff]
      %v1049 = vld [vmem:[%s1 + $0x48] sm:$0xff]
      %v1050 = vld [vmem:[%s1 + $0x50] sm:$0xff]
      %v1051 = vld [vmem:[%s1 + $0x58] sm:$0xff]
      %v1053 = vsel %vm305, %v1012, 0
      %v1056 = vsel %vm305, %v1013, 0
      %v1059 = vsel %vm305, %v1014, 0
      %v1062 = vsel %vm305, %v1015, 0
      %v1065 = vsel %vm305, %v1016, 0
      %v1068 = vsel %vm305, %v1017, 0
      %v1071 = vsel %vm305, %v1018, 0
      %v1074 = vsel %vm305, %v1019, 0
      %v1077 = vsel %vm305, %v1020, 0
      %v1080 = vsel %vm305, %v1021, 0
      %v1083 = vsel %vm305, %v1022, 0
      %v1086 = vsel %vm305, %v1023, 0
      %v1089 = vsel %vm305, %v1024, 0
      %v1092 = vsel %vm305, %v1025, 0
      %v1095 = vsel %vm305, %v1026, 0
      %v1098 = vsel %vm305, %v1027, 0
      %v1101 = vsel %vm305, %v1028, 0
      %v1104 = vsel %vm305, %v1029, 0
      %v1107 = vsel %vm305, %v1030, 0
      %v1110 = vsel %vm305, %v1031, 0
      %v1113 = vsel %vm305, %v1032, 0
      %v1116 = vsel %vm305, %v1033, 0
      %v1119 = vsel %vm305, %v1034, 0
      %v1122 = vsel %vm305, %v1035, 0
      %v1125 = vsel %vm305, %v1036, 0
      %v1128 = vsel %vm305, %v1037, 0
      %v1131 = vsel %vm305, %v1038, 0
      %v1134 = vsel %vm305, %v1039, 0
      %v1137 = vsel %vm305, %v1040, 0
      %v1140 = vsel %vm305, %v1041, 0
      %v1143 = vsel %vm305, %v1042, 0
      %v1146 = vsel %vm305, %v1043, 0
      %v1149 = vsel %vm305, %v1044, 0
      %v1152 = vsel %vm305, %v1045, 0
      %v1155 = vsel %vm305, %v1046, 0
      %v1158 = vsel %vm305, %v1047, 0
      %1160 = vmatprep.subr.mxu0 0.0
      %1161 = vmatpush1.msra.mxu0 %v1048
      %1162 = vmatprep.subr.mxu0 0.0
      %1163 = vmatpush1.msra.mxu0 %v1049
      %1164 = vmatprep.subr.mxu0 0.0
      %1165 = vmatpush1.msra.mxu0 %v1050
      %1166 = vmatprep.subr.mxu0 0.0
      %1167 = vmatpush1.msra.mxu0 %v1051
      %1168 = vmatprep.subr.mxu0 0.0
      %1169 = vmatpush1.msra.mxu0 0.0
      %1170 = vmatprep.subr.mxu0 0.0
      %1171 = vmatpush1.msra.mxu0 0.0
      %1172 = vmatprep.subr.mxu0 0.0
      %1173 = vmatpush1.msra.mxu0 0.0
      %1174 = vmatprep.subr.mxu0 0.0
      %1175 = vmatpush1.msra.mxu0 0.0
      %1176 = vmatprep.subr.mxu0 0.0
      %1177 = vmatpush1.msra.mxu0 0.0
      %1178 = vmatprep.subr.mxu0 0.0
      %1179 = vmatpush1.msra.mxu0 0.0
      %1180 = vmatprep.subr.mxu0 0.0
      %1181 = vmatpush1.msra.mxu0 0.0
      %1182 = vmatprep.subr.mxu0 0.0
      %1183 = vmatpush1.msra.mxu0 0.0
      %1184 = vmatprep.subr.mxu0 0.0
      %1185 = vmatpush1.msra.mxu0 0.0
      %1186 = vmatprep.subr.mxu0 0.0
      %1187 = vmatpush1.msra.mxu0 0.0
      %1188 = vmatprep.subr.mxu0 0.0
      %1189 = vmatpush1.msra.mxu0 0.0
      %1190 = vmatprep.subr.mxu0 0.0
      %1191 = vmatpush1.msra.mxu0 0.0
      %1192 = vmatprep.subr.mxu0 0.0
      %1193 = vmatpush1.msra.mxu0 0.0
      %1194 = vmatprep.subr.mxu0 0.0
      %1195 = vmatpush1.msra.mxu0 0.0
      %1196 = vmatprep.subr.mxu0 0.0
      %1197 = vmatpush1.msra.mxu0 0.0
      %1198 = vmatprep.subr.mxu0 0.0
      %1199 = vmatpush1.msra.mxu0 0.0
      %1200 = vmatprep.subr.mxu0 0.0
      %1201 = vmatpush1.msra.mxu0 0.0
      %1202 = vmatprep.subr.mxu0 0.0
      %1203 = vmatpush1.msra.mxu0 0.0
      %1204 = vmatprep.subr.mxu0 0.0
      %1205 = vmatpush1.msra.mxu0 0.0
      %1206 = vmatprep.subr.mxu0 0.0
      %1207 = vmatpush1.msra.mxu0 0.0
      %1208 = vmatprep.subr.mxu0 0.0
      %1209 = vmatpush1.msra.mxu0 0.0
      %1210 = vmatprep.subr.mxu0 0.0
      %1211 = vmatpush1.msra.mxu0 0.0
      %1212 = vmatprep.subr.mxu0 0.0
      %1213 = vmatpush1.msra.mxu0 0.0
      %1214 = vmatprep.subr.mxu0 0.0
      %1215 = vmatpush1.msra.mxu0 0.0
      %1216 = vmatprep.subr.mxu0 0.0
      %1217 = vmatpush1.msra.mxu0 0.0
      %1218 = vmatprep.subr.mxu0 0.0
      %1219 = vmatpush1.msra.mxu0 0.0
      %1220 = vmatprep.subr.mxu0 0.0
      %1221 = vmatpush1.msra.mxu0 0.0
      %1222 = vmatprep.subr.mxu0 0.0
      %1223 = vmatpush1.msra.mxu0 0.0
      %1224 = vmatprep.mubr.f32.mxu0 0.0
      %1225 = vmatmul.mubr.f32.gmra.mrb[0].mxu0 %v1053
      %v1226 = vpop.f32.mrb[0].mxu0
      %v1227 = vadd.f32 0.0, %v1226
      %v1228 = vpop.f32.mrb[0].mxu0
      %1229 = vmatprep.mubr.f32.mxu0 0.0
      %1230 = vmatmul.mubr.f32.gmra.mrb[0].mxu0 %v1056
      %v1231 = vpop.f32.mrb[0].mxu0
      %v1232 = vadd.f32 0.0, %v1231
      %v1233 = vpop.f32.mrb[0].mxu0
      %1234 = vmatprep.mubr.f32.mxu0 0.0
      %1235 = vmatmul.mubr.f32.gmra.mrb[0].mxu0 %v1059
      %v1236 = vpop.f32.mrb[0].mxu0
      %v1237 = vadd.f32 0.0, %v1236
      %v1238 = vpop.f32.mrb[0].mxu0
      %1239 = vmatprep.mubr.f32.mxu0 0.0
      %1240 = vmatmul.mubr.f32.gmra.mrb[0].mxu0 %v1062
      %v1241 = vpop.f32.mrb[0].mxu0
      %v1242 = vadd.f32 0.0, %v1241
      %v1243 = vpop.f32.mrb[0].mxu0
      %1244 = vmatprep.mubr.f32.mxu0 0.0
      %1245 = vmatmul.mubr.f32.gmra.mrb[0].mxu0 %v1065
      %v1246 = vpop.f32.mrb[0].mxu0
      %v1247 = vadd.f32 0.0, %v1246
      %v1248 = vpop.f32.mrb[0].mxu0
      %1249 = vmatprep.mubr.f32.mxu0 0.0
      %1250 = vmatmul.mubr.f32.gmra.mrb[0].mxu0 %v1068
      %v1251 = vpop.f32.mrb[0].mxu0
      %v1252 = vadd.f32 0.0, %v1251
      %v1253 = vpop.f32.mrb[0].mxu0
      %1254 = vmatprep.mubr.f32.mxu0 0.0
      %1255 = vmatmul.mubr.f32.gmra.mrb[0].mxu0 %v1071
      %v1256 = vpop.f32.mrb[0].mxu0
      %v1257 = vadd.f32 0.0, %v1256
      %v1258 = vpop.f32.mrb[0].mxu0
      %1259 = vmatprep.mubr.f32.mxu0 0.0
      %1260 = vmatmul.mubr.f32.gmra.mrb[0].mxu0 %v1074
      %v1261 = vpop.f32.mrb[0].mxu0
      %v1262 = vadd.f32 0.0, %v1261
      %v1263 = vpop.f32.mrb[0].mxu0
      %1264 = vmatprep.mubr.f32.mxu0 0.0
      %1265 = vmatmul.mubr.f32.gmra.mrb[0].mxu0 %v1077
      %v1266 = vpop.f32.mrb[0].mxu0
      %v1267 = vadd.f32 0.0, %v1266
      %v1268 = vpop.f32.mrb[0].mxu0
      %1269 = vmatprep.mubr.f32.mxu0 0.0
      %1270 = vmatmul.mubr.f32.gmra.mrb[0].mxu0 %v1080
      %v1271 = vpop.f32.mrb[0].mxu0
      %v1272 = vadd.f32 0.0, %v1271
      %v1273 = vpop.f32.mrb[0].mxu0
      %1274 = vmatprep.mubr.f32.mxu0 0.0
      %1275 = vmatmul.mubr.f32.gmra.mrb[0].mxu0 %v1083
      %v1276 = vpop.f32.mrb[0].mxu0
      %v1277 = vadd.f32 0.0, %v1276
      %v1278 = vpop.f32.mrb[0].mxu0
      %1279 = vmatprep.mubr.f32.mxu0 0.0
      %1280 = vmatmul.mubr.f32.gmra.mrb[0].mxu0 %v1086
      %v1281 = vpop.f32.mrb[0].mxu0
      %v1282 = vadd.f32 0.0, %v1281
      %v1283 = vpop.f32.mrb[0].mxu0
      %1284 = vmatprep.mubr.f32.mxu0 0.0
      %1285 = vmatmul.mubr.f32.gmra.mrb[0].mxu0 %v1089
      %v1286 = vpop.f32.mrb[0].mxu0
      %v1287 = vadd.f32 0.0, %v1286
      %v1288 = vpop.f32.mrb[0].mxu0
      %1289 = vmatprep.mubr.f32.mxu0 0.0
      %1290 = vmatmul.mubr.f32.gmra.mrb[0].mxu0 %v1092
      %v1291 = vpop.f32.mrb[0].mxu0
      %v1292 = vadd.f32 0.0, %v1291
      %v1293 = vpop.f32.mrb[0].mxu0
      %1294 = vmatprep.mubr.f32.mxu0 0.0
      %1295 = vmatmul.mubr.f32.gmra.mrb[0].mxu0 %v1095
      %v1296 = vpop.f32.mrb[0].mxu0
      %v1297 = vadd.f32 0.0, %v1296
      %v1298 = vpop.f32.mrb[0].mxu0
      %1299 = vmatprep.mubr.f32.mxu0 0.0
      %1300 = vmatmul.mubr.f32.gmra.mrb[0].mxu0 %v1098
      %v1301 = vpop.f32.mrb[0].mxu0
      %v1302 = vadd.f32 0.0, %v1301
      %v1303 = vpop.f32.mrb[0].mxu0
      %1304 = vmatprep.mubr.f32.mxu0 0.0
      %1305 = vmatmul.mubr.f32.gmra.mrb[0].mxu0 %v1101
      %v1306 = vpop.f32.mrb[0].mxu0
      %v1307 = vadd.f32 0.0, %v1306
      %v1308 = vpop.f32.mrb[0].mxu0
      %1309 = vmatprep.mubr.f32.mxu0 0.0
      %1310 = vmatmul.mubr.f32.gmra.mrb[0].mxu0 %v1104
      %v1311 = vpop.f32.mrb[0].mxu0
      %v1312 = vadd.f32 0.0, %v1311
      %v1313 = vpop.f32.mrb[0].mxu0
      %1314 = vmatprep.mubr.f32.mxu0 0.0
      %1315 = vmatmul.mubr.f32.gmra.mrb[0].mxu0 %v1107
      %v1316 = vpop.f32.mrb[0].mxu0
      %v1317 = vadd.f32 0.0, %v1316
      %v1318 = vpop.f32.mrb[0].mxu0
      %1319 = vmatprep.mubr.f32.mxu0 0.0
      %1320 = vmatmul.mubr.f32.gmra.mrb[0].mxu0 %v1110
      %v1321 = vpop.f32.mrb[0].mxu0
      %v1322 = vadd.f32 0.0, %v1321
      %v1323 = vpop.f32.mrb[0].mxu0
      %1324 = vmatprep.mubr.f32.mxu0 0.0
      %1325 = vmatmul.mubr.f32.gmra.mrb[0].mxu0 %v1113
      %v1326 = vpop.f32.mrb[0].mxu0
      %v1327 = vadd.f32 0.0, %v1326
      %v1328 = vpop.f32.mrb[0].mxu0
      %1329 = vmatprep.mubr.f32.mxu0 0.0
      %1330 = vmatmul.mubr.f32.gmra.mrb[0].mxu0 %v1116
      %v1331 = vpop.f32.mrb[0].mxu0
      %v1332 = vadd.f32 0.0, %v1331
      %v1333 = vpop.f32.mrb[0].mxu0
      %1334 = vmatprep.mubr.f32.mxu0 0.0
      %1335 = vmatmul.mubr.f32.gmra.mrb[0].mxu0 %v1119
      %v1336 = vpop.f32.mrb[0].mxu0
      %v1337 = vadd.f32 0.0, %v1336
      %v1338 = vpop.f32.mrb[0].mxu0
      %1339 = vmatprep.mubr.f32.mxu0 0.0
      %1340 = vmatmul.mubr.f32.gmra.mrb[0].mxu0 %v1122
      %v1341 = vpop.f32.mrb[0].mxu0
      %v1342 = vadd.f32 0.0, %v1341
      %v1343 = vpop.f32.mrb[0].mxu0
      %1344 = vmatprep.mubr.f32.mxu0 0.0
      %1345 = vmatmul.mubr.f32.gmra.mrb[0].mxu0 %v1125
      %v1346 = vpop.f32.mrb[0].mxu0
      %v1347 = vadd.f32 0.0, %v1346
      %v1348 = vpop.f32.mrb[0].mxu0
      %1349 = vmatprep.mubr.f32.mxu0 0.0
      %1350 = vmatmul.mubr.f32.gmra.mrb[0].mxu0 %v1128
      %v1351 = vpop.f32.mrb[0].mxu0
      %v1352 = vadd.f32 0.0, %v1351
      %v1353 = vpop.f32.mrb[0].mxu0
      %1354 = vmatprep.mubr.f32.mxu0 0.0
      %1355 = vmatmul.mubr.f32.gmra.mrb[0].mxu0 %v1131
      %v1356 = vpop.f32.mrb[0].mxu0
      %v1357 = vadd.f32 0.0, %v1356
      %v1358 = vpop.f32.mrb[0].mxu0
      %1359 = vmatprep.mubr.f32.mxu0 0.0
      %1360 = vmatmul.mubr.f32.gmra.mrb[0].mxu0 %v1134
      %v1361 = vpop.f32.mrb[0].mxu0
      %v1362 = vadd.f32 0.0, %v1361
      %v1363 = vpop.f32.mrb[0].mxu0
      %1364 = vmatprep.mubr.f32.mxu0 0.0
      %1365 = vmatmul.mubr.f32.gmra.mrb[0].mxu0 %v1137
      %v1366 = vpop.f32.mrb[0].mxu0
      %v1367 = vadd.f32 0.0, %v1366
      %v1368 = vpop.f32.mrb[0].mxu0
      %1369 = vmatprep.mubr.f32.mxu0 0.0
      %1370 = vmatmul.mubr.f32.gmra.mrb[0].mxu0 %v1140
      %v1371 = vpop.f32.mrb[0].mxu0
      %v1372 = vadd.f32 0.0, %v1371
      %v1373 = vpop.f32.mrb[0].mxu0
      %1374 = vmatprep.mubr.f32.mxu0 0.0
      %1375 = vmatmul.mubr.f32.gmra.mrb[0].mxu0 %v1143
      %v1376 = vpop.f32.mrb[0].mxu0
      %v1377 = vadd.f32 0.0, %v1376
      %v1378 = vpop.f32.mrb[0].mxu0
      %1379 = vmatprep.mubr.f32.mxu0 0.0
      %1380 = vmatmul.mubr.f32.gmra.mrb[0].mxu0 %v1146
      %v1381 = vpop.f32.mrb[0].mxu0
      %v1382 = vadd.f32 0.0, %v1381
      %v1383 = vpop.f32.mrb[0].mxu0
      %1384 = vmatprep.mubr.f32.mxu0 0.0
      %1385 = vmatmul.mubr.f32.gmra.mrb[0].mxu0 %v1149
      %v1386 = vpop.f32.mrb[0].mxu0
      %v1387 = vadd.f32 0.0, %v1386
      %v1388 = vpop.f32.mrb[0].mxu0
      %1389 = vmatprep.mubr.f32.mxu0 0.0
      %1390 = vmatmul.mubr.f32.gmra.mrb[0].mxu0 %v1152
      %v1391 = vpop.f32.mrb[0].mxu0
      %v1392 = vadd.f32 0.0, %v1391
      %v1393 = vpop.f32.mrb[0].mxu0
      %1394 = vmatprep.mubr.f32.mxu0 0.0
      %1395 = vmatmul.mubr.f32.gmra.mrb[0].mxu0 %v1155
      %v1396 = vpop.f32.mrb[0].mxu0
      %v1397 = vadd.f32 0.0, %v1396
      %v1398 = vpop.f32.mrb[0].mxu0
      %1399 = vmatprep.mubr.f32.mxu0 0.0
      %1400 = vmatmul.mubr.f32.gmra.mrb[0].mxu0 %v1158
      %v1401 = vpop.f32.mrb[0].mxu0
      %v1402 = vadd.f32 0.0, %v1401
      %v1403 = vpop.f32.mrb[0].mxu0
      %1404 = vdwg.mxu0
      %v1405 = vadd.f32 %v834, %v1227
      %v1406 = vadd.f32 %v839, %v1232
      %v1407 = vadd.f32 %v844, %v1237
      %v1408 = vadd.f32 %v849, %v1242
      %v1409 = vadd.f32 %v854, %v1247
      %v1410 = vadd.f32 %v859, %v1252
      %v1411 = vadd.f32 %v864, %v1257
      %v1412 = vadd.f32 %v869, %v1262
      %v1413 = vadd.f32 %v874, %v1267
      %v1414 = vadd.f32 %v879, %v1272
      %v1415 = vadd.f32 %v884, %v1277
      %v1416 = vadd.f32 %v889, %v1282
      %v1417 = vadd.f32 %v894, %v1287
      %v1418 = vadd.f32 %v899, %v1292
      %v1419 = vadd.f32 %v904, %v1297
      %v1420 = vadd.f32 %v909, %v1302
      %v1421 = vadd.f32 %v914, %v1307
      %v1422 = vadd.f32 %v919, %v1312
      %v1423 = vadd.f32 %v924, %v1317
      %v1424 = vadd.f32 %v929, %v1322
      %v1425 = vadd.f32 %v934, %v1327
      %v1426 = vadd.f32 %v939, %v1332
      %v1427 = vadd.f32 %v944, %v1337
      %v1428 = vadd.f32 %v949, %v1342
      %v1429 = vadd.f32 %v954, %v1347
      %v1430 = vadd.f32 %v959, %v1352
      %v1431 = vadd.f32 %v964, %v1357
      %v1432 = vadd.f32 %v969, %v1362
      %v1433 = vadd.f32 %v974, %v1367
      %v1434 = vadd.f32 %v979, %v1372
      %v1435 = vadd.f32 %v984, %v1377
      %v1436 = vadd.f32 %v989, %v1382
      %v1437 = vadd.f32 %v994, %v1387
      %v1438 = vadd.f32 %v999, %v1392
      %v1439 = vadd.f32 %v1004, %v1397
      %v1440 = vadd.f32 %v1009, %v1402
      %v1441 = vld [vmem:[%s219 + $0x12] sm:$0xff]
      %v1442 = vld [vmem:[%s219 + $0x1a] sm:$0xff]
      %v1443 = vld [vmem:[%s219 + $0x22] sm:$0xff]
      %v1444 = vld [vmem:[%s219 + $0x2a] sm:$0xff]
      %v1445 = vld [vmem:[%s219 + $0x32] sm:$0xff]
      %v1446 = vld [vmem:[%s219 + $0x3a] sm:$0xff]
      %v1447 = vld [vmem:[%s219 + $0x42] sm:$0xff]
      %v1448 = vld [vmem:[%s219 + $0x4a] sm:$0xff]
      %v1449 = vld [vmem:[%s219 + $0x52] sm:$0xff]
      %v1450 = vld [vmem:[%s219 + $0x5a] sm:$0xff]
      %v1451 = vld [vmem:[%s219 + $0x62] sm:$0xff]
      %v1452 = vld [vmem:[%s219 + $0x6a] sm:$0xff]
      %v1453 = vld [vmem:[%s219 + $0x72] sm:$0xff]
      %v1454 = vld [vmem:[%s219 + $0x7a] sm:$0xff]
      %v1455 = vld [vmem:[%s219 + $0x82] sm:$0xff]
      %v1456 = vld [vmem:[%s219 + $0x8a] sm:$0xff]
      %v1457 = vld [vmem:[%s219 + $0x92] sm:$0xff]
      %v1458 = vld [vmem:[%s219 + $0x9a] sm:$0xff]
      %v1459 = vld [vmem:[%s219 + $0xa2] sm:$0xff]
      %v1460 = vld [vmem:[%s219 + $0xaa] sm:$0xff]
      %v1461 = vld [vmem:[%s219 + $0xb2] sm:$0xff]
      %v1462 = vld [vmem:[%s219 + $0xba] sm:$0xff]
      %v1463 = vld [vmem:[%s219 + $0xc2] sm:$0xff]
      %v1464 = vld [vmem:[%s219 + $0xca] sm:$0xff]
      %v1465 = vld [vmem:[%s219 + $0xd2] sm:$0xff]
      %v1466 = vld [vmem:[%s219 + $0xda] sm:$0xff]
      %v1467 = vld [vmem:[%s219 + $0xe2] sm:$0xff]
      %v1468 = vld [vmem:[%s219 + $0xea] sm:$0xff]
      %v1469 = vld [vmem:[%s219 + $0xf2] sm:$0xff]
      %v1470 = vld [vmem:[%s219 + $0xfa] sm:$0xff]
      %v1471 = vld [vmem:[%s219 + $0x102] sm:$0xff]
      %v1472 = vld [vmem:[%s219 + $0x10a] sm:$0xff]
      %v1473 = vld [vmem:[%s219 + $0x112] sm:$0xff]
      %v1474 = vld [vmem:[%s219 + $0x11a] sm:$0xff]
      %v1475 = vld [vmem:[%s219 + $0x122] sm:$0xff]
      %v1476 = vld [vmem:[%s219 + $0x12a] sm:$0xff]
      %v1477 = vld [vmem:[%s1 + $0x60] sm:$0xff]
      %v1478 = vld [vmem:[%s1 + $0x68] sm:$0xff]
      %v1479 = vld [vmem:[%s1 + $0x70] sm:$0xff]
      %v1480 = vld [vmem:[%s1 + $0x78] sm:$0xff]
      %v1482 = vsel %vm305, %v1441, 0
      %v1485 = vsel %vm305, %v1442, 0
      %v1488 = vsel %vm305, %v1443, 0
      %v1491 = vsel %vm305, %v1444, 0
      %v1494 = vsel %vm305, %v1445, 0
      %v1497 = vsel %vm305, %v1446, 0
      %v1500 = vsel %vm305, %v1447, 0
      %v1503 = vsel %vm305, %v1448, 0
      %v1506 = vsel %vm305, %v1449, 0
      %v1509 = vsel %vm305, %v1450, 0
      %v1512 = vsel %vm305, %v1451, 0
      %v1515 = vsel %vm305, %v1452, 0
      %v1518 = vsel %vm305, %v1453, 0
      %v1521 = vsel %vm305, %v1454, 0
      %v1524 = vsel %vm305, %v1455, 0
      %v1527 = vsel %vm305, %v1456, 0
      %v1530 = vsel %vm305, %v1457, 0
      %v1533 = vsel %vm305, %v1458, 0
      %v1536 = vsel %vm305, %v1459, 0
      %v1539 = vsel %vm305, %v1460, 0
      %v1542 = vsel %vm305, %v1461, 0
      %v1545 = vsel %vm305, %v1462, 0
      %v1548 = vsel %vm305, %v1463, 0
      %v1551 = vsel %vm305, %v1464, 0
      %v1554 = vsel %vm305, %v1465, 0
      %v1557 = vsel %vm305, %v1466, 0
      %v1560 = vsel %vm305, %v1467, 0
      %v1563 = vsel %vm305, %v1468, 0
      %v1566 = vsel %vm305, %v1469, 0
      %v1569 = vsel %vm305, %v1470, 0
      %v1572 = vsel %vm305, %v1471, 0
      %v1575 = vsel %vm305, %v1472, 0
      %v1578 = vsel %vm305, %v1473, 0
      %v1581 = vsel %vm305, %v1474, 0
      %v1584 = vsel %vm305, %v1475, 0
      %v1587 = vsel %vm305, %v1476, 0
      %1589 = vmatprep.subr.mxu0 0.0
      %1590 = vmatpush1.msra.mxu0 %v1477
      %1591 = vmatprep.subr.mxu0 0.0
      %1592 = vmatpush1.msra.mxu0 %v1478
      %1593 = vmatprep.subr.mxu0 0.0
      %1594 = vmatpush1.msra.mxu0 %v1479
      %1595 = vmatprep.subr.mxu0 0.0
      %1596 = vmatpush1.msra.mxu0 %v1480
      %1597 = vmatprep.subr.mxu0 0.0
      %1598 = vmatpush1.msra.mxu0 0.0
      %1599 = vmatprep.subr.mxu0 0.0
      %1600 = vmatpush1.msra.mxu0 0.0
      %1601 = vmatprep.subr.mxu0 0.0
      %1602 = vmatpush1.msra.mxu0 0.0
      %1603 = vmatprep.subr.mxu0 0.0
      %1604 = vmatpush1.msra.mxu0 0.0
      %1605 = vmatprep.subr.mxu0 0.0
      %1606 = vmatpush1.msra.mxu0 0.0
      %1607 = vmatprep.subr.mxu0 0.0
      %1608 = vmatpush1.msra.mxu0 0.0
      %1609 = vmatprep.subr.mxu0 0.0
      %1610 = vmatpush1.msra.mxu0 0.0
      %1611 = vmatprep.subr.mxu0 0.0
      %1612 = vmatpush1.msra.mxu0 0.0
      %1613 = vmatprep.subr.mxu0 0.0
      %1614 = vmatpush1.msra.mxu0 0.0
      %1615 = vmatprep.subr.mxu0 0.0
      %1616 = vmatpush1.msra.mxu0 0.0
      %1617 = vmatprep.subr.mxu0 0.0
      %1618 = vmatpush1.msra.mxu0 0.0
      %1619 = vmatprep.subr.mxu0 0.0
      %1620 = vmatpush1.msra.mxu0 0.0
      %1621 = vmatprep.subr.mxu0 0.0
      %1622 = vmatpush1.msra.mxu0 0.0
      %1623 = vmatprep.subr.mxu0 0.0
      %1624 = vmatpush1.msra.mxu0 0.0
      %1625 = vmatprep.subr.mxu0 0.0
      %1626 = vmatpush1.msra.mxu0 0.0
      %1627 = vmatprep.subr.mxu0 0.0
      %1628 = vmatpush1.msra.mxu0 0.0
      %1629 = vmatprep.subr.mxu0 0.0
      %1630 = vmatpush1.msra.mxu0 0.0
      %1631 = vmatprep.subr.mxu0 0.0
      %1632 = vmatpush1.msra.mxu0 0.0
      %1633 = vmatprep.subr.mxu0 0.0
      %1634 = vmatpush1.msra.mxu0 0.0
      %1635 = vmatprep.subr.mxu0 0.0
      %1636 = vmatpush1.msra.mxu0 0.0
      %1637 = vmatprep.subr.mxu0 0.0
      %1638 = vmatpush1.msra.mxu0 0.0
      %1639 = vmatprep.subr.mxu0 0.0
      %1640 = vmatpush1.msra.mxu0 0.0
      %1641 = vmatprep.subr.mxu0 0.0
      %1642 = vmatpush1.msra.mxu0 0.0
      %1643 = vmatprep.subr.mxu0 0.0
      %1644 = vmatpush1.msra.mxu0 0.0
      %1645 = vmatprep.subr.mxu0 0.0
      %1646 = vmatpush1.msra.mxu0 0.0
      %1647 = vmatprep.subr.mxu0 0.0
      %1648 = vmatpush1.msra.mxu0 0.0
      %1649 = vmatprep.subr.mxu0 0.0
      %1650 = vmatpush1.msra.mxu0 0.0
      %1651 = vmatprep.subr.mxu0 0.0
      %1652 = vmatpush1.msra.mxu0 0.0
      %1653 = vmatprep.mubr.f32.mxu0 0.0
      %1654 = vmatmul.mubr.f32.gmra.mrb[0].mxu0 %v1482
      %v1655 = vpop.f32.mrb[0].mxu0
      %v1656 = vadd.f32 0.0, %v1655
      %v1657 = vpop.f32.mrb[0].mxu0
      %1658 = vmatprep.mubr.f32.mxu0 0.0
      %1659 = vmatmul.mubr.f32.gmra.mrb[0].mxu0 %v1485
      %v1660 = vpop.f32.mrb[0].mxu0
      %v1661 = vadd.f32 0.0, %v1660
      %v1662 = vpop.f32.mrb[0].mxu0
      %1663 = vmatprep.mubr.f32.mxu0 0.0
      %1664 = vmatmul.mubr.f32.gmra.mrb[0].mxu0 %v1488
      %v1665 = vpop.f32.mrb[0].mxu0
      %v1666 = vadd.f32 0.0, %v1665
      %v1667 = vpop.f32.mrb[0].mxu0
      %1668 = vmatprep.mubr.f32.mxu0 0.0
      %1669 = vmatmul.mubr.f32.gmra.mrb[0].mxu0 %v1491
      %v1670 = vpop.f32.mrb[0].mxu0
      %v1671 = vadd.f32 0.0, %v1670
      %v1672 = vpop.f32.mrb[0].mxu0
      %1673 = vmatprep.mubr.f32.mxu0 0.0
      %1674 = vmatmul.mubr.f32.gmra.mrb[0].mxu0 %v1494
      %v1675 = vpop.f32.mrb[0].mxu0
      %v1676 = vadd.f32 0.0, %v1675
      %v1677 = vpop.f32.mrb[0].mxu0
      %1678 = vmatprep.mubr.f32.mxu0 0.0
      %1679 = vmatmul.mubr.f32.gmra.mrb[0].mxu0 %v1497
      %v1680 = vpop.f32.mrb[0].mxu0
      %v1681 = vadd.f32 0.0, %v1680
      %v1682 = vpop.f32.mrb[0].mxu0
      %1683 = vmatprep.mubr.f32.mxu0 0.0
      %1684 = vmatmul.mubr.f32.gmra.mrb[0].mxu0 %v1500
      %v1685 = vpop.f32.mrb[0].mxu0
      %v1686 = vadd.f32 0.0, %v1685
      %v1687 = vpop.f32.mrb[0].mxu0
      %1688 = vmatprep.mubr.f32.mxu0 0.0
      %1689 = vmatmul.mubr.f32.gmra.mrb[0].mxu0 %v1503
      %v1690 = vpop.f32.mrb[0].mxu0
      %v1691 = vadd.f32 0.0, %v1690
      %v1692 = vpop.f32.mrb[0].mxu0
      %1693 = vmatprep.mubr.f32.mxu0 0.0
      %1694 = vmatmul.mubr.f32.gmra.mrb[0].mxu0 %v1506
      %v1695 = vpop.f32.mrb[0].mxu0
      %v1696 = vadd.f32 0.0, %v1695
      %v1697 = vpop.f32.mrb[0].mxu0
      %1698 = vmatprep.mubr.f32.mxu0 0.0
      %1699 = vmatmul.mubr.f32.gmra.mrb[0].mxu0 %v1509
      %v1700 = vpop.f32.mrb[0].mxu0
      %v1701 = vadd.f32 0.0, %v1700
      %v1702 = vpop.f32.mrb[0].mxu0
      %1703 = vmatprep.mubr.f32.mxu0 0.0
      %1704 = vmatmul.mubr.f32.gmra.mrb[0].mxu0 %v1512
      %v1705 = vpop.f32.mrb[0].mxu0
      %v1706 = vadd.f32 0.0, %v1705
      %v1707 = vpop.f32.mrb[0].mxu0
      %1708 = vmatprep.mubr.f32.mxu0 0.0
      %1709 = vmatmul.mubr.f32.gmra.mrb[0].mxu0 %v1515
      %v1710 = vpop.f32.mrb[0].mxu0
      %v1711 = vadd.f32 0.0, %v1710
      %v1712 = vpop.f32.mrb[0].mxu0
      %1713 = vmatprep.mubr.f32.mxu0 0.0
      %1714 = vmatmul.mubr.f32.gmra.mrb[0].mxu0 %v1518
      %v1715 = vpop.f32.mrb[0].mxu0
      %v1716 = vadd.f32 0.0, %v1715
      %v1717 = vpop.f32.mrb[0].mxu0
      %1718 = vmatprep.mubr.f32.mxu0 0.0
      %1719 = vmatmul.mubr.f32.gmra.mrb[0].mxu0 %v1521
      %v1720 = vpop.f32.mrb[0].mxu0
      %v1721 = vadd.f32 0.0, %v1720
      %v1722 = vpop.f32.mrb[0].mxu0
      %1723 = vmatprep.mubr.f32.mxu0 0.0
      %1724 = vmatmul.mubr.f32.gmra.mrb[0].mxu0 %v1524
      %v1725 = vpop.f32.mrb[0].mxu0
      %v1726 = vadd.f32 0.0, %v1725
      %v1727 = vpop.f32.mrb[0].mxu0
      %1728 = vmatprep.mubr.f32.mxu0 0.0
      %1729 = vmatmul.mubr.f32.gmra.mrb[0].mxu0 %v1527
      %v1730 = vpop.f32.mrb[0].mxu0
      %v1731 = vadd.f32 0.0, %v1730
      %v1732 = vpop.f32.mrb[0].mxu0
      %1733 = vmatprep.mubr.f32.mxu0 0.0
      %1734 = vmatmul.mubr.f32.gmra.mrb[0].mxu0 %v1530
      %v1735 = vpop.f32.mrb[0].mxu0
      %v1736 = vadd.f32 0.0, %v1735
      %v1737 = vpop.f32.mrb[0].mxu0
      %1738 = vmatprep.mubr.f32.mxu0 0.0
      %1739 = vmatmul.mubr.f32.gmra.mrb[0].mxu0 %v1533
      %v1740 = vpop.f32.mrb[0].mxu0
      %v1741 = vadd.f32 0.0, %v1740
      %v1742 = vpop.f32.mrb[0].mxu0
      %1743 = vmatprep.mubr.f32.mxu0 0.0
      %1744 = vmatmul.mubr.f32.gmra.mrb[0].mxu0 %v1536
      %v1745 = vpop.f32.mrb[0].mxu0
      %v1746 = vadd.f32 0.0, %v1745
      %v1747 = vpop.f32.mrb[0].mxu0
      %1748 = vmatprep.mubr.f32.mxu0 0.0
      %1749 = vmatmul.mubr.f32.gmra.mrb[0].mxu0 %v1539
      %v1750 = vpop.f32.mrb[0].mxu0
      %v1751 = vadd.f32 0.0, %v1750
      %v1752 = vpop.f32.mrb[0].mxu0
      %1753 = vmatprep.mubr.f32.mxu0 0.0
      %1754 = vmatmul.mubr.f32.gmra.mrb[0].mxu0 %v1542
      %v1755 = vpop.f32.mrb[0].mxu0
      %v1756 = vadd.f32 0.0, %v1755
      %v1757 = vpop.f32.mrb[0].mxu0
      %1758 = vmatprep.mubr.f32.mxu0 0.0
      %1759 = vmatmul.mubr.f32.gmra.mrb[0].mxu0 %v1545
      %v1760 = vpop.f32.mrb[0].mxu0
      %v1761 = vadd.f32 0.0, %v1760
      %v1762 = vpop.f32.mrb[0].mxu0
      %1763 = vmatprep.mubr.f32.mxu0 0.0
      %1764 = vmatmul.mubr.f32.gmra.mrb[0].mxu0 %v1548
      %v1765 = vpop.f32.mrb[0].mxu0
      %v1766 = vadd.f32 0.0, %v1765
      %v1767 = vpop.f32.mrb[0].mxu0
      %1768 = vmatprep.mubr.f32.mxu0 0.0
      %1769 = vmatmul.mubr.f32.gmra.mrb[0].mxu0 %v1551
      %v1770 = vpop.f32.mrb[0].mxu0
      %v1771 = vadd.f32 0.0, %v1770
      %v1772 = vpop.f32.mrb[0].mxu0
      %1773 = vmatprep.mubr.f32.mxu0 0.0
      %1774 = vmatmul.mubr.f32.gmra.mrb[0].mxu0 %v1554
      %v1775 = vpop.f32.mrb[0].mxu0
      %v1776 = vadd.f32 0.0, %v1775
      %v1777 = vpop.f32.mrb[0].mxu0
      %1778 = vmatprep.mubr.f32.mxu0 0.0
      %1779 = vmatmul.mubr.f32.gmra.mrb[0].mxu0 %v1557
      %v1780 = vpop.f32.mrb[0].mxu0
      %v1781 = vadd.f32 0.0, %v1780
      %v1782 = vpop.f32.mrb[0].mxu0
      %1783 = vmatprep.mubr.f32.mxu0 0.0
      %1784 = vmatmul.mubr.f32.gmra.mrb[0].mxu0 %v1560
      %v1785 = vpop.f32.mrb[0].mxu0
      %v1786 = vadd.f32 0.0, %v1785
      %v1787 = vpop.f32.mrb[0].mxu0
      %1788 = vmatprep.mubr.f32.mxu0 0.0
      %1789 = vmatmul.mubr.f32.gmra.mrb[0].mxu0 %v1563
      %v1790 = vpop.f32.mrb[0].mxu0
      %v1791 = vadd.f32 0.0, %v1790
      %v1792 = vpop.f32.mrb[0].mxu0
      %1793 = vmatprep.mubr.f32.mxu0 0.0
      %1794 = vmatmul.mubr.f32.gmra.mrb[0].mxu0 %v1566
      %v1795 = vpop.f32.mrb[0].mxu0
      %v1796 = vadd.f32 0.0, %v1795
      %v1797 = vpop.f32.mrb[0].mxu0
      %1798 = vmatprep.mubr.f32.mxu0 0.0
      %1799 = vmatmul.mubr.f32.gmra.mrb[0].mxu0 %v1569
      %v1800 = vpop.f32.mrb[0].mxu0
      %v1801 = vadd.f32 0.0, %v1800
      %v1802 = vpop.f32.mrb[0].mxu0
      %1803 = vmatprep.mubr.f32.mxu0 0.0
      %1804 = vmatmul.mubr.f32.gmra.mrb[0].mxu0 %v1572
      %v1805 = vpop.f32.mrb[0].mxu0
      %v1806 = vadd.f32 0.0, %v1805
      %v1807 = vpop.f32.mrb[0].mxu0
      %1808 = vmatprep.mubr.f32.mxu0 0.0
      %1809 = vmatmul.mubr.f32.gmra.mrb[0].mxu0 %v1575
      %v1810 = vpop.f32.mrb[0].mxu0
      %v1811 = vadd.f32 0.0, %v1810
      %v1812 = vpop.f32.mrb[0].mxu0
      %1813 = vmatprep.mubr.f32.mxu0 0.0
      %1814 = vmatmul.mubr.f32.gmra.mrb[0].mxu0 %v1578
      %v1815 = vpop.f32.mrb[0].mxu0
      %v1816 = vadd.f32 0.0, %v1815
      %v1817 = vpop.f32.mrb[0].mxu0
      %1818 = vmatprep.mubr.f32.mxu0 0.0
      %1819 = vmatmul.mubr.f32.gmra.mrb[0].mxu0 %v1581
      %v1820 = vpop.f32.mrb[0].mxu0
      %v1821 = vadd.f32 0.0, %v1820
      %v1822 = vpop.f32.mrb[0].mxu0
      %1823 = vmatprep.mubr.f32.mxu0 0.0
      %1824 = vmatmul.mubr.f32.gmra.mrb[0].mxu0 %v1584
      %v1825 = vpop.f32.mrb[0].mxu0
      %v1826 = vadd.f32 0.0, %v1825
      %v1827 = vpop.f32.mrb[0].mxu0
      %1828 = vmatprep.mubr.f32.mxu0 0.0
      %1829 = vmatmul.mubr.f32.gmra.mrb[0].mxu0 %v1587
      %v1830 = vpop.f32.mrb[0].mxu0
      %v1831 = vadd.f32 0.0, %v1830
      %v1832 = vpop.f32.mrb[0].mxu0
      %1833 = vdwg.mxu0
      %v1834 = vadd.f32 %v1405, %v1656
      %v1835 = vadd.f32 %v1406, %v1661
      %v1836 = vadd.f32 %v1407, %v1666
      %v1837 = vadd.f32 %v1408, %v1671
      %v1838 = vadd.f32 %v1409, %v1676
      %v1839 = vadd.f32 %v1410, %v1681
      %v1840 = vadd.f32 %v1411, %v1686
      %v1841 = vadd.f32 %v1412, %v1691
      %v1842 = vadd.f32 %v1413, %v1696
      %v1843 = vadd.f32 %v1414, %v1701
      %v1844 = vadd.f32 %v1415, %v1706
      %v1845 = vadd.f32 %v1416, %v1711
      %v1846 = vadd.f32 %v1417, %v1716
      %v1847 = vadd.f32 %v1418, %v1721
      %v1848 = vadd.f32 %v1419, %v1726
      %v1849 = vadd.f32 %v1420, %v1731
      %v1850 = vadd.f32 %v1421, %v1736
      %v1851 = vadd.f32 %v1422, %v1741
      %v1852 = vadd.f32 %v1423, %v1746
      %v1853 = vadd.f32 %v1424, %v1751
      %v1854 = vadd.f32 %v1425, %v1756
      %v1855 = vadd.f32 %v1426, %v1761
      %v1856 = vadd.f32 %v1427, %v1766
      %v1857 = vadd.f32 %v1428, %v1771
      %v1858 = vadd.f32 %v1429, %v1776
      %v1859 = vadd.f32 %v1430, %v1781
      %v1860 = vadd.f32 %v1431, %v1786
      %v1861 = vadd.f32 %v1432, %v1791
      %v1862 = vadd.f32 %v1433, %v1796
      %v1863 = vadd.f32 %v1434, %v1801
      %v1864 = vadd.f32 %v1435, %v1806
      %v1865 = vadd.f32 %v1436, %v1811
      %v1866 = vadd.f32 %v1437, %v1816
      %v1867 = vadd.f32 %v1438, %v1821
      %v1868 = vadd.f32 %v1439, %v1826
      %v1869 = vadd.f32 %v1440, %v1831
      %v1870 = vld [vmem:[%s219 + $0x13] sm:$0xff]
      %v1871 = vld [vmem:[%s219 + $0x1b] sm:$0xff]
      %v1872 = vld [vmem:[%s219 + $0x23] sm:$0xff]
      %v1873 = vld [vmem:[%s219 + $0x2b] sm:$0xff]
      %v1874 = vld [vmem:[%s219 + $0x33] sm:$0xff]
      %v1875 = vld [vmem:[%s219 + $0x3b] sm:$0xff]
      %v1876 = vld [vmem:[%s219 + $0x43] sm:$0xff]
      %v1877 = vld [vmem:[%s219 + $0x4b] sm:$0xff]
      %v1878 = vld [vmem:[%s219 + $0x53] sm:$0xff]
      %v1879 = vld [vmem:[%s219 + $0x5b] sm:$0xff]
      %v1880 = vld [vmem:[%s219 + $0x63] sm:$0xff]
      %v1881 = vld [vmem:[%s219 + $0x6b] sm:$0xff]
      %v1882 = vld [vmem:[%s219 + $0x73] sm:$0xff]
      %v1883 = vld [vmem:[%s219 + $0x7b] sm:$0xff]
      %v1884 = vld [vmem:[%s219 + $0x83] sm:$0xff]
      %v1885 = vld [vmem:[%s219 + $0x8b] sm:$0xff]
      %v1886 = vld [vmem:[%s219 + $0x93] sm:$0xff]
      %v1887 = vld [vmem:[%s219 + $0x9b] sm:$0xff]
      %v1888 = vld [vmem:[%s219 + $0xa3] sm:$0xff]
      %v1889 = vld [vmem:[%s219 + $0xab] sm:$0xff]
      %v1890 = vld [vmem:[%s219 + $0xb3] sm:$0xff]
      %v1891 = vld [vmem:[%s219 + $0xbb] sm:$0xff]
      %v1892 = vld [vmem:[%s219 + $0xc3] sm:$0xff]
      %v1893 = vld [vmem:[%s219 + $0xcb] sm:$0xff]
      %v1894 = vld [vmem:[%s219 + $0xd3] sm:$0xff]
      %v1895 = vld [vmem:[%s219 + $0xdb] sm:$0xff]
      %v1896 = vld [vmem:[%s219 + $0xe3] sm:$0xff]
      %v1897 = vld [vmem:[%s219 + $0xeb] sm:$0xff]
      %v1898 = vld [vmem:[%s219 + $0xf3] sm:$0xff]
      %v1899 = vld [vmem:[%s219 + $0xfb] sm:$0xff]
      %v1900 = vld [vmem:[%s219 + $0x103] sm:$0xff]
      %v1901 = vld [vmem:[%s219 + $0x10b] sm:$0xff]
      %v1902 = vld [vmem:[%s219 + $0x113] sm:$0xff]
      %v1903 = vld [vmem:[%s219 + $0x11b] sm:$0xff]
      %v1904 = vld [vmem:[%s219 + $0x123] sm:$0xff]
      %v1905 = vld [vmem:[%s219 + $0x12b] sm:$0xff]
      %v1906 = vld [vmem:[%s1 + $0x80] sm:$0xff]
      %v1907 = vld [vmem:[%s1 + $0x88] sm:$0xff]
      %v1908 = vld [vmem:[%s1 + $0x90] sm:$0xff]
      %v1909 = vld [vmem:[%s1 + $0x98] sm:$0xff]
      %v1911 = vsel %vm305, %v1870, 0
      %v1914 = vsel %vm305, %v1871, 0
      %v1917 = vsel %vm305, %v1872, 0
      %v1920 = vsel %vm305, %v1873, 0
      %v1923 = vsel %vm305, %v1874, 0
      %v1926 = vsel %vm305, %v1875, 0
      %v1929 = vsel %vm305, %v1876, 0
      %v1932 = vsel %vm305, %v1877, 0
      %v1935 = vsel %vm305, %v1878, 0
      %v1938 = vsel %vm305, %v1879, 0
      %v1941 = vsel %vm305, %v1880, 0
      %v1944 = vsel %vm305, %v1881, 0
      %v1947 = vsel %vm305, %v1882, 0
      %v1950 = vsel %vm305, %v1883, 0
      %v1953 = vsel %vm305, %v1884, 0
      %v1956 = vsel %vm305, %v1885, 0
      %v1959 = vsel %vm305, %v1886, 0
      %v1962 = vsel %vm305, %v1887, 0
      %v1965 = vsel %vm305, %v1888, 0
      %v1968 = vsel %vm305, %v1889, 0
      %v1971 = vsel %vm305, %v1890, 0
      %v1974 = vsel %vm305, %v1891, 0
      %v1977 = vsel %vm305, %v1892, 0
      %v1980 = vsel %vm305, %v1893, 0
      %v1983 = vsel %vm305, %v1894, 0
      %v1986 = vsel %vm305, %v1895, 0
      %v1989 = vsel %vm305, %v1896, 0
      %v1992 = vsel %vm305, %v1897, 0
      %v1995 = vsel %vm305, %v1898, 0
      %v1998 = vsel %vm305, %v1899, 0
      %v2001 = vsel %vm305, %v1900, 0
      %v2004 = vsel %vm305, %v1901, 0
      %v2007 = vsel %vm305, %v1902, 0
      %v2010 = vsel %vm305, %v1903, 0
      %v2013 = vsel %vm305, %v1904, 0
      %v2016 = vsel %vm305, %v1905, 0
      %2018 = vmatprep.subr.mxu0 0.0
      %2019 = vmatpush1.msra.mxu0 %v1906
      %2020 = vmatprep.subr.mxu0 0.0
      %2021 = vmatpush1.msra.mxu0 %v1907
      %2022 = vmatprep.subr.mxu0 0.0
      %2023 = vmatpush1.msra.mxu0 %v1908
      %2024 = vmatprep.subr.mxu0 0.0
      %2025 = vmatpush1.msra.mxu0 %v1909
      %2026 = vmatprep.subr.mxu0 0.0
      %2027 = vmatpush1.msra.mxu0 0.0
      %2028 = vmatprep.subr.mxu0 0.0
      %2029 = vmatpush1.msra.mxu0 0.0
      %2030 = vmatprep.subr.mxu0 0.0
      %2031 = vmatpush1.msra.mxu0 0.0
      %2032 = vmatprep.subr.mxu0 0.0
      %2033 = vmatpush1.msra.mxu0 0.0
      %2034 = vmatprep.subr.mxu0 0.0
      %2035 = vmatpush1.msra.mxu0 0.0
      %2036 = vmatprep.subr.mxu0 0.0
      %2037 = vmatpush1.msra.mxu0 0.0
      %2038 = vmatprep.subr.mxu0 0.0
      %2039 = vmatpush1.msra.mxu0 0.0
      %2040 = vmatprep.subr.mxu0 0.0
      %2041 = vmatpush1.msra.mxu0 0.0
      %2042 = vmatprep.subr.mxu0 0.0
      %2043 = vmatpush1.msra.mxu0 0.0
      %2044 = vmatprep.subr.mxu0 0.0
      %2045 = vmatpush1.msra.mxu0 0.0
      %2046 = vmatprep.subr.mxu0 0.0
      %2047 = vmatpush1.msra.mxu0 0.0
      %2048 = vmatprep.subr.mxu0 0.0
      %2049 = vmatpush1.msra.mxu0 0.0
      %2050 = vmatprep.subr.mxu0 0.0
      %2051 = vmatpush1.msra.mxu0 0.0
      %2052 = vmatprep.subr.mxu0 0.0
      %2053 = vmatpush1.msra.mxu0 0.0
      %2054 = vmatprep.subr.mxu0 0.0
      %2055 = vmatpush1.msra.mxu0 0.0
      %2056 = vmatprep.subr.mxu0 0.0
      %2057 = vmatpush1.msra.mxu0 0.0
      %2058 = vmatprep.subr.mxu0 0.0
      %2059 = vmatpush1.msra.mxu0 0.0
      %2060 = vmatprep.subr.mxu0 0.0
      %2061 = vmatpush1.msra.mxu0 0.0
      %2062 = vmatprep.subr.mxu0 0.0
      %2063 = vmatpush1.msra.mxu0 0.0
      %2064 = vmatprep.subr.mxu0 0.0
      %2065 = vmatpush1.msra.mxu0 0.0
      %2066 = vmatprep.subr.mxu0 0.0
      %2067 = vmatpush1.msra.mxu0 0.0
      %2068 = vmatprep.subr.mxu0 0.0
      %2069 = vmatpush1.msra.mxu0 0.0
      %2070 = vmatprep.subr.mxu0 0.0
      %2071 = vmatpush1.msra.mxu0 0.0
      %2072 = vmatprep.subr.mxu0 0.0
      %2073 = vmatpush1.msra.mxu0 0.0
      %2074 = vmatprep.subr.mxu0 0.0
      %2075 = vmatpush1.msra.mxu0 0.0
      %2076 = vmatprep.subr.mxu0 0.0
      %2077 = vmatpush1.msra.mxu0 0.0
      %2078 = vmatprep.subr.mxu0 0.0
      %2079 = vmatpush1.msra.mxu0 0.0
      %2080 = vmatprep.subr.mxu0 0.0
      %2081 = vmatpush1.msra.mxu0 0.0
      %2082 = vmatprep.mubr.f32.mxu0 0.0
      %2083 = vmatmul.mubr.f32.gmra.mrb[0].mxu0 %v1911
      %v2084 = vpop.f32.mrb[0].mxu0
      %v2085 = vadd.f32 0.0, %v2084
      %v2086 = vpop.f32.mrb[0].mxu0
      %2087 = vmatprep.mubr.f32.mxu0 0.0
      %2088 = vmatmul.mubr.f32.gmra.mrb[0].mxu0 %v1914
      %v2089 = vpop.f32.mrb[0].mxu0
      %v2090 = vadd.f32 0.0, %v2089
      %v2091 = vpop.f32.mrb[0].mxu0
      %2092 = vmatprep.mubr.f32.mxu0 0.0
      %2093 = vmatmul.mubr.f32.gmra.mrb[0].mxu0 %v1917
      %v2094 = vpop.f32.mrb[0].mxu0
      %v2095 = vadd.f32 0.0, %v2094
      %v2096 = vpop.f32.mrb[0].mxu0
      %2097 = vmatprep.mubr.f32.mxu0 0.0
      %2098 = vmatmul.mubr.f32.gmra.mrb[0].mxu0 %v1920
      %v2099 = vpop.f32.mrb[0].mxu0
      %v2100 = vadd.f32 0.0, %v2099
      %v2101 = vpop.f32.mrb[0].mxu0
      %2102 = vmatprep.mubr.f32.mxu0 0.0
      %2103 = vmatmul.mubr.f32.gmra.mrb[0].mxu0 %v1923
      %v2104 = vpop.f32.mrb[0].mxu0
      %v2105 = vadd.f32 0.0, %v2104
      %v2106 = vpop.f32.mrb[0].mxu0
      %2107 = vmatprep.mubr.f32.mxu0 0.0
      %2108 = vmatmul.mubr.f32.gmra.mrb[0].mxu0 %v1926
      %v2109 = vpop.f32.mrb[0].mxu0
      %v2110 = vadd.f32 0.0, %v2109
      %v2111 = vpop.f32.mrb[0].mxu0
      %2112 = vmatprep.mubr.f32.mxu0 0.0
      %2113 = vmatmul.mubr.f32.gmra.mrb[0].mxu0 %v1929
      %v2114 = vpop.f32.mrb[0].mxu0
      %v2115 = vadd.f32 0.0, %v2114
      %v2116 = vpop.f32.mrb[0].mxu0
      %2117 = vmatprep.mubr.f32.mxu0 0.0
      %2118 = vmatmul.mubr.f32.gmra.mrb[0].mxu0 %v1932
      %v2119 = vpop.f32.mrb[0].mxu0
      %v2120 = vadd.f32 0.0, %v2119
      %v2121 = vpop.f32.mrb[0].mxu0
      %2122 = vmatprep.mubr.f32.mxu0 0.0
      %2123 = vmatmul.mubr.f32.gmra.mrb[0].mxu0 %v1935
      %v2124 = vpop.f32.mrb[0].mxu0
      %v2125 = vadd.f32 0.0, %v2124
      %v2126 = vpop.f32.mrb[0].mxu0
      %2127 = vmatprep.mubr.f32.mxu0 0.0
      %2128 = vmatmul.mubr.f32.gmra.mrb[0].mxu0 %v1938
      %v2129 = vpop.f32.mrb[0].mxu0
      %v2130 = vadd.f32 0.0, %v2129
      %v2131 = vpop.f32.mrb[0].mxu0
      %2132 = vmatprep.mubr.f32.mxu0 0.0
      %2133 = vmatmul.mubr.f32.gmra.mrb[0].mxu0 %v1941
      %v2134 = vpop.f32.mrb[0].mxu0
      %v2135 = vadd.f32 0.0, %v2134
      %v2136 = vpop.f32.mrb[0].mxu0
      %2137 = vmatprep.mubr.f32.mxu0 0.0
      %2138 = vmatmul.mubr.f32.gmra.mrb[0].mxu0 %v1944
      %v2139 = vpop.f32.mrb[0].mxu0
      %v2140 = vadd.f32 0.0, %v2139
      %v2141 = vpop.f32.mrb[0].mxu0
      %2142 = vmatprep.mubr.f32.mxu0 0.0
      %2143 = vmatmul.mubr.f32.gmra.mrb[0].mxu0 %v1947
      %v2144 = vpop.f32.mrb[0].mxu0
      %v2145 = vadd.f32 0.0, %v2144
      %v2146 = vpop.f32.mrb[0].mxu0
      %2147 = vmatprep.mubr.f32.mxu0 0.0
      %2148 = vmatmul.mubr.f32.gmra.mrb[0].mxu0 %v1950
      %v2149 = vpop.f32.mrb[0].mxu0
      %v2150 = vadd.f32 0.0, %v2149
      %v2151 = vpop.f32.mrb[0].mxu0
      %2152 = vmatprep.mubr.f32.mxu0 0.0
      %2153 = vmatmul.mubr.f32.gmra.mrb[0].mxu0 %v1953
      %v2154 = vpop.f32.mrb[0].mxu0
      %v2155 = vadd.f32 0.0, %v2154
      %v2156 = vpop.f32.mrb[0].mxu0
      %2157 = vmatprep.mubr.f32.mxu0 0.0
      %2158 = vmatmul.mubr.f32.gmra.mrb[0].mxu0 %v1956
      %v2159 = vpop.f32.mrb[0].mxu0
      %v2160 = vadd.f32 0.0, %v2159
      %v2161 = vpop.f32.mrb[0].mxu0
      %2162 = vmatprep.mubr.f32.mxu0 0.0
      %2163 = vmatmul.mubr.f32.gmra.mrb[0].mxu0 %v1959
      %v2164 = vpop.f32.mrb[0].mxu0
      %v2165 = vadd.f32 0.0, %v2164
      %v2166 = vpop.f32.mrb[0].mxu0
      %2167 = vmatprep.mubr.f32.mxu0 0.0
      %2168 = vmatmul.mubr.f32.gmra.mrb[0].mxu0 %v1962
      %v2169 = vpop.f32.mrb[0].mxu0
      %v2170 = vadd.f32 0.0, %v2169
      %v2171 = vpop.f32.mrb[0].mxu0
      %2172 = vmatprep.mubr.f32.mxu0 0.0
      %2173 = vmatmul.mubr.f32.gmra.mrb[0].mxu0 %v1965
      %v2174 = vpop.f32.mrb[0].mxu0
      %v2175 = vadd.f32 0.0, %v2174
      %v2176 = vpop.f32.mrb[0].mxu0
      %2177 = vmatprep.mubr.f32.mxu0 0.0
      %2178 = vmatmul.mubr.f32.gmra.mrb[0].mxu0 %v1968
      %v2179 = vpop.f32.mrb[0].mxu0
      %v2180 = vadd.f32 0.0, %v2179
      %v2181 = vpop.f32.mrb[0].mxu0
      %2182 = vmatprep.mubr.f32.mxu0 0.0
      %2183 = vmatmul.mubr.f32.gmra.mrb[0].mxu0 %v1971
      %v2184 = vpop.f32.mrb[0].mxu0
      %v2185 = vadd.f32 0.0, %v2184
      %v2186 = vpop.f32.mrb[0].mxu0
      %2187 = vmatprep.mubr.f32.mxu0 0.0
      %2188 = vmatmul.mubr.f32.gmra.mrb[0].mxu0 %v1974
      %v2189 = vpop.f32.mrb[0].mxu0
      %v2190 = vadd.f32 0.0, %v2189
      %v2191 = vpop.f32.mrb[0].mxu0
      %2192 = vmatprep.mubr.f32.mxu0 0.0
      %2193 = vmatmul.mubr.f32.gmra.mrb[0].mxu0 %v1977
      %v2194 = vpop.f32.mrb[0].mxu0
      %v2195 = vadd.f32 0.0, %v2194
      %v2196 = vpop.f32.mrb[0].mxu0
      %2197 = vmatprep.mubr.f32.mxu0 0.0
      %2198 = vmatmul.mubr.f32.gmra.mrb[0].mxu0 %v1980
      %v2199 = vpop.f32.mrb[0].mxu0
      %v2200 = vadd.f32 0.0, %v2199
      %v2201 = vpop.f32.mrb[0].mxu0
      %2202 = vmatprep.mubr.f32.mxu0 0.0
      %2203 = vmatmul.mubr.f32.gmra.mrb[0].mxu0 %v1983
      %v2204 = vpop.f32.mrb[0].mxu0
      %v2205 = vadd.f32 0.0, %v2204
      %v2206 = vpop.f32.mrb[0].mxu0
      %2207 = vmatprep.mubr.f32.mxu0 0.0
      %2208 = vmatmul.mubr.f32.gmra.mrb[0].mxu0 %v1986
      %v2209 = vpop.f32.mrb[0].mxu0
      %v2210 = vadd.f32 0.0, %v2209
      %v2211 = vpop.f32.mrb[0].mxu0
      %2212 = vmatprep.mubr.f32.mxu0 0.0
      %2213 = vmatmul.mubr.f32.gmra.mrb[0].mxu0 %v1989
      %v2214 = vpop.f32.mrb[0].mxu0
      %v2215 = vadd.f32 0.0, %v2214
      %v2216 = vpop.f32.mrb[0].mxu0
      %2217 = vmatprep.mubr.f32.mxu0 0.0
      %2218 = vmatmul.mubr.f32.gmra.mrb[0].mxu0 %v1992
      %v2219 = vpop.f32.mrb[0].mxu0
      %v2220 = vadd.f32 0.0, %v2219
      %v2221 = vpop.f32.mrb[0].mxu0
      %2222 = vmatprep.mubr.f32.mxu0 0.0
      %2223 = vmatmul.mubr.f32.gmra.mrb[0].mxu0 %v1995
      %v2224 = vpop.f32.mrb[0].mxu0
      %v2225 = vadd.f32 0.0, %v2224
      %v2226 = vpop.f32.mrb[0].mxu0
      %2227 = vmatprep.mubr.f32.mxu0 0.0
      %2228 = vmatmul.mubr.f32.gmra.mrb[0].mxu0 %v1998
      %v2229 = vpop.f32.mrb[0].mxu0
      %v2230 = vadd.f32 0.0, %v2229
      %v2231 = vpop.f32.mrb[0].mxu0
      %2232 = vmatprep.mubr.f32.mxu0 0.0
      %2233 = vmatmul.mubr.f32.gmra.mrb[0].mxu0 %v2001
      %v2234 = vpop.f32.mrb[0].mxu0
      %v2235 = vadd.f32 0.0, %v2234
      %v2236 = vpop.f32.mrb[0].mxu0
      %2237 = vmatprep.mubr.f32.mxu0 0.0
      %2238 = vmatmul.mubr.f32.gmra.mrb[0].mxu0 %v2004
      %v2239 = vpop.f32.mrb[0].mxu0
      %v2240 = vadd.f32 0.0, %v2239
      %v2241 = vpop.f32.mrb[0].mxu0
      %2242 = vmatprep.mubr.f32.mxu0 0.0
      %2243 = vmatmul.mubr.f32.gmra.mrb[0].mxu0 %v2007
      %v2244 = vpop.f32.mrb[0].mxu0
      %v2245 = vadd.f32 0.0, %v2244
      %v2246 = vpop.f32.mrb[0].mxu0
      %2247 = vmatprep.mubr.f32.mxu0 0.0
      %2248 = vmatmul.mubr.f32.gmra.mrb[0].mxu0 %v2010
      %v2249 = vpop.f32.mrb[0].mxu0
      %v2250 = vadd.f32 0.0, %v2249
      %v2251 = vpop.f32.mrb[0].mxu0
      %2252 = vmatprep.mubr.f32.mxu0 0.0
      %2253 = vmatmul.mubr.f32.gmra.mrb[0].mxu0 %v2013
      %v2254 = vpop.f32.mrb[0].mxu0
      %v2255 = vadd.f32 0.0, %v2254
      %v2256 = vpop.f32.mrb[0].mxu0
      %2257 = vmatprep.mubr.f32.mxu0 0.0
      %2258 = vmatmul.mubr.f32.gmra.mrb[0].mxu0 %v2016
      %v2259 = vpop.f32.mrb[0].mxu0
      %v2260 = vadd.f32 0.0, %v2259
      %v2261 = vpop.f32.mrb[0].mxu0
      %2262 = vdwg.mxu0
      %v2263 = vadd.f32 %v1834, %v2085
      %v2264 = vadd.f32 %v1835, %v2090
      %v2265 = vadd.f32 %v1836, %v2095
      %v2266 = vadd.f32 %v1837, %v2100
      %v2267 = vadd.f32 %v1838, %v2105
      %v2268 = vadd.f32 %v1839, %v2110
      %v2269 = vadd.f32 %v1840, %v2115
      %v2270 = vadd.f32 %v1841, %v2120
      %v2271 = vadd.f32 %v1842, %v2125
      %v2272 = vadd.f32 %v1843, %v2130
      %v2273 = vadd.f32 %v1844, %v2135
      %v2274 = vadd.f32 %v1845, %v2140
      %v2275 = vadd.f32 %v1846, %v2145
      %v2276 = vadd.f32 %v1847, %v2150
      %v2277 = vadd.f32 %v1848, %v2155
      %v2278 = vadd.f32 %v1849, %v2160
      %v2279 = vadd.f32 %v1850, %v2165
      %v2280 = vadd.f32 %v1851, %v2170
      %v2281 = vadd.f32 %v1852, %v2175
      %v2282 = vadd.f32 %v1853, %v2180
      %v2283 = vadd.f32 %v1854, %v2185
      %v2284 = vadd.f32 %v1855, %v2190
      %v2285 = vadd.f32 %v1856, %v2195
      %v2286 = vadd.f32 %v1857, %v2200
      %v2287 = vadd.f32 %v1858, %v2205
      %v2288 = vadd.f32 %v1859, %v2210
      %v2289 = vadd.f32 %v1860, %v2215
      %v2290 = vadd.f32 %v1861, %v2220
      %v2291 = vadd.f32 %v1862, %v2225
      %v2292 = vadd.f32 %v1863, %v2230
      %v2293 = vadd.f32 %v1864, %v2235
      %v2294 = vadd.f32 %v1865, %v2240
      %v2295 = vadd.f32 %v1866, %v2245
      %v2296 = vadd.f32 %v1867, %v2250
      %v2297 = vadd.f32 %v1868, %v2255
      %v2298 = vadd.f32 %v1869, %v2260
      %v2299 = vld [vmem:[%s219 + $0x14] sm:$0xff]
      %v2300 = vld [vmem:[%s219 + $0x1c] sm:$0xff]
      %v2301 = vld [vmem:[%s219 + $0x24] sm:$0xff]
      %v2302 = vld [vmem:[%s219 + $0x2c] sm:$0xff]
      %v2303 = vld [vmem:[%s219 + $0x34] sm:$0xff]
      %v2304 = vld [vmem:[%s219 + $0x3c] sm:$0xff]
      %v2305 = vld [vmem:[%s219 + $0x44] sm:$0xff]
      %v2306 = vld [vmem:[%s219 + $0x4c] sm:$0xff]
      %v2307 = vld [vmem:[%s219 + $0x54] sm:$0xff]
      %v2308 = vld [vmem:[%s219 + $0x5c] sm:$0xff]
      %v2309 = vld [vmem:[%s219 + $0x64] sm:$0xff]
      %v2310 = vld [vmem:[%s219 + $0x6c] sm:$0xff]
      %v2311 = vld [vmem:[%s219 + $0x74] sm:$0xff]
      %v2312 = vld [vmem:[%s219 + $0x7c] sm:$0xff]
      %v2313 = vld [vmem:[%s219 + $0x84] sm:$0xff]
      %v2314 = vld [vmem:[%s219 + $0x8c] sm:$0xff]
      %v2315 = vld [vmem:[%s219 + $0x94] sm:$0xff]
      %v2316 = vld [vmem:[%s219 + $0x9c] sm:$0xff]
      %v2317 = vld [vmem:[%s219 + $0xa4] sm:$0xff]
      %v2318 = vld [vmem:[%s219 + $0xac] sm:$0xff]
      %v2319 = vld [vmem:[%s219 + $0xb4] sm:$0xff]
      %v2320 = vld [vmem:[%s219 + $0xbc] sm:$0xff]
      %v2321 = vld [vmem:[%s219 + $0xc4] sm:$0xff]
      %v2322 = vld [vmem:[%s219 + $0xcc] sm:$0xff]
      %v2323 = vld [vmem:[%s219 + $0xd4] sm:$0xff]
      %v2324 = vld [vmem:[%s219 + $0xdc] sm:$0xff]
      %v2325 = vld [vmem:[%s219 + $0xe4] sm:$0xff]
      %v2326 = vld [vmem:[%s219 + $0xec] sm:$0xff]
      %v2327 = vld [vmem:[%s219 + $0xf4] sm:$0xff]
      %v2328 = vld [vmem:[%s219 + $0xfc] sm:$0xff]
      %v2329 = vld [vmem:[%s219 + $0x104] sm:$0xff]
      %v2330 = vld [vmem:[%s219 + $0x10c] sm:$0xff]
      %v2331 = vld [vmem:[%s219 + $0x114] sm:$0xff]
      %v2332 = vld [vmem:[%s219 + $0x11c] sm:$0xff]
      %v2333 = vld [vmem:[%s219 + $0x124] sm:$0xff]
      %v2334 = vld [vmem:[%s219 + $0x12c] sm:$0xff]
      %v2335 = vld [vmem:[%s1 + $0xa0] sm:$0xff]
      %v2336 = vld [vmem:[%s1 + $0xa8] sm:$0xff]
      %v2337 = vld [vmem:[%s1 + $0xb0] sm:$0xff]
      %v2338 = vld [vmem:[%s1 + $0xb8] sm:$0xff]
      %v2340 = vsel %vm305, %v2299, 0
      %v2343 = vsel %vm305, %v2300, 0
      %v2346 = vsel %vm305, %v2301, 0
      %v2349 = vsel %vm305, %v2302, 0
      %v2352 = vsel %vm305, %v2303, 0
      %v2355 = vsel %vm305, %v2304, 0
      %v2358 = vsel %vm305, %v2305, 0
      %v2361 = vsel %vm305, %v2306, 0
      %v2364 = vsel %vm305, %v2307, 0
      %v2367 = vsel %vm305, %v2308, 0
      %v2370 = vsel %vm305, %v2309, 0
      %v2373 = vsel %vm305, %v2310, 0
      %v2376 = vsel %vm305, %v2311, 0
      %v2379 = vsel %vm305, %v2312, 0
      %v2382 = vsel %vm305, %v2313, 0
      %v2385 = vsel %vm305, %v2314, 0
      %v2388 = vsel %vm305, %v2315, 0
      %v2391 = vsel %vm305, %v2316, 0
      %v2394 = vsel %vm305, %v2317, 0
      %v2397 = vsel %vm305, %v2318, 0
      %v2400 = vsel %vm305, %v2319, 0
      %v2403 = vsel %vm305, %v2320, 0
      %v2406 = vsel %vm305, %v2321, 0
      %v2409 = vsel %vm305, %v2322, 0
      %v2412 = vsel %vm305, %v2323, 0
      %v2415 = vsel %vm305, %v2324, 0
      %v2418 = vsel %vm305, %v2325, 0
      %v2421 = vsel %vm305, %v2326, 0
      %v2424 = vsel %vm305, %v2327, 0
      %v2427 = vsel %vm305, %v2328, 0
      %v2430 = vsel %vm305, %v2329, 0
      %v2433 = vsel %vm305, %v2330, 0
      %v2436 = vsel %vm305, %v2331, 0
      %v2439 = vsel %vm305, %v2332, 0
      %v2442 = vsel %vm305, %v2333, 0
      %v2445 = vsel %vm305, %v2334, 0
      %2447 = vmatprep.subr.mxu0 0.0
      %2448 = vmatpush1.msra.mxu0 %v2335
      %2449 = vmatprep.subr.mxu0 0.0
      %2450 = vmatpush1.msra.mxu0 %v2336
      %2451 = vmatprep.subr.mxu0 0.0
      %2452 = vmatpush1.msra.mxu0 %v2337
      %2453 = vmatprep.subr.mxu0 0.0
      %2454 = vmatpush1.msra.mxu0 %v2338
      %2455 = vmatprep.subr.mxu0 0.0
      %2456 = vmatpush1.msra.mxu0 0.0
      %2457 = vmatprep.subr.mxu0 0.0
      %2458 = vmatpush1.msra.mxu0 0.0
      %2459 = vmatprep.subr.mxu0 0.0
      %2460 = vmatpush1.msra.mxu0 0.0
      %2461 = vmatprep.subr.mxu0 0.0
      %2462 = vmatpush1.msra.mxu0 0.0
      %2463 = vmatprep.subr.mxu0 0.0
      %2464 = vmatpush1.msra.mxu0 0.0
      %2465 = vmatprep.subr.mxu0 0.0
      %2466 = vmatpush1.msra.mxu0 0.0
      %2467 = vmatprep.subr.mxu0 0.0
      %2468 = vmatpush1.msra.mxu0 0.0
      %2469 = vmatprep.subr.mxu0 0.0
      %2470 = vmatpush1.msra.mxu0 0.0
      %2471 = vmatprep.subr.mxu0 0.0
      %2472 = vmatpush1.msra.mxu0 0.0
      %2473 = vmatprep.subr.mxu0 0.0
      %2474 = vmatpush1.msra.mxu0 0.0
      %2475 = vmatprep.subr.mxu0 0.0
      %2476 = vmatpush1.msra.mxu0 0.0
      %2477 = vmatprep.subr.mxu0 0.0
      %2478 = vmatpush1.msra.mxu0 0.0
      %2479 = vmatprep.subr.mxu0 0.0
      %2480 = vmatpush1.msra.mxu0 0.0
      %2481 = vmatprep.subr.mxu0 0.0
      %2482 = vmatpush1.msra.mxu0 0.0
      %2483 = vmatprep.subr.mxu0 0.0
      %2484 = vmatpush1.msra.mxu0 0.0
      %2485 = vmatprep.subr.mxu0 0.0
      %2486 = vmatpush1.msra.mxu0 0.0
      %2487 = vmatprep.subr.mxu0 0.0
      %2488 = vmatpush1.msra.mxu0 0.0
      %2489 = vmatprep.subr.mxu0 0.0
      %2490 = vmatpush1.msra.mxu0 0.0
      %2491 = vmatprep.subr.mxu0 0.0
      %2492 = vmatpush1.msra.mxu0 0.0
      %2493 = vmatprep.subr.mxu0 0.0
      %2494 = vmatpush1.msra.mxu0 0.0
      %2495 = vmatprep.subr.mxu0 0.0
      %2496 = vmatpush1.msra.mxu0 0.0
      %2497 = vmatprep.subr.mxu0 0.0
      %2498 = vmatpush1.msra.mxu0 0.0
      %2499 = vmatprep.subr.mxu0 0.0
      %2500 = vmatpush1.msra.mxu0 0.0
      %2501 = vmatprep.subr.mxu0 0.0
      %2502 = vmatpush1.msra.mxu0 0.0
      %2503 = vmatprep.subr.mxu0 0.0
      %2504 = vmatpush1.msra.mxu0 0.0
      %2505 = vmatprep.subr.mxu0 0.0
      %2506 = vmatpush1.msra.mxu0 0.0
      %2507 = vmatprep.subr.mxu0 0.0
      %2508 = vmatpush1.msra.mxu0 0.0
      %2509 = vmatprep.subr.mxu0 0.0
      %2510 = vmatpush1.msra.mxu0 0.0
      %2511 = vmatprep.mubr.f32.mxu0 0.0
      %2512 = vmatmul.mubr.f32.gmra.mrb[0].mxu0 %v2340
      %v2513 = vpop.f32.mrb[0].mxu0
      %v2514 = vadd.f32 0.0, %v2513
      %v2515 = vpop.f32.mrb[0].mxu0
      %2516 = vmatprep.mubr.f32.mxu0 0.0
      %2517 = vmatmul.mubr.f32.gmra.mrb[0].mxu0 %v2343
      %v2518 = vpop.f32.mrb[0].mxu0
      %v2519 = vadd.f32 0.0, %v2518
      %v2520 = vpop.f32.mrb[0].mxu0
      %2521 = vmatprep.mubr.f32.mxu0 0.0
      %2522 = vmatmul.mubr.f32.gmra.mrb[0].mxu0 %v2346
      %v2523 = vpop.f32.mrb[0].mxu0
      %v2524 = vadd.f32 0.0, %v2523
      %v2525 = vpop.f32.mrb[0].mxu0
      %2526 = vmatprep.mubr.f32.mxu0 0.0
      %2527 = vmatmul.mubr.f32.gmra.mrb[0].mxu0 %v2349
      %v2528 = vpop.f32.mrb[0].mxu0
      %v2529 = vadd.f32 0.0, %v2528
      %v2530 = vpop.f32.mrb[0].mxu0
      %2531 = vmatprep.mubr.f32.mxu0 0.0
      %2532 = vmatmul.mubr.f32.gmra.mrb[0].mxu0 %v2352
      %v2533 = vpop.f32.mrb[0].mxu0
      %v2534 = vadd.f32 0.0, %v2533
      %v2535 = vpop.f32.mrb[0].mxu0
      %2536 = vmatprep.mubr.f32.mxu0 0.0
      %2537 = vmatmul.mubr.f32.gmra.mrb[0].mxu0 %v2355
      %v2538 = vpop.f32.mrb[0].mxu0
      %v2539 = vadd.f32 0.0, %v2538
      %v2540 = vpop.f32.mrb[0].mxu0
      %2541 = vmatprep.mubr.f32.mxu0 0.0
      %2542 = vmatmul.mubr.f32.gmra.mrb[0].mxu0 %v2358
      %v2543 = vpop.f32.mrb[0].mxu0
      %v2544 = vadd.f32 0.0, %v2543
      %v2545 = vpop.f32.mrb[0].mxu0
      %2546 = vmatprep.mubr.f32.mxu0 0.0
      %2547 = vmatmul.mubr.f32.gmra.mrb[0].mxu0 %v2361
      %v2548 = vpop.f32.mrb[0].mxu0
      %v2549 = vadd.f32 0.0, %v2548
      %v2550 = vpop.f32.mrb[0].mxu0
      %2551 = vmatprep.mubr.f32.mxu0 0.0
      %2552 = vmatmul.mubr.f32.gmra.mrb[0].mxu0 %v2364
      %v2553 = vpop.f32.mrb[0].mxu0
      %v2554 = vadd.f32 0.0, %v2553
      %v2555 = vpop.f32.mrb[0].mxu0
      %2556 = vmatprep.mubr.f32.mxu0 0.0
      %2557 = vmatmul.mubr.f32.gmra.mrb[0].mxu0 %v2367
      %v2558 = vpop.f32.mrb[0].mxu0
      %v2559 = vadd.f32 0.0, %v2558
      %v2560 = vpop.f32.mrb[0].mxu0
      %2561 = vmatprep.mubr.f32.mxu0 0.0
      %2562 = vmatmul.mubr.f32.gmra.mrb[0].mxu0 %v2370
      %v2563 = vpop.f32.mrb[0].mxu0
      %v2564 = vadd.f32 0.0, %v2563
      %v2565 = vpop.f32.mrb[0].mxu0
      %2566 = vmatprep.mubr.f32.mxu0 0.0
      %2567 = vmatmul.mubr.f32.gmra.mrb[0].mxu0 %v2373
      %v2568 = vpop.f32.mrb[0].mxu0
      %v2569 = vadd.f32 0.0, %v2568
      %v2570 = vpop.f32.mrb[0].mxu0
      %2571 = vmatprep.mubr.f32.mxu0 0.0
      %2572 = vmatmul.mubr.f32.gmra.mrb[0].mxu0 %v2376
      %v2573 = vpop.f32.mrb[0].mxu0
      %v2574 = vadd.f32 0.0, %v2573
      %v2575 = vpop.f32.mrb[0].mxu0
      %2576 = vmatprep.mubr.f32.mxu0 0.0
      %2577 = vmatmul.mubr.f32.gmra.mrb[0].mxu0 %v2379
      %v2578 = vpop.f32.mrb[0].mxu0
      %v2579 = vadd.f32 0.0, %v2578
      %v2580 = vpop.f32.mrb[0].mxu0
      %2581 = vmatprep.mubr.f32.mxu0 0.0
      %2582 = vmatmul.mubr.f32.gmra.mrb[0].mxu0 %v2382
      %v2583 = vpop.f32.mrb[0].mxu0
      %v2584 = vadd.f32 0.0, %v2583
      %v2585 = vpop.f32.mrb[0].mxu0
      %2586 = vmatprep.mubr.f32.mxu0 0.0
      %2587 = vmatmul.mubr.f32.gmra.mrb[0].mxu0 %v2385
      %v2588 = vpop.f32.mrb[0].mxu0
      %v2589 = vadd.f32 0.0, %v2588
      %v2590 = vpop.f32.mrb[0].mxu0
      %2591 = vmatprep.mubr.f32.mxu0 0.0
      %2592 = vmatmul.mubr.f32.gmra.mrb[0].mxu0 %v2388
      %v2593 = vpop.f32.mrb[0].mxu0
      %v2594 = vadd.f32 0.0, %v2593
      %v2595 = vpop.f32.mrb[0].mxu0
      %2596 = vmatprep.mubr.f32.mxu0 0.0
      %2597 = vmatmul.mubr.f32.gmra.mrb[0].mxu0 %v2391
      %v2598 = vpop.f32.mrb[0].mxu0
      %v2599 = vadd.f32 0.0, %v2598
      %v2600 = vpop.f32.mrb[0].mxu0
      %2601 = vmatprep.mubr.f32.mxu0 0.0
      %2602 = vmatmul.mubr.f32.gmra.mrb[0].mxu0 %v2394
      %v2603 = vpop.f32.mrb[0].mxu0
      %v2604 = vadd.f32 0.0, %v2603
      %v2605 = vpop.f32.mrb[0].mxu0
      %2606 = vmatprep.mubr.f32.mxu0 0.0
      %2607 = vmatmul.mubr.f32.gmra.mrb[0].mxu0 %v2397
      %v2608 = vpop.f32.mrb[0].mxu0
      %v2609 = vadd.f32 0.0, %v2608
      %v2610 = vpop.f32.mrb[0].mxu0
      %2611 = vmatprep.mubr.f32.mxu0 0.0
      %2612 = vmatmul.mubr.f32.gmra.mrb[0].mxu0 %v2400
      %v2613 = vpop.f32.mrb[0].mxu0
      %v2614 = vadd.f32 0.0, %v2613
      %v2615 = vpop.f32.mrb[0].mxu0
      %2616 = vmatprep.mubr.f32.mxu0 0.0
      %2617 = vmatmul.mubr.f32.gmra.mrb[0].mxu0 %v2403
      %v2618 = vpop.f32.mrb[0].mxu0
      %v2619 = vadd.f32 0.0, %v2618
      %v2620 = vpop.f32.mrb[0].mxu0
      %2621 = vmatprep.mubr.f32.mxu0 0.0
      %2622 = vmatmul.mubr.f32.gmra.mrb[0].mxu0 %v2406
      %v2623 = vpop.f32.mrb[0].mxu0
      %v2624 = vadd.f32 0.0, %v2623
      %v2625 = vpop.f32.mrb[0].mxu0
      %2626 = vmatprep.mubr.f32.mxu0 0.0
      %2627 = vmatmul.mubr.f32.gmra.mrb[0].mxu0 %v2409
      %v2628 = vpop.f32.mrb[0].mxu0
      %v2629 = vadd.f32 0.0, %v2628
      %v2630 = vpop.f32.mrb[0].mxu0
      %2631 = vmatprep.mubr.f32.mxu0 0.0
      %2632 = vmatmul.mubr.f32.gmra.mrb[0].mxu0 %v2412
      %v2633 = vpop.f32.mrb[0].mxu0
      %v2634 = vadd.f32 0.0, %v2633
      %v2635 = vpop.f32.mrb[0].mxu0
      %2636 = vmatprep.mubr.f32.mxu0 0.0
      %2637 = vmatmul.mubr.f32.gmra.mrb[0].mxu0 %v2415
      %v2638 = vpop.f32.mrb[0].mxu0
      %v2639 = vadd.f32 0.0, %v2638
      %v2640 = vpop.f32.mrb[0].mxu0
      %2641 = vmatprep.mubr.f32.mxu0 0.0
      %2642 = vmatmul.mubr.f32.gmra.mrb[0].mxu0 %v2418
      %v2643 = vpop.f32.mrb[0].mxu0
      %v2644 = vadd.f32 0.0, %v2643
      %v2645 = vpop.f32.mrb[0].mxu0
      %2646 = vmatprep.mubr.f32.mxu0 0.0
      %2647 = vmatmul.mubr.f32.gmra.mrb[0].mxu0 %v2421
      %v2648 = vpop.f32.mrb[0].mxu0
      %v2649 = vadd.f32 0.0, %v2648
      %v2650 = vpop.f32.mrb[0].mxu0
      %2651 = vmatprep.mubr.f32.mxu0 0.0
      %2652 = vmatmul.mubr.f32.gmra.mrb[0].mxu0 %v2424
      %v2653 = vpop.f32.mrb[0].mxu0
      %v2654 = vadd.f32 0.0, %v2653
      %v2655 = vpop.f32.mrb[0].mxu0
      %2656 = vmatprep.mubr.f32.mxu0 0.0
      %2657 = vmatmul.mubr.f32.gmra.mrb[0].mxu0 %v2427
      %v2658 = vpop.f32.mrb[0].mxu0
      %v2659 = vadd.f32 0.0, %v2658
      %v2660 = vpop.f32.mrb[0].mxu0
      %2661 = vmatprep.mubr.f32.mxu0 0.0
      %2662 = vmatmul.mubr.f32.gmra.mrb[0].mxu0 %v2430
      %v2663 = vpop.f32.mrb[0].mxu0
      %v2664 = vadd.f32 0.0, %v2663
      %v2665 = vpop.f32.mrb[0].mxu0
      %2666 = vmatprep.mubr.f32.mxu0 0.0
      %2667 = vmatmul.mubr.f32.gmra.mrb[0].mxu0 %v2433
      %v2668 = vpop.f32.mrb[0].mxu0
      %v2669 = vadd.f32 0.0, %v2668
      %v2670 = vpop.f32.mrb[0].mxu0
      %2671 = vmatprep.mubr.f32.mxu0 0.0
      %2672 = vmatmul.mubr.f32.gmra.mrb[0].mxu0 %v2436
      %v2673 = vpop.f32.mrb[0].mxu0
      %v2674 = vadd.f32 0.0, %v2673
      %v2675 = vpop.f32.mrb[0].mxu0
      %2676 = vmatprep.mubr.f32.mxu0 0.0
      %2677 = vmatmul.mubr.f32.gmra.mrb[0].mxu0 %v2439
      %v2678 = vpop.f32.mrb[0].mxu0
      %v2679 = vadd.f32 0.0, %v2678
      %v2680 = vpop.f32.mrb[0].mxu0
      %2681 = vmatprep.mubr.f32.mxu0 0.0
      %2682 = vmatmul.mubr.f32.gmra.mrb[0].mxu0 %v2442
      %v2683 = vpop.f32.mrb[0].mxu0
      %v2684 = vadd.f32 0.0, %v2683
      %v2685 = vpop.f32.mrb[0].mxu0
      %2686 = vmatprep.mubr.f32.mxu0 0.0
      %2687 = vmatmul.mubr.f32.gmra.mrb[0].mxu0 %v2445
      %v2688 = vpop.f32.mrb[0].mxu0
      %v2689 = vadd.f32 0.0, %v2688
      %v2690 = vpop.f32.mrb[0].mxu0
      %2691 = vdwg.mxu0
      %v2692 = vadd.f32 %v2263, %v2514
      %v2693 = vadd.f32 %v2264, %v2519
      %v2694 = vadd.f32 %v2265, %v2524
      %v2695 = vadd.f32 %v2266, %v2529
      %v2696 = vadd.f32 %v2267, %v2534
      %v2697 = vadd.f32 %v2268, %v2539
      %v2698 = vadd.f32 %v2269, %v2544
      %v2699 = vadd.f32 %v2270, %v2549
      %v2700 = vadd.f32 %v2271, %v2554
      %v2701 = vadd.f32 %v2272, %v2559
      %v2702 = vadd.f32 %v2273, %v2564
      %v2703 = vadd.f32 %v2274, %v2569
      %v2704 = vadd.f32 %v2275, %v2574
      %v2705 = vadd.f32 %v2276, %v2579
      %v2706 = vadd.f32 %v2277, %v2584
      %v2707 = vadd.f32 %v2278, %v2589
      %v2708 = vadd.f32 %v2279, %v2594
      %v2709 = vadd.f32 %v2280, %v2599
      %v2710 = vadd.f32 %v2281, %v2604
      %v2711 = vadd.f32 %v2282, %v2609
      %v2712 = vadd.f32 %v2283, %v2614
      %v2713 = vadd.f32 %v2284, %v2619
      %v2714 = vadd.f32 %v2285, %v2624
      %v2715 = vadd.f32 %v2286, %v2629
      %v2716 = vadd.f32 %v2287, %v2634
      %v2717 = vadd.f32 %v2288, %v2639
      %v2718 = vadd.f32 %v2289, %v2644
      %v2719 = vadd.f32 %v2290, %v2649
      %v2720 = vadd.f32 %v2291, %v2654
      %v2721 = vadd.f32 %v2292, %v2659
      %v2722 = vadd.f32 %v2293, %v2664
      %v2723 = vadd.f32 %v2294, %v2669
      %v2724 = vadd.f32 %v2295, %v2674
      %v2725 = vadd.f32 %v2296, %v2679
      %v2726 = vadd.f32 %v2297, %v2684
      %v2727 = vadd.f32 %v2298, %v2689
      %v2728 = vld [vmem:[%s219 + $0x24] sm:$0xff]
      %v2729 = vld [vmem:[%s219 + $0x2c] sm:$0xff]
      %v2730 = vld [vmem:[%s219 + $0x34] sm:$0xff]
      %v2731 = vld [vmem:[%s219 + $0x3c] sm:$0xff]
      %v2732 = vld [vmem:[%s219 + $0x44] sm:$0xff]
      %v2733 = vld [vmem:[%s219 + $0x4c] sm:$0xff]
      %v2734 = vld [vmem:[%s219 + $0x54] sm:$0xff]
      %v2735 = vld [vmem:[%s219 + $0x5c] sm:$0xff]
      %v2736 = vld [vmem:[%s219 + $0x64] sm:$0xff]
      %v2737 = vld [vmem:[%s219 + $0x6c] sm:$0xff]
      %v2738 = vld [vmem:[%s219 + $0x74] sm:$0xff]
      %v2739 = vld [vmem:[%s219 + $0x7c] sm:$0xff]
      %v2740 = vld [vmem:[%s219 + $0x84] sm:$0xff]
      %v2741 = vld [vmem:[%s219 + $0x8c] sm:$0xff]
      %v2742 = vld [vmem:[%s219 + $0x94] sm:$0xff]
      %v2743 = vld [vmem:[%s219 + $0x9c] sm:$0xff]
      %v2744 = vld [vmem:[%s219 + $0xa4] sm:$0xff]
      %v2745 = vld [vmem:[%s219 + $0xac] sm:$0xff]
      %v2746 = vld [vmem:[%s219 + $0xb4] sm:$0xff]
      %v2747 = vld [vmem:[%s219 + $0xbc] sm:$0xff]
      %v2748 = vld [vmem:[%s219 + $0xc4] sm:$0xff]
      %v2749 = vld [vmem:[%s219 + $0xcc] sm:$0xff]
      %v2750 = vld [vmem:[%s219 + $0xd4] sm:$0xff]
      %v2751 = vld [vmem:[%s219 + $0xdc] sm:$0xff]
      %v2752 = vld [vmem:[%s219 + $0xe4] sm:$0xff]
      %v2753 = vld [vmem:[%s219 + $0xec] sm:$0xff]
      %v2754 = vld [vmem:[%s219 + $0xf4] sm:$0xff]
      %v2755 = vld [vmem:[%s219 + $0xfc] sm:$0xff]
      %v2756 = vld [vmem:[%s219 + $0x104] sm:$0xff]
      %v2757 = vld [vmem:[%s219 + $0x10c] sm:$0xff]
      %v2758 = vld [vmem:[%s219 + $0x114] sm:$0xff]
      %v2759 = vld [vmem:[%s219 + $0x11c] sm:$0xff]
      %v2760 = vld [vmem:[%s219 + $0x124] sm:$0xff]
      %v2761 = vld [vmem:[%s219 + $0x12c] sm:$0xff]
      %v2762 = vld [vmem:[%s219 + $0x134] sm:$0xff]
      %v2763 = vld [vmem:[%s219 + $0x13c] sm:$0xff]
      %v2764 = vld [vmem:[%s1 + $0xc0] sm:$0xff]
      %v2765 = vld [vmem:[%s1 + $0xc8] sm:$0xff]
      %v2766 = vld [vmem:[%s1 + $0xd0] sm:$0xff]
      %v2767 = vld [vmem:[%s1 + $0xd8] sm:$0xff]
      %v2769 = vsel %vm305, %v2728, 0
      %v2772 = vsel %vm305, %v2729, 0
      %v2775 = vsel %vm305, %v2730, 0
      %v2778 = vsel %vm305, %v2731, 0
      %v2781 = vsel %vm305, %v2732, 0
      %v2784 = vsel %vm305, %v2733, 0
      %v2787 = vsel %vm305, %v2734, 0
      %v2790 = vsel %vm305, %v2735, 0
      %v2793 = vsel %vm305, %v2736, 0
      %v2796 = vsel %vm305, %v2737, 0
      %v2799 = vsel %vm305, %v2738, 0
      %v2802 = vsel %vm305, %v2739, 0
      %v2805 = vsel %vm305, %v2740, 0
      %v2808 = vsel %vm305, %v2741, 0
      %v2811 = vsel %vm305, %v2742, 0
      %v2814 = vsel %vm305, %v2743, 0
      %v2817 = vsel %vm305, %v2744, 0
      %v2820 = vsel %vm305, %v2745, 0
      %v2823 = vsel %vm305, %v2746, 0
      %v2826 = vsel %vm305, %v2747, 0
      %v2829 = vsel %vm305, %v2748, 0
      %v2832 = vsel %vm305, %v2749, 0
      %v2835 = vsel %vm305, %v2750, 0
      %v2838 = vsel %vm305, %v2751, 0
      %v2841 = vsel %vm305, %v2752, 0
      %v2844 = vsel %vm305, %v2753, 0
      %v2847 = vsel %vm305, %v2754, 0
      %v2850 = vsel %vm305, %v2755, 0
      %v2853 = vsel %vm305, %v2756, 0
      %v2856 = vsel %vm305, %v2757, 0
      %v2859 = vsel %vm305, %v2758, 0
      %v2862 = vsel %vm305, %v2759, 0
      %v2865 = vsel %vm305, %v2760, 0
      %v2868 = vsel %vm305, %v2761, 0
      %v2871 = vsel %vm305, %v2762, 0
      %v2874 = vsel %vm305, %v2763, 0
      %2876 = vmatprep.subr.mxu0 0.0
      %2877 = vmatpush1.msra.mxu0 %v2764
      %2878 = vmatprep.subr.mxu0 0.0
      %2879 = vmatpush1.msra.mxu0 %v2765
      %2880 = vmatprep.subr.mxu0 0.0
      %2881 = vmatpush1.msra.mxu0 %v2766
      %2882 = vmatprep.subr.mxu0 0.0
      %2883 = vmatpush1.msra.mxu0 %v2767
      %2884 = vmatprep.subr.mxu0 0.0
      %2885 = vmatpush1.msra.mxu0 0.0
      %2886 = vmatprep.subr.mxu0 0.0
      %2887 = vmatpush1.msra.mxu0 0.0
      %2888 = vmatprep.subr.mxu0 0.0
      %2889 = vmatpush1.msra.mxu0 0.0
      %2890 = vmatprep.subr.mxu0 0.0
      %2891 = vmatpush1.msra.mxu0 0.0
      %2892 = vmatprep.subr.mxu0 0.0
      %2893 = vmatpush1.msra.mxu0 0.0
      %2894 = vmatprep.subr.mxu0 0.0
      %2895 = vmatpush1.msra.mxu0 0.0
      %2896 = vmatprep.subr.mxu0 0.0
      %2897 = vmatpush1.msra.mxu0 0.0
      %2898 = vmatprep.subr.mxu0 0.0
      %2899 = vmatpush1.msra.mxu0 0.0
      %2900 = vmatprep.subr.mxu0 0.0
      %2901 = vmatpush1.msra.mxu0 0.0
      %2902 = vmatprep.subr.mxu0 0.0
      %2903 = vmatpush1.msra.mxu0 0.0
      %2904 = vmatprep.subr.mxu0 0.0
      %2905 = vmatpush1.msra.mxu0 0.0
      %2906 = vmatprep.subr.mxu0 0.0
      %2907 = vmatpush1.msra.mxu0 0.0
      %2908 = vmatprep.subr.mxu0 0.0
      %2909 = vmatpush1.msra.mxu0 0.0
      %2910 = vmatprep.subr.mxu0 0.0
      %2911 = vmatpush1.msra.mxu0 0.0
      %2912 = vmatprep.subr.mxu0 0.0
      %2913 = vmatpush1.msra.mxu0 0.0
      %2914 = vmatprep.subr.mxu0 0.0
      %2915 = vmatpush1.msra.mxu0 0.0
      %2916 = vmatprep.subr.mxu0 0.0
      %2917 = vmatpush1.msra.mxu0 0.0
      %2918 = vmatprep.subr.mxu0 0.0
      %2919 = vmatpush1.msra.mxu0 0.0
      %2920 = vmatprep.subr.mxu0 0.0
      %2921 = vmatpush1.msra.mxu0 0.0
      %2922 = vmatprep.subr.mxu0 0.0
      %2923 = vmatpush1.msra.mxu0 0.0
      %2924 = vmatprep.subr.mxu0 0.0
      %2925 = vmatpush1.msra.mxu0 0.0
      %2926 = vmatprep.subr.mxu0 0.0
      %2927 = vmatpush1.msra.mxu0 0.0
      %2928 = vmatprep.subr.mxu0 0.0
      %2929 = vmatpush1.msra.mxu0 0.0
      %2930 = vmatprep.subr.mxu0 0.0
      %2931 = vmatpush1.msra.mxu0 0.0
      %2932 = vmatprep.subr.mxu0 0.0
      %2933 = vmatpush1.msra.mxu0 0.0
      %2934 = vmatprep.subr.mxu0 0.0
      %2935 = vmatpush1.msra.mxu0 0.0
      %2936 = vmatprep.subr.mxu0 0.0
      %2937 = vmatpush1.msra.mxu0 0.0
      %2938 = vmatprep.subr.mxu0 0.0
      %2939 = vmatpush1.msra.mxu0 0.0
      %2940 = vmatprep.mubr.f32.mxu0 0.0
      %2941 = vmatmul.mubr.f32.gmra.mrb[0].mxu0 %v2769
      %v2942 = vpop.f32.mrb[0].mxu0
      %v2943 = vadd.f32 0.0, %v2942
      %v2944 = vpop.f32.mrb[0].mxu0
      %2945 = vmatprep.mubr.f32.mxu0 0.0
      %2946 = vmatmul.mubr.f32.gmra.mrb[0].mxu0 %v2772
      %v2947 = vpop.f32.mrb[0].mxu0
      %v2948 = vadd.f32 0.0, %v2947
      %v2949 = vpop.f32.mrb[0].mxu0
      %2950 = vmatprep.mubr.f32.mxu0 0.0
      %2951 = vmatmul.mubr.f32.gmra.mrb[0].mxu0 %v2775
      %v2952 = vpop.f32.mrb[0].mxu0
      %v2953 = vadd.f32 0.0, %v2952
      %v2954 = vpop.f32.mrb[0].mxu0
      %2955 = vmatprep.mubr.f32.mxu0 0.0
      %2956 = vmatmul.mubr.f32.gmra.mrb[0].mxu0 %v2778
      %v2957 = vpop.f32.mrb[0].mxu0
      %v2958 = vadd.f32 0.0, %v2957
      %v2959 = vpop.f32.mrb[0].mxu0
      %2960 = vmatprep.mubr.f32.mxu0 0.0
      %2961 = vmatmul.mubr.f32.gmra.mrb[0].mxu0 %v2781
      %v2962 = vpop.f32.mrb[0].mxu0
      %v2963 = vadd.f32 0.0, %v2962
      %v2964 = vpop.f32.mrb[0].mxu0
      %2965 = vmatprep.mubr.f32.mxu0 0.0
      %2966 = vmatmul.mubr.f32.gmra.mrb[0].mxu0 %v2784
      %v2967 = vpop.f32.mrb[0].mxu0
      %v2968 = vadd.f32 0.0, %v2967
      %v2969 = vpop.f32.mrb[0].mxu0
      %2970 = vmatprep.mubr.f32.mxu0 0.0
      %2971 = vmatmul.mubr.f32.gmra.mrb[0].mxu0 %v2787
      %v2972 = vpop.f32.mrb[0].mxu0
      %v2973 = vadd.f32 0.0, %v2972
      %v2974 = vpop.f32.mrb[0].mxu0
      %2975 = vmatprep.mubr.f32.mxu0 0.0
      %2976 = vmatmul.mubr.f32.gmra.mrb[0].mxu0 %v2790
      %v2977 = vpop.f32.mrb[0].mxu0
      %v2978 = vadd.f32 0.0, %v2977
      %v2979 = vpop.f32.mrb[0].mxu0
      %2980 = vmatprep.mubr.f32.mxu0 0.0
      %2981 = vmatmul.mubr.f32.gmra.mrb[0].mxu0 %v2793
      %v2982 = vpop.f32.mrb[0].mxu0
      %v2983 = vadd.f32 0.0, %v2982
      %v2984 = vpop.f32.mrb[0].mxu0
      %2985 = vmatprep.mubr.f32.mxu0 0.0
      %2986 = vmatmul.mubr.f32.gmra.mrb[0].mxu0 %v2796
      %v2987 = vpop.f32.mrb[0].mxu0
      %v2988 = vadd.f32 0.0, %v2987
      %v2989 = vpop.f32.mrb[0].mxu0
      %2990 = vmatprep.mubr.f32.mxu0 0.0
      %2991 = vmatmul.mubr.f32.gmra.mrb[0].mxu0 %v2799
      %v2992 = vpop.f32.mrb[0].mxu0
      %v2993 = vadd.f32 0.0, %v2992
      %v2994 = vpop.f32.mrb[0].mxu0
      %2995 = vmatprep.mubr.f32.mxu0 0.0
      %2996 = vmatmul.mubr.f32.gmra.mrb[0].mxu0 %v2802
      %v2997 = vpop.f32.mrb[0].mxu0
      %v2998 = vadd.f32 0.0, %v2997
      %v2999 = vpop.f32.mrb[0].mxu0
      %3000 = vmatprep.mubr.f32.mxu0 0.0
      %3001 = vmatmul.mubr.f32.gmra.mrb[0].mxu0 %v2805
      %v3002 = vpop.f32.mrb[0].mxu0
      %v3003 = vadd.f32 0.0, %v3002
      %v3004 = vpop.f32.mrb[0].mxu0
      %3005 = vmatprep.mubr.f32.mxu0 0.0
      %3006 = vmatmul.mubr.f32.gmra.mrb[0].mxu0 %v2808
      %v3007 = vpop.f32.mrb[0].mxu0
      %v3008 = vadd.f32 0.0, %v3007
      %v3009 = vpop.f32.mrb[0].mxu0
      %3010 = vmatprep.mubr.f32.mxu0 0.0
      %3011 = vmatmul.mubr.f32.gmra.mrb[0].mxu0 %v2811
      %v3012 = vpop.f32.mrb[0].mxu0
      %v3013 = vadd.f32 0.0, %v3012
      %v3014 = vpop.f32.mrb[0].mxu0
      %3015 = vmatprep.mubr.f32.mxu0 0.0
      %3016 = vmatmul.mubr.f32.gmra.mrb[0].mxu0 %v2814
      %v3017 = vpop.f32.mrb[0].mxu0
      %v3018 = vadd.f32 0.0, %v3017
      %v3019 = vpop.f32.mrb[0].mxu0
      %3020 = vmatprep.mubr.f32.mxu0 0.0
      %3021 = vmatmul.mubr.f32.gmra.mrb[0].mxu0 %v2817
      %v3022 = vpop.f32.mrb[0].mxu0
      %v3023 = vadd.f32 0.0, %v3022
      %v3024 = vpop.f32.mrb[0].mxu0
      %3025 = vmatprep.mubr.f32.mxu0 0.0
      %3026 = vmatmul.mubr.f32.gmra.mrb[0].mxu0 %v2820
      %v3027 = vpop.f32.mrb[0].mxu0
      %v3028 = vadd.f32 0.0, %v3027
      %v3029 = vpop.f32.mrb[0].mxu0
      %3030 = vmatprep.mubr.f32.mxu0 0.0
      %3031 = vmatmul.mubr.f32.gmra.mrb[0].mxu0 %v2823
      %v3032 = vpop.f32.mrb[0].mxu0
      %v3033 = vadd.f32 0.0, %v3032
      %v3034 = vpop.f32.mrb[0].mxu0
      %3035 = vmatprep.mubr.f32.mxu0 0.0
      %3036 = vmatmul.mubr.f32.gmra.mrb[0].mxu0 %v2826
      %v3037 = vpop.f32.mrb[0].mxu0
      %v3038 = vadd.f32 0.0, %v3037
      %v3039 = vpop.f32.mrb[0].mxu0
      %3040 = vmatprep.mubr.f32.mxu0 0.0
      %3041 = vmatmul.mubr.f32.gmra.mrb[0].mxu0 %v2829
      %v3042 = vpop.f32.mrb[0].mxu0
      %v3043 = vadd.f32 0.0, %v3042
      %v3044 = vpop.f32.mrb[0].mxu0
      %3045 = vmatprep.mubr.f32.mxu0 0.0
      %3046 = vmatmul.mubr.f32.gmra.mrb[0].mxu0 %v2832
      %v3047 = vpop.f32.mrb[0].mxu0
      %v3048 = vadd.f32 0.0, %v3047
      %v3049 = vpop.f32.mrb[0].mxu0
      %3050 = vmatprep.mubr.f32.mxu0 0.0
      %3051 = vmatmul.mubr.f32.gmra.mrb[0].mxu0 %v2835
      %v3052 = vpop.f32.mrb[0].mxu0
      %v3053 = vadd.f32 0.0, %v3052
      %v3054 = vpop.f32.mrb[0].mxu0
      %3055 = vmatprep.mubr.f32.mxu0 0.0
      %3056 = vmatmul.mubr.f32.gmra.mrb[0].mxu0 %v2838
      %v3057 = vpop.f32.mrb[0].mxu0
      %v3058 = vadd.f32 0.0, %v3057
      %v3059 = vpop.f32.mrb[0].mxu0
      %3060 = vmatprep.mubr.f32.mxu0 0.0
      %3061 = vmatmul.mubr.f32.gmra.mrb[0].mxu0 %v2841
      %v3062 = vpop.f32.mrb[0].mxu0
      %v3063 = vadd.f32 0.0, %v3062
      %v3064 = vpop.f32.mrb[0].mxu0
      %3065 = vmatprep.mubr.f32.mxu0 0.0
      %3066 = vmatmul.mubr.f32.gmra.mrb[0].mxu0 %v2844
      %v3067 = vpop.f32.mrb[0].mxu0
      %v3068 = vadd.f32 0.0, %v3067
      %v3069 = vpop.f32.mrb[0].mxu0
      %3070 = vmatprep.mubr.f32.mxu0 0.0
      %3071 = vmatmul.mubr.f32.gmra.mrb[0].mxu0 %v2847
      %v3072 = vpop.f32.mrb[0].mxu0
      %v3073 = vadd.f32 0.0, %v3072
      %v3074 = vpop.f32.mrb[0].mxu0
      %3075 = vmatprep.mubr.f32.mxu0 0.0
      %3076 = vmatmul.mubr.f32.gmra.mrb[0].mxu0 %v2850
      %v3077 = vpop.f32.mrb[0].mxu0
      %v3078 = vadd.f32 0.0, %v3077
      %v3079 = vpop.f32.mrb[0].mxu0
      %3080 = vmatprep.mubr.f32.mxu0 0.0
      %3081 = vmatmul.mubr.f32.gmra.mrb[0].mxu0 %v2853
      %v3082 = vpop.f32.mrb[0].mxu0
      %v3083 = vadd.f32 0.0, %v3082
      %v3084 = vpop.f32.mrb[0].mxu0
      %3085 = vmatprep.mubr.f32.mxu0 0.0
      %3086 = vmatmul.mubr.f32.gmra.mrb[0].mxu0 %v2856
      %v3087 = vpop.f32.mrb[0].mxu0
      %v3088 = vadd.f32 0.0, %v3087
      %v3089 = vpop.f32.mrb[0].mxu0
      %3090 = vmatprep.mubr.f32.mxu0 0.0
      %3091 = vmatmul.mubr.f32.gmra.mrb[0].mxu0 %v2859
      %v3092 = vpop.f32.mrb[0].mxu0
      %v3093 = vadd.f32 0.0, %v3092
      %v3094 = vpop.f32.mrb[0].mxu0
      %3095 = vmatprep.mubr.f32.mxu0 0.0
      %3096 = vmatmul.mubr.f32.gmra.mrb[0].mxu0 %v2862
      %v3097 = vpop.f32.mrb[0].mxu0
      %v3098 = vadd.f32 0.0, %v3097
      %v3099 = vpop.f32.mrb[0].mxu0
      %3100 = vmatprep.mubr.f32.mxu0 0.0
      %3101 = vmatmul.mubr.f32.gmra.mrb[0].mxu0 %v2865
      %v3102 = vpop.f32.mrb[0].mxu0
      %v3103 = vadd.f32 0.0, %v3102
      %v3104 = vpop.f32.mrb[0].mxu0
      %3105 = vmatprep.mubr.f32.mxu0 0.0
      %3106 = vmatmul.mubr.f32.gmra.mrb[0].mxu0 %v2868
      %v3107 = vpop.f32.mrb[0].mxu0
      %v3108 = vadd.f32 0.0, %v3107
      %v3109 = vpop.f32.mrb[0].mxu0
      %3110 = vmatprep.mubr.f32.mxu0 0.0
      %3111 = vmatmul.mubr.f32.gmra.mrb[0].mxu0 %v2871
      %v3112 = vpop.f32.mrb[0].mxu0
      %v3113 = vadd.f32 0.0, %v3112
      %v3114 = vpop.f32.mrb[0].mxu0
      %3115 = vmatprep.mubr.f32.mxu0 0.0
      %3116 = vmatmul.mubr.f32.gmra.mrb[0].mxu0 %v2874
      %v3117 = vpop.f32.mrb[0].mxu0
      %v3118 = vadd.f32 0.0, %v3117
      %v3119 = vpop.f32.mrb[0].mxu0
      %3120 = vdwg.mxu0
      %v3121 = vadd.f32 %v2692, %v2943
      %v3122 = vadd.f32 %v2693, %v2948
      %v3123 = vadd.f32 %v2694, %v2953
      %v3124 = vadd.f32 %v2695, %v2958
      %v3125 = vadd.f32 %v2696, %v2963
      %v3126 = vadd.f32 %v2697, %v2968
      %v3127 = vadd.f32 %v2698, %v2973
      %v3128 = vadd.f32 %v2699, %v2978
      %v3129 = vadd.f32 %v2700, %v2983
      %v3130 = vadd.f32 %v2701, %v2988
      %v3131 = vadd.f32 %v2702, %v2993
      %v3132 = vadd.f32 %v2703, %v2998
      %v3133 = vadd.f32 %v2704, %v3003
      %v3134 = vadd.f32 %v2705, %v3008
      %v3135 = vadd.f32 %v2706, %v3013
      %v3136 = vadd.f32 %v2707, %v3018
      %v3137 = vadd.f32 %v2708, %v3023
      %v3138 = vadd.f32 %v2709, %v3028
      %v3139 = vadd.f32 %v2710, %v3033
      %v3140 = vadd.f32 %v2711, %v3038
      %v3141 = vadd.f32 %v2712, %v3043
      %v3142 = vadd.f32 %v2713, %v3048
      %v3143 = vadd.f32 %v2714, %v3053
      %v3144 = vadd.f32 %v2715, %v3058
      %v3145 = vadd.f32 %v2716, %v3063
      %v3146 = vadd.f32 %v2717, %v3068
      %v3147 = vadd.f32 %v2718, %v3073
      %v3148 = vadd.f32 %v2719, %v3078
      %v3149 = vadd.f32 %v2720, %v3083
      %v3150 = vadd.f32 %v2721, %v3088
      %v3151 = vadd.f32 %v2722, %v3093
      %v3152 = vadd.f32 %v2723, %v3098
      %v3153 = vadd.f32 %v2724, %v3103
      %v3154 = vadd.f32 %v2725, %v3108
      %v3155 = vadd.f32 %v2726, %v3113
      %v3156 = vadd.f32 %v2727, %v3118
      %v3157 = vld [vmem:[%s219 + $0x25] sm:$0xff]
      %v3158 = vld [vmem:[%s219 + $0x2d] sm:$0xff]
      %v3159 = vld [vmem:[%s219 + $0x35] sm:$0xff]
      %v3160 = vld [vmem:[%s219 + $0x3d] sm:$0xff]
      %v3161 = vld [vmem:[%s219 + $0x45] sm:$0xff]
      %v3162 = vld [vmem:[%s219 + $0x4d] sm:$0xff]
      %v3163 = vld [vmem:[%s219 + $0x55] sm:$0xff]
      %v3164 = vld [vmem:[%s219 + $0x5d] sm:$0xff]
      %v3165 = vld [vmem:[%s219 + $0x65] sm:$0xff]
      %v3166 = vld [vmem:[%s219 + $0x6d] sm:$0xff]
      %v3167 = vld [vmem:[%s219 + $0x75] sm:$0xff]
      %v3168 = vld [vmem:[%s219 + $0x7d] sm:$0xff]
      %v3169 = vld [vmem:[%s219 + $0x85] sm:$0xff]
      %v3170 = vld [vmem:[%s219 + $0x8d] sm:$0xff]
      %v3171 = vld [vmem:[%s219 + $0x95] sm:$0xff]
      %v3172 = vld [vmem:[%s219 + $0x9d] sm:$0xff]
      %v3173 = vld [vmem:[%s219 + $0xa5] sm:$0xff]
      %v3174 = vld [vmem:[%s219 + $0xad] sm:$0xff]
      %v3175 = vld [vmem:[%s219 + $0xb5] sm:$0xff]
      %v3176 = vld [vmem:[%s219 + $0xbd] sm:$0xff]
      %v3177 = vld [vmem:[%s219 + $0xc5] sm:$0xff]
      %v3178 = vld [vmem:[%s219 + $0xcd] sm:$0xff]
      %v3179 = vld [vmem:[%s219 + $0xd5] sm:$0xff]
      %v3180 = vld [vmem:[%s219 + $0xdd] sm:$0xff]
      %v3181 = vld [vmem:[%s219 + $0xe5] sm:$0xff]
      %v3182 = vld [vmem:[%s219 + $0xed] sm:$0xff]
      %v3183 = vld [vmem:[%s219 + $0xf5] sm:$0xff]
      %v3184 = vld [vmem:[%s219 + $0xfd] sm:$0xff]
      %v3185 = vld [vmem:[%s219 + $0x105] sm:$0xff]
      %v3186 = vld [vmem:[%s219 + $0x10d] sm:$0xff]
      %v3187 = vld [vmem:[%s219 + $0x115] sm:$0xff]
      %v3188 = vld [vmem:[%s219 + $0x11d] sm:$0xff]
      %v3189 = vld [vmem:[%s219 + $0x125] sm:$0xff]
      %v3190 = vld [vmem:[%s219 + $0x12d] sm:$0xff]
      %v3191 = vld [vmem:[%s219 + $0x135] sm:$0xff]
      %v3192 = vld [vmem:[%s219 + $0x13d] sm:$0xff]
      %v3193 = vld [vmem:[%s1 + $0xe0] sm:$0xff]
      %v3194 = vld [vmem:[%s1 + $0xe8] sm:$0xff]
      %v3195 = vld [vmem:[%s1 + $0xf0] sm:$0xff]
      %v3196 = vld [vmem:[%s1 + $0xf8] sm:$0xff]
      %v3198 = vsel %vm305, %v3157, 0
      %v3201 = vsel %vm305, %v3158, 0
      %v3204 = vsel %vm305, %v3159, 0
      %v3207 = vsel %vm305, %v3160, 0
      %v3210 = vsel %vm305, %v3161, 0
      %v3213 = vsel %vm305, %v3162, 0
      %v3216 = vsel %vm305, %v3163, 0
      %v3219 = vsel %vm305, %v3164, 0
      %v3222 = vsel %vm305, %v3165, 0
      %v3225 = vsel %vm305, %v3166, 0
      %v3228 = vsel %vm305, %v3167, 0
      %v3231 = vsel %vm305, %v3168, 0
      %v3234 = vsel %vm305, %v3169, 0
      %v3237 = vsel %vm305, %v3170, 0
      %v3240 = vsel %vm305, %v3171, 0
      %v3243 = vsel %vm305, %v3172, 0
      %v3246 = vsel %vm305, %v3173, 0
      %v3249 = vsel %vm305, %v3174, 0
      %v3252 = vsel %vm305, %v3175, 0
      %v3255 = vsel %vm305, %v3176, 0
      %v3258 = vsel %vm305, %v3177, 0
      %v3261 = vsel %vm305, %v3178, 0
      %v3264 = vsel %vm305, %v3179, 0
      %v3267 = vsel %vm305, %v3180, 0
      %v3270 = vsel %vm305, %v3181, 0
      %v3273 = vsel %vm305, %v3182, 0
      %v3276 = vsel %vm305, %v3183, 0
      %v3279 = vsel %vm305, %v3184, 0
      %v3282 = vsel %vm305, %v3185, 0
      %v3285 = vsel %vm305, %v3186, 0
      %v3288 = vsel %vm305, %v3187, 0
      %v3291 = vsel %vm305, %v3188, 0
      %v3294 = vsel %vm305, %v3189, 0
      %v3297 = vsel %vm305, %v3190, 0
      %v3300 = vsel %vm305, %v3191, 0
      %v3303 = vsel %vm305, %v3192, 0
      %3305 = vmatprep.subr.mxu0 0.0
      %3306 = vmatpush1.msra.mxu0 %v3193
      %3307 = vmatprep.subr.mxu0 0.0
      %3308 = vmatpush1.msra.mxu0 %v3194
      %3309 = vmatprep.subr.mxu0 0.0
      %3310 = vmatpush1.msra.mxu0 %v3195
      %3311 = vmatprep.subr.mxu0 0.0
      %3312 = vmatpush1.msra.mxu0 %v3196
      %3313 = vmatprep.subr.mxu0 0.0
      %3314 = vmatpush1.msra.mxu0 0.0
      %3315 = vmatprep.subr.mxu0 0.0
      %3316 = vmatpush1.msra.mxu0 0.0
      %3317 = vmatprep.subr.mxu0 0.0
      %3318 = vmatpush1.msra.mxu0 0.0
      %3319 = vmatprep.subr.mxu0 0.0
      %3320 = vmatpush1.msra.mxu0 0.0
      %3321 = vmatprep.subr.mxu0 0.0
      %3322 = vmatpush1.msra.mxu0 0.0
      %3323 = vmatprep.subr.mxu0 0.0
      %3324 = vmatpush1.msra.mxu0 0.0
      %3325 = vmatprep.subr.mxu0 0.0
      %3326 = vmatpush1.msra.mxu0 0.0
      %3327 = vmatprep.subr.mxu0 0.0
      %3328 = vmatpush1.msra.mxu0 0.0
      %3329 = vmatprep.subr.mxu0 0.0
      %3330 = vmatpush1.msra.mxu0 0.0
      %3331 = vmatprep.subr.mxu0 0.0
      %3332 = vmatpush1.msra.mxu0 0.0
      %3333 = vmatprep.subr.mxu0 0.0
      %3334 = vmatpush1.msra.mxu0 0.0
      %3335 = vmatprep.subr.mxu0 0.0
      %3336 = vmatpush1.msra.mxu0 0.0
      %3337 = vmatprep.subr.mxu0 0.0
      %3338 = vmatpush1.msra.mxu0 0.0
      %3339 = vmatprep.subr.mxu0 0.0
      %3340 = vmatpush1.msra.mxu0 0.0
      %3341 = vmatprep.subr.mxu0 0.0
      %3342 = vmatpush1.msra.mxu0 0.0
      %3343 = vmatprep.subr.mxu0 0.0
      %3344 = vmatpush1.msra.mxu0 0.0
      %3345 = vmatprep.subr.mxu0 0.0
      %3346 = vmatpush1.msra.mxu0 0.0
      %3347 = vmatprep.subr.mxu0 0.0
      %3348 = vmatpush1.msra.mxu0 0.0
      %3349 = vmatprep.subr.mxu0 0.0
      %3350 = vmatpush1.msra.mxu0 0.0
      %3351 = vmatprep.subr.mxu0 0.0
      %3352 = vmatpush1.msra.mxu0 0.0
      %3353 = vmatprep.subr.mxu0 0.0
      %3354 = vmatpush1.msra.mxu0 0.0
      %3355 = vmatprep.subr.mxu0 0.0
      %3356 = vmatpush1.msra.mxu0 0.0
      %3357 = vmatprep.subr.mxu0 0.0
      %3358 = vmatpush1.msra.mxu0 0.0
      %3359 = vmatprep.subr.mxu0 0.0
      %3360 = vmatpush1.msra.mxu0 0.0
      %3361 = vmatprep.subr.mxu0 0.0
      %3362 = vmatpush1.msra.mxu0 0.0
      %3363 = vmatprep.subr.mxu0 0.0
      %3364 = vmatpush1.msra.mxu0 0.0
      %3365 = vmatprep.subr.mxu0 0.0
      %3366 = vmatpush1.msra.mxu0 0.0
      %3367 = vmatprep.subr.mxu0 0.0
      %3368 = vmatpush1.msra.mxu0 0.0
      %3369 = vmatprep.mubr.f32.mxu0 0.0
      %3370 = vmatmul.mubr.f32.gmra.mrb[0].mxu0 %v3198
      %v3371 = vpop.f32.mrb[0].mxu0
      %v3372 = vadd.f32 0.0, %v3371
      %v3373 = vpop.f32.mrb[0].mxu0
      %3374 = vmatprep.mubr.f32.mxu0 0.0
      %3375 = vmatmul.mubr.f32.gmra.mrb[0].mxu0 %v3201
      %v3376 = vpop.f32.mrb[0].mxu0
      %v3377 = vadd.f32 0.0, %v3376
      %v3378 = vpop.f32.mrb[0].mxu0
      %3379 = vmatprep.mubr.f32.mxu0 0.0
      %3380 = vmatmul.mubr.f32.gmra.mrb[0].mxu0 %v3204
      %v3381 = vpop.f32.mrb[0].mxu0
      %v3382 = vadd.f32 0.0, %v3381
      %v3383 = vpop.f32.mrb[0].mxu0
      %3384 = vmatprep.mubr.f32.mxu0 0.0
      %3385 = vmatmul.mubr.f32.gmra.mrb[0].mxu0 %v3207
      %v3386 = vpop.f32.mrb[0].mxu0
      %v3387 = vadd.f32 0.0, %v3386
      %v3388 = vpop.f32.mrb[0].mxu0
      %3389 = vmatprep.mubr.f32.mxu0 0.0
      %3390 = vmatmul.mubr.f32.gmra.mrb[0].mxu0 %v3210
      %v3391 = vpop.f32.mrb[0].mxu0
      %v3392 = vadd.f32 0.0, %v3391
      %v3393 = vpop.f32.mrb[0].mxu0
      %3394 = vmatprep.mubr.f32.mxu0 0.0
      %3395 = vmatmul.mubr.f32.gmra.mrb[0].mxu0 %v3213
      %v3396 = vpop.f32.mrb[0].mxu0
      %v3397 = vadd.f32 0.0, %v3396
      %v3398 = vpop.f32.mrb[0].mxu0
      %3399 = vmatprep.mubr.f32.mxu0 0.0
      %3400 = vmatmul.mubr.f32.gmra.mrb[0].mxu0 %v3216
      %v3401 = vpop.f32.mrb[0].mxu0
      %v3402 = vadd.f32 0.0, %v3401
      %v3403 = vpop.f32.mrb[0].mxu0
      %3404 = vmatprep.mubr.f32.mxu0 0.0
      %3405 = vmatmul.mubr.f32.gmra.mrb[0].mxu0 %v3219
      %v3406 = vpop.f32.mrb[0].mxu0
      %v3407 = vadd.f32 0.0, %v3406
      %v3408 = vpop.f32.mrb[0].mxu0
      %3409 = vmatprep.mubr.f32.mxu0 0.0
      %3410 = vmatmul.mubr.f32.gmra.mrb[0].mxu0 %v3222
      %v3411 = vpop.f32.mrb[0].mxu0
      %v3412 = vadd.f32 0.0, %v3411
      %v3413 = vpop.f32.mrb[0].mxu0
      %3414 = vmatprep.mubr.f32.mxu0 0.0
      %3415 = vmatmul.mubr.f32.gmra.mrb[0].mxu0 %v3225
      %v3416 = vpop.f32.mrb[0].mxu0
      %v3417 = vadd.f32 0.0, %v3416
      %v3418 = vpop.f32.mrb[0].mxu0
      %3419 = vmatprep.mubr.f32.mxu0 0.0
      %3420 = vmatmul.mubr.f32.gmra.mrb[0].mxu0 %v3228
      %v3421 = vpop.f32.mrb[0].mxu0
      %v3422 = vadd.f32 0.0, %v3421
      %v3423 = vpop.f32.mrb[0].mxu0
      %3424 = vmatprep.mubr.f32.mxu0 0.0
      %3425 = vmatmul.mubr.f32.gmra.mrb[0].mxu0 %v3231
      %v3426 = vpop.f32.mrb[0].mxu0
      %v3427 = vadd.f32 0.0, %v3426
      %v3428 = vpop.f32.mrb[0].mxu0
      %3429 = vmatprep.mubr.f32.mxu0 0.0
      %3430 = vmatmul.mubr.f32.gmra.mrb[0].mxu0 %v3234
      %v3431 = vpop.f32.mrb[0].mxu0
      %v3432 = vadd.f32 0.0, %v3431
      %v3433 = vpop.f32.mrb[0].mxu0
      %3434 = vmatprep.mubr.f32.mxu0 0.0
      %3435 = vmatmul.mubr.f32.gmra.mrb[0].mxu0 %v3237
      %v3436 = vpop.f32.mrb[0].mxu0
      %v3437 = vadd.f32 0.0, %v3436
      %v3438 = vpop.f32.mrb[0].mxu0
      %3439 = vmatprep.mubr.f32.mxu0 0.0
      %3440 = vmatmul.mubr.f32.gmra.mrb[0].mxu0 %v3240
      %v3441 = vpop.f32.mrb[0].mxu0
      %v3442 = vadd.f32 0.0, %v3441
      %v3443 = vpop.f32.mrb[0].mxu0
      %3444 = vmatprep.mubr.f32.mxu0 0.0
      %3445 = vmatmul.mubr.f32.gmra.mrb[0].mxu0 %v3243
      %v3446 = vpop.f32.mrb[0].mxu0
      %v3447 = vadd.f32 0.0, %v3446
      %v3448 = vpop.f32.mrb[0].mxu0
      %3449 = vmatprep.mubr.f32.mxu0 0.0
      %3450 = vmatmul.mubr.f32.gmra.mrb[0].mxu0 %v3246
      %v3451 = vpop.f32.mrb[0].mxu0
      %v3452 = vadd.f32 0.0, %v3451
      %v3453 = vpop.f32.mrb[0].mxu0
      %3454 = vmatprep.mubr.f32.mxu0 0.0
      %3455 = vmatmul.mubr.f32.gmra.mrb[0].mxu0 %v3249
      %v3456 = vpop.f32.mrb[0].mxu0
      %v3457 = vadd.f32 0.0, %v3456
      %v3458 = vpop.f32.mrb[0].mxu0
      %3459 = vmatprep.mubr.f32.mxu0 0.0
      %3460 = vmatmul.mubr.f32.gmra.mrb[0].mxu0 %v3252
      %v3461 = vpop.f32.mrb[0].mxu0
      %v3462 = vadd.f32 0.0, %v3461
      %v3463 = vpop.f32.mrb[0].mxu0
      %3464 = vmatprep.mubr.f32.mxu0 0.0
      %3465 = vmatmul.mubr.f32.gmra.mrb[0].mxu0 %v3255
      %v3466 = vpop.f32.mrb[0].mxu0
      %v3467 = vadd.f32 0.0, %v3466
      %v3468 = vpop.f32.mrb[0].mxu0
      %3469 = vmatprep.mubr.f32.mxu0 0.0
      %3470 = vmatmul.mubr.f32.gmra.mrb[0].mxu0 %v3258
      %v3471 = vpop.f32.mrb[0].mxu0
      %v3472 = vadd.f32 0.0, %v3471
      %v3473 = vpop.f32.mrb[0].mxu0
      %3474 = vmatprep.mubr.f32.mxu0 0.0
      %3475 = vmatmul.mubr.f32.gmra.mrb[0].mxu0 %v3261
      %v3476 = vpop.f32.mrb[0].mxu0
      %v3477 = vadd.f32 0.0, %v3476
      %v3478 = vpop.f32.mrb[0].mxu0
      %3479 = vmatprep.mubr.f32.mxu0 0.0
      %3480 = vmatmul.mubr.f32.gmra.mrb[0].mxu0 %v3264
      %v3481 = vpop.f32.mrb[0].mxu0
      %v3482 = vadd.f32 0.0, %v3481
      %v3483 = vpop.f32.mrb[0].mxu0
      %3484 = vmatprep.mubr.f32.mxu0 0.0
      %3485 = vmatmul.mubr.f32.gmra.mrb[0].mxu0 %v3267
      %v3486 = vpop.f32.mrb[0].mxu0
      %v3487 = vadd.f32 0.0, %v3486
      %v3488 = vpop.f32.mrb[0].mxu0
      %3489 = vmatprep.mubr.f32.mxu0 0.0
      %3490 = vmatmul.mubr.f32.gmra.mrb[0].mxu0 %v3270
      %v3491 = vpop.f32.mrb[0].mxu0
      %v3492 = vadd.f32 0.0, %v3491
      %v3493 = vpop.f32.mrb[0].mxu0
      %3494 = vmatprep.mubr.f32.mxu0 0.0
      %3495 = vmatmul.mubr.f32.gmra.mrb[0].mxu0 %v3273
      %v3496 = vpop.f32.mrb[0].mxu0
      %v3497 = vadd.f32 0.0, %v3496
      %v3498 = vpop.f32.mrb[0].mxu0
      %3499 = vmatprep.mubr.f32.mxu0 0.0
      %3500 = vmatmul.mubr.f32.gmra.mrb[0].mxu0 %v3276
      %v3501 = vpop.f32.mrb[0].mxu0
      %v3502 = vadd.f32 0.0, %v3501
      %v3503 = vpop.f32.mrb[0].mxu0
      %3504 = vmatprep.mubr.f32.mxu0 0.0
      %3505 = vmatmul.mubr.f32.gmra.mrb[0].mxu0 %v3279
      %v3506 = vpop.f32.mrb[0].mxu0
      %v3507 = vadd.f32 0.0, %v3506
      %v3508 = vpop.f32.mrb[0].mxu0
      %3509 = vmatprep.mubr.f32.mxu0 0.0
      %3510 = vmatmul.mubr.f32.gmra.mrb[0].mxu0 %v3282
      %v3511 = vpop.f32.mrb[0].mxu0
      %v3512 = vadd.f32 0.0, %v3511
      %v3513 = vpop.f32.mrb[0].mxu0
      %3514 = vmatprep.mubr.f32.mxu0 0.0
      %3515 = vmatmul.mubr.f32.gmra.mrb[0].mxu0 %v3285
      %v3516 = vpop.f32.mrb[0].mxu0
      %v3517 = vadd.f32 0.0, %v3516
      %v3518 = vpop.f32.mrb[0].mxu0
      %3519 = vmatprep.mubr.f32.mxu0 0.0
      %3520 = vmatmul.mubr.f32.gmra.mrb[0].mxu0 %v3288
      %v3521 = vpop.f32.mrb[0].mxu0
      %v3522 = vadd.f32 0.0, %v3521
      %v3523 = vpop.f32.mrb[0].mxu0
      %3524 = vmatprep.mubr.f32.mxu0 0.0
      %3525 = vmatmul.mubr.f32.gmra.mrb[0].mxu0 %v3291
      %v3526 = vpop.f32.mrb[0].mxu0
      %v3527 = vadd.f32 0.0, %v3526
      %v3528 = vpop.f32.mrb[0].mxu0
      %3529 = vmatprep.mubr.f32.mxu0 0.0
      %3530 = vmatmul.mubr.f32.gmra.mrb[0].mxu0 %v3294
      %v3531 = vpop.f32.mrb[0].mxu0
      %v3532 = vadd.f32 0.0, %v3531
      %v3533 = vpop.f32.mrb[0].mxu0
      %3534 = vmatprep.mubr.f32.mxu0 0.0
      %3535 = vmatmul.mubr.f32.gmra.mrb[0].mxu0 %v3297
      %v3536 = vpop.f32.mrb[0].mxu0
      %v3537 = vadd.f32 0.0, %v3536
      %v3538 = vpop.f32.mrb[0].mxu0
      %3539 = vmatprep.mubr.f32.mxu0 0.0
      %3540 = vmatmul.mubr.f32.gmra.mrb[0].mxu0 %v3300
      %v3541 = vpop.f32.mrb[0].mxu0
      %v3542 = vadd.f32 0.0, %v3541
      %v3543 = vpop.f32.mrb[0].mxu0
      %3544 = vmatprep.mubr.f32.mxu0 0.0
      %3545 = vmatmul.mubr.f32.gmra.mrb[0].mxu0 %v3303
      %v3546 = vpop.f32.mrb[0].mxu0
      %v3547 = vadd.f32 0.0, %v3546
      %v3548 = vpop.f32.mrb[0].mxu0
      %3549 = vdwg.mxu0
      %v3550 = vadd.f32 %v3121, %v3372
      %v3551 = vadd.f32 %v3122, %v3377
      %v3552 = vadd.f32 %v3123, %v3382
      %v3553 = vadd.f32 %v3124, %v3387
      %v3554 = vadd.f32 %v3125, %v3392
      %v3555 = vadd.f32 %v3126, %v3397
      %v3556 = vadd.f32 %v3127, %v3402
      %v3557 = vadd.f32 %v3128, %v3407
      %v3558 = vadd.f32 %v3129, %v3412
      %v3559 = vadd.f32 %v3130, %v3417
      %v3560 = vadd.f32 %v3131, %v3422
      %v3561 = vadd.f32 %v3132, %v3427
      %v3562 = vadd.f32 %v3133, %v3432
      %v3563 = vadd.f32 %v3134, %v3437
      %v3564 = vadd.f32 %v3135, %v3442
      %v3565 = vadd.f32 %v3136, %v3447
      %v3566 = vadd.f32 %v3137, %v3452
      %v3567 = vadd.f32 %v3138, %v3457
      %v3568 = vadd.f32 %v3139, %v3462
      %v3569 = vadd.f32 %v3140, %v3467
      %v3570 = vadd.f32 %v3141, %v3472
      %v3571 = vadd.f32 %v3142, %v3477
      %v3572 = vadd.f32 %v3143, %v3482
      %v3573 = vadd.f32 %v3144, %v3487
      %v3574 = vadd.f32 %v3145, %v3492
      %v3575 = vadd.f32 %v3146, %v3497
      %v3576 = vadd.f32 %v3147, %v3502
      %v3577 = vadd.f32 %v3148, %v3507
      %v3578 = vadd.f32 %v3149, %v3512
      %v3579 = vadd.f32 %v3150, %v3517
      %v3580 = vadd.f32 %v3151, %v3522
      %v3581 = vadd.f32 %v3152, %v3527
      %v3582 = vadd.f32 %v3153, %v3532
      %v3583 = vadd.f32 %v3154, %v3537
      %v3584 = vadd.f32 %v3155, %v3542
      %v3585 = vadd.f32 %v3156, %v3547
      %v3586 = vld [vmem:[%s219 + $0x26] sm:$0xff]
      %v3587 = vld [vmem:[%s219 + $0x2e] sm:$0xff]
      %v3588 = vld [vmem:[%s219 + $0x36] sm:$0xff]
      %v3589 = vld [vmem:[%s219 + $0x3e] sm:$0xff]
      %v3590 = vld [vmem:[%s219 + $0x46] sm:$0xff]
      %v3591 = vld [vmem:[%s219 + $0x4e] sm:$0xff]
      %v3592 = vld [vmem:[%s219 + $0x56] sm:$0xff]
      %v3593 = vld [vmem:[%s219 + $0x5e] sm:$0xff]
      %v3594 = vld [vmem:[%s219 + $0x66] sm:$0xff]
      %v3595 = vld [vmem:[%s219 + $0x6e] sm:$0xff]
      %v3596 = vld [vmem:[%s219 + $0x76] sm:$0xff]
      %v3597 = vld [vmem:[%s219 + $0x7e] sm:$0xff]
      %v3598 = vld [vmem:[%s219 + $0x86] sm:$0xff]
      %v3599 = vld [vmem:[%s219 + $0x8e] sm:$0xff]
      %v3600 = vld [vmem:[%s219 + $0x96] sm:$0xff]
      %v3601 = vld [vmem:[%s219 + $0x9e] sm:$0xff]
      %v3602 = vld [vmem:[%s219 + $0xa6] sm:$0xff]
      %v3603 = vld [vmem:[%s219 + $0xae] sm:$0xff]
      %v3604 = vld [vmem:[%s219 + $0xb6] sm:$0xff]
      %v3605 = vld [vmem:[%s219 + $0xbe] sm:$0xff]
      %v3606 = vld [vmem:[%s219 + $0xc6] sm:$0xff]
      %v3607 = vld [vmem:[%s219 + $0xce] sm:$0xff]
      %v3608 = vld [vmem:[%s219 + $0xd6] sm:$0xff]
      %v3609 = vld [vmem:[%s219 + $0xde] sm:$0xff]
      %v3610 = vld [vmem:[%s219 + $0xe6] sm:$0xff]
      %v3611 = vld [vmem:[%s219 + $0xee] sm:$0xff]
      %v3612 = vld [vmem:[%s219 + $0xf6] sm:$0xff]
      %v3613 = vld [vmem:[%s219 + $0xfe] sm:$0xff]
      %v3614 = vld [vmem:[%s219 + $0x106] sm:$0xff]
      %v3615 = vld [vmem:[%s219 + $0x10e] sm:$0xff]
      %v3616 = vld [vmem:[%s219 + $0x116] sm:$0xff]
      %v3617 = vld [vmem:[%s219 + $0x11e] sm:$0xff]
      %v3618 = vld [vmem:[%s219 + $0x126] sm:$0xff]
      %v3619 = vld [vmem:[%s219 + $0x12e] sm:$0xff]
      %v3620 = vld [vmem:[%s219 + $0x136] sm:$0xff]
      %v3621 = vld [vmem:[%s219 + $0x13e] sm:$0xff]
      %v3622 = vld [vmem:[%s1 + $0x100] sm:$0xff]
      %v3623 = vld [vmem:[%s1 + $0x108] sm:$0xff]
      %v3624 = vld [vmem:[%s1 + $0x110] sm:$0xff]
      %v3625 = vld [vmem:[%s1 + $0x118] sm:$0xff]
      %v3627 = vsel %vm305, %v3586, 0
      %v3630 = vsel %vm305, %v3587, 0
      %v3633 = vsel %vm305, %v3588, 0
      %v3636 = vsel %vm305, %v3589, 0
      %v3639 = vsel %vm305, %v3590, 0
      %v3642 = vsel %vm305, %v3591, 0
      %v3645 = vsel %vm305, %v3592, 0
      %v3648 = vsel %vm305, %v3593, 0
      %v3651 = vsel %vm305, %v3594, 0
      %v3654 = vsel %vm305, %v3595, 0
      %v3657 = vsel %vm305, %v3596, 0
      %v3660 = vsel %vm305, %v3597, 0
      %v3663 = vsel %vm305, %v3598, 0
      %v3666 = vsel %vm305, %v3599, 0
      %v3669 = vsel %vm305, %v3600, 0
      %v3672 = vsel %vm305, %v3601, 0
      %v3675 = vsel %vm305, %v3602, 0
      %v3678 = vsel %vm305, %v3603, 0
      %v3681 = vsel %vm305, %v3604, 0
      %v3684 = vsel %vm305, %v3605, 0
      %v3687 = vsel %vm305, %v3606, 0
      %v3690 = vsel %vm305, %v3607, 0
      %v3693 = vsel %vm305, %v3608, 0
      %v3696 = vsel %vm305, %v3609, 0
      %v3699 = vsel %vm305, %v3610, 0
      %v3702 = vsel %vm305, %v3611, 0
      %v3705 = vsel %vm305, %v3612, 0
      %v3708 = vsel %vm305, %v3613, 0
      %v3711 = vsel %vm305, %v3614, 0
      %v3714 = vsel %vm305, %v3615, 0
      %v3717 = vsel %vm305, %v3616, 0
      %v3720 = vsel %vm305, %v3617, 0
      %v3723 = vsel %vm305, %v3618, 0
      %v3726 = vsel %vm305, %v3619, 0
      %v3729 = vsel %vm305, %v3620, 0
      %v3732 = vsel %vm305, %v3621, 0
      %3734 = vmatprep.subr.mxu0 0.0
      %3735 = vmatpush1.msra.mxu0 %v3622
      %3736 = vmatprep.subr.mxu0 0.0
      %3737 = vmatpush1.msra.mxu0 %v3623
      %3738 = vmatprep.subr.mxu0 0.0
      %3739 = vmatpush1.msra.mxu0 %v3624
      %3740 = vmatprep.subr.mxu0 0.0
      %3741 = vmatpush1.msra.mxu0 %v3625
      %3742 = vmatprep.subr.mxu0 0.0
      %3743 = vmatpush1.msra.mxu0 0.0
      %3744 = vmatprep.subr.mxu0 0.0
      %3745 = vmatpush1.msra.mxu0 0.0
      %3746 = vmatprep.subr.mxu0 0.0
      %3747 = vmatpush1.msra.mxu0 0.0
      %3748 = vmatprep.subr.mxu0 0.0
      %3749 = vmatpush1.msra.mxu0 0.0
      %3750 = vmatprep.subr.mxu0 0.0
      %3751 = vmatpush1.msra.mxu0 0.0
      %3752 = vmatprep.subr.mxu0 0.0
      %3753 = vmatpush1.msra.mxu0 0.0
      %3754 = vmatprep.subr.mxu0 0.0
      %3755 = vmatpush1.msra.mxu0 0.0
      %3756 = vmatprep.subr.mxu0 0.0
      %3757 = vmatpush1.msra.mxu0 0.0
      %3758 = vmatprep.subr.mxu0 0.0
      %3759 = vmatpush1.msra.mxu0 0.0
      %3760 = vmatprep.subr.mxu0 0.0
      %3761 = vmatpush1.msra.mxu0 0.0
      %3762 = vmatprep.subr.mxu0 0.0
      %3763 = vmatpush1.msra.mxu0 0.0
      %3764 = vmatprep.subr.mxu0 0.0
      %3765 = vmatpush1.msra.mxu0 0.0
      %3766 = vmatprep.subr.mxu0 0.0
      %3767 = vmatpush1.msra.mxu0 0.0
      %3768 = vmatprep.subr.mxu0 0.0
      %3769 = vmatpush1.msra.mxu0 0.0
      %3770 = vmatprep.subr.mxu0 0.0
      %3771 = vmatpush1.msra.mxu0 0.0
      %3772 = vmatprep.subr.mxu0 0.0
      %3773 = vmatpush1.msra.mxu0 0.0
      %3774 = vmatprep.subr.mxu0 0.0
      %3775 = vmatpush1.msra.mxu0 0.0
      %3776 = vmatprep.subr.mxu0 0.0
      %3777 = vmatpush1.msra.mxu0 0.0
      %3778 = vmatprep.subr.mxu0 0.0
      %3779 = vmatpush1.msra.mxu0 0.0
      %3780 = vmatprep.subr.mxu0 0.0
      %3781 = vmatpush1.msra.mxu0 0.0
      %3782 = vmatprep.subr.mxu0 0.0
      %3783 = vmatpush1.msra.mxu0 0.0
      %3784 = vmatprep.subr.mxu0 0.0
      %3785 = vmatpush1.msra.mxu0 0.0
      %3786 = vmatprep.subr.mxu0 0.0
      %3787 = vmatpush1.msra.mxu0 0.0
      %3788 = vmatprep.subr.mxu0 0.0
      %3789 = vmatpush1.msra.mxu0 0.0
      %3790 = vmatprep.subr.mxu0 0.0
      %3791 = vmatpush1.msra.mxu0 0.0
      %3792 = vmatprep.subr.mxu0 0.0
      %3793 = vmatpush1.msra.mxu0 0.0
      %3794 = vmatprep.subr.mxu0 0.0
      %3795 = vmatpush1.msra.mxu0 0.0
      %3796 = vmatprep.subr.mxu0 0.0
      %3797 = vmatpush1.msra.mxu0 0.0
      %3798 = vmatprep.mubr.f32.mxu0 0.0
      %3799 = vmatmul.mubr.f32.gmra.mrb[0].mxu0 %v3627
      %v3800 = vpop.f32.mrb[0].mxu0
      %v3801 = vadd.f32 0.0, %v3800
      %v3802 = vpop.f32.mrb[0].mxu0
      %3803 = vmatprep.mubr.f32.mxu0 0.0
      %3804 = vmatmul.mubr.f32.gmra.mrb[0].mxu0 %v3630
      %v3805 = vpop.f32.mrb[0].mxu0
      %v3806 = vadd.f32 0.0, %v3805
      %v3807 = vpop.f32.mrb[0].mxu0
      %3808 = vmatprep.mubr.f32.mxu0 0.0
      %3809 = vmatmul.mubr.f32.gmra.mrb[0].mxu0 %v3633
      %v3810 = vpop.f32.mrb[0].mxu0
      %v3811 = vadd.f32 0.0, %v3810
      %v3812 = vpop.f32.mrb[0].mxu0
      %3813 = vmatprep.mubr.f32.mxu0 0.0
      %3814 = vmatmul.mubr.f32.gmra.mrb[0].mxu0 %v3636
      %v3815 = vpop.f32.mrb[0].mxu0
      %v3816 = vadd.f32 0.0, %v3815
      %v3817 = vpop.f32.mrb[0].mxu0
      %3818 = vmatprep.mubr.f32.mxu0 0.0
      %3819 = vmatmul.mubr.f32.gmra.mrb[0].mxu0 %v3639
      %v3820 = vpop.f32.mrb[0].mxu0
      %v3821 = vadd.f32 0.0, %v3820
      %v3822 = vpop.f32.mrb[0].mxu0
      %3823 = vmatprep.mubr.f32.mxu0 0.0
      %3824 = vmatmul.mubr.f32.gmra.mrb[0].mxu0 %v3642
      %v3825 = vpop.f32.mrb[0].mxu0
      %v3826 = vadd.f32 0.0, %v3825
      %v3827 = vpop.f32.mrb[0].mxu0
      %3828 = vmatprep.mubr.f32.mxu0 0.0
      %3829 = vmatmul.mubr.f32.gmra.mrb[0].mxu0 %v3645
      %v3830 = vpop.f32.mrb[0].mxu0
      %v3831 = vadd.f32 0.0, %v3830
      %v3832 = vpop.f32.mrb[0].mxu0
      %3833 = vmatprep.mubr.f32.mxu0 0.0
      %3834 = vmatmul.mubr.f32.gmra.mrb[0].mxu0 %v3648
      %v3835 = vpop.f32.mrb[0].mxu0
      %v3836 = vadd.f32 0.0, %v3835
      %v3837 = vpop.f32.mrb[0].mxu0
      %3838 = vmatprep.mubr.f32.mxu0 0.0
      %3839 = vmatmul.mubr.f32.gmra.mrb[0].mxu0 %v3651
      %v3840 = vpop.f32.mrb[0].mxu0
      %v3841 = vadd.f32 0.0, %v3840
      %v3842 = vpop.f32.mrb[0].mxu0
      %3843 = vmatprep.mubr.f32.mxu0 0.0
      %3844 = vmatmul.mubr.f32.gmra.mrb[0].mxu0 %v3654
      %v3845 = vpop.f32.mrb[0].mxu0
      %v3846 = vadd.f32 0.0, %v3845
      %v3847 = vpop.f32.mrb[0].mxu0
      %3848 = vmatprep.mubr.f32.mxu0 0.0
      %3849 = vmatmul.mubr.f32.gmra.mrb[0].mxu0 %v3657
      %v3850 = vpop.f32.mrb[0].mxu0
      %v3851 = vadd.f32 0.0, %v3850
      %v3852 = vpop.f32.mrb[0].mxu0
      %3853 = vmatprep.mubr.f32.mxu0 0.0
      %3854 = vmatmul.mubr.f32.gmra.mrb[0].mxu0 %v3660
      %v3855 = vpop.f32.mrb[0].mxu0
      %v3856 = vadd.f32 0.0, %v3855
      %v3857 = vpop.f32.mrb[0].mxu0
      %3858 = vmatprep.mubr.f32.mxu0 0.0
      %3859 = vmatmul.mubr.f32.gmra.mrb[0].mxu0 %v3663
      %v3860 = vpop.f32.mrb[0].mxu0
      %v3861 = vadd.f32 0.0, %v3860
      %v3862 = vpop.f32.mrb[0].mxu0
      %3863 = vmatprep.mubr.f32.mxu0 0.0
      %3864 = vmatmul.mubr.f32.gmra.mrb[0].mxu0 %v3666
      %v3865 = vpop.f32.mrb[0].mxu0
      %v3866 = vadd.f32 0.0, %v3865
      %v3867 = vpop.f32.mrb[0].mxu0
      %3868 = vmatprep.mubr.f32.mxu0 0.0
      %3869 = vmatmul.mubr.f32.gmra.mrb[0].mxu0 %v3669
      %v3870 = vpop.f32.mrb[0].mxu0
      %v3871 = vadd.f32 0.0, %v3870
      %v3872 = vpop.f32.mrb[0].mxu0
      %3873 = vmatprep.mubr.f32.mxu0 0.0
      %3874 = vmatmul.mubr.f32.gmra.mrb[0].mxu0 %v3672
      %v3875 = vpop.f32.mrb[0].mxu0
      %v3876 = vadd.f32 0.0, %v3875
      %v3877 = vpop.f32.mrb[0].mxu0
      %3878 = vmatprep.mubr.f32.mxu0 0.0
      %3879 = vmatmul.mubr.f32.gmra.mrb[0].mxu0 %v3675
      %v3880 = vpop.f32.mrb[0].mxu0
      %v3881 = vadd.f32 0.0, %v3880
      %v3882 = vpop.f32.mrb[0].mxu0
      %3883 = vmatprep.mubr.f32.mxu0 0.0
      %3884 = vmatmul.mubr.f32.gmra.mrb[0].mxu0 %v3678
      %v3885 = vpop.f32.mrb[0].mxu0
      %v3886 = vadd.f32 0.0, %v3885
      %v3887 = vpop.f32.mrb[0].mxu0
      %3888 = vmatprep.mubr.f32.mxu0 0.0
      %3889 = vmatmul.mubr.f32.gmra.mrb[0].mxu0 %v3681
      %v3890 = vpop.f32.mrb[0].mxu0
      %v3891 = vadd.f32 0.0, %v3890
      %v3892 = vpop.f32.mrb[0].mxu0
      %3893 = vmatprep.mubr.f32.mxu0 0.0
      %3894 = vmatmul.mubr.f32.gmra.mrb[0].mxu0 %v3684
      %v3895 = vpop.f32.mrb[0].mxu0
      %v3896 = vadd.f32 0.0, %v3895
      %v3897 = vpop.f32.mrb[0].mxu0
      %3898 = vmatprep.mubr.f32.mxu0 0.0
      %3899 = vmatmul.mubr.f32.gmra.mrb[0].mxu0 %v3687
      %v3900 = vpop.f32.mrb[0].mxu0
      %v3901 = vadd.f32 0.0, %v3900
      %v3902 = vpop.f32.mrb[0].mxu0
      %3903 = vmatprep.mubr.f32.mxu0 0.0
      %3904 = vmatmul.mubr.f32.gmra.mrb[0].mxu0 %v3690
      %v3905 = vpop.f32.mrb[0].mxu0
      %v3906 = vadd.f32 0.0, %v3905
      %v3907 = vpop.f32.mrb[0].mxu0
      %3908 = vmatprep.mubr.f32.mxu0 0.0
      %3909 = vmatmul.mubr.f32.gmra.mrb[0].mxu0 %v3693
      %v3910 = vpop.f32.mrb[0].mxu0
      %v3911 = vadd.f32 0.0, %v3910
      %v3912 = vpop.f32.mrb[0].mxu0
      %3913 = vmatprep.mubr.f32.mxu0 0.0
      %3914 = vmatmul.mubr.f32.gmra.mrb[0].mxu0 %v3696
      %v3915 = vpop.f32.mrb[0].mxu0
      %v3916 = vadd.f32 0.0, %v3915
      %v3917 = vpop.f32.mrb[0].mxu0
      %3918 = vmatprep.mubr.f32.mxu0 0.0
      %3919 = vmatmul.mubr.f32.gmra.mrb[0].mxu0 %v3699
      %v3920 = vpop.f32.mrb[0].mxu0
      %v3921 = vadd.f32 0.0, %v3920
      %v3922 = vpop.f32.mrb[0].mxu0
      %3923 = vmatprep.mubr.f32.mxu0 0.0
      %3924 = vmatmul.mubr.f32.gmra.mrb[0].mxu0 %v3702
      %v3925 = vpop.f32.mrb[0].mxu0
      %v3926 = vadd.f32 0.0, %v3925
      %v3927 = vpop.f32.mrb[0].mxu0
      %3928 = vmatprep.mubr.f32.mxu0 0.0
      %3929 = vmatmul.mubr.f32.gmra.mrb[0].mxu0 %v3705
      %v3930 = vpop.f32.mrb[0].mxu0
      %v3931 = vadd.f32 0.0, %v3930
      %v3932 = vpop.f32.mrb[0].mxu0
      %3933 = vmatprep.mubr.f32.mxu0 0.0
      %3934 = vmatmul.mubr.f32.gmra.mrb[0].mxu0 %v3708
      %v3935 = vpop.f32.mrb[0].mxu0
      %v3936 = vadd.f32 0.0, %v3935
      %v3937 = vpop.f32.mrb[0].mxu0
      %3938 = vmatprep.mubr.f32.mxu0 0.0
      %3939 = vmatmul.mubr.f32.gmra.mrb[0].mxu0 %v3711
      %v3940 = vpop.f32.mrb[0].mxu0
      %v3941 = vadd.f32 0.0, %v3940
      %v3942 = vpop.f32.mrb[0].mxu0
      %3943 = vmatprep.mubr.f32.mxu0 0.0
      %3944 = vmatmul.mubr.f32.gmra.mrb[0].mxu0 %v3714
      %v3945 = vpop.f32.mrb[0].mxu0
      %v3946 = vadd.f32 0.0, %v3945
      %v3947 = vpop.f32.mrb[0].mxu0
      %3948 = vmatprep.mubr.f32.mxu0 0.0
      %3949 = vmatmul.mubr.f32.gmra.mrb[0].mxu0 %v3717
      %v3950 = vpop.f32.mrb[0].mxu0
      %v3951 = vadd.f32 0.0, %v3950
      %v3952 = vpop.f32.mrb[0].mxu0
      %3953 = vmatprep.mubr.f32.mxu0 0.0
      %3954 = vmatmul.mubr.f32.gmra.mrb[0].mxu0 %v3720
      %v3955 = vpop.f32.mrb[0].mxu0
      %v3956 = vadd.f32 0.0, %v3955
      %v3957 = vpop.f32.mrb[0].mxu0
      %3958 = vmatprep.mubr.f32.mxu0 0.0
      %3959 = vmatmul.mubr.f32.gmra.mrb[0].mxu0 %v3723
      %v3960 = vpop.f32.mrb[0].mxu0
      %v3961 = vadd.f32 0.0, %v3960
      %v3962 = vpop.f32.mrb[0].mxu0
      %3963 = vmatprep.mubr.f32.mxu0 0.0
      %3964 = vmatmul.mubr.f32.gmra.mrb[0].mxu0 %v3726
      %v3965 = vpop.f32.mrb[0].mxu0
      %v3966 = vadd.f32 0.0, %v3965
      %v3967 = vpop.f32.mrb[0].mxu0
      %3968 = vmatprep.mubr.f32.mxu0 0.0
      %3969 = vmatmul.mubr.f32.gmra.mrb[0].mxu0 %v3729
      %v3970 = vpop.f32.mrb[0].mxu0
      %v3971 = vadd.f32 0.0, %v3970
      %v3972 = vpop.f32.mrb[0].mxu0
      %3973 = vmatprep.mubr.f32.mxu0 0.0
      %3974 = vmatmul.mubr.f32.gmra.mrb[0].mxu0 %v3732
      %v3975 = vpop.f32.mrb[0].mxu0
      %v3976 = vadd.f32 0.0, %v3975
      %v3977 = vpop.f32.mrb[0].mxu0
      %3978 = vdwg.mxu0
      %v3979 = vadd.f32 %v3550, %v3801
      %v3980 = vadd.f32 %v3551, %v3806
      %v3981 = vadd.f32 %v3552, %v3811
      %v3982 = vadd.f32 %v3553, %v3816
      %v3983 = vadd.f32 %v3554, %v3821
      %v3984 = vadd.f32 %v3555, %v3826
      %v3985 = vadd.f32 %v3556, %v3831
      %v3986 = vadd.f32 %v3557, %v3836
      %v3987 = vadd.f32 %v3558, %v3841
      %v3988 = vadd.f32 %v3559, %v3846
      %v3989 = vadd.f32 %v3560, %v3851
      %v3990 = vadd.f32 %v3561, %v3856
      %v3991 = vadd.f32 %v3562, %v3861
      %v3992 = vadd.f32 %v3563, %v3866
      %v3993 = vadd.f32 %v3564, %v3871
      %v3994 = vadd.f32 %v3565, %v3876
      %v3995 = vadd.f32 %v3566, %v3881
      %v3996 = vadd.f32 %v3567, %v3886
      %v3997 = vadd.f32 %v3568, %v3891
      %v3998 = vadd.f32 %v3569, %v3896
      %v3999 = vadd.f32 %v3570, %v3901
      %v4000 = vadd.f32 %v3571, %v3906
      %v4001 = vadd.f32 %v3572, %v3911
      %v4002 = vadd.f32 %v3573, %v3916
      %v4003 = vadd.f32 %v3574, %v3921
      %v4004 = vadd.f32 %v3575, %v3926
      %v4005 = vadd.f32 %v3576, %v3931
      %v4006 = vadd.f32 %v3577, %v3936
      %v4007 = vadd.f32 %v3578, %v3941
      %v4008 = vadd.f32 %v3579, %v3946
      %v4009 = vadd.f32 %v3580, %v3951
      %v4010 = vadd.f32 %v3581, %v3956
      %v4011 = vadd.f32 %v3582, %v3961
      %v4012 = vadd.f32 %v3583, %v3966
      %v4013 = vadd.f32 %v3584, %v3971
      %v4014 = vadd.f32 %v3585, %v3976
      %v4015 = vld [vmem:[%s3] sm:$0x1]
      %v4017 = vlaneseq
      %v4018 = vshrl.u32 %v4017, 7
      %v4019 = vsub.s32 0, %v4018
      %v4020 = vrot.slane %v4015, %v4019
      %v4022 = vadd.f32 %v3979, %v4020
      %v4023 = vadd.f32 %v3980, %v4020
      %v4024 = vadd.f32 %v3981, %v4020
      %v4025 = vadd.f32 %v3982, %v4020
      %v4026 = vadd.f32 %v3983, %v4020
      %v4027 = vadd.f32 %v3984, %v4020
      %v4028 = vadd.f32 %v3985, %v4020
      %v4029 = vadd.f32 %v3986, %v4020
      %v4030 = vadd.f32 %v3987, %v4020
      %v4031 = vadd.f32 %v3988, %v4020
      %v4032 = vadd.f32 %v3989, %v4020
      %v4033 = vadd.f32 %v3990, %v4020
      %v4034 = vadd.f32 %v3991, %v4020
      %v4035 = vadd.f32 %v3992, %v4020
      %v4036 = vadd.f32 %v3993, %v4020
      %v4037 = vadd.f32 %v3994, %v4020
      %v4038 = vadd.f32 %v3995, %v4020
      %v4039 = vadd.f32 %v3996, %v4020
      %v4040 = vadd.f32 %v3997, %v4020
      %v4041 = vadd.f32 %v3998, %v4020
      %v4042 = vadd.f32 %v3999, %v4020
      %v4043 = vadd.f32 %v4000, %v4020
      %v4044 = vadd.f32 %v4001, %v4020
      %v4045 = vadd.f32 %v4002, %v4020
      %v4046 = vadd.f32 %v4003, %v4020
      %v4047 = vadd.f32 %v4004, %v4020
      %v4048 = vadd.f32 %v4005, %v4020
      %v4049 = vadd.f32 %v4006, %v4020
      %v4050 = vadd.f32 %v4007, %v4020
      %v4051 = vadd.f32 %v4008, %v4020
      %v4052 = vadd.f32 %v4009, %v4020
      %v4053 = vadd.f32 %v4010, %v4020
      %v4054 = vadd.f32 %v4011, %v4020
      %v4055 = vadd.f32 %v4012, %v4020
      %v4056 = vadd.f32 %v4013, %v4020
      %v4057 = vadd.f32 %v4014, %v4020
      %v4058 = vmax.f32 %v4022, 0.0
      %v4059 = vmax.f32 %v4023, 0.0
      %v4060 = vmax.f32 %v4024, 0.0
      %v4061 = vmax.f32 %v4025, 0.0
      %v4062 = vmax.f32 %v4026, 0.0
      %v4063 = vmax.f32 %v4027, 0.0
      %v4064 = vmax.f32 %v4028, 0.0
      %v4065 = vmax.f32 %v4029, 0.0
      %v4066 = vmax.f32 %v4030, 0.0
      %v4067 = vmax.f32 %v4031, 0.0
      %v4068 = vmax.f32 %v4032, 0.0
      %v4069 = vmax.f32 %v4033, 0.0
      %v4070 = vmax.f32 %v4034, 0.0
      %v4071 = vmax.f32 %v4035, 0.0
      %v4072 = vmax.f32 %v4036, 0.0
      %v4073 = vmax.f32 %v4037, 0.0
      %v4074 = vmax.f32 %v4038, 0.0
      %v4075 = vmax.f32 %v4039, 0.0
      %v4076 = vmax.f32 %v4040, 0.0
      %v4077 = vmax.f32 %v4041, 0.0
      %v4078 = vmax.f32 %v4042, 0.0
      %v4079 = vmax.f32 %v4043, 0.0
      %v4080 = vmax.f32 %v4044, 0.0
      %v4081 = vmax.f32 %v4045, 0.0
      %v4082 = vmax.f32 %v4046, 0.0
      %v4083 = vmax.f32 %v4047, 0.0
      %v4084 = vmax.f32 %v4048, 0.0
      %v4085 = vmax.f32 %v4049, 0.0
      %v4086 = vmax.f32 %v4050, 0.0
      %v4087 = vmax.f32 %v4051, 0.0
      %v4088 = vmax.f32 %v4052, 0.0
      %v4089 = vmax.f32 %v4053, 0.0
      %v4090 = vmax.f32 %v4054, 0.0
      %v4091 = vmax.f32 %v4055, 0.0
      %v4092 = vmax.f32 %v4056, 0.0
      %v4093 = vmax.f32 %v4057, 0.0
      %v4094 = vlaneseq
      %v4095 = vshrl.u32 %v4094, 7
      %v4096 = vadd.s32 %v4095, 8
      %v4097 = vadd.s32 %v4095, 16
      %v4098 = vadd.s32 %v4095, 24
      %v4099 = vadd.s32 %v4095, 32
      %v4100 = vadd.s32 %v4095, 40
      %v4101 = vadd.s32 %v4095, 48
      %v4102 = vadd.s32 %v4095, 56
      %v4103 = vadd.s32 %v4095, 64
      %v4104 = vadd.s32 %v4095, 72
      %v4105 = vadd.s32 %v4095, 80
      %v4106 = vadd.s32 %v4095, 88
      %v4107 = vadd.s32 %v4095, 96
      %v4108 = vadd.s32 %v4095, 104
      %v4109 = vadd.s32 %v4095, 112
      %v4110 = vadd.s32 %v4095, 120
      %v4111 = vadd.s32 %v4095, 128
      %v4112 = vadd.s32 %v4095, 136
      %v4113 = vadd.s32 %v4095, 144
      %v4114 = vadd.s32 %v4095, 152
      %v4115 = vadd.s32 %v4095, 160
      %v4116 = vadd.s32 %v4095, 168
      %v4117 = vadd.s32 %v4095, 176
      %v4118 = vadd.s32 %v4095, 184
      %v4119 = vadd.s32 %v4095, 192
      %v4120 = vadd.s32 %v4095, 200
      %v4121 = vadd.s32 %v4095, 208
      %v4122 = vadd.s32 %v4095, 216
      %v4123 = vadd.s32 %v4095, 224
      %v4124 = vadd.s32 %v4095, 232
      %v4125 = vadd.s32 %v4095, 240
      %v4126 = vadd.s32 %v4095, 248
      %v4127 = vadd.s32 %v4095, 256
      %v4128 = vadd.s32 %v4095, 264
      %v4129 = vadd.s32 %v4095, 272
      %v4130 = vadd.s32 %v4095, 280
      %vm4131 = vcmp.lt.s32.totalorder %v4095, 0
      %v4132 = vsub.s32 0, %v4095
      %v4133 = vsel %vm4131, %v4132, %v4095
      %v4134 = vmul.u32.u64.compose %v4133, 3817748708
      %v4135 = vextract.low.u32 %v4134
      %v4136 = vextract.high.u32 %v4134
      %v4137 = vshrl.u32 %v4136, 4
      %v4138 = vmul.u32 %v4137, 18
      %v4139 = vsub.s32 %v4133, %v4138
      %v4140 = vsub.s32 0, %v4139
      %v4141 = vsel %vm4131, %v4140, %v4139
      %vm4142 = vcmp.lt.s32.totalorder %v4096, 0
      %v4143 = vsub.s32 0, %v4096
      %v4144 = vsel %vm4142, %v4143, %v4096
      %v4145 = vmul.u32.u64.compose %v4144, 3817748708
      %v4146 = vextract.low.u32 %v4145
      %v4147 = vextract.high.u32 %v4145
      %v4148 = vshrl.u32 %v4147, 4
      %v4149 = vmul.u32 %v4148, 18
      %v4150 = vsub.s32 %v4144, %v4149
      %v4151 = vsub.s32 0, %v4150
      %v4152 = vsel %vm4142, %v4151, %v4150
      %vm4153 = vcmp.lt.s32.totalorder %v4097, 0
      %v4154 = vsub.s32 0, %v4097
      %v4155 = vsel %vm4153, %v4154, %v4097
      %v4156 = vmul.u32.u64.compose %v4155, 3817748708
      %v4157 = vextract.low.u32 %v4156
      %v4158 = vextract.high.u32 %v4156
      %v4159 = vshrl.u32 %v4158, 4
      %v4160 = vmul.u32 %v4159, 18
      %v4161 = vsub.s32 %v4155, %v4160
      %v4162 = vsub.s32 0, %v4161
      %v4163 = vsel %vm4153, %v4162, %v4161
      %vm4164 = vcmp.lt.s32.totalorder %v4098, 0
      %v4165 = vsub.s32 0, %v4098
      %v4166 = vsel %vm4164, %v4165, %v4098
      %v4167 = vmul.u32.u64.compose %v4166, 3817748708
      %v4168 = vextract.low.u32 %v4167
      %v4169 = vextract.high.u32 %v4167
      %v4170 = vshrl.u32 %v4169, 4
      %v4171 = vmul.u32 %v4170, 18
      %v4172 = vsub.s32 %v4166, %v4171
      %v4173 = vsub.s32 0, %v4172
      %v4174 = vsel %vm4164, %v4173, %v4172
      %vm4175 = vcmp.lt.s32.totalorder %v4099, 0
      %v4176 = vsub.s32 0, %v4099
      %v4177 = vsel %vm4175, %v4176, %v4099
      %v4178 = vmul.u32.u64.compose %v4177, 3817748708
      %v4179 = vextract.low.u32 %v4178
      %v4180 = vextract.high.u32 %v4178
      %v4181 = vshrl.u32 %v4180, 4
      %v4182 = vmul.u32 %v4181, 18
      %v4183 = vsub.s32 %v4177, %v4182
      %v4184 = vsub.s32 0, %v4183
      %v4185 = vsel %vm4175, %v4184, %v4183
      %vm4186 = vcmp.lt.s32.totalorder %v4100, 0
      %v4187 = vsub.s32 0, %v4100
      %v4188 = vsel %vm4186, %v4187, %v4100
      %v4189 = vmul.u32.u64.compose %v4188, 3817748708
      %v4190 = vextract.low.u32 %v4189
      %v4191 = vextract.high.u32 %v4189
      %v4192 = vshrl.u32 %v4191, 4
      %v4193 = vmul.u32 %v4192, 18
      %v4194 = vsub.s32 %v4188, %v4193
      %v4195 = vsub.s32 0, %v4194
      %v4196 = vsel %vm4186, %v4195, %v4194
      %vm4197 = vcmp.lt.s32.totalorder %v4101, 0
      %v4198 = vsub.s32 0, %v4101
      %v4199 = vsel %vm4197, %v4198, %v4101
      %v4200 = vmul.u32.u64.compose %v4199, 3817748708
      %v4201 = vextract.low.u32 %v4200
      %v4202 = vextract.high.u32 %v4200
      %v4203 = vshrl.u32 %v4202, 4
      %v4204 = vmul.u32 %v4203, 18
      %v4205 = vsub.s32 %v4199, %v4204
      %v4206 = vsub.s32 0, %v4205
      %v4207 = vsel %vm4197, %v4206, %v4205
      %vm4208 = vcmp.lt.s32.totalorder %v4102, 0
      %v4209 = vsub.s32 0, %v4102
      %v4210 = vsel %vm4208, %v4209, %v4102
      %v4211 = vmul.u32.u64.compose %v4210, 3817748708
      %v4212 = vextract.low.u32 %v4211
      %v4213 = vextract.high.u32 %v4211
      %v4214 = vshrl.u32 %v4213, 4
      %v4215 = vmul.u32 %v4214, 18
      %v4216 = vsub.s32 %v4210, %v4215
      %v4217 = vsub.s32 0, %v4216
      %v4218 = vsel %vm4208, %v4217, %v4216
      %vm4219 = vcmp.lt.s32.totalorder %v4103, 0
      %v4220 = vsub.s32 0, %v4103
      %v4221 = vsel %vm4219, %v4220, %v4103
      %v4222 = vmul.u32.u64.compose %v4221, 3817748708
      %v4223 = vextract.low.u32 %v4222
      %v4224 = vextract.high.u32 %v4222
      %v4225 = vshrl.u32 %v4224, 4
      %v4226 = vmul.u32 %v4225, 18
      %v4227 = vsub.s32 %v4221, %v4226
      %v4228 = vsub.s32 0, %v4227
      %v4229 = vsel %vm4219, %v4228, %v4227
      %vm4230 = vcmp.lt.s32.totalorder %v4104, 0
      %v4231 = vsub.s32 0, %v4104
      %v4232 = vsel %vm4230, %v4231, %v4104
      %v4233 = vmul.u32.u64.compose %v4232, 3817748708
      %v4234 = vextract.low.u32 %v4233
      %v4235 = vextract.high.u32 %v4233
      %v4236 = vshrl.u32 %v4235, 4
      %v4237 = vmul.u32 %v4236, 18
      %v4238 = vsub.s32 %v4232, %v4237
      %v4239 = vsub.s32 0, %v4238
      %v4240 = vsel %vm4230, %v4239, %v4238
      %vm4241 = vcmp.lt.s32.totalorder %v4105, 0
      %v4242 = vsub.s32 0, %v4105
      %v4243 = vsel %vm4241, %v4242, %v4105
      %v4244 = vmul.u32.u64.compose %v4243, 3817748708
      %v4245 = vextract.low.u32 %v4244
      %v4246 = vextract.high.u32 %v4244
      %v4247 = vshrl.u32 %v4246, 4
      %v4248 = vmul.u32 %v4247, 18
      %v4249 = vsub.s32 %v4243, %v4248
      %v4250 = vsub.s32 0, %v4249
      %v4251 = vsel %vm4241, %v4250, %v4249
      %vm4252 = vcmp.lt.s32.totalorder %v4106, 0
      %v4253 = vsub.s32 0, %v4106
      %v4254 = vsel %vm4252, %v4253, %v4106
      %v4255 = vmul.u32.u64.compose %v4254, 3817748708
      %v4256 = vextract.low.u32 %v4255
      %v4257 = vextract.high.u32 %v4255
      %v4258 = vshrl.u32 %v4257, 4
      %v4259 = vmul.u32 %v4258, 18
      %v4260 = vsub.s32 %v4254, %v4259
      %v4261 = vsub.s32 0, %v4260
      %v4262 = vsel %vm4252, %v4261, %v4260
      %vm4263 = vcmp.lt.s32.totalorder %v4107, 0
      %v4264 = vsub.s32 0, %v4107
      %v4265 = vsel %vm4263, %v4264, %v4107
      %v4266 = vmul.u32.u64.compose %v4265, 3817748708
      %v4267 = vextract.low.u32 %v4266
      %v4268 = vextract.high.u32 %v4266
      %v4269 = vshrl.u32 %v4268, 4
      %v4270 = vmul.u32 %v4269, 18
      %v4271 = vsub.s32 %v4265, %v4270
      %v4272 = vsub.s32 0, %v4271
      %v4273 = vsel %vm4263, %v4272, %v4271
      %vm4274 = vcmp.lt.s32.totalorder %v4108, 0
      %v4275 = vsub.s32 0, %v4108
      %v4276 = vsel %vm4274, %v4275, %v4108
      %v4277 = vmul.u32.u64.compose %v4276, 3817748708
      %v4278 = vextract.low.u32 %v4277
      %v4279 = vextract.high.u32 %v4277
      %v4280 = vshrl.u32 %v4279, 4
      %v4281 = vmul.u32 %v4280, 18
      %v4282 = vsub.s32 %v4276, %v4281
      %v4283 = vsub.s32 0, %v4282
      %v4284 = vsel %vm4274, %v4283, %v4282
      %vm4285 = vcmp.lt.s32.totalorder %v4109, 0
      %v4286 = vsub.s32 0, %v4109
      %v4287 = vsel %vm4285, %v4286, %v4109
      %v4288 = vmul.u32.u64.compose %v4287, 3817748708
      %v4289 = vextract.low.u32 %v4288
      %v4290 = vextract.high.u32 %v4288
      %v4291 = vshrl.u32 %v4290, 4
      %v4292 = vmul.u32 %v4291, 18
      %v4293 = vsub.s32 %v4287, %v4292
      %v4294 = vsub.s32 0, %v4293
      %v4295 = vsel %vm4285, %v4294, %v4293
      %vm4296 = vcmp.lt.s32.totalorder %v4110, 0
      %v4297 = vsub.s32 0, %v4110
      %v4298 = vsel %vm4296, %v4297, %v4110
      %v4299 = vmul.u32.u64.compose %v4298, 3817748708
      %v4300 = vextract.low.u32 %v4299
      %v4301 = vextract.high.u32 %v4299
      %v4302 = vshrl.u32 %v4301, 4
      %v4303 = vmul.u32 %v4302, 18
      %v4304 = vsub.s32 %v4298, %v4303
      %v4305 = vsub.s32 0, %v4304
      %v4306 = vsel %vm4296, %v4305, %v4304
      %vm4307 = vcmp.lt.s32.totalorder %v4111, 0
      %v4308 = vsub.s32 0, %v4111
      %v4309 = vsel %vm4307, %v4308, %v4111
      %v4310 = vmul.u32.u64.compose %v4309, 3817748708
      %v4311 = vextract.low.u32 %v4310
      %v4312 = vextract.high.u32 %v4310
      %v4313 = vshrl.u32 %v4312, 4
      %v4314 = vmul.u32 %v4313, 18
      %v4315 = vsub.s32 %v4309, %v4314
      %v4316 = vsub.s32 0, %v4315
      %v4317 = vsel %vm4307, %v4316, %v4315
      %vm4318 = vcmp.lt.s32.totalorder %v4112, 0
      %v4319 = vsub.s32 0, %v4112
      %v4320 = vsel %vm4318, %v4319, %v4112
      %v4321 = vmul.u32.u64.compose %v4320, 3817748708
      %v4322 = vextract.low.u32 %v4321
      %v4323 = vextract.high.u32 %v4321
      %v4324 = vshrl.u32 %v4323, 4
      %v4325 = vmul.u32 %v4324, 18
      %v4326 = vsub.s32 %v4320, %v4325
      %v4327 = vsub.s32 0, %v4326
      %v4328 = vsel %vm4318, %v4327, %v4326
      %vm4329 = vcmp.lt.s32.totalorder %v4113, 0
      %v4330 = vsub.s32 0, %v4113
      %v4331 = vsel %vm4329, %v4330, %v4113
      %v4332 = vmul.u32.u64.compose %v4331, 3817748708
      %v4333 = vextract.low.u32 %v4332
      %v4334 = vextract.high.u32 %v4332
      %v4335 = vshrl.u32 %v4334, 4
      %v4336 = vmul.u32 %v4335, 18
      %v4337 = vsub.s32 %v4331, %v4336
      %v4338 = vsub.s32 0, %v4337
      %v4339 = vsel %vm4329, %v4338, %v4337
      %vm4340 = vcmp.lt.s32.totalorder %v4114, 0
      %v4341 = vsub.s32 0, %v4114
      %v4342 = vsel %vm4340, %v4341, %v4114
      %v4343 = vmul.u32.u64.compose %v4342, 3817748708
      %v4344 = vextract.low.u32 %v4343
      %v4345 = vextract.high.u32 %v4343
      %v4346 = vshrl.u32 %v4345, 4
      %v4347 = vmul.u32 %v4346, 18
      %v4348 = vsub.s32 %v4342, %v4347
      %v4349 = vsub.s32 0, %v4348
      %v4350 = vsel %vm4340, %v4349, %v4348
      %vm4351 = vcmp.lt.s32.totalorder %v4115, 0
      %v4352 = vsub.s32 0, %v4115
      %v4353 = vsel %vm4351, %v4352, %v4115
      %v4354 = vmul.u32.u64.compose %v4353, 3817748708
      %v4355 = vextract.low.u32 %v4354
      %v4356 = vextract.high.u32 %v4354
      %v4357 = vshrl.u32 %v4356, 4
      %v4358 = vmul.u32 %v4357, 18
      %v4359 = vsub.s32 %v4353, %v4358
      %v4360 = vsub.s32 0, %v4359
      %v4361 = vsel %vm4351, %v4360, %v4359
      %vm4362 = vcmp.lt.s32.totalorder %v4116, 0
      %v4363 = vsub.s32 0, %v4116
      %v4364 = vsel %vm4362, %v4363, %v4116
      %v4365 = vmul.u32.u64.compose %v4364, 3817748708
      %v4366 = vextract.low.u32 %v4365
      %v4367 = vextract.high.u32 %v4365
      %v4368 = vshrl.u32 %v4367, 4
      %v4369 = vmul.u32 %v4368, 18
      %v4370 = vsub.s32 %v4364, %v4369
      %v4371 = vsub.s32 0, %v4370
      %v4372 = vsel %vm4362, %v4371, %v4370
      %vm4373 = vcmp.lt.s32.totalorder %v4117, 0
      %v4374 = vsub.s32 0, %v4117
      %v4375 = vsel %vm4373, %v4374, %v4117
      %v4376 = vmul.u32.u64.compose %v4375, 3817748708
      %v4377 = vextract.low.u32 %v4376
      %v4378 = vextract.high.u32 %v4376
      %v4379 = vshrl.u32 %v4378, 4
      %v4380 = vmul.u32 %v4379, 18
      %v4381 = vsub.s32 %v4375, %v4380
      %v4382 = vsub.s32 0, %v4381
      %v4383 = vsel %vm4373, %v4382, %v4381
      %vm4384 = vcmp.lt.s32.totalorder %v4118, 0
      %v4385 = vsub.s32 0, %v4118
      %v4386 = vsel %vm4384, %v4385, %v4118
      %v4387 = vmul.u32.u64.compose %v4386, 3817748708
      %v4388 = vextract.low.u32 %v4387
      %v4389 = vextract.high.u32 %v4387
      %v4390 = vshrl.u32 %v4389, 4
      %v4391 = vmul.u32 %v4390, 18
      %v4392 = vsub.s32 %v4386, %v4391
      %v4393 = vsub.s32 0, %v4392
      %v4394 = vsel %vm4384, %v4393, %v4392
      %vm4395 = vcmp.lt.s32.totalorder %v4119, 0
      %v4396 = vsub.s32 0, %v4119
      %v4397 = vsel %vm4395, %v4396, %v4119
      %v4398 = vmul.u32.u64.compose %v4397, 3817748708
      %v4399 = vextract.low.u32 %v4398
      %v4400 = vextract.high.u32 %v4398
      %v4401 = vshrl.u32 %v4400, 4
      %v4402 = vmul.u32 %v4401, 18
      %v4403 = vsub.s32 %v4397, %v4402
      %v4404 = vsub.s32 0, %v4403
      %v4405 = vsel %vm4395, %v4404, %v4403
      %vm4406 = vcmp.lt.s32.totalorder %v4120, 0
      %v4407 = vsub.s32 0, %v4120
      %v4408 = vsel %vm4406, %v4407, %v4120
      %v4409 = vmul.u32.u64.compose %v4408, 3817748708
      %v4410 = vextract.low.u32 %v4409
      %v4411 = vextract.high.u32 %v4409
      %v4412 = vshrl.u32 %v4411, 4
      %v4413 = vmul.u32 %v4412, 18
      %v4414 = vsub.s32 %v4408, %v4413
      %v4415 = vsub.s32 0, %v4414
      %v4416 = vsel %vm4406, %v4415, %v4414
      %vm4417 = vcmp.lt.s32.totalorder %v4121, 0
      %v4418 = vsub.s32 0, %v4121
      %v4419 = vsel %vm4417, %v4418, %v4121
      %v4420 = vmul.u32.u64.compose %v4419, 3817748708
      %v4421 = vextract.low.u32 %v4420
      %v4422 = vextract.high.u32 %v4420
      %v4423 = vshrl.u32 %v4422, 4
      %v4424 = vmul.u32 %v4423, 18
      %v4425 = vsub.s32 %v4419, %v4424
      %v4426 = vsub.s32 0, %v4425
      %v4427 = vsel %vm4417, %v4426, %v4425
      %vm4428 = vcmp.lt.s32.totalorder %v4122, 0
      %v4429 = vsub.s32 0, %v4122
      %v4430 = vsel %vm4428, %v4429, %v4122
      %v4431 = vmul.u32.u64.compose %v4430, 3817748708
      %v4432 = vextract.low.u32 %v4431
      %v4433 = vextract.high.u32 %v4431
      %v4434 = vshrl.u32 %v4433, 4
      %v4435 = vmul.u32 %v4434, 18
      %v4436 = vsub.s32 %v4430, %v4435
      %v4437 = vsub.s32 0, %v4436
      %v4438 = vsel %vm4428, %v4437, %v4436
      %vm4439 = vcmp.lt.s32.totalorder %v4123, 0
      %v4440 = vsub.s32 0, %v4123
      %v4441 = vsel %vm4439, %v4440, %v4123
      %v4442 = vmul.u32.u64.compose %v4441, 3817748708
      %v4443 = vextract.low.u32 %v4442
      %v4444 = vextract.high.u32 %v4442
      %v4445 = vshrl.u32 %v4444, 4
      %v4446 = vmul.u32 %v4445, 18
      %v4447 = vsub.s32 %v4441, %v4446
      %v4448 = vsub.s32 0, %v4447
      %v4449 = vsel %vm4439, %v4448, %v4447
      %vm4450 = vcmp.lt.s32.totalorder %v4124, 0
      %v4451 = vsub.s32 0, %v4124
      %v4452 = vsel %vm4450, %v4451, %v4124
      %v4453 = vmul.u32.u64.compose %v4452, 3817748708
      %v4454 = vextract.low.u32 %v4453
      %v4455 = vextract.high.u32 %v4453
      %v4456 = vshrl.u32 %v4455, 4
      %v4457 = vmul.u32 %v4456, 18
      %v4458 = vsub.s32 %v4452, %v4457
      %v4459 = vsub.s32 0, %v4458
      %v4460 = vsel %vm4450, %v4459, %v4458
      %vm4461 = vcmp.lt.s32.totalorder %v4125, 0
      %v4462 = vsub.s32 0, %v4125
      %v4463 = vsel %vm4461, %v4462, %v4125
      %v4464 = vmul.u32.u64.compose %v4463, 3817748708
      %v4465 = vextract.low.u32 %v4464
      %v4466 = vextract.high.u32 %v4464
      %v4467 = vshrl.u32 %v4466, 4
      %v4468 = vmul.u32 %v4467, 18
      %v4469 = vsub.s32 %v4463, %v4468
      %v4470 = vsub.s32 0, %v4469
      %v4471 = vsel %vm4461, %v4470, %v4469
      %vm4472 = vcmp.lt.s32.totalorder %v4126, 0
      %v4473 = vsub.s32 0, %v4126
      %v4474 = vsel %vm4472, %v4473, %v4126
      %v4475 = vmul.u32.u64.compose %v4474, 3817748708
      %v4476 = vextract.low.u32 %v4475
      %v4477 = vextract.high.u32 %v4475
      %v4478 = vshrl.u32 %v4477, 4
      %v4479 = vmul.u32 %v4478, 18
      %v4480 = vsub.s32 %v4474, %v4479
      %v4481 = vsub.s32 0, %v4480
      %v4482 = vsel %vm4472, %v4481, %v4480
      %vm4483 = vcmp.lt.s32.totalorder %v4127, 0
      %v4484 = vsub.s32 0, %v4127
      %v4485 = vsel %vm4483, %v4484, %v4127
      %v4486 = vmul.u32.u64.compose %v4485, 3817748708
      %v4487 = vextract.low.u32 %v4486
      %v4488 = vextract.high.u32 %v4486
      %v4489 = vshrl.u32 %v4488, 4
      %v4490 = vmul.u32 %v4489, 18
      %v4491 = vsub.s32 %v4485, %v4490
      %v4492 = vsub.s32 0, %v4491
      %v4493 = vsel %vm4483, %v4492, %v4491
      %vm4494 = vcmp.lt.s32.totalorder %v4128, 0
      %v4495 = vsub.s32 0, %v4128
      %v4496 = vsel %vm4494, %v4495, %v4128
      %v4497 = vmul.u32.u64.compose %v4496, 3817748708
      %v4498 = vextract.low.u32 %v4497
      %v4499 = vextract.high.u32 %v4497
      %v4500 = vshrl.u32 %v4499, 4
      %v4501 = vmul.u32 %v4500, 18
      %v4502 = vsub.s32 %v4496, %v4501
      %v4503 = vsub.s32 0, %v4502
      %v4504 = vsel %vm4494, %v4503, %v4502
      %vm4505 = vcmp.lt.s32.totalorder %v4129, 0
      %v4506 = vsub.s32 0, %v4129
      %v4507 = vsel %vm4505, %v4506, %v4129
      %v4508 = vmul.u32.u64.compose %v4507, 3817748708
      %v4509 = vextract.low.u32 %v4508
      %v4510 = vextract.high.u32 %v4508
      %v4511 = vshrl.u32 %v4510, 4
      %v4512 = vmul.u32 %v4511, 18
      %v4513 = vsub.s32 %v4507, %v4512
      %v4514 = vsub.s32 0, %v4513
      %v4515 = vsel %vm4505, %v4514, %v4513
      %vm4516 = vcmp.lt.s32.totalorder %v4130, 0
      %v4517 = vsub.s32 0, %v4130
      %v4518 = vsel %vm4516, %v4517, %v4130
      %v4519 = vmul.u32.u64.compose %v4518, 3817748708
      %v4520 = vextract.low.u32 %v4519
      %v4521 = vextract.high.u32 %v4519
      %v4522 = vshrl.u32 %v4521, 4
      %v4523 = vmul.u32 %v4522, 18
      %v4524 = vsub.s32 %v4518, %v4523
      %v4525 = vsub.s32 0, %v4524
      %v4526 = vsel %vm4516, %v4525, %v4524
      %vm4527 = vcmp.ne.s32.totalorder %v4141, 0
      %vm4528 = vcmp.ne.s32.totalorder %v4152, 0
      %vm4529 = vcmp.ne.s32.totalorder %v4163, 0
      %vm4530 = vcmp.ne.s32.totalorder %v4174, 0
      %vm4531 = vcmp.ne.s32.totalorder %v4185, 0
      %vm4532 = vcmp.ne.s32.totalorder %v4196, 0
      %vm4533 = vcmp.ne.s32.totalorder %v4207, 0
      %vm4534 = vcmp.ne.s32.totalorder %v4218, 0
      %vm4535 = vcmp.ne.s32.totalorder %v4229, 0
      %vm4536 = vcmp.ne.s32.totalorder %v4240, 0
      %vm4537 = vcmp.ne.s32.totalorder %v4251, 0
      %vm4538 = vcmp.ne.s32.totalorder %v4262, 0
      %vm4539 = vcmp.ne.s32.totalorder %v4273, 0
      %vm4540 = vcmp.ne.s32.totalorder %v4284, 0
      %vm4541 = vcmp.ne.s32.totalorder %v4295, 0
      %vm4542 = vcmp.ne.s32.totalorder %v4306, 0
      %vm4543 = vcmp.ne.s32.totalorder %v4317, 0
      %vm4544 = vcmp.ne.s32.totalorder %v4328, 0
      %vm4545 = vcmp.ne.s32.totalorder %v4339, 0
      %vm4546 = vcmp.ne.s32.totalorder %v4350, 0
      %vm4547 = vcmp.ne.s32.totalorder %v4361, 0
      %vm4548 = vcmp.ne.s32.totalorder %v4372, 0
      %vm4549 = vcmp.ne.s32.totalorder %v4383, 0
      %vm4550 = vcmp.ne.s32.totalorder %v4394, 0
      %vm4551 = vcmp.ne.s32.totalorder %v4405, 0
      %vm4552 = vcmp.ne.s32.totalorder %v4416, 0
      %vm4553 = vcmp.ne.s32.totalorder %v4427, 0
      %vm4554 = vcmp.ne.s32.totalorder %v4438, 0
      %vm4555 = vcmp.ne.s32.totalorder %v4449, 0
      %vm4556 = vcmp.ne.s32.totalorder %v4460, 0
      %vm4557 = vcmp.ne.s32.totalorder %v4471, 0
      %vm4558 = vcmp.ne.s32.totalorder %v4482, 0
      %vm4559 = vcmp.ne.s32.totalorder %v4493, 0
      %vm4560 = vcmp.ne.s32.totalorder %v4504, 0
      %vm4561 = vcmp.ne.s32.totalorder %v4515, 0
      %vm4562 = vcmp.ne.s32.totalorder %v4526, 0
      %vm4563 = vcmp.lt.s32.totalorder %v4141, 0
      %vm4564 = vcmp.lt.s32.totalorder %v4152, 0
      %vm4565 = vcmp.lt.s32.totalorder %v4163, 0
      %vm4566 = vcmp.lt.s32.totalorder %v4174, 0
      %vm4567 = vcmp.lt.s32.totalorder %v4185, 0
      %vm4568 = vcmp.lt.s32.totalorder %v4196, 0
      %vm4569 = vcmp.lt.s32.totalorder %v4207, 0
      %vm4570 = vcmp.lt.s32.totalorder %v4218, 0
      %vm4571 = vcmp.lt.s32.totalorder %v4229, 0
      %vm4572 = vcmp.lt.s32.totalorder %v4240, 0
      %vm4573 = vcmp.lt.s32.totalorder %v4251, 0
      %vm4574 = vcmp.lt.s32.totalorder %v4262, 0
      %vm4575 = vcmp.lt.s32.totalorder %v4273, 0
      %vm4576 = vcmp.lt.s32.totalorder %v4284, 0
      %vm4577 = vcmp.lt.s32.totalorder %v4295, 0
      %vm4578 = vcmp.lt.s32.totalorder %v4306, 0
      %vm4579 = vcmp.lt.s32.totalorder %v4317, 0
      %vm4580 = vcmp.lt.s32.totalorder %v4328, 0
      %vm4581 = vcmp.lt.s32.totalorder %v4339, 0
      %vm4582 = vcmp.lt.s32.totalorder %v4350, 0
      %vm4583 = vcmp.lt.s32.totalorder %v4361, 0
      %vm4584 = vcmp.lt.s32.totalorder %v4372, 0
      %vm4585 = vcmp.lt.s32.totalorder %v4383, 0
      %vm4586 = vcmp.lt.s32.totalorder %v4394, 0
      %vm4587 = vcmp.lt.s32.totalorder %v4405, 0
      %vm4588 = vcmp.lt.s32.totalorder %v4416, 0
      %vm4589 = vcmp.lt.s32.totalorder %v4427, 0
      %vm4590 = vcmp.lt.s32.totalorder %v4438, 0
      %vm4591 = vcmp.lt.s32.totalorder %v4449, 0
      %vm4592 = vcmp.lt.s32.totalorder %v4460, 0
      %vm4593 = vcmp.lt.s32.totalorder %v4471, 0
      %vm4594 = vcmp.lt.s32.totalorder %v4482, 0
      %vm4595 = vcmp.lt.s32.totalorder %v4493, 0
      %vm4596 = vcmp.lt.s32.totalorder %v4504, 0
      %vm4597 = vcmp.lt.s32.totalorder %v4515, 0
      %vm4598 = vcmp.lt.s32.totalorder %v4526, 0
      %vm4599 = vmand %vm4563, %vm4527
      %vm4600 = vmand %vm4564, %vm4528
      %vm4601 = vmand %vm4565, %vm4529
      %vm4602 = vmand %vm4566, %vm4530
      %vm4603 = vmand %vm4567, %vm4531
      %vm4604 = vmand %vm4568, %vm4532
      %vm4605 = vmand %vm4569, %vm4533
      %vm4606 = vmand %vm4570, %vm4534
      %vm4607 = vmand %vm4571, %vm4535
      %vm4608 = vmand %vm4572, %vm4536
      %vm4609 = vmand %vm4573, %vm4537
      %vm4610 = vmand %vm4574, %vm4538
      %vm4611 = vmand %vm4575, %vm4539
      %vm4612 = vmand %vm4576, %vm4540
      %vm4613 = vmand %vm4577, %vm4541
      %vm4614 = vmand %vm4578, %vm4542
      %vm4615 = vmand %vm4579, %vm4543
      %vm4616 = vmand %vm4580, %vm4544
      %vm4617 = vmand %vm4581, %vm4545
      %vm4618 = vmand %vm4582, %vm4546
      %vm4619 = vmand %vm4583, %vm4547
      %vm4620 = vmand %vm4584, %vm4548
      %vm4621 = vmand %vm4585, %vm4549
      %vm4622 = vmand %vm4586, %vm4550
      %vm4623 = vmand %vm4587, %vm4551
      %vm4624 = vmand %vm4588, %vm4552
      %vm4625 = vmand %vm4589, %vm4553
      %vm4626 = vmand %vm4590, %vm4554
      %vm4627 = vmand %vm4591, %vm4555
      %vm4628 = vmand %vm4592, %vm4556
      %vm4629 = vmand %vm4593, %vm4557
      %vm4630 = vmand %vm4594, %vm4558
      %vm4631 = vmand %vm4595, %vm4559
      %vm4632 = vmand %vm4596, %vm4560
      %vm4633 = vmand %vm4597, %vm4561
      %vm4634 = vmand %vm4598, %vm4562
      %v4635 = vadd.s32 %v4141, 18
      %v4636 = vadd.s32 %v4152, 18
      %v4637 = vadd.s32 %v4163, 18
      %v4638 = vadd.s32 %v4174, 18
      %v4639 = vadd.s32 %v4185, 18
      %v4640 = vadd.s32 %v4196, 18
      %v4641 = vadd.s32 %v4207, 18
      %v4642 = vadd.s32 %v4218, 18
      %v4643 = vadd.s32 %v4229, 18
      %v4644 = vadd.s32 %v4240, 18
      %v4645 = vadd.s32 %v4251, 18
      %v4646 = vadd.s32 %v4262, 18
      %v4647 = vadd.s32 %v4273, 18
      %v4648 = vadd.s32 %v4284, 18
      %v4649 = vadd.s32 %v4295, 18
      %v4650 = vadd.s32 %v4306, 18
      %v4651 = vadd.s32 %v4317, 18
      %v4652 = vadd.s32 %v4328, 18
      %v4653 = vadd.s32 %v4339, 18
      %v4654 = vadd.s32 %v4350, 18
      %v4655 = vadd.s32 %v4361, 18
      %v4656 = vadd.s32 %v4372, 18
      %v4657 = vadd.s32 %v4383, 18
      %v4658 = vadd.s32 %v4394, 18
      %v4659 = vadd.s32 %v4405, 18
      %v4660 = vadd.s32 %v4416, 18
      %v4661 = vadd.s32 %v4427, 18
      %v4662 = vadd.s32 %v4438, 18
      %v4663 = vadd.s32 %v4449, 18
      %v4664 = vadd.s32 %v4460, 18
      %v4665 = vadd.s32 %v4471, 18
      %v4666 = vadd.s32 %v4482, 18
      %v4667 = vadd.s32 %v4493, 18
      %v4668 = vadd.s32 %v4504, 18
      %v4669 = vadd.s32 %v4515, 18
      %v4670 = vadd.s32 %v4526, 18
      %v4671 = vsel %vm4599, %v4635, %v4141
      %v4672 = vsel %vm4600, %v4636, %v4152
      %v4673 = vsel %vm4601, %v4637, %v4163
      %v4674 = vsel %vm4602, %v4638, %v4174
      %v4675 = vsel %vm4603, %v4639, %v4185
      %v4676 = vsel %vm4604, %v4640, %v4196
      %v4677 = vsel %vm4605, %v4641, %v4207
      %v4678 = vsel %vm4606, %v4642, %v4218
      %v4679 = vsel %vm4607, %v4643, %v4229
      %v4680 = vsel %vm4608, %v4644, %v4240
      %v4681 = vsel %vm4609, %v4645, %v4251
      %v4682 = vsel %vm4610, %v4646, %v4262
      %v4683 = vsel %vm4611, %v4647, %v4273
      %v4684 = vsel %vm4612, %v4648, %v4284
      %v4685 = vsel %vm4613, %v4649, %v4295
      %v4686 = vsel %vm4614, %v4650, %v4306
      %v4687 = vsel %vm4615, %v4651, %v4317
      %v4688 = vsel %vm4616, %v4652, %v4328
      %v4689 = vsel %vm4617, %v4653, %v4339
      %v4690 = vsel %vm4618, %v4654, %v4350
      %v4691 = vsel %vm4619, %v4655, %v4361
      %v4692 = vsel %vm4620, %v4656, %v4372
      %v4693 = vsel %vm4621, %v4657, %v4383
      %v4694 = vsel %vm4622, %v4658, %v4394
      %v4695 = vsel %vm4623, %v4659, %v4405
      %v4696 = vsel %vm4624, %v4660, %v4416
      %v4697 = vsel %vm4625, %v4661, %v4427
      %v4698 = vsel %vm4626, %v4662, %v4438
      %v4699 = vsel %vm4627, %v4663, %v4449
      %v4700 = vsel %vm4628, %v4664, %v4460
      %v4701 = vsel %vm4629, %v4665, %v4471
      %v4702 = vsel %vm4630, %v4666, %v4482
      %v4703 = vsel %vm4631, %v4667, %v4493
      %v4704 = vsel %vm4632, %v4668, %v4504
      %v4705 = vsel %vm4633, %v4669, %v4515
      %v4706 = vsel %vm4634, %v4670, %v4526
      %vm4707 = vcmp.lt.s32.totalorder %v4671, 16
      %vm4708 = vcmp.lt.s32.totalorder %v4672, 16
      %vm4709 = vcmp.lt.s32.totalorder %v4673, 16
      %vm4710 = vcmp.lt.s32.totalorder %v4674, 16
      %vm4711 = vcmp.lt.s32.totalorder %v4675, 16
      %vm4712 = vcmp.lt.s32.totalorder %v4676, 16
      %vm4713 = vcmp.lt.s32.totalorder %v4677, 16
      %vm4714 = vcmp.lt.s32.totalorder %v4678, 16
      %vm4715 = vcmp.lt.s32.totalorder %v4679, 16
      %vm4716 = vcmp.lt.s32.totalorder %v4680, 16
      %vm4717 = vcmp.lt.s32.totalorder %v4681, 16
      %vm4718 = vcmp.lt.s32.totalorder %v4682, 16
      %vm4719 = vcmp.lt.s32.totalorder %v4683, 16
      %vm4720 = vcmp.lt.s32.totalorder %v4684, 16
      %vm4721 = vcmp.lt.s32.totalorder %v4685, 16
      %vm4722 = vcmp.lt.s32.totalorder %v4686, 16
      %vm4723 = vcmp.lt.s32.totalorder %v4687, 16
      %vm4724 = vcmp.lt.s32.totalorder %v4688, 16
      %vm4725 = vcmp.lt.s32.totalorder %v4689, 16
      %vm4726 = vcmp.lt.s32.totalorder %v4690, 16
      %vm4727 = vcmp.lt.s32.totalorder %v4691, 16
      %vm4728 = vcmp.lt.s32.totalorder %v4692, 16
      %vm4729 = vcmp.lt.s32.totalorder %v4693, 16
      %vm4730 = vcmp.lt.s32.totalorder %v4694, 16
      %vm4731 = vcmp.lt.s32.totalorder %v4695, 16
      %vm4732 = vcmp.lt.s32.totalorder %v4696, 16
      %vm4733 = vcmp.lt.s32.totalorder %v4697, 16
      %vm4734 = vcmp.lt.s32.totalorder %v4698, 16
      %vm4735 = vcmp.lt.s32.totalorder %v4699, 16
      %vm4736 = vcmp.lt.s32.totalorder %v4700, 16
      %vm4737 = vcmp.lt.s32.totalorder %v4701, 16
      %vm4738 = vcmp.lt.s32.totalorder %v4702, 16
      %vm4739 = vcmp.lt.s32.totalorder %v4703, 16
      %vm4740 = vcmp.lt.s32.totalorder %v4704, 16
      %vm4741 = vcmp.lt.s32.totalorder %v4705, 16
      %vm4742 = vcmp.lt.s32.totalorder %v4706, 16
      %v4743 = vsel %vm4707, %v4058, 0.0
      %v4744 = vsel %vm4708, %v4059, 0.0
      %v4745 = vsel %vm4709, %v4060, 0.0
      %v4746 = vsel %vm4710, %v4061, 0.0
      %v4747 = vsel %vm4711, %v4062, 0.0
      %v4748 = vsel %vm4712, %v4063, 0.0
      %v4749 = vsel %vm4713, %v4064, 0.0
      %v4750 = vsel %vm4714, %v4065, 0.0
      %v4751 = vsel %vm4715, %v4066, 0.0
      %v4752 = vsel %vm4716, %v4067, 0.0
      %v4753 = vsel %vm4717, %v4068, 0.0
      %v4754 = vsel %vm4718, %v4069, 0.0
      %v4755 = vsel %vm4719, %v4070, 0.0
      %v4756 = vsel %vm4720, %v4071, 0.0
      %v4757 = vsel %vm4721, %v4072, 0.0
      %v4758 = vsel %vm4722, %v4073, 0.0
      %v4759 = vsel %vm4723, %v4074, 0.0
      %v4760 = vsel %vm4724, %v4075, 0.0
      %v4761 = vsel %vm4725, %v4076, 0.0
      %v4762 = vsel %vm4726, %v4077, 0.0
      %v4763 = vsel %vm4727, %v4078, 0.0
      %v4764 = vsel %vm4728, %v4079, 0.0
      %v4765 = vsel %vm4729, %v4080, 0.0
      %v4766 = vsel %vm4730, %v4081, 0.0
      %v4767 = vsel %vm4731, %v4082, 0.0
      %v4768 = vsel %vm4732, %v4083, 0.0
      %v4769 = vsel %vm4733, %v4084, 0.0
      %v4770 = vsel %vm4734, %v4085, 0.0
      %v4771 = vsel %vm4735, %v4086, 0.0
      %v4772 = vsel %vm4736, %v4087, 0.0
      %v4773 = vsel %vm4737, %v4088, 0.0
      %v4774 = vsel %vm4738, %v4089, 0.0
      %v4775 = vsel %vm4739, %v4090, 0.0
      %v4776 = vsel %vm4740, %v4091, 0.0
      %v4777 = vsel %vm4741, %v4092, 0.0
      %v4778 = vsel %vm4742, %v4093, 0.0
      %4779 = vst.msk [vmem:[#allocation2] sm:$0xff] %vm305, 0.0
      %4780 = vst.msk [vmem:[#allocation2 + $0x8] sm:$0xff] %vm305, 0.0
      %4781 = vst.msk [vmem:[#allocation2 + $0x10] sm:$0xff] %vm305, 0.0
      %4782 = vst.msk [vmem:[#allocation2 + $0x138] sm:$0xff] %vm305, 0.0
      %4783 = vst.msk [vmem:[#allocation2 + $0x140] sm:$0xff] %vm305, 0.0
      %4784 = vst.msk [vmem:[#allocation2 + $0x148] sm:$0xff] %vm305, 0.0
      %4785 = vst.msk [vmem:[#allocation2 + $0x18] sm:$0xff] %vm305, %v4743
      %4786 = vst.msk [vmem:[#allocation2 + $0x20] sm:$0xff] %vm305, %v4744
      %4787 = vst.msk [vmem:[#allocation2 + $0x28] sm:$0xff] %vm305, %v4745
      %4788 = vst.msk [vmem:[#allocation2 + $0x30] sm:$0xff] %vm305, %v4746
      %4789 = vst.msk [vmem:[#allocation2 + $0x38] sm:$0xff] %vm305, %v4747
      %4790 = vst.msk [vmem:[#allocation2 + $0x40] sm:$0xff] %vm305, %v4748
      %4791 = vst.msk [vmem:[#allocation2 + $0x48] sm:$0xff] %vm305, %v4749
      %4792 = vst.msk [vmem:[#allocation2 + $0x50] sm:$0xff] %vm305, %v4750
      %4793 = vst.msk [vmem:[#allocation2 + $0x58] sm:$0xff] %vm305, %v4751
      %4794 = vst.msk [vmem:[#allocation2 + $0x60] sm:$0xff] %vm305, %v4752
      %4795 = vst.msk [vmem:[#allocation2 + $0x68] sm:$0xff] %vm305, %v4753
      %4796 = vst.msk [vmem:[#allocation2 + $0x70] sm:$0xff] %vm305, %v4754
      %4797 = vst.msk [vmem:[#allocation2 + $0x78] sm:$0xff] %vm305, %v4755
      %4798 = vst.msk [vmem:[#allocation2 + $0x80] sm:$0xff] %vm305, %v4756
      %4799 = vst.msk [vmem:[#allocation2 + $0x88] sm:$0xff] %vm305, %v4757
      %4800 = vst.msk [vmem:[#allocation2 + $0x90] sm:$0xff] %vm305, %v4758
      %4801 = vst.msk [vmem:[#allocation2 + $0x98] sm:$0xff] %vm305, %v4759
      %4802 = vst.msk [vmem:[#allocation2 + $0xa0] sm:$0xff] %vm305, %v4760
      %4803 = vst.msk [vmem:[#allocation2 + $0xa8] sm:$0xff] %vm305, %v4761
      %4804 = vst.msk [vmem:[#allocation2 + $0xb0] sm:$0xff] %vm305, %v4762
      %4805 = vst.msk [vmem:[#allocation2 + $0xb8] sm:$0xff] %vm305, %v4763
      %4806 = vst.msk [vmem:[#allocation2 + $0xc0] sm:$0xff] %vm305, %v4764
      %4807 = vst.msk [vmem:[#allocation2 + $0xc8] sm:$0xff] %vm305, %v4765
      %4808 = vst.msk [vmem:[#allocation2 + $0xd0] sm:$0xff] %vm305, %v4766
      %4809 = vst.msk [vmem:[#allocation2 + $0xd8] sm:$0xff] %vm305, %v4767
      %4810 = vst.msk [vmem:[#allocation2 + $0xe0] sm:$0xff] %vm305, %v4768
      %4811 = vst.msk [vmem:[#allocation2 + $0xe8] sm:$0xff] %vm305, %v4769
      %4812 = vst.msk [vmem:[#allocation2 + $0xf0] sm:$0xff] %vm305, %v4770
      %4813 = vst.msk [vmem:[#allocation2 + $0xf8] sm:$0xff] %vm305, %v4771
      %4814 = vst.msk [vmem:[#allocation2 + $0x100] sm:$0xff] %vm305, %v4772
      %4815 = vst.msk [vmem:[#allocation2 + $0x108] sm:$0xff] %vm305, %v4773
      %4816 = vst.msk [vmem:[#allocation2 + $0x110] sm:$0xff] %vm305, %v4774
      %4817 = vst.msk [vmem:[#allocation2 + $0x118] sm:$0xff] %vm305, %v4775
      %4818 = vst.msk [vmem:[#allocation2 + $0x120] sm:$0xff] %vm305, %v4776
      %4819 = vst.msk [vmem:[#allocation2 + $0x128] sm:$0xff] %vm305, %v4777
      %4820 = vst.msk [vmem:[#allocation2 + $0x130] sm:$0xff] %vm305, %v4778
      %v4821 = vld [vmem:[#allocation2 + $0x5] sm:$0xff]
      %v4822 = vld [vmem:[#allocation2 + $0xd] sm:$0xff]
      %v4823 = vld [vmem:[#allocation2 + $0x15] sm:$0xff]
      %v4824 = vld [vmem:[#allocation2 + $0x1d] sm:$0xff]
      %v4825 = vld [vmem:[#allocation2 + $0x25] sm:$0xff]
      %v4826 = vld [vmem:[#allocation2 + $0x2d] sm:$0xff]
      %v4827 = vld [vmem:[#allocation2 + $0x35] sm:$0xff]
      %v4828 = vld [vmem:[#allocation2 + $0x3d] sm:$0xff]
      %v4829 = vld [vmem:[#allocation2 + $0x45] sm:$0xff]
      %v4830 = vld [vmem:[#allocation2 + $0x4d] sm:$0xff]
      %v4831 = vld [vmem:[#allocation2 + $0x55] sm:$0xff]
      %v4832 = vld [vmem:[#allocation2 + $0x5d] sm:$0xff]
      %v4833 = vld [vmem:[#allocation2 + $0x65] sm:$0xff]
      %v4834 = vld [vmem:[#allocation2 + $0x6d] sm:$0xff]
      %v4835 = vld [vmem:[#allocation2 + $0x75] sm:$0xff]
      %v4836 = vld [vmem:[#allocation2 + $0x7d] sm:$0xff]
      %v4837 = vld [vmem:[#allocation2 + $0x85] sm:$0xff]
      %v4838 = vld [vmem:[#allocation2 + $0x8d] sm:$0xff]
      %v4839 = vld [vmem:[#allocation2 + $0x95] sm:$0xff]
      %v4840 = vld [vmem:[#allocation2 + $0x9d] sm:$0xff]
      %v4841 = vld [vmem:[#allocation2 + $0xa5] sm:$0xff]
      %v4842 = vld [vmem:[#allocation2 + $0xad] sm:$0xff]
      %v4843 = vld [vmem:[#allocation2 + $0xb5] sm:$0xff]
      %v4844 = vld [vmem:[#allocation2 + $0xbd] sm:$0xff]
      %v4845 = vld [vmem:[#allocation2 + $0xc5] sm:$0xff]
      %v4846 = vld [vmem:[#allocation2 + $0xcd] sm:$0xff]
      %v4847 = vld [vmem:[#allocation2 + $0xd5] sm:$0xff]
      %v4848 = vld [vmem:[#allocation2 + $0xdd] sm:$0xff]
      %v4849 = vld [vmem:[#allocation2 + $0xe5] sm:$0xff]
      %v4850 = vld [vmem:[#allocation2 + $0xed] sm:$0xff]
      %v4851 = vld [vmem:[#allocation2 + $0xf5] sm:$0xff]
      %v4852 = vld [vmem:[#allocation2 + $0xfd] sm:$0xff]
      %v4853 = vld [vmem:[#allocation2 + $0x105] sm:$0xff]
      %v4854 = vld [vmem:[#allocation2 + $0x10d] sm:$0xff]
      %v4855 = vld [vmem:[#allocation2 + $0x115] sm:$0xff]
      %v4856 = vld [vmem:[#allocation2 + $0x11d] sm:$0xff]
      %v4857 = vld [vmem:[%s2] sm:$0xff]
      %v4858 = vld [vmem:[%s2 + $0x8] sm:$0xff]
      %v4859 = vld [vmem:[%s2 + $0x10] sm:$0xff]
      %v4860 = vld [vmem:[%s2 + $0x18] sm:$0xff]
      %v4861 = vld [vmem:[#allocation2 + $0x6] sm:$0xff]
      %v4862 = vld [vmem:[#allocation2 + $0xe] sm:$0xff]
      %v4863 = vld [vmem:[#allocation2 + $0x16] sm:$0xff]
      %v4864 = vld [vmem:[#allocation2 + $0x1e] sm:$0xff]
      %v4865 = vld [vmem:[#allocation2 + $0x26] sm:$0xff]
      %v4866 = vld [vmem:[#allocation2 + $0x2e] sm:$0xff]
      %v4867 = vld [vmem:[#allocation2 + $0x36] sm:$0xff]
      %v4868 = vld [vmem:[#allocation2 + $0x3e] sm:$0xff]
      %v4869 = vld [vmem:[#allocation2 + $0x46] sm:$0xff]
      %v4870 = vld [vmem:[#allocation2 + $0x4e] sm:$0xff]
      %v4871 = vld [vmem:[#allocation2 + $0x56] sm:$0xff]
      %v4872 = vld [vmem:[#allocation2 + $0x5e] sm:$0xff]
      %v4873 = vld [vmem:[#allocation2 + $0x66] sm:$0xff]
      %v4874 = vld [vmem:[#allocation2 + $0x6e] sm:$0xff]
      %v4875 = vld [vmem:[#allocation2 + $0x76] sm:$0xff]
      %v4876 = vld [vmem:[#allocation2 + $0x7e] sm:$0xff]
      %v4877 = vld [vmem:[#allocation2 + $0x86] sm:$0xff]
      %v4878 = vld [vmem:[#allocation2 + $0x8e] sm:$0xff]
      %v4879 = vld [vmem:[#allocation2 + $0x96] sm:$0xff]
      %v4880 = vld [vmem:[#allocation2 + $0x9e] sm:$0xff]
      %v4881 = vld [vmem:[#allocation2 + $0xa6] sm:$0xff]
      %v4882 = vld [vmem:[#allocation2 + $0xae] sm:$0xff]
      %v4883 = vld [vmem:[#allocation2 + $0xb6] sm:$0xff]
      %v4884 = vld [vmem:[#allocation2 + $0xbe] sm:$0xff]
      %v4885 = vld [vmem:[#allocation2 + $0xc6] sm:$0xff]
      %v4886 = vld [vmem:[#allocation2 + $0xce] sm:$0xff]
      %v4887 = vld [vmem:[#allocation2 + $0xd6] sm:$0xff]
      %v4888 = vld [vmem:[#allocation2 + $0xde] sm:$0xff]
      %v4889 = vld [vmem:[#allocation2 + $0xe6] sm:$0xff]
      %v4890 = vld [vmem:[#allocation2 + $0xee] sm:$0xff]
      %v4891 = vld [vmem:[#allocation2 + $0xf6] sm:$0xff]
      %v4892 = vld [vmem:[#allocation2 + $0xfe] sm:$0xff]
      %v4893 = vld [vmem:[#allocation2 + $0x106] sm:$0xff]
      %v4894 = vld [vmem:[#allocation2 + $0x10e] sm:$0xff]
      %v4895 = vld [vmem:[#allocation2 + $0x116] sm:$0xff]
      %v4896 = vld [vmem:[#allocation2 + $0x11e] sm:$0xff]
      %v4897 = vld [vmem:[%s2 + $0x20] sm:$0xff]
      %v4898 = vld [vmem:[%s2 + $0x28] sm:$0xff]
      %v4899 = vld [vmem:[%s2 + $0x30] sm:$0xff]
      %v4900 = vld [vmem:[%s2 + $0x38] sm:$0xff]
      %v4902 = vsel %vm305, %v4861, 0
      %v4905 = vsel %vm305, %v4862, 0
      %v4908 = vsel %vm305, %v4863, 0
      %v4911 = vsel %vm305, %v4864, 0
      %v4914 = vsel %vm305, %v4865, 0
      %v4917 = vsel %vm305, %v4866, 0
      %v4920 = vsel %vm305, %v4867, 0
      %v4923 = vsel %vm305, %v4868, 0
      %v4926 = vsel %vm305, %v4869, 0
      %v4929 = vsel %vm305, %v4870, 0
      %v4932 = vsel %vm305, %v4871, 0
      %v4935 = vsel %vm305, %v4872, 0
      %v4938 = vsel %vm305, %v4873, 0
      %v4941 = vsel %vm305, %v4874, 0
      %v4944 = vsel %vm305, %v4875, 0
      %v4947 = vsel %vm305, %v4876, 0
      %v4950 = vsel %vm305, %v4877, 0
      %v4953 = vsel %vm305, %v4878, 0
      %v4956 = vsel %vm305, %v4879, 0
      %v4959 = vsel %vm305, %v4880, 0
      %v4962 = vsel %vm305, %v4881, 0
      %v4965 = vsel %vm305, %v4882, 0
      %v4968 = vsel %vm305, %v4883, 0
      %v4971 = vsel %vm305, %v4884, 0
      %v4974 = vsel %vm305, %v4885, 0
      %v4977 = vsel %vm305, %v4886, 0
      %v4980 = vsel %vm305, %v4887, 0
      %v4983 = vsel %vm305, %v4888, 0
      %v4986 = vsel %vm305, %v4889, 0
      %v4989 = vsel %vm305, %v4890, 0
      %v4992 = vsel %vm305, %v4891, 0
      %v4995 = vsel %vm305, %v4892, 0
      %v4998 = vsel %vm305, %v4893, 0
      %v5001 = vsel %vm305, %v4894, 0
      %v5004 = vsel %vm305, %v4895, 0
      %v5007 = vsel %vm305, %v4896, 0
      %5009 = vmatprep.subr.mxu0 0.0
      %5010 = vmatpush1.msra.mxu0 %v4897
      %5011 = vmatprep.subr.mxu0 0.0
      %5012 = vmatpush1.msra.mxu0 %v4898
      %5013 = vmatprep.subr.mxu0 0.0
      %5014 = vmatpush1.msra.mxu0 %v4899
      %5015 = vmatprep.subr.mxu0 0.0
      %5016 = vmatpush1.msra.mxu0 %v4900
      %5017 = vmatprep.subr.mxu0 0.0
      %5018 = vmatpush1.msra.mxu0 0.0
      %5019 = vmatprep.subr.mxu0 0.0
      %5020 = vmatpush1.msra.mxu0 0.0
      %5021 = vmatprep.subr.mxu0 0.0
      %5022 = vmatpush1.msra.mxu0 0.0
      %5023 = vmatprep.subr.mxu0 0.0
      %5024 = vmatpush1.msra.mxu0 0.0
      %5025 = vmatprep.subr.mxu0 0.0
      %5026 = vmatpush1.msra.mxu0 0.0
      %5027 = vmatprep.subr.mxu0 0.0
      %5028 = vmatpush1.msra.mxu0 0.0
      %5029 = vmatprep.subr.mxu0 0.0
      %5030 = vmatpush1.msra.mxu0 0.0
      %5031 = vmatprep.subr.mxu0 0.0
      %5032 = vmatpush1.msra.mxu0 0.0
      %5033 = vmatprep.subr.mxu0 0.0
      %5034 = vmatpush1.msra.mxu0 0.0
      %5035 = vmatprep.subr.mxu0 0.0
      %5036 = vmatpush1.msra.mxu0 0.0
      %5037 = vmatprep.subr.mxu0 0.0
      %5038 = vmatpush1.msra.mxu0 0.0
      %5039 = vmatprep.subr.mxu0 0.0
      %5040 = vmatpush1.msra.mxu0 0.0
      %5041 = vmatprep.subr.mxu0 0.0
      %5042 = vmatpush1.msra.mxu0 0.0
      %5043 = vmatprep.subr.mxu0 0.0
      %5044 = vmatpush1.msra.mxu0 0.0
      %5045 = vmatprep.subr.mxu0 0.0
      %5046 = vmatpush1.msra.mxu0 0.0
      %5047 = vmatprep.subr.mxu0 0.0
      %5048 = vmatpush1.msra.mxu0 0.0
      %5049 = vmatprep.subr.mxu0 0.0
      %5050 = vmatpush1.msra.mxu0 0.0
      %5051 = vmatprep.subr.mxu0 0.0
      %5052 = vmatpush1.msra.mxu0 0.0
      %5053 = vmatprep.subr.mxu0 0.0
      %5054 = vmatpush1.msra.mxu0 0.0
      %5055 = vmatprep.subr.mxu0 0.0
      %5056 = vmatpush1.msra.mxu0 0.0
      %5057 = vmatprep.subr.mxu0 0.0
      %5058 = vmatpush1.msra.mxu0 0.0
      %5059 = vmatprep.subr.mxu0 0.0
      %5060 = vmatpush1.msra.mxu0 0.0
      %5061 = vmatprep.subr.mxu0 0.0
      %5062 = vmatpush1.msra.mxu0 0.0
      %5063 = vmatprep.subr.mxu0 0.0
      %5064 = vmatpush1.msra.mxu0 0.0
      %5065 = vmatprep.subr.mxu0 0.0
      %5066 = vmatpush1.msra.mxu0 0.0
      %5067 = vmatprep.subr.mxu0 0.0
      %5068 = vmatpush1.msra.mxu0 0.0
      %5069 = vmatprep.subr.mxu0 0.0
      %5070 = vmatpush1.msra.mxu0 0.0
      %5071 = vmatprep.subr.mxu0 0.0
      %5072 = vmatpush1.msra.mxu0 0.0
      %5073 = vmatprep.mubr.f32.mxu0 0.0
      %5074 = vmatmul.mubr.f32.gmra.mrb[0].mxu0 %v4902
      %v5075 = vpop.f32.mrb[0].mxu0
      %v5076 = vadd.f32 0.0, %v5075
      %v5077 = vpop.f32.mrb[0].mxu0
      %5078 = vmatprep.mubr.f32.mxu0 0.0
      %5079 = vmatmul.mubr.f32.gmra.mrb[0].mxu0 %v4905
      %v5080 = vpop.f32.mrb[0].mxu0
      %v5081 = vadd.f32 0.0, %v5080
      %v5082 = vpop.f32.mrb[0].mxu0
      %5083 = vmatprep.mubr.f32.mxu0 0.0
      %5084 = vmatmul.mubr.f32.gmra.mrb[0].mxu0 %v4908
      %v5085 = vpop.f32.mrb[0].mxu0
      %v5086 = vadd.f32 0.0, %v5085
      %v5087 = vpop.f32.mrb[0].mxu0
      %5088 = vmatprep.mubr.f32.mxu0 0.0
      %5089 = vmatmul.mubr.f32.gmra.mrb[0].mxu0 %v4911
      %v5090 = vpop.f32.mrb[0].mxu0
      %v5091 = vadd.f32 0.0, %v5090
      %v5092 = vpop.f32.mrb[0].mxu0
      %5093 = vmatprep.mubr.f32.mxu0 0.0
      %5094 = vmatmul.mubr.f32.gmra.mrb[0].mxu0 %v4914
      %v5095 = vpop.f32.mrb[0].mxu0
      %v5096 = vadd.f32 0.0, %v5095
      %v5097 = vpop.f32.mrb[0].mxu0
      %5098 = vmatprep.mubr.f32.mxu0 0.0
      %5099 = vmatmul.mubr.f32.gmra.mrb[0].mxu0 %v4917
      %v5100 = vpop.f32.mrb[0].mxu0
      %v5101 = vadd.f32 0.0, %v5100
      %v5102 = vpop.f32.mrb[0].mxu0
      %5103 = vmatprep.mubr.f32.mxu0 0.0
      %5104 = vmatmul.mubr.f32.gmra.mrb[0].mxu0 %v4920
      %v5105 = vpop.f32.mrb[0].mxu0
      %v5106 = vadd.f32 0.0, %v5105
      %v5107 = vpop.f32.mrb[0].mxu0
      %5108 = vmatprep.mubr.f32.mxu0 0.0
      %5109 = vmatmul.mubr.f32.gmra.mrb[0].mxu0 %v4923
      %v5110 = vpop.f32.mrb[0].mxu0
      %v5111 = vadd.f32 0.0, %v5110
      %v5112 = vpop.f32.mrb[0].mxu0
      %5113 = vmatprep.mubr.f32.mxu0 0.0
      %5114 = vmatmul.mubr.f32.gmra.mrb[0].mxu0 %v4926
      %v5115 = vpop.f32.mrb[0].mxu0
      %v5116 = vadd.f32 0.0, %v5115
      %v5117 = vpop.f32.mrb[0].mxu0
      %5118 = vmatprep.mubr.f32.mxu0 0.0
      %5119 = vmatmul.mubr.f32.gmra.mrb[0].mxu0 %v4929
      %v5120 = vpop.f32.mrb[0].mxu0
      %v5121 = vadd.f32 0.0, %v5120
      %v5122 = vpop.f32.mrb[0].mxu0
      %5123 = vmatprep.mubr.f32.mxu0 0.0
      %5124 = vmatmul.mubr.f32.gmra.mrb[0].mxu0 %v4932
      %v5125 = vpop.f32.mrb[0].mxu0
      %v5126 = vadd.f32 0.0, %v5125
      %v5127 = vpop.f32.mrb[0].mxu0
      %5128 = vmatprep.mubr.f32.mxu0 0.0
      %5129 = vmatmul.mubr.f32.gmra.mrb[0].mxu0 %v4935
      %v5130 = vpop.f32.mrb[0].mxu0
      %v5131 = vadd.f32 0.0, %v5130
      %v5132 = vpop.f32.mrb[0].mxu0
      %5133 = vmatprep.mubr.f32.mxu0 0.0
      %5134 = vmatmul.mubr.f32.gmra.mrb[0].mxu0 %v4938
      %v5135 = vpop.f32.mrb[0].mxu0
      %v5136 = vadd.f32 0.0, %v5135
      %v5137 = vpop.f32.mrb[0].mxu0
      %5138 = vmatprep.mubr.f32.mxu0 0.0
      %5139 = vmatmul.mubr.f32.gmra.mrb[0].mxu0 %v4941
      %v5140 = vpop.f32.mrb[0].mxu0
      %v5141 = vadd.f32 0.0, %v5140
      %v5142 = vpop.f32.mrb[0].mxu0
      %5143 = vmatprep.mubr.f32.mxu0 0.0
      %5144 = vmatmul.mubr.f32.gmra.mrb[0].mxu0 %v4944
      %v5145 = vpop.f32.mrb[0].mxu0
      %v5146 = vadd.f32 0.0, %v5145
      %v5147 = vpop.f32.mrb[0].mxu0
      %5148 = vmatprep.mubr.f32.mxu0 0.0
      %5149 = vmatmul.mubr.f32.gmra.mrb[0].mxu0 %v4947
      %v5150 = vpop.f32.mrb[0].mxu0
      %v5151 = vadd.f32 0.0, %v5150
      %v5152 = vpop.f32.mrb[0].mxu0
      %5153 = vmatprep.mubr.f32.mxu0 0.0
      %5154 = vmatmul.mubr.f32.gmra.mrb[0].mxu0 %v4950
      %v5155 = vpop.f32.mrb[0].mxu0
      %v5156 = vadd.f32 0.0, %v5155
      %v5157 = vpop.f32.mrb[0].mxu0
      %5158 = vmatprep.mubr.f32.mxu0 0.0
      %5159 = vmatmul.mubr.f32.gmra.mrb[0].mxu0 %v4953
      %v5160 = vpop.f32.mrb[0].mxu0
      %v5161 = vadd.f32 0.0, %v5160
      %v5162 = vpop.f32.mrb[0].mxu0
      %5163 = vmatprep.mubr.f32.mxu0 0.0
      %5164 = vmatmul.mubr.f32.gmra.mrb[0].mxu0 %v4956
      %v5165 = vpop.f32.mrb[0].mxu0
      %v5166 = vadd.f32 0.0, %v5165
      %v5167 = vpop.f32.mrb[0].mxu0
      %5168 = vmatprep.mubr.f32.mxu0 0.0
      %5169 = vmatmul.mubr.f32.gmra.mrb[0].mxu0 %v4959
      %v5170 = vpop.f32.mrb[0].mxu0
      %v5171 = vadd.f32 0.0, %v5170
      %v5172 = vpop.f32.mrb[0].mxu0
      %5173 = vmatprep.mubr.f32.mxu0 0.0
      %5174 = vmatmul.mubr.f32.gmra.mrb[0].mxu0 %v4962
      %v5175 = vpop.f32.mrb[0].mxu0
      %v5176 = vadd.f32 0.0, %v5175
      %v5177 = vpop.f32.mrb[0].mxu0
      %5178 = vmatprep.mubr.f32.mxu0 0.0
      %5179 = vmatmul.mubr.f32.gmra.mrb[0].mxu0 %v4965
      %v5180 = vpop.f32.mrb[0].mxu0
      %v5181 = vadd.f32 0.0, %v5180
      %v5182 = vpop.f32.mrb[0].mxu0
      %5183 = vmatprep.mubr.f32.mxu0 0.0
      %5184 = vmatmul.mubr.f32.gmra.mrb[0].mxu0 %v4968
      %v5185 = vpop.f32.mrb[0].mxu0
      %v5186 = vadd.f32 0.0, %v5185
      %v5187 = vpop.f32.mrb[0].mxu0
      %5188 = vmatprep.mubr.f32.mxu0 0.0
      %5189 = vmatmul.mubr.f32.gmra.mrb[0].mxu0 %v4971
      %v5190 = vpop.f32.mrb[0].mxu0
      %v5191 = vadd.f32 0.0, %v5190
      %v5192 = vpop.f32.mrb[0].mxu0
      %5193 = vmatprep.mubr.f32.mxu0 0.0
      %5194 = vmatmul.mubr.f32.gmra.mrb[0].mxu0 %v4974
      %v5195 = vpop.f32.mrb[0].mxu0
      %v5196 = vadd.f32 0.0, %v5195
      %v5197 = vpop.f32.mrb[0].mxu0
      %5198 = vmatprep.mubr.f32.mxu0 0.0
      %5199 = vmatmul.mubr.f32.gmra.mrb[0].mxu0 %v4977
      %v5200 = vpop.f32.mrb[0].mxu0
      %v5201 = vadd.f32 0.0, %v5200
      %v5202 = vpop.f32.mrb[0].mxu0
      %5203 = vmatprep.mubr.f32.mxu0 0.0
      %5204 = vmatmul.mubr.f32.gmra.mrb[0].mxu0 %v4980
      %v5205 = vpop.f32.mrb[0].mxu0
      %v5206 = vadd.f32 0.0, %v5205
      %v5207 = vpop.f32.mrb[0].mxu0
      %5208 = vmatprep.mubr.f32.mxu0 0.0
      %5209 = vmatmul.mubr.f32.gmra.mrb[0].mxu0 %v4983
      %v5210 = vpop.f32.mrb[0].mxu0
      %v5211 = vadd.f32 0.0, %v5210
      %v5212 = vpop.f32.mrb[0].mxu0
      %5213 = vmatprep.mubr.f32.mxu0 0.0
      %5214 = vmatmul.mubr.f32.gmra.mrb[0].mxu0 %v4986
      %v5215 = vpop.f32.mrb[0].mxu0
      %v5216 = vadd.f32 0.0, %v5215
      %v5217 = vpop.f32.mrb[0].mxu0
      %5218 = vmatprep.mubr.f32.mxu0 0.0
      %5219 = vmatmul.mubr.f32.gmra.mrb[0].mxu0 %v4989
      %v5220 = vpop.f32.mrb[0].mxu0
      %v5221 = vadd.f32 0.0, %v5220
      %v5222 = vpop.f32.mrb[0].mxu0
      %5223 = vmatprep.mubr.f32.mxu0 0.0
      %5224 = vmatmul.mubr.f32.gmra.mrb[0].mxu0 %v4992
      %v5225 = vpop.f32.mrb[0].mxu0
      %v5226 = vadd.f32 0.0, %v5225
      %v5227 = vpop.f32.mrb[0].mxu0
      %5228 = vmatprep.mubr.f32.mxu0 0.0
      %5229 = vmatmul.mubr.f32.gmra.mrb[0].mxu0 %v4995
      %v5230 = vpop.f32.mrb[0].mxu0
      %v5231 = vadd.f32 0.0, %v5230
      %v5232 = vpop.f32.mrb[0].mxu0
      %5233 = vmatprep.mubr.f32.mxu0 0.0
      %5234 = vmatmul.mubr.f32.gmra.mrb[0].mxu0 %v4998
      %v5235 = vpop.f32.mrb[0].mxu0
      %v5236 = vadd.f32 0.0, %v5235
      %v5237 = vpop.f32.mrb[0].mxu0
      %5238 = vmatprep.mubr.f32.mxu0 0.0
      %5239 = vmatmul.mubr.f32.gmra.mrb[0].mxu0 %v5001
      %v5240 = vpop.f32.mrb[0].mxu0
      %v5241 = vadd.f32 0.0, %v5240
      %v5242 = vpop.f32.mrb[0].mxu0
      %5243 = vmatprep.mubr.f32.mxu0 0.0
      %5244 = vmatmul.mubr.f32.gmra.mrb[0].mxu0 %v5004
      %v5245 = vpop.f32.mrb[0].mxu0
      %v5246 = vadd.f32 0.0, %v5245
      %v5247 = vpop.f32.mrb[0].mxu0
      %5248 = vmatprep.mubr.f32.mxu0 0.0
      %5249 = vmatmul.mubr.f32.gmra.mrb[0].mxu0 %v5007
      %v5250 = vpop.f32.mrb[0].mxu0
      %v5251 = vadd.f32 0.0, %v5250
      %v5252 = vpop.f32.mrb[0].mxu0
      %5253 = vdwg.mxu0
      %v5255 = vsel %vm305, %v4821, 0
      %v5258 = vsel %vm305, %v4822, 0
      %v5261 = vsel %vm305, %v4823, 0
      %v5264 = vsel %vm305, %v4824, 0
      %v5267 = vsel %vm305, %v4825, 0
      %v5270 = vsel %vm305, %v4826, 0
      %v5273 = vsel %vm305, %v4827, 0
      %v5276 = vsel %vm305, %v4828, 0
      %v5279 = vsel %vm305, %v4829, 0
      %v5282 = vsel %vm305, %v4830, 0
      %v5285 = vsel %vm305, %v4831, 0
      %v5288 = vsel %vm305, %v4832, 0
      %v5291 = vsel %vm305, %v4833, 0
      %v5294 = vsel %vm305, %v4834, 0
      %v5297 = vsel %vm305, %v4835, 0
      %v5300 = vsel %vm305, %v4836, 0
      %v5303 = vsel %vm305, %v4837, 0
      %v5306 = vsel %vm305, %v4838, 0
      %v5309 = vsel %vm305, %v4839, 0
      %v5312 = vsel %vm305, %v4840, 0
      %v5315 = vsel %vm305, %v4841, 0
      %v5318 = vsel %vm305, %v4842, 0
      %v5321 = vsel %vm305, %v4843, 0
      %v5324 = vsel %vm305, %v4844, 0
      %v5327 = vsel %vm305, %v4845, 0
      %v5330 = vsel %vm305, %v4846, 0
      %v5333 = vsel %vm305, %v4847, 0
      %v5336 = vsel %vm305, %v4848, 0
      %v5339 = vsel %vm305, %v4849, 0
      %v5342 = vsel %vm305, %v4850, 0
      %v5345 = vsel %vm305, %v4851, 0
      %v5348 = vsel %vm305, %v4852, 0
      %v5351 = vsel %vm305, %v4853, 0
      %v5354 = vsel %vm305, %v4854, 0
      %v5357 = vsel %vm305, %v4855, 0
      %v5360 = vsel %vm305, %v4856, 0
      %5362 = vmatprep.subr.mxu0 0.0
      %5363 = vmatpush1.msra.mxu0 %v4857
      %5364 = vmatprep.subr.mxu0 0.0
      %5365 = vmatpush1.msra.mxu0 %v4858
      %5366 = vmatprep.subr.mxu0 0.0
      %5367 = vmatpush1.msra.mxu0 %v4859
      %5368 = vmatprep.subr.mxu0 0.0
      %5369 = vmatpush1.msra.mxu0 %v4860
      %5370 = vmatprep.subr.mxu0 0.0
      %5371 = vmatpush1.msra.mxu0 0.0
      %5372 = vmatprep.subr.mxu0 0.0
      %5373 = vmatpush1.msra.mxu0 0.0
      %5374 = vmatprep.subr.mxu0 0.0
      %5375 = vmatpush1.msra.mxu0 0.0
      %5376 = vmatprep.subr.mxu0 0.0
      %5377 = vmatpush1.msra.mxu0 0.0
      %5378 = vmatprep.subr.mxu0 0.0
      %5379 = vmatpush1.msra.mxu0 0.0
      %5380 = vmatprep.subr.mxu0 0.0
      %5381 = vmatpush1.msra.mxu0 0.0
      %5382 = vmatprep.subr.mxu0 0.0
      %5383 = vmatpush1.msra.mxu0 0.0
      %5384 = vmatprep.subr.mxu0 0.0
      %5385 = vmatpush1.msra.mxu0 0.0
      %5386 = vmatprep.subr.mxu0 0.0
      %5387 = vmatpush1.msra.mxu0 0.0
      %5388 = vmatprep.subr.mxu0 0.0
      %5389 = vmatpush1.msra.mxu0 0.0
      %5390 = vmatprep.subr.mxu0 0.0
      %5391 = vmatpush1.msra.mxu0 0.0
      %5392 = vmatprep.subr.mxu0 0.0
      %5393 = vmatpush1.msra.mxu0 0.0
      %5394 = vmatprep.subr.mxu0 0.0
      %5395 = vmatpush1.msra.mxu0 0.0
      %5396 = vmatprep.subr.mxu0 0.0
      %5397 = vmatpush1.msra.mxu0 0.0
      %5398 = vmatprep.subr.mxu0 0.0
      %5399 = vmatpush1.msra.mxu0 0.0
      %5400 = vmatprep.subr.mxu0 0.0
      %5401 = vmatpush1.msra.mxu0 0.0
      %5402 = vmatprep.subr.mxu0 0.0
      %5403 = vmatpush1.msra.mxu0 0.0
      %5404 = vmatprep.subr.mxu0 0.0
      %5405 = vmatpush1.msra.mxu0 0.0
      %5406 = vmatprep.subr.mxu0 0.0
      %5407 = vmatpush1.msra.mxu0 0.0
      %5408 = vmatprep.subr.mxu0 0.0
      %5409 = vmatpush1.msra.mxu0 0.0
      %5410 = vmatprep.subr.mxu0 0.0
      %5411 = vmatpush1.msra.mxu0 0.0
      %5412 = vmatprep.subr.mxu0 0.0
      %5413 = vmatpush1.msra.mxu0 0.0
      %5414 = vmatprep.subr.mxu0 0.0
      %5415 = vmatpush1.msra.mxu0 0.0
      %5416 = vmatprep.subr.mxu0 0.0
      %5417 = vmatpush1.msra.mxu0 0.0
      %5418 = vmatprep.subr.mxu0 0.0
      %5419 = vmatpush1.msra.mxu0 0.0
      %5420 = vmatprep.subr.mxu0 0.0
      %5421 = vmatpush1.msra.mxu0 0.0
      %5422 = vmatprep.subr.mxu0 0.0
      %5423 = vmatpush1.msra.mxu0 0.0
      %5424 = vmatprep.subr.mxu0 0.0
      %5425 = vmatpush1.msra.mxu0 0.0
      %5426 = vmatprep.mubr.f32.mxu0 0.0
      %5427 = vmatmul.mubr.f32.gmra.mrb[0].mxu0 %v5255
      %v5428 = vpop.f32.mrb[0].mxu0
      %v5429 = vadd.f32 %v5076, %v5428
      %v5430 = vpop.f32.mrb[0].mxu0
      %5431 = vmatprep.mubr.f32.mxu0 0.0
      %5432 = vmatmul.mubr.f32.gmra.mrb[0].mxu0 %v5258
      %v5433 = vpop.f32.mrb[0].mxu0
      %v5434 = vadd.f32 %v5081, %v5433
      %v5435 = vpop.f32.mrb[0].mxu0
      %5436 = vmatprep.mubr.f32.mxu0 0.0
      %5437 = vmatmul.mubr.f32.gmra.mrb[0].mxu0 %v5261
      %v5438 = vpop.f32.mrb[0].mxu0
      %v5439 = vadd.f32 %v5086, %v5438
      %v5440 = vpop.f32.mrb[0].mxu0
      %5441 = vmatprep.mubr.f32.mxu0 0.0
      %5442 = vmatmul.mubr.f32.gmra.mrb[0].mxu0 %v5264
      %v5443 = vpop.f32.mrb[0].mxu0
      %v5444 = vadd.f32 %v5091, %v5443
      %v5445 = vpop.f32.mrb[0].mxu0
      %5446 = vmatprep.mubr.f32.mxu0 0.0
      %5447 = vmatmul.mubr.f32.gmra.mrb[0].mxu0 %v5267
      %v5448 = vpop.f32.mrb[0].mxu0
      %v5449 = vadd.f32 %v5096, %v5448
      %v5450 = vpop.f32.mrb[0].mxu0
      %5451 = vmatprep.mubr.f32.mxu0 0.0
      %5452 = vmatmul.mubr.f32.gmra.mrb[0].mxu0 %v5270
      %v5453 = vpop.f32.mrb[0].mxu0
      %v5454 = vadd.f32 %v5101, %v5453
      %v5455 = vpop.f32.mrb[0].mxu0
      %5456 = vmatprep.mubr.f32.mxu0 0.0
      %5457 = vmatmul.mubr.f32.gmra.mrb[0].mxu0 %v5273
      %v5458 = vpop.f32.mrb[0].mxu0
      %v5459 = vadd.f32 %v5106, %v5458
      %v5460 = vpop.f32.mrb[0].mxu0
      %5461 = vmatprep.mubr.f32.mxu0 0.0
      %5462 = vmatmul.mubr.f32.gmra.mrb[0].mxu0 %v5276
      %v5463 = vpop.f32.mrb[0].mxu0
      %v5464 = vadd.f32 %v5111, %v5463
      %v5465 = vpop.f32.mrb[0].mxu0
      %5466 = vmatprep.mubr.f32.mxu0 0.0
      %5467 = vmatmul.mubr.f32.gmra.mrb[0].mxu0 %v5279
      %v5468 = vpop.f32.mrb[0].mxu0
      %v5469 = vadd.f32 %v5116, %v5468
      %v5470 = vpop.f32.mrb[0].mxu0
      %5471 = vmatprep.mubr.f32.mxu0 0.0
      %5472 = vmatmul.mubr.f32.gmra.mrb[0].mxu0 %v5282
      %v5473 = vpop.f32.mrb[0].mxu0
      %v5474 = vadd.f32 %v5121, %v5473
      %v5475 = vpop.f32.mrb[0].mxu0
      %5476 = vmatprep.mubr.f32.mxu0 0.0
      %5477 = vmatmul.mubr.f32.gmra.mrb[0].mxu0 %v5285
      %v5478 = vpop.f32.mrb[0].mxu0
      %v5479 = vadd.f32 %v5126, %v5478
      %v5480 = vpop.f32.mrb[0].mxu0
      %5481 = vmatprep.mubr.f32.mxu0 0.0
      %5482 = vmatmul.mubr.f32.gmra.mrb[0].mxu0 %v5288
      %v5483 = vpop.f32.mrb[0].mxu0
      %v5484 = vadd.f32 %v5131, %v5483
      %v5485 = vpop.f32.mrb[0].mxu0
      %5486 = vmatprep.mubr.f32.mxu0 0.0
      %5487 = vmatmul.mubr.f32.gmra.mrb[0].mxu0 %v5291
      %v5488 = vpop.f32.mrb[0].mxu0
      %v5489 = vadd.f32 %v5136, %v5488
      %v5490 = vpop.f32.mrb[0].mxu0
      %5491 = vmatprep.mubr.f32.mxu0 0.0
      %5492 = vmatmul.mubr.f32.gmra.mrb[0].mxu0 %v5294
      %v5493 = vpop.f32.mrb[0].mxu0
      %v5494 = vadd.f32 %v5141, %v5493
      %v5495 = vpop.f32.mrb[0].mxu0
      %5496 = vmatprep.mubr.f32.mxu0 0.0
      %5497 = vmatmul.mubr.f32.gmra.mrb[0].mxu0 %v5297
      %v5498 = vpop.f32.mrb[0].mxu0
      %v5499 = vadd.f32 %v5146, %v5498
      %v5500 = vpop.f32.mrb[0].mxu0
      %5501 = vmatprep.mubr.f32.mxu0 0.0
      %5502 = vmatmul.mubr.f32.gmra.mrb[0].mxu0 %v5300
      %v5503 = vpop.f32.mrb[0].mxu0
      %v5504 = vadd.f32 %v5151, %v5503
      %v5505 = vpop.f32.mrb[0].mxu0
      %5506 = vmatprep.mubr.f32.mxu0 0.0
      %5507 = vmatmul.mubr.f32.gmra.mrb[0].mxu0 %v5303
      %v5508 = vpop.f32.mrb[0].mxu0
      %v5509 = vadd.f32 %v5156, %v5508
      %v5510 = vpop.f32.mrb[0].mxu0
      %5511 = vmatprep.mubr.f32.mxu0 0.0
      %5512 = vmatmul.mubr.f32.gmra.mrb[0].mxu0 %v5306
      %v5513 = vpop.f32.mrb[0].mxu0
      %v5514 = vadd.f32 %v5161, %v5513
      %v5515 = vpop.f32.mrb[0].mxu0
      %5516 = vmatprep.mubr.f32.mxu0 0.0
      %5517 = vmatmul.mubr.f32.gmra.mrb[0].mxu0 %v5309
      %v5518 = vpop.f32.mrb[0].mxu0
      %v5519 = vadd.f32 %v5166, %v5518
      %v5520 = vpop.f32.mrb[0].mxu0
      %5521 = vmatprep.mubr.f32.mxu0 0.0
      %5522 = vmatmul.mubr.f32.gmra.mrb[0].mxu0 %v5312
      %v5523 = vpop.f32.mrb[0].mxu0
      %v5524 = vadd.f32 %v5171, %v5523
      %v5525 = vpop.f32.mrb[0].mxu0
      %5526 = vmatprep.mubr.f32.mxu0 0.0
      %5527 = vmatmul.mubr.f32.gmra.mrb[0].mxu0 %v5315
      %v5528 = vpop.f32.mrb[0].mxu0
      %v5529 = vadd.f32 %v5176, %v5528
      %v5530 = vpop.f32.mrb[0].mxu0
      %5531 = vmatprep.mubr.f32.mxu0 0.0
      %5532 = vmatmul.mubr.f32.gmra.mrb[0].mxu0 %v5318
      %v5533 = vpop.f32.mrb[0].mxu0
      %v5534 = vadd.f32 %v5181, %v5533
      %v5535 = vpop.f32.mrb[0].mxu0
      %5536 = vmatprep.mubr.f32.mxu0 0.0
      %5537 = vmatmul.mubr.f32.gmra.mrb[0].mxu0 %v5321
      %v5538 = vpop.f32.mrb[0].mxu0
      %v5539 = vadd.f32 %v5186, %v5538
      %v5540 = vpop.f32.mrb[0].mxu0
      %5541 = vmatprep.mubr.f32.mxu0 0.0
      %5542 = vmatmul.mubr.f32.gmra.mrb[0].mxu0 %v5324
      %v5543 = vpop.f32.mrb[0].mxu0
      %v5544 = vadd.f32 %v5191, %v5543
      %v5545 = vpop.f32.mrb[0].mxu0
      %5546 = vmatprep.mubr.f32.mxu0 0.0
      %5547 = vmatmul.mubr.f32.gmra.mrb[0].mxu0 %v5327
      %v5548 = vpop.f32.mrb[0].mxu0
      %v5549 = vadd.f32 %v5196, %v5548
      %v5550 = vpop.f32.mrb[0].mxu0
      %5551 = vmatprep.mubr.f32.mxu0 0.0
      %5552 = vmatmul.mubr.f32.gmra.mrb[0].mxu0 %v5330
      %v5553 = vpop.f32.mrb[0].mxu0
      %v5554 = vadd.f32 %v5201, %v5553
      %v5555 = vpop.f32.mrb[0].mxu0
      %5556 = vmatprep.mubr.f32.mxu0 0.0
      %5557 = vmatmul.mubr.f32.gmra.mrb[0].mxu0 %v5333
      %v5558 = vpop.f32.mrb[0].mxu0
      %v5559 = vadd.f32 %v5206, %v5558
      %v5560 = vpop.f32.mrb[0].mxu0
      %5561 = vmatprep.mubr.f32.mxu0 0.0
      %5562 = vmatmul.mubr.f32.gmra.mrb[0].mxu0 %v5336
      %v5563 = vpop.f32.mrb[0].mxu0
      %v5564 = vadd.f32 %v5211, %v5563
      %v5565 = vpop.f32.mrb[0].mxu0
      %5566 = vmatprep.mubr.f32.mxu0 0.0
      %5567 = vmatmul.mubr.f32.gmra.mrb[0].mxu0 %v5339
      %v5568 = vpop.f32.mrb[0].mxu0
      %v5569 = vadd.f32 %v5216, %v5568
      %v5570 = vpop.f32.mrb[0].mxu0
      %5571 = vmatprep.mubr.f32.mxu0 0.0
      %5572 = vmatmul.mubr.f32.gmra.mrb[0].mxu0 %v5342
      %v5573 = vpop.f32.mrb[0].mxu0
      %v5574 = vadd.f32 %v5221, %v5573
      %v5575 = vpop.f32.mrb[0].mxu0
      %5576 = vmatprep.mubr.f32.mxu0 0.0
      %5577 = vmatmul.mubr.f32.gmra.mrb[0].mxu0 %v5345
      %v5578 = vpop.f32.mrb[0].mxu0
      %v5579 = vadd.f32 %v5226, %v5578
      %v5580 = vpop.f32.mrb[0].mxu0
      %5581 = vmatprep.mubr.f32.mxu0 0.0
      %5582 = vmatmul.mubr.f32.gmra.mrb[0].mxu0 %v5348
      %v5583 = vpop.f32.mrb[0].mxu0
      %v5584 = vadd.f32 %v5231, %v5583
      %v5585 = vpop.f32.mrb[0].mxu0
      %5586 = vmatprep.mubr.f32.mxu0 0.0
      %5587 = vmatmul.mubr.f32.gmra.mrb[0].mxu0 %v5351
      %v5588 = vpop.f32.mrb[0].mxu0
      %v5589 = vadd.f32 %v5236, %v5588
      %v5590 = vpop.f32.mrb[0].mxu0
      %5591 = vmatprep.mubr.f32.mxu0 0.0
      %5592 = vmatmul.mubr.f32.gmra.mrb[0].mxu0 %v5354
      %v5593 = vpop.f32.mrb[0].mxu0
      %v5594 = vadd.f32 %v5241, %v5593
      %v5595 = vpop.f32.mrb[0].mxu0
      %5596 = vmatprep.mubr.f32.mxu0 0.0
      %5597 = vmatmul.mubr.f32.gmra.mrb[0].mxu0 %v5357
      %v5598 = vpop.f32.mrb[0].mxu0
      %v5599 = vadd.f32 %v5246, %v5598
      %v5600 = vpop.f32.mrb[0].mxu0
      %5601 = vmatprep.mubr.f32.mxu0 0.0
      %5602 = vmatmul.mubr.f32.gmra.mrb[0].mxu0 %v5360
      %v5603 = vpop.f32.mrb[0].mxu0
      %v5604 = vadd.f32 %v5251, %v5603
      %v5605 = vpop.f32.mrb[0].mxu0
      %5606 = vdwg.mxu0
      %v5607 = vld [vmem:[#allocation2 + $0x7] sm:$0xff]
      %v5608 = vld [vmem:[#allocation2 + $0xf] sm:$0xff]
      %v5609 = vld [vmem:[#allocation2 + $0x17] sm:$0xff]
      %v5610 = vld [vmem:[#allocation2 + $0x1f] sm:$0xff]
      %v5611 = vld [vmem:[#allocation2 + $0x27] sm:$0xff]
      %v5612 = vld [vmem:[#allocation2 + $0x2f] sm:$0xff]
      %v5613 = vld [vmem:[#allocation2 + $0x37] sm:$0xff]
      %v5614 = vld [vmem:[#allocation2 + $0x3f] sm:$0xff]
      %v5615 = vld [vmem:[#allocation2 + $0x47] sm:$0xff]
      %v5616 = vld [vmem:[#allocation2 + $0x4f] sm:$0xff]
      %v5617 = vld [vmem:[#allocation2 + $0x57] sm:$0xff]
      %v5618 = vld [vmem:[#allocation2 + $0x5f] sm:$0xff]
      %v5619 = vld [vmem:[#allocation2 + $0x67] sm:$0xff]
      %v5620 = vld [vmem:[#allocation2 + $0x6f] sm:$0xff]
      %v5621 = vld [vmem:[#allocation2 + $0x77] sm:$0xff]
      %v5622 = vld [vmem:[#allocation2 + $0x7f] sm:$0xff]
      %v5623 = vld [vmem:[#allocation2 + $0x87] sm:$0xff]
      %v5624 = vld [vmem:[#allocation2 + $0x8f] sm:$0xff]
      %v5625 = vld [vmem:[#allocation2 + $0x97] sm:$0xff]
      %v5626 = vld [vmem:[#allocation2 + $0x9f] sm:$0xff]
      %v5627 = vld [vmem:[#allocation2 + $0xa7] sm:$0xff]
      %v5628 = vld [vmem:[#allocation2 + $0xaf] sm:$0xff]
      %v5629 = vld [vmem:[#allocation2 + $0xb7] sm:$0xff]
      %v5630 = vld [vmem:[#allocation2 + $0xbf] sm:$0xff]
      %v5631 = vld [vmem:[#allocation2 + $0xc7] sm:$0xff]
      %v5632 = vld [vmem:[#allocation2 + $0xcf] sm:$0xff]
      %v5633 = vld [vmem:[#allocation2 + $0xd7] sm:$0xff]
      %v5634 = vld [vmem:[#allocation2 + $0xdf] sm:$0xff]
      %v5635 = vld [vmem:[#allocation2 + $0xe7] sm:$0xff]
      %v5636 = vld [vmem:[#allocation2 + $0xef] sm:$0xff]
      %v5637 = vld [vmem:[#allocation2 + $0xf7] sm:$0xff]
      %v5638 = vld [vmem:[#allocation2 + $0xff] sm:$0xff]
      %v5639 = vld [vmem:[#allocation2 + $0x107] sm:$0xff]
      %v5640 = vld [vmem:[#allocation2 + $0x10f] sm:$0xff]
      %v5641 = vld [vmem:[#allocation2 + $0x117] sm:$0xff]
      %v5642 = vld [vmem:[#allocation2 + $0x11f] sm:$0xff]
      %v5643 = vld [vmem:[%s2 + $0x40] sm:$0xff]
      %v5644 = vld [vmem:[%s2 + $0x48] sm:$0xff]
      %v5645 = vld [vmem:[%s2 + $0x50] sm:$0xff]
      %v5646 = vld [vmem:[%s2 + $0x58] sm:$0xff]
      %v5648 = vsel %vm305, %v5607, 0
      %v5651 = vsel %vm305, %v5608, 0
      %v5654 = vsel %vm305, %v5609, 0
      %v5657 = vsel %vm305, %v5610, 0
      %v5660 = vsel %vm305, %v5611, 0
      %v5663 = vsel %vm305, %v5612, 0
      %v5666 = vsel %vm305, %v5613, 0
      %v5669 = vsel %vm305, %v5614, 0
      %v5672 = vsel %vm305, %v5615, 0
      %v5675 = vsel %vm305, %v5616, 0
      %v5678 = vsel %vm305, %v5617, 0
      %v5681 = vsel %vm305, %v5618, 0
      %v5684 = vsel %vm305, %v5619, 0
      %v5687 = vsel %vm305, %v5620, 0
      %v5690 = vsel %vm305, %v5621, 0
      %v5693 = vsel %vm305, %v5622, 0
      %v5696 = vsel %vm305, %v5623, 0
      %v5699 = vsel %vm305, %v5624, 0
      %v5702 = vsel %vm305, %v5625, 0
      %v5705 = vsel %vm305, %v5626, 0
      %v5708 = vsel %vm305, %v5627, 0
      %v5711 = vsel %vm305, %v5628, 0
      %v5714 = vsel %vm305, %v5629, 0
      %v5717 = vsel %vm305, %v5630, 0
      %v5720 = vsel %vm305, %v5631, 0
      %v5723 = vsel %vm305, %v5632, 0
      %v5726 = vsel %vm305, %v5633, 0
      %v5729 = vsel %vm305, %v5634, 0
      %v5732 = vsel %vm305, %v5635, 0
      %v5735 = vsel %vm305, %v5636, 0
      %v5738 = vsel %vm305, %v5637, 0
      %v5741 = vsel %vm305, %v5638, 0
      %v5744 = vsel %vm305, %v5639, 0
      %v5747 = vsel %vm305, %v5640, 0
      %v5750 = vsel %vm305, %v5641, 0
      %v5753 = vsel %vm305, %v5642, 0
      %5755 = vmatprep.subr.mxu0 0.0
      %5756 = vmatpush1.msra.mxu0 %v5643
      %5757 = vmatprep.subr.mxu0 0.0
      %5758 = vmatpush1.msra.mxu0 %v5644
      %5759 = vmatprep.subr.mxu0 0.0
      %5760 = vmatpush1.msra.mxu0 %v5645
      %5761 = vmatprep.subr.mxu0 0.0
      %5762 = vmatpush1.msra.mxu0 %v5646
      %5763 = vmatprep.subr.mxu0 0.0
      %5764 = vmatpush1.msra.mxu0 0.0
      %5765 = vmatprep.subr.mxu0 0.0
      %5766 = vmatpush1.msra.mxu0 0.0
      %5767 = vmatprep.subr.mxu0 0.0
      %5768 = vmatpush1.msra.mxu0 0.0
      %5769 = vmatprep.subr.mxu0 0.0
      %5770 = vmatpush1.msra.mxu0 0.0
      %5771 = vmatprep.subr.mxu0 0.0
      %5772 = vmatpush1.msra.mxu0 0.0
      %5773 = vmatprep.subr.mxu0 0.0
      %5774 = vmatpush1.msra.mxu0 0.0
      %5775 = vmatprep.subr.mxu0 0.0
      %5776 = vmatpush1.msra.mxu0 0.0
      %5777 = vmatprep.subr.mxu0 0.0
      %5778 = vmatpush1.msra.mxu0 0.0
      %5779 = vmatprep.subr.mxu0 0.0
      %5780 = vmatpush1.msra.mxu0 0.0
      %5781 = vmatprep.subr.mxu0 0.0
      %5782 = vmatpush1.msra.mxu0 0.0
      %5783 = vmatprep.subr.mxu0 0.0
      %5784 = vmatpush1.msra.mxu0 0.0
      %5785 = vmatprep.subr.mxu0 0.0
      %5786 = vmatpush1.msra.mxu0 0.0
      %5787 = vmatprep.subr.mxu0 0.0
      %5788 = vmatpush1.msra.mxu0 0.0
      %5789 = vmatprep.subr.mxu0 0.0
      %5790 = vmatpush1.msra.mxu0 0.0
      %5791 = vmatprep.subr.mxu0 0.0
      %5792 = vmatpush1.msra.mxu0 0.0
      %5793 = vmatprep.subr.mxu0 0.0
      %5794 = vmatpush1.msra.mxu0 0.0
      %5795 = vmatprep.subr.mxu0 0.0
      %5796 = vmatpush1.msra.mxu0 0.0
      %5797 = vmatprep.subr.mxu0 0.0
      %5798 = vmatpush1.msra.mxu0 0.0
      %5799 = vmatprep.subr.mxu0 0.0
      %5800 = vmatpush1.msra.mxu0 0.0
      %5801 = vmatprep.subr.mxu0 0.0
      %5802 = vmatpush1.msra.mxu0 0.0
      %5803 = vmatprep.subr.mxu0 0.0
      %5804 = vmatpush1.msra.mxu0 0.0
      %5805 = vmatprep.subr.mxu0 0.0
      %5806 = vmatpush1.msra.mxu0 0.0
      %5807 = vmatprep.subr.mxu0 0.0
      %5808 = vmatpush1.msra.mxu0 0.0
      %5809 = vmatprep.subr.mxu0 0.0
      %5810 = vmatpush1.msra.mxu0 0.0
      %5811 = vmatprep.subr.mxu0 0.0
      %5812 = vmatpush1.msra.mxu0 0.0
      %5813 = vmatprep.subr.mxu0 0.0
      %5814 = vmatpush1.msra.mxu0 0.0
      %5815 = vmatprep.subr.mxu0 0.0
      %5816 = vmatpush1.msra.mxu0 0.0
      %5817 = vmatprep.subr.mxu0 0.0
      %5818 = vmatpush1.msra.mxu0 0.0
      %5819 = vmatprep.mubr.f32.mxu0 0.0
      %5820 = vmatmul.mubr.f32.gmra.mrb[0].mxu0 %v5648
      %v5821 = vpop.f32.mrb[0].mxu0
      %v5822 = vadd.f32 0.0, %v5821
      %v5823 = vpop.f32.mrb[0].mxu0
      %5824 = vmatprep.mubr.f32.mxu0 0.0
      %5825 = vmatmul.mubr.f32.gmra.mrb[0].mxu0 %v5651
      %v5826 = vpop.f32.mrb[0].mxu0
      %v5827 = vadd.f32 0.0, %v5826
      %v5828 = vpop.f32.mrb[0].mxu0
      %5829 = vmatprep.mubr.f32.mxu0 0.0
      %5830 = vmatmul.mubr.f32.gmra.mrb[0].mxu0 %v5654
      %v5831 = vpop.f32.mrb[0].mxu0
      %v5832 = vadd.f32 0.0, %v5831
      %v5833 = vpop.f32.mrb[0].mxu0
      %5834 = vmatprep.mubr.f32.mxu0 0.0
      %5835 = vmatmul.mubr.f32.gmra.mrb[0].mxu0 %v5657
      %v5836 = vpop.f32.mrb[0].mxu0
      %v5837 = vadd.f32 0.0, %v5836
      %v5838 = vpop.f32.mrb[0].mxu0
      %5839 = vmatprep.mubr.f32.mxu0 0.0
      %5840 = vmatmul.mubr.f32.gmra.mrb[0].mxu0 %v5660
      %v5841 = vpop.f32.mrb[0].mxu0
      %v5842 = vadd.f32 0.0, %v5841
      %v5843 = vpop.f32.mrb[0].mxu0
      %5844 = vmatprep.mubr.f32.mxu0 0.0
      %5845 = vmatmul.mubr.f32.gmra.mrb[0].mxu0 %v5663
      %v5846 = vpop.f32.mrb[0].mxu0
      %v5847 = vadd.f32 0.0, %v5846
      %v5848 = vpop.f32.mrb[0].mxu0
      %5849 = vmatprep.mubr.f32.mxu0 0.0
      %5850 = vmatmul.mubr.f32.gmra.mrb[0].mxu0 %v5666
      %v5851 = vpop.f32.mrb[0].mxu0
      %v5852 = vadd.f32 0.0, %v5851
      %v5853 = vpop.f32.mrb[0].mxu0
      %5854 = vmatprep.mubr.f32.mxu0 0.0
      %5855 = vmatmul.mubr.f32.gmra.mrb[0].mxu0 %v5669
      %v5856 = vpop.f32.mrb[0].mxu0
      %v5857 = vadd.f32 0.0, %v5856
      %v5858 = vpop.f32.mrb[0].mxu0
      %5859 = vmatprep.mubr.f32.mxu0 0.0
      %5860 = vmatmul.mubr.f32.gmra.mrb[0].mxu0 %v5672
      %v5861 = vpop.f32.mrb[0].mxu0
      %v5862 = vadd.f32 0.0, %v5861
      %v5863 = vpop.f32.mrb[0].mxu0
      %5864 = vmatprep.mubr.f32.mxu0 0.0
      %5865 = vmatmul.mubr.f32.gmra.mrb[0].mxu0 %v5675
      %v5866 = vpop.f32.mrb[0].mxu0
      %v5867 = vadd.f32 0.0, %v5866
      %v5868 = vpop.f32.mrb[0].mxu0
      %5869 = vmatprep.mubr.f32.mxu0 0.0
      %5870 = vmatmul.mubr.f32.gmra.mrb[0].mxu0 %v5678
      %v5871 = vpop.f32.mrb[0].mxu0
      %v5872 = vadd.f32 0.0, %v5871
      %v5873 = vpop.f32.mrb[0].mxu0
      %5874 = vmatprep.mubr.f32.mxu0 0.0
      %5875 = vmatmul.mubr.f32.gmra.mrb[0].mxu0 %v5681
      %v5876 = vpop.f32.mrb[0].mxu0
      %v5877 = vadd.f32 0.0, %v5876
      %v5878 = vpop.f32.mrb[0].mxu0
      %5879 = vmatprep.mubr.f32.mxu0 0.0
      %5880 = vmatmul.mubr.f32.gmra.mrb[0].mxu0 %v5684
      %v5881 = vpop.f32.mrb[0].mxu0
      %v5882 = vadd.f32 0.0, %v5881
      %v5883 = vpop.f32.mrb[0].mxu0
      %5884 = vmatprep.mubr.f32.mxu0 0.0
      %5885 = vmatmul.mubr.f32.gmra.mrb[0].mxu0 %v5687
      %v5886 = vpop.f32.mrb[0].mxu0
      %v5887 = vadd.f32 0.0, %v5886
      %v5888 = vpop.f32.mrb[0].mxu0
      %5889 = vmatprep.mubr.f32.mxu0 0.0
      %5890 = vmatmul.mubr.f32.gmra.mrb[0].mxu0 %v5690
      %v5891 = vpop.f32.mrb[0].mxu0
      %v5892 = vadd.f32 0.0, %v5891
      %v5893 = vpop.f32.mrb[0].mxu0
      %5894 = vmatprep.mubr.f32.mxu0 0.0
      %5895 = vmatmul.mubr.f32.gmra.mrb[0].mxu0 %v5693
      %v5896 = vpop.f32.mrb[0].mxu0
      %v5897 = vadd.f32 0.0, %v5896
      %v5898 = vpop.f32.mrb[0].mxu0
      %5899 = vmatprep.mubr.f32.mxu0 0.0
      %5900 = vmatmul.mubr.f32.gmra.mrb[0].mxu0 %v5696
      %v5901 = vpop.f32.mrb[0].mxu0
      %v5902 = vadd.f32 0.0, %v5901
      %v5903 = vpop.f32.mrb[0].mxu0
      %5904 = vmatprep.mubr.f32.mxu0 0.0
      %5905 = vmatmul.mubr.f32.gmra.mrb[0].mxu0 %v5699
      %v5906 = vpop.f32.mrb[0].mxu0
      %v5907 = vadd.f32 0.0, %v5906
      %v5908 = vpop.f32.mrb[0].mxu0
      %5909 = vmatprep.mubr.f32.mxu0 0.0
      %5910 = vmatmul.mubr.f32.gmra.mrb[0].mxu0 %v5702
      %v5911 = vpop.f32.mrb[0].mxu0
      %v5912 = vadd.f32 0.0, %v5911
      %v5913 = vpop.f32.mrb[0].mxu0
      %5914 = vmatprep.mubr.f32.mxu0 0.0
      %5915 = vmatmul.mubr.f32.gmra.mrb[0].mxu0 %v5705
      %v5916 = vpop.f32.mrb[0].mxu0
      %v5917 = vadd.f32 0.0, %v5916
      %v5918 = vpop.f32.mrb[0].mxu0
      %5919 = vmatprep.mubr.f32.mxu0 0.0
      %5920 = vmatmul.mubr.f32.gmra.mrb[0].mxu0 %v5708
      %v5921 = vpop.f32.mrb[0].mxu0
      %v5922 = vadd.f32 0.0, %v5921
      %v5923 = vpop.f32.mrb[0].mxu0
      %5924 = vmatprep.mubr.f32.mxu0 0.0
      %5925 = vmatmul.mubr.f32.gmra.mrb[0].mxu0 %v5711
      %v5926 = vpop.f32.mrb[0].mxu0
      %v5927 = vadd.f32 0.0, %v5926
      %v5928 = vpop.f32.mrb[0].mxu0
      %5929 = vmatprep.mubr.f32.mxu0 0.0
      %5930 = vmatmul.mubr.f32.gmra.mrb[0].mxu0 %v5714
      %v5931 = vpop.f32.mrb[0].mxu0
      %v5932 = vadd.f32 0.0, %v5931
      %v5933 = vpop.f32.mrb[0].mxu0
      %5934 = vmatprep.mubr.f32.mxu0 0.0
      %5935 = vmatmul.mubr.f32.gmra.mrb[0].mxu0 %v5717
      %v5936 = vpop.f32.mrb[0].mxu0
      %v5937 = vadd.f32 0.0, %v5936
      %v5938 = vpop.f32.mrb[0].mxu0
      %5939 = vmatprep.mubr.f32.mxu0 0.0
      %5940 = vmatmul.mubr.f32.gmra.mrb[0].mxu0 %v5720
      %v5941 = vpop.f32.mrb[0].mxu0
      %v5942 = vadd.f32 0.0, %v5941
      %v5943 = vpop.f32.mrb[0].mxu0
      %5944 = vmatprep.mubr.f32.mxu0 0.0
      %5945 = vmatmul.mubr.f32.gmra.mrb[0].mxu0 %v5723
      %v5946 = vpop.f32.mrb[0].mxu0
      %v5947 = vadd.f32 0.0, %v5946
      %v5948 = vpop.f32.mrb[0].mxu0
      %5949 = vmatprep.mubr.f32.mxu0 0.0
      %5950 = vmatmul.mubr.f32.gmra.mrb[0].mxu0 %v5726
      %v5951 = vpop.f32.mrb[0].mxu0
      %v5952 = vadd.f32 0.0, %v5951
      %v5953 = vpop.f32.mrb[0].mxu0
      %5954 = vmatprep.mubr.f32.mxu0 0.0
      %5955 = vmatmul.mubr.f32.gmra.mrb[0].mxu0 %v5729
      %v5956 = vpop.f32.mrb[0].mxu0
      %v5957 = vadd.f32 0.0, %v5956
      %v5958 = vpop.f32.mrb[0].mxu0
      %5959 = vmatprep.mubr.f32.mxu0 0.0
      %5960 = vmatmul.mubr.f32.gmra.mrb[0].mxu0 %v5732
      %v5961 = vpop.f32.mrb[0].mxu0
      %v5962 = vadd.f32 0.0, %v5961
      %v5963 = vpop.f32.mrb[0].mxu0
      %5964 = vmatprep.mubr.f32.mxu0 0.0
      %5965 = vmatmul.mubr.f32.gmra.mrb[0].mxu0 %v5735
      %v5966 = vpop.f32.mrb[0].mxu0
      %v5967 = vadd.f32 0.0, %v5966
      %v5968 = vpop.f32.mrb[0].mxu0
      %5969 = vmatprep.mubr.f32.mxu0 0.0
      %5970 = vmatmul.mubr.f32.gmra.mrb[0].mxu0 %v5738
      %v5971 = vpop.f32.mrb[0].mxu0
      %v5972 = vadd.f32 0.0, %v5971
      %v5973 = vpop.f32.mrb[0].mxu0
      %5974 = vmatprep.mubr.f32.mxu0 0.0
      %5975 = vmatmul.mubr.f32.gmra.mrb[0].mxu0 %v5741
      %v5976 = vpop.f32.mrb[0].mxu0
      %v5977 = vadd.f32 0.0, %v5976
      %v5978 = vpop.f32.mrb[0].mxu0
      %5979 = vmatprep.mubr.f32.mxu0 0.0
      %5980 = vmatmul.mubr.f32.gmra.mrb[0].mxu0 %v5744
      %v5981 = vpop.f32.mrb[0].mxu0
      %v5982 = vadd.f32 0.0, %v5981
      %v5983 = vpop.f32.mrb[0].mxu0
      %5984 = vmatprep.mubr.f32.mxu0 0.0
      %5985 = vmatmul.mubr.f32.gmra.mrb[0].mxu0 %v5747
      %v5986 = vpop.f32.mrb[0].mxu0
      %v5987 = vadd.f32 0.0, %v5986
      %v5988 = vpop.f32.mrb[0].mxu0
      %5989 = vmatprep.mubr.f32.mxu0 0.0
      %5990 = vmatmul.mubr.f32.gmra.mrb[0].mxu0 %v5750
      %v5991 = vpop.f32.mrb[0].mxu0
      %v5992 = vadd.f32 0.0, %v5991
      %v5993 = vpop.f32.mrb[0].mxu0
      %5994 = vmatprep.mubr.f32.mxu0 0.0
      %5995 = vmatmul.mubr.f32.gmra.mrb[0].mxu0 %v5753
      %v5996 = vpop.f32.mrb[0].mxu0
      %v5997 = vadd.f32 0.0, %v5996
      %v5998 = vpop.f32.mrb[0].mxu0
      %5999 = vdwg.mxu0
      %v6000 = vadd.f32 %v5429, %v5822
      %v6001 = vadd.f32 %v5434, %v5827
      %v6002 = vadd.f32 %v5439, %v5832
      %v6003 = vadd.f32 %v5444, %v5837
      %v6004 = vadd.f32 %v5449, %v5842
      %v6005 = vadd.f32 %v5454, %v5847
      %v6006 = vadd.f32 %v5459, %v5852
      %v6007 = vadd.f32 %v5464, %v5857
      %v6008 = vadd.f32 %v5469, %v5862
      %v6009 = vadd.f32 %v5474, %v5867
      %v6010 = vadd.f32 %v5479, %v5872
      %v6011 = vadd.f32 %v5484, %v5877
      %v6012 = vadd.f32 %v5489, %v5882
      %v6013 = vadd.f32 %v5494, %v5887
      %v6014 = vadd.f32 %v5499, %v5892
      %v6015 = vadd.f32 %v5504, %v5897
      %v6016 = vadd.f32 %v5509, %v5902
      %v6017 = vadd.f32 %v5514, %v5907
      %v6018 = vadd.f32 %v5519, %v5912
      %v6019 = vadd.f32 %v5524, %v5917
      %v6020 = vadd.f32 %v5529, %v5922
      %v6021 = vadd.f32 %v5534, %v5927
      %v6022 = vadd.f32 %v5539, %v5932
      %v6023 = vadd.f32 %v5544, %v5937
      %v6024 = vadd.f32 %v5549, %v5942
      %v6025 = vadd.f32 %v5554, %v5947
      %v6026 = vadd.f32 %v5559, %v5952
      %v6027 = vadd.f32 %v5564, %v5957
      %v6028 = vadd.f32 %v5569, %v5962
      %v6029 = vadd.f32 %v5574, %v5967
      %v6030 = vadd.f32 %v5579, %v5972
      %v6031 = vadd.f32 %v5584, %v5977
      %v6032 = vadd.f32 %v5589, %v5982
      %v6033 = vadd.f32 %v5594, %v5987
      %v6034 = vadd.f32 %v5599, %v5992
      %v6035 = vadd.f32 %v5604, %v5997
      %v6036 = vld [vmem:[#allocation2 + $0x17] sm:$0xff]
      %v6037 = vld [vmem:[#allocation2 + $0x1f] sm:$0xff]
      %v6038 = vld [vmem:[#allocation2 + $0x27] sm:$0xff]
      %v6039 = vld [vmem:[#allocation2 + $0x2f] sm:$0xff]
      %v6040 = vld [vmem:[#allocation2 + $0x37] sm:$0xff]
      %v6041 = vld [vmem:[#allocation2 + $0x3f] sm:$0xff]
      %v6042 = vld [vmem:[#allocation2 + $0x47] sm:$0xff]
      %v6043 = vld [vmem:[#allocation2 + $0x4f] sm:$0xff]
      %v6044 = vld [vmem:[#allocation2 + $0x57] sm:$0xff]
      %v6045 = vld [vmem:[#allocation2 + $0x5f] sm:$0xff]
      %v6046 = vld [vmem:[#allocation2 + $0x67] sm:$0xff]
      %v6047 = vld [vmem:[#allocation2 + $0x6f] sm:$0xff]
      %v6048 = vld [vmem:[#allocation2 + $0x77] sm:$0xff]
      %v6049 = vld [vmem:[#allocation2 + $0x7f] sm:$0xff]
      %v6050 = vld [vmem:[#allocation2 + $0x87] sm:$0xff]
      %v6051 = vld [vmem:[#allocation2 + $0x8f] sm:$0xff]
      %v6052 = vld [vmem:[#allocation2 + $0x97] sm:$0xff]
      %v6053 = vld [vmem:[#allocation2 + $0x9f] sm:$0xff]
      %v6054 = vld [vmem:[#allocation2 + $0xa7] sm:$0xff]
      %v6055 = vld [vmem:[#allocation2 + $0xaf] sm:$0xff]
      %v6056 = vld [vmem:[#allocation2 + $0xb7] sm:$0xff]
      %v6057 = vld [vmem:[#allocation2 + $0xbf] sm:$0xff]
      %v6058 = vld [vmem:[#allocation2 + $0xc7] sm:$0xff]
      %v6059 = vld [vmem:[#allocation2 + $0xcf] sm:$0xff]
      %v6060 = vld [vmem:[#allocation2 + $0xd7] sm:$0xff]
      %v6061 = vld [vmem:[#allocation2 + $0xdf] sm:$0xff]
      %v6062 = vld [vmem:[#allocation2 + $0xe7] sm:$0xff]
      %v6063 = vld [vmem:[#allocation2 + $0xef] sm:$0xff]
      %v6064 = vld [vmem:[#allocation2 + $0xf7] sm:$0xff]
      %v6065 = vld [vmem:[#allocation2 + $0xff] sm:$0xff]
      %v6066 = vld [vmem:[#allocation2 + $0x107] sm:$0xff]
      %v6067 = vld [vmem:[#allocation2 + $0x10f] sm:$0xff]
      %v6068 = vld [vmem:[#allocation2 + $0x117] sm:$0xff]
      %v6069 = vld [vmem:[#allocation2 + $0x11f] sm:$0xff]
      %v6070 = vld [vmem:[#allocation2 + $0x127] sm:$0xff]
      %v6071 = vld [vmem:[#allocation2 + $0x12f] sm:$0xff]
      %v6072 = vld [vmem:[%s2 + $0x60] sm:$0xff]
      %v6073 = vld [vmem:[%s2 + $0x68] sm:$0xff]
      %v6074 = vld [vmem:[%s2 + $0x70] sm:$0xff]
      %v6075 = vld [vmem:[%s2 + $0x78] sm:$0xff]
      %v6077 = vsel %vm305, %v6036, 0
      %v6080 = vsel %vm305, %v6037, 0
      %v6083 = vsel %vm305, %v6038, 0
      %v6086 = vsel %vm305, %v6039, 0
      %v6089 = vsel %vm305, %v6040, 0
      %v6092 = vsel %vm305, %v6041, 0
      %v6095 = vsel %vm305, %v6042, 0
      %v6098 = vsel %vm305, %v6043, 0
      %v6101 = vsel %vm305, %v6044, 0
      %v6104 = vsel %vm305, %v6045, 0
      %v6107 = vsel %vm305, %v6046, 0
      %v6110 = vsel %vm305, %v6047, 0
      %v6113 = vsel %vm305, %v6048, 0
      %v6116 = vsel %vm305, %v6049, 0
      %v6119 = vsel %vm305, %v6050, 0
      %v6122 = vsel %vm305, %v6051, 0
      %v6125 = vsel %vm305, %v6052, 0
      %v6128 = vsel %vm305, %v6053, 0
      %v6131 = vsel %vm305, %v6054, 0
      %v6134 = vsel %vm305, %v6055, 0
      %v6137 = vsel %vm305, %v6056, 0
      %v6140 = vsel %vm305, %v6057, 0
      %v6143 = vsel %vm305, %v6058, 0
      %v6146 = vsel %vm305, %v6059, 0
      %v6149 = vsel %vm305, %v6060, 0
      %v6152 = vsel %vm305, %v6061, 0
      %v6155 = vsel %vm305, %v6062, 0
      %v6158 = vsel %vm305, %v6063, 0
      %v6161 = vsel %vm305, %v6064, 0
      %v6164 = vsel %vm305, %v6065, 0
      %v6167 = vsel %vm305, %v6066, 0
      %v6170 = vsel %vm305, %v6067, 0
      %v6173 = vsel %vm305, %v6068, 0
      %v6176 = vsel %vm305, %v6069, 0
      %v6179 = vsel %vm305, %v6070, 0
      %v6182 = vsel %vm305, %v6071, 0
      %6184 = vmatprep.subr.mxu0 0.0
      %6185 = vmatpush1.msra.mxu0 %v6072
      %6186 = vmatprep.subr.mxu0 0.0
      %6187 = vmatpush1.msra.mxu0 %v6073
      %6188 = vmatprep.subr.mxu0 0.0
      %6189 = vmatpush1.msra.mxu0 %v6074
      %6190 = vmatprep.subr.mxu0 0.0
      %6191 = vmatpush1.msra.mxu0 %v6075
      %6192 = vmatprep.subr.mxu0 0.0
      %6193 = vmatpush1.msra.mxu0 0.0
      %6194 = vmatprep.subr.mxu0 0.0
      %6195 = vmatpush1.msra.mxu0 0.0
      %6196 = vmatprep.subr.mxu0 0.0
      %6197 = vmatpush1.msra.mxu0 0.0
      %6198 = vmatprep.subr.mxu0 0.0
      %6199 = vmatpush1.msra.mxu0 0.0
      %6200 = vmatprep.subr.mxu0 0.0
      %6201 = vmatpush1.msra.mxu0 0.0
      %6202 = vmatprep.subr.mxu0 0.0
      %6203 = vmatpush1.msra.mxu0 0.0
      %6204 = vmatprep.subr.mxu0 0.0
      %6205 = vmatpush1.msra.mxu0 0.0
      %6206 = vmatprep.subr.mxu0 0.0
      %6207 = vmatpush1.msra.mxu0 0.0
      %6208 = vmatprep.subr.mxu0 0.0
      %6209 = vmatpush1.msra.mxu0 0.0
      %6210 = vmatprep.subr.mxu0 0.0
      %6211 = vmatpush1.msra.mxu0 0.0
      %6212 = vmatprep.subr.mxu0 0.0
      %6213 = vmatpush1.msra.mxu0 0.0
      %6214 = vmatprep.subr.mxu0 0.0
      %6215 = vmatpush1.msra.mxu0 0.0
      %6216 = vmatprep.subr.mxu0 0.0
      %6217 = vmatpush1.msra.mxu0 0.0
      %6218 = vmatprep.subr.mxu0 0.0
      %6219 = vmatpush1.msra.mxu0 0.0
      %6220 = vmatprep.subr.mxu0 0.0
      %6221 = vmatpush1.msra.mxu0 0.0
      %6222 = vmatprep.subr.mxu0 0.0
      %6223 = vmatpush1.msra.mxu0 0.0
      %6224 = vmatprep.subr.mxu0 0.0
      %6225 = vmatpush1.msra.mxu0 0.0
      %6226 = vmatprep.subr.mxu0 0.0
      %6227 = vmatpush1.msra.mxu0 0.0
      %6228 = vmatprep.subr.mxu0 0.0
      %6229 = vmatpush1.msra.mxu0 0.0
      %6230 = vmatprep.subr.mxu0 0.0
      %6231 = vmatpush1.msra.mxu0 0.0
      %6232 = vmatprep.subr.mxu0 0.0
      %6233 = vmatpush1.msra.mxu0 0.0
      %6234 = vmatprep.subr.mxu0 0.0
      %6235 = vmatpush1.msra.mxu0 0.0
      %6236 = vmatprep.subr.mxu0 0.0
      %6237 = vmatpush1.msra.mxu0 0.0
      %6238 = vmatprep.subr.mxu0 0.0
      %6239 = vmatpush1.msra.mxu0 0.0
      %6240 = vmatprep.subr.mxu0 0.0
      %6241 = vmatpush1.msra.mxu0 0.0
      %6242 = vmatprep.subr.mxu0 0.0
      %6243 = vmatpush1.msra.mxu0 0.0
      %6244 = vmatprep.subr.mxu0 0.0
      %6245 = vmatpush1.msra.mxu0 0.0
      %6246 = vmatprep.subr.mxu0 0.0
      %6247 = vmatpush1.msra.mxu0 0.0
      %6248 = vmatprep.mubr.f32.mxu0 0.0
      %6249 = vmatmul.mubr.f32.gmra.mrb[0].mxu0 %v6077
      %v6250 = vpop.f32.mrb[0].mxu0
      %v6251 = vadd.f32 0.0, %v6250
      %v6252 = vpop.f32.mrb[0].mxu0
      %6253 = vmatprep.mubr.f32.mxu0 0.0
      %6254 = vmatmul.mubr.f32.gmra.mrb[0].mxu0 %v6080
      %v6255 = vpop.f32.mrb[0].mxu0
      %v6256 = vadd.f32 0.0, %v6255
      %v6257 = vpop.f32.mrb[0].mxu0
      %6258 = vmatprep.mubr.f32.mxu0 0.0
      %6259 = vmatmul.mubr.f32.gmra.mrb[0].mxu0 %v6083
      %v6260 = vpop.f32.mrb[0].mxu0
      %v6261 = vadd.f32 0.0, %v6260
      %v6262 = vpop.f32.mrb[0].mxu0
      %6263 = vmatprep.mubr.f32.mxu0 0.0
      %6264 = vmatmul.mubr.f32.gmra.mrb[0].mxu0 %v6086
      %v6265 = vpop.f32.mrb[0].mxu0
      %v6266 = vadd.f32 0.0, %v6265
      %v6267 = vpop.f32.mrb[0].mxu0
      %6268 = vmatprep.mubr.f32.mxu0 0.0
      %6269 = vmatmul.mubr.f32.gmra.mrb[0].mxu0 %v6089
      %v6270 = vpop.f32.mrb[0].mxu0
      %v6271 = vadd.f32 0.0, %v6270
      %v6272 = vpop.f32.mrb[0].mxu0
      %6273 = vmatprep.mubr.f32.mxu0 0.0
      %6274 = vmatmul.mubr.f32.gmra.mrb[0].mxu0 %v6092
      %v6275 = vpop.f32.mrb[0].mxu0
      %v6276 = vadd.f32 0.0, %v6275
      %v6277 = vpop.f32.mrb[0].mxu0
      %6278 = vmatprep.mubr.f32.mxu0 0.0
      %6279 = vmatmul.mubr.f32.gmra.mrb[0].mxu0 %v6095
      %v6280 = vpop.f32.mrb[0].mxu0
      %v6281 = vadd.f32 0.0, %v6280
      %v6282 = vpop.f32.mrb[0].mxu0
      %6283 = vmatprep.mubr.f32.mxu0 0.0
      %6284 = vmatmul.mubr.f32.gmra.mrb[0].mxu0 %v6098
      %v6285 = vpop.f32.mrb[0].mxu0
      %v6286 = vadd.f32 0.0, %v6285
      %v6287 = vpop.f32.mrb[0].mxu0
      %6288 = vmatprep.mubr.f32.mxu0 0.0
      %6289 = vmatmul.mubr.f32.gmra.mrb[0].mxu0 %v6101
      %v6290 = vpop.f32.mrb[0].mxu0
      %v6291 = vadd.f32 0.0, %v6290
      %v6292 = vpop.f32.mrb[0].mxu0
      %6293 = vmatprep.mubr.f32.mxu0 0.0
      %6294 = vmatmul.mubr.f32.gmra.mrb[0].mxu0 %v6104
      %v6295 = vpop.f32.mrb[0].mxu0
      %v6296 = vadd.f32 0.0, %v6295
      %v6297 = vpop.f32.mrb[0].mxu0
      %6298 = vmatprep.mubr.f32.mxu0 0.0
      %6299 = vmatmul.mubr.f32.gmra.mrb[0].mxu0 %v6107
      %v6300 = vpop.f32.mrb[0].mxu0
      %v6301 = vadd.f32 0.0, %v6300
      %v6302 = vpop.f32.mrb[0].mxu0
      %6303 = vmatprep.mubr.f32.mxu0 0.0
      %6304 = vmatmul.mubr.f32.gmra.mrb[0].mxu0 %v6110
      %v6305 = vpop.f32.mrb[0].mxu0
      %v6306 = vadd.f32 0.0, %v6305
      %v6307 = vpop.f32.mrb[0].mxu0
      %6308 = vmatprep.mubr.f32.mxu0 0.0
      %6309 = vmatmul.mubr.f32.gmra.mrb[0].mxu0 %v6113
      %v6310 = vpop.f32.mrb[0].mxu0
      %v6311 = vadd.f32 0.0, %v6310
      %v6312 = vpop.f32.mrb[0].mxu0
      %6313 = vmatprep.mubr.f32.mxu0 0.0
      %6314 = vmatmul.mubr.f32.gmra.mrb[0].mxu0 %v6116
      %v6315 = vpop.f32.mrb[0].mxu0
      %v6316 = vadd.f32 0.0, %v6315
      %v6317 = vpop.f32.mrb[0].mxu0
      %6318 = vmatprep.mubr.f32.mxu0 0.0
      %6319 = vmatmul.mubr.f32.gmra.mrb[0].mxu0 %v6119
      %v6320 = vpop.f32.mrb[0].mxu0
      %v6321 = vadd.f32 0.0, %v6320
      %v6322 = vpop.f32.mrb[0].mxu0
      %6323 = vmatprep.mubr.f32.mxu0 0.0
      %6324 = vmatmul.mubr.f32.gmra.mrb[0].mxu0 %v6122
      %v6325 = vpop.f32.mrb[0].mxu0
      %v6326 = vadd.f32 0.0, %v6325
      %v6327 = vpop.f32.mrb[0].mxu0
      %6328 = vmatprep.mubr.f32.mxu0 0.0
      %6329 = vmatmul.mubr.f32.gmra.mrb[0].mxu0 %v6125
      %v6330 = vpop.f32.mrb[0].mxu0
      %v6331 = vadd.f32 0.0, %v6330
      %v6332 = vpop.f32.mrb[0].mxu0
      %6333 = vmatprep.mubr.f32.mxu0 0.0
      %6334 = vmatmul.mubr.f32.gmra.mrb[0].mxu0 %v6128
      %v6335 = vpop.f32.mrb[0].mxu0
      %v6336 = vadd.f32 0.0, %v6335
      %v6337 = vpop.f32.mrb[0].mxu0
      %6338 = vmatprep.mubr.f32.mxu0 0.0
      %6339 = vmatmul.mubr.f32.gmra.mrb[0].mxu0 %v6131
      %v6340 = vpop.f32.mrb[0].mxu0
      %v6341 = vadd.f32 0.0, %v6340
      %v6342 = vpop.f32.mrb[0].mxu0
      %6343 = vmatprep.mubr.f32.mxu0 0.0
      %6344 = vmatmul.mubr.f32.gmra.mrb[0].mxu0 %v6134
      %v6345 = vpop.f32.mrb[0].mxu0
      %v6346 = vadd.f32 0.0, %v6345
      %v6347 = vpop.f32.mrb[0].mxu0
      %6348 = vmatprep.mubr.f32.mxu0 0.0
      %6349 = vmatmul.mubr.f32.gmra.mrb[0].mxu0 %v6137
      %v6350 = vpop.f32.mrb[0].mxu0
      %v6351 = vadd.f32 0.0, %v6350
      %v6352 = vpop.f32.mrb[0].mxu0
      %6353 = vmatprep.mubr.f32.mxu0 0.0
      %6354 = vmatmul.mubr.f32.gmra.mrb[0].mxu0 %v6140
      %v6355 = vpop.f32.mrb[0].mxu0
      %v6356 = vadd.f32 0.0, %v6355
      %v6357 = vpop.f32.mrb[0].mxu0
      %6358 = vmatprep.mubr.f32.mxu0 0.0
      %6359 = vmatmul.mubr.f32.gmra.mrb[0].mxu0 %v6143
      %v6360 = vpop.f32.mrb[0].mxu0
      %v6361 = vadd.f32 0.0, %v6360
      %v6362 = vpop.f32.mrb[0].mxu0
      %6363 = vmatprep.mubr.f32.mxu0 0.0
      %6364 = vmatmul.mubr.f32.gmra.mrb[0].mxu0 %v6146
      %v6365 = vpop.f32.mrb[0].mxu0
      %v6366 = vadd.f32 0.0, %v6365
      %v6367 = vpop.f32.mrb[0].mxu0
      %6368 = vmatprep.mubr.f32.mxu0 0.0
      %6369 = vmatmul.mubr.f32.gmra.mrb[0].mxu0 %v6149
      %v6370 = vpop.f32.mrb[0].mxu0
      %v6371 = vadd.f32 0.0, %v6370
      %v6372 = vpop.f32.mrb[0].mxu0
      %6373 = vmatprep.mubr.f32.mxu0 0.0
      %6374 = vmatmul.mubr.f32.gmra.mrb[0].mxu0 %v6152
      %v6375 = vpop.f32.mrb[0].mxu0
      %v6376 = vadd.f32 0.0, %v6375
      %v6377 = vpop.f32.mrb[0].mxu0
      %6378 = vmatprep.mubr.f32.mxu0 0.0
      %6379 = vmatmul.mubr.f32.gmra.mrb[0].mxu0 %v6155
      %v6380 = vpop.f32.mrb[0].mxu0
      %v6381 = vadd.f32 0.0, %v6380
      %v6382 = vpop.f32.mrb[0].mxu0
      %6383 = vmatprep.mubr.f32.mxu0 0.0
      %6384 = vmatmul.mubr.f32.gmra.mrb[0].mxu0 %v6158
      %v6385 = vpop.f32.mrb[0].mxu0
      %v6386 = vadd.f32 0.0, %v6385
      %v6387 = vpop.f32.mrb[0].mxu0
      %6388 = vmatprep.mubr.f32.mxu0 0.0
      %6389 = vmatmul.mubr.f32.gmra.mrb[0].mxu0 %v6161
      %v6390 = vpop.f32.mrb[0].mxu0
      %v6391 = vadd.f32 0.0, %v6390
      %v6392 = vpop.f32.mrb[0].mxu0
      %6393 = vmatprep.mubr.f32.mxu0 0.0
      %6394 = vmatmul.mubr.f32.gmra.mrb[0].mxu0 %v6164
      %v6395 = vpop.f32.mrb[0].mxu0
      %v6396 = vadd.f32 0.0, %v6395
      %v6397 = vpop.f32.mrb[0].mxu0
      %6398 = vmatprep.mubr.f32.mxu0 0.0
      %6399 = vmatmul.mubr.f32.gmra.mrb[0].mxu0 %v6167
      %v6400 = vpop.f32.mrb[0].mxu0
      %v6401 = vadd.f32 0.0, %v6400
      %v6402 = vpop.f32.mrb[0].mxu0
      %6403 = vmatprep.mubr.f32.mxu0 0.0
      %6404 = vmatmul.mubr.f32.gmra.mrb[0].mxu0 %v6170
      %v6405 = vpop.f32.mrb[0].mxu0
      %v6406 = vadd.f32 0.0, %v6405
      %v6407 = vpop.f32.mrb[0].mxu0
      %6408 = vmatprep.mubr.f32.mxu0 0.0
      %6409 = vmatmul.mubr.f32.gmra.mrb[0].mxu0 %v6173
      %v6410 = vpop.f32.mrb[0].mxu0
      %v6411 = vadd.f32 0.0, %v6410
      %v6412 = vpop.f32.mrb[0].mxu0
      %6413 = vmatprep.mubr.f32.mxu0 0.0
      %6414 = vmatmul.mubr.f32.gmra.mrb[0].mxu0 %v6176
      %v6415 = vpop.f32.mrb[0].mxu0
      %v6416 = vadd.f32 0.0, %v6415
      %v6417 = vpop.f32.mrb[0].mxu0
      %6418 = vmatprep.mubr.f32.mxu0 0.0
      %6419 = vmatmul.mubr.f32.gmra.mrb[0].mxu0 %v6179
      %v6420 = vpop.f32.mrb[0].mxu0
      %v6421 = vadd.f32 0.0, %v6420
      %v6422 = vpop.f32.mrb[0].mxu0
      %6423 = vmatprep.mubr.f32.mxu0 0.0
      %6424 = vmatmul.mubr.f32.gmra.mrb[0].mxu0 %v6182
      %v6425 = vpop.f32.mrb[0].mxu0
      %v6426 = vadd.f32 0.0, %v6425
      %v6427 = vpop.f32.mrb[0].mxu0
      %6428 = vdwg.mxu0
      %v6429 = vadd.f32 %v6000, %v6251
      %v6430 = vadd.f32 %v6001, %v6256
      %v6431 = vadd.f32 %v6002, %v6261
      %v6432 = vadd.f32 %v6003, %v6266
      %v6433 = vadd.f32 %v6004, %v6271
      %v6434 = vadd.f32 %v6005, %v6276
      %v6435 = vadd.f32 %v6006, %v6281
      %v6436 = vadd.f32 %v6007, %v6286
      %v6437 = vadd.f32 %v6008, %v6291
      %v6438 = vadd.f32 %v6009, %v6296
      %v6439 = vadd.f32 %v6010, %v6301
      %v6440 = vadd.f32 %v6011, %v6306
      %v6441 = vadd.f32 %v6012, %v6311
      %v6442 = vadd.f32 %v6013, %v6316
      %v6443 = vadd.f32 %v6014, %v6321
      %v6444 = vadd.f32 %v6015, %v6326
      %v6445 = vadd.f32 %v6016, %v6331
      %v6446 = vadd.f32 %v6017, %v6336
      %v6447 = vadd.f32 %v6018, %v6341
      %v6448 = vadd.f32 %v6019, %v6346
      %v6449 = vadd.f32 %v6020, %v6351
      %v6450 = vadd.f32 %v6021, %v6356
      %v6451 = vadd.f32 %v6022, %v6361
      %v6452 = vadd.f32 %v6023, %v6366
      %v6453 = vadd.f32 %v6024, %v6371
      %v6454 = vadd.f32 %v6025, %v6376
      %v6455 = vadd.f32 %v6026, %v6381
      %v6456 = vadd.f32 %v6027, %v6386
      %v6457 = vadd.f32 %v6028, %v6391
      %v6458 = vadd.f32 %v6029, %v6396
      %v6459 = vadd.f32 %v6030, %v6401
      %v6460 = vadd.f32 %v6031, %v6406
      %v6461 = vadd.f32 %v6032, %v6411
      %v6462 = vadd.f32 %v6033, %v6416
      %v6463 = vadd.f32 %v6034, %v6421
      %v6464 = vadd.f32 %v6035, %v6426
      %v6465 = vld [vmem:[#allocation2 + $0x18] sm:$0xff]
      %v6466 = vld [vmem:[#allocation2 + $0x20] sm:$0xff]
      %v6467 = vld [vmem:[#allocation2 + $0x28] sm:$0xff]
      %v6468 = vld [vmem:[#allocation2 + $0x30] sm:$0xff]
      %v6469 = vld [vmem:[#allocation2 + $0x38] sm:$0xff]
      %v6470 = vld [vmem:[#allocation2 + $0x40] sm:$0xff]
      %v6471 = vld [vmem:[#allocation2 + $0x48] sm:$0xff]
      %v6472 = vld [vmem:[#allocation2 + $0x50] sm:$0xff]
      %v6473 = vld [vmem:[#allocation2 + $0x58] sm:$0xff]
      %v6474 = vld [vmem:[#allocation2 + $0x60] sm:$0xff]
      %v6475 = vld [vmem:[#allocation2 + $0x68] sm:$0xff]
      %v6476 = vld [vmem:[#allocation2 + $0x70] sm:$0xff]
      %v6477 = vld [vmem:[#allocation2 + $0x78] sm:$0xff]
      %v6478 = vld [vmem:[#allocation2 + $0x80] sm:$0xff]
      %v6479 = vld [vmem:[#allocation2 + $0x88] sm:$0xff]
      %v6480 = vld [vmem:[#allocation2 + $0x90] sm:$0xff]
      %v6481 = vld [vmem:[#allocation2 + $0x98] sm:$0xff]
      %v6482 = vld [vmem:[#allocation2 + $0xa0] sm:$0xff]
      %v6483 = vld [vmem:[#allocation2 + $0xa8] sm:$0xff]
      %v6484 = vld [vmem:[#allocation2 + $0xb0] sm:$0xff]
      %v6485 = vld [vmem:[#allocation2 + $0xb8] sm:$0xff]
      %v6486 = vld [vmem:[#allocation2 + $0xc0] sm:$0xff]
      %v6487 = vld [vmem:[#allocation2 + $0xc8] sm:$0xff]
      %v6488 = vld [vmem:[#allocation2 + $0xd0] sm:$0xff]
      %v6489 = vld [vmem:[#allocation2 + $0xd8] sm:$0xff]
      %v6490 = vld [vmem:[#allocation2 + $0xe0] sm:$0xff]
      %v6491 = vld [vmem:[#allocation2 + $0xe8] sm:$0xff]
      %v6492 = vld [vmem:[#allocation2 + $0xf0] sm:$0xff]
      %v6493 = vld [vmem:[#allocation2 + $0xf8] sm:$0xff]
      %v6494 = vld [vmem:[#allocation2 + $0x100] sm:$0xff]
      %v6495 = vld [vmem:[#allocation2 + $0x108] sm:$0xff]
      %v6496 = vld [vmem:[#allocation2 + $0x110] sm:$0xff]
      %v6497 = vld [vmem:[#allocation2 + $0x118] sm:$0xff]
      %v6498 = vld [vmem:[#allocation2 + $0x120] sm:$0xff]
      %v6499 = vld [vmem:[#allocation2 + $0x128] sm:$0xff]
      %v6500 = vld [vmem:[#allocation2 + $0x130] sm:$0xff]
      %v6501 = vld [vmem:[%s2 + $0x80] sm:$0xff]
      %v6502 = vld [vmem:[%s2 + $0x88] sm:$0xff]
      %v6503 = vld [vmem:[%s2 + $0x90] sm:$0xff]
      %v6504 = vld [vmem:[%s2 + $0x98] sm:$0xff]
      %v6506 = vsel %vm305, %v6465, 0
      %v6509 = vsel %vm305, %v6466, 0
      %v6512 = vsel %vm305, %v6467, 0
      %v6515 = vsel %vm305, %v6468, 0
      %v6518 = vsel %vm305, %v6469, 0
      %v6521 = vsel %vm305, %v6470, 0
      %v6524 = vsel %vm305, %v6471, 0
      %v6527 = vsel %vm305, %v6472, 0
      %v6530 = vsel %vm305, %v6473, 0
      %v6533 = vsel %vm305, %v6474, 0
      %v6536 = vsel %vm305, %v6475, 0
      %v6539 = vsel %vm305, %v6476, 0
      %v6542 = vsel %vm305, %v6477, 0
      %v6545 = vsel %vm305, %v6478, 0
      %v6548 = vsel %vm305, %v6479, 0
      %v6551 = vsel %vm305, %v6480, 0
      %v6554 = vsel %vm305, %v6481, 0
      %v6557 = vsel %vm305, %v6482, 0
      %v6560 = vsel %vm305, %v6483, 0
      %v6563 = vsel %vm305, %v6484, 0
      %v6566 = vsel %vm305, %v6485, 0
      %v6569 = vsel %vm305, %v6486, 0
      %v6572 = vsel %vm305, %v6487, 0
      %v6575 = vsel %vm305, %v6488, 0
      %v6578 = vsel %vm305, %v6489, 0
      %v6581 = vsel %vm305, %v6490, 0
      %v6584 = vsel %vm305, %v6491, 0
      %v6587 = vsel %vm305, %v6492, 0
      %v6590 = vsel %vm305, %v6493, 0
      %v6593 = vsel %vm305, %v6494, 0
      %v6596 = vsel %vm305, %v6495, 0
      %v6599 = vsel %vm305, %v6496, 0
      %v6602 = vsel %vm305, %v6497, 0
      %v6605 = vsel %vm305, %v6498, 0
      %v6608 = vsel %vm305, %v6499, 0
      %v6611 = vsel %vm305, %v6500, 0
      %6613 = vmatprep.subr.mxu0 0.0
      %6614 = vmatpush1.msra.mxu0 %v6501
      %6615 = vmatprep.subr.mxu0 0.0
      %6616 = vmatpush1.msra.mxu0 %v6502
      %6617 = vmatprep.subr.mxu0 0.0
      %6618 = vmatpush1.msra.mxu0 %v6503
      %6619 = vmatprep.subr.mxu0 0.0
      %6620 = vmatpush1.msra.mxu0 %v6504
      %6621 = vmatprep.subr.mxu0 0.0
      %6622 = vmatpush1.msra.mxu0 0.0
      %6623 = vmatprep.subr.mxu0 0.0
      %6624 = vmatpush1.msra.mxu0 0.0
      %6625 = vmatprep.subr.mxu0 0.0
      %6626 = vmatpush1.msra.mxu0 0.0
      %6627 = vmatprep.subr.mxu0 0.0
      %6628 = vmatpush1.msra.mxu0 0.0
      %6629 = vmatprep.subr.mxu0 0.0
      %6630 = vmatpush1.msra.mxu0 0.0
      %6631 = vmatprep.subr.mxu0 0.0
      %6632 = vmatpush1.msra.mxu0 0.0
      %6633 = vmatprep.subr.mxu0 0.0
      %6634 = vmatpush1.msra.mxu0 0.0
      %6635 = vmatprep.subr.mxu0 0.0
      %6636 = vmatpush1.msra.mxu0 0.0
      %6637 = vmatprep.subr.mxu0 0.0
      %6638 = vmatpush1.msra.mxu0 0.0
      %6639 = vmatprep.subr.mxu0 0.0
      %6640 = vmatpush1.msra.mxu0 0.0
      %6641 = vmatprep.subr.mxu0 0.0
      %6642 = vmatpush1.msra.mxu0 0.0
      %6643 = vmatprep.subr.mxu0 0.0
      %6644 = vmatpush1.msra.mxu0 0.0
      %6645 = vmatprep.subr.mxu0 0.0
      %6646 = vmatpush1.msra.mxu0 0.0
      %6647 = vmatprep.subr.mxu0 0.0
      %6648 = vmatpush1.msra.mxu0 0.0
      %6649 = vmatprep.subr.mxu0 0.0
      %6650 = vmatpush1.msra.mxu0 0.0
      %6651 = vmatprep.subr.mxu0 0.0
      %6652 = vmatpush1.msra.mxu0 0.0
      %6653 = vmatprep.subr.mxu0 0.0
      %6654 = vmatpush1.msra.mxu0 0.0
      %6655 = vmatprep.subr.mxu0 0.0
      %6656 = vmatpush1.msra.mxu0 0.0
      %6657 = vmatprep.subr.mxu0 0.0
      %6658 = vmatpush1.msra.mxu0 0.0
      %6659 = vmatprep.subr.mxu0 0.0
      %6660 = vmatpush1.msra.mxu0 0.0
      %6661 = vmatprep.subr.mxu0 0.0
      %6662 = vmatpush1.msra.mxu0 0.0
      %6663 = vmatprep.subr.mxu0 0.0
      %6664 = vmatpush1.msra.mxu0 0.0
      %6665 = vmatprep.subr.mxu0 0.0
      %6666 = vmatpush1.msra.mxu0 0.0
      %6667 = vmatprep.subr.mxu0 0.0
      %6668 = vmatpush1.msra.mxu0 0.0
      %6669 = vmatprep.subr.mxu0 0.0
      %6670 = vmatpush1.msra.mxu0 0.0
      %6671 = vmatprep.subr.mxu0 0.0
      %6672 = vmatpush1.msra.mxu0 0.0
      %6673 = vmatprep.subr.mxu0 0.0
      %6674 = vmatpush1.msra.mxu0 0.0
      %6675 = vmatprep.subr.mxu0 0.0
      %6676 = vmatpush1.msra.mxu0 0.0
      %6677 = vmatprep.mubr.f32.mxu0 0.0
      %6678 = vmatmul.mubr.f32.gmra.mrb[0].mxu0 %v6506
      %v6679 = vpop.f32.mrb[0].mxu0
      %v6680 = vadd.f32 0.0, %v6679
      %v6681 = vpop.f32.mrb[0].mxu0
      %6682 = vmatprep.mubr.f32.mxu0 0.0
      %6683 = vmatmul.mubr.f32.gmra.mrb[0].mxu0 %v6509
      %v6684 = vpop.f32.mrb[0].mxu0
      %v6685 = vadd.f32 0.0, %v6684
      %v6686 = vpop.f32.mrb[0].mxu0
      %6687 = vmatprep.mubr.f32.mxu0 0.0
      %6688 = vmatmul.mubr.f32.gmra.mrb[0].mxu0 %v6512
      %v6689 = vpop.f32.mrb[0].mxu0
      %v6690 = vadd.f32 0.0, %v6689
      %v6691 = vpop.f32.mrb[0].mxu0
      %6692 = vmatprep.mubr.f32.mxu0 0.0
      %6693 = vmatmul.mubr.f32.gmra.mrb[0].mxu0 %v6515
      %v6694 = vpop.f32.mrb[0].mxu0
      %v6695 = vadd.f32 0.0, %v6694
      %v6696 = vpop.f32.mrb[0].mxu0
      %6697 = vmatprep.mubr.f32.mxu0 0.0
      %6698 = vmatmul.mubr.f32.gmra.mrb[0].mxu0 %v6518
      %v6699 = vpop.f32.mrb[0].mxu0
      %v6700 = vadd.f32 0.0, %v6699
      %v6701 = vpop.f32.mrb[0].mxu0
      %6702 = vmatprep.mubr.f32.mxu0 0.0
      %6703 = vmatmul.mubr.f32.gmra.mrb[0].mxu0 %v6521
      %v6704 = vpop.f32.mrb[0].mxu0
      %v6705 = vadd.f32 0.0, %v6704
      %v6706 = vpop.f32.mrb[0].mxu0
      %6707 = vmatprep.mubr.f32.mxu0 0.0
      %6708 = vmatmul.mubr.f32.gmra.mrb[0].mxu0 %v6524
      %v6709 = vpop.f32.mrb[0].mxu0
      %v6710 = vadd.f32 0.0, %v6709
      %v6711 = vpop.f32.mrb[0].mxu0
      %6712 = vmatprep.mubr.f32.mxu0 0.0
      %6713 = vmatmul.mubr.f32.gmra.mrb[0].mxu0 %v6527
      %v6714 = vpop.f32.mrb[0].mxu0
      %v6715 = vadd.f32 0.0, %v6714
      %v6716 = vpop.f32.mrb[0].mxu0
      %6717 = vmatprep.mubr.f32.mxu0 0.0
      %6718 = vmatmul.mubr.f32.gmra.mrb[0].mxu0 %v6530
      %v6719 = vpop.f32.mrb[0].mxu0
      %v6720 = vadd.f32 0.0, %v6719
      %v6721 = vpop.f32.mrb[0].mxu0
      %6722 = vmatprep.mubr.f32.mxu0 0.0
      %6723 = vmatmul.mubr.f32.gmra.mrb[0].mxu0 %v6533
      %v6724 = vpop.f32.mrb[0].mxu0
      %v6725 = vadd.f32 0.0, %v6724
      %v6726 = vpop.f32.mrb[0].mxu0
      %6727 = vmatprep.mubr.f32.mxu0 0.0
      %6728 = vmatmul.mubr.f32.gmra.mrb[0].mxu0 %v6536
      %v6729 = vpop.f32.mrb[0].mxu0
      %v6730 = vadd.f32 0.0, %v6729
      %v6731 = vpop.f32.mrb[0].mxu0
      %6732 = vmatprep.mubr.f32.mxu0 0.0
      %6733 = vmatmul.mubr.f32.gmra.mrb[0].mxu0 %v6539
      %v6734 = vpop.f32.mrb[0].mxu0
      %v6735 = vadd.f32 0.0, %v6734
      %v6736 = vpop.f32.mrb[0].mxu0
      %6737 = vmatprep.mubr.f32.mxu0 0.0
      %6738 = vmatmul.mubr.f32.gmra.mrb[0].mxu0 %v6542
      %v6739 = vpop.f32.mrb[0].mxu0
      %v6740 = vadd.f32 0.0, %v6739
      %v6741 = vpop.f32.mrb[0].mxu0
      %6742 = vmatprep.mubr.f32.mxu0 0.0
      %6743 = vmatmul.mubr.f32.gmra.mrb[0].mxu0 %v6545
      %v6744 = vpop.f32.mrb[0].mxu0
      %v6745 = vadd.f32 0.0, %v6744
      %v6746 = vpop.f32.mrb[0].mxu0
      %6747 = vmatprep.mubr.f32.mxu0 0.0
      %6748 = vmatmul.mubr.f32.gmra.mrb[0].mxu0 %v6548
      %v6749 = vpop.f32.mrb[0].mxu0
      %v6750 = vadd.f32 0.0, %v6749
      %v6751 = vpop.f32.mrb[0].mxu0
      %6752 = vmatprep.mubr.f32.mxu0 0.0
      %6753 = vmatmul.mubr.f32.gmra.mrb[0].mxu0 %v6551
      %v6754 = vpop.f32.mrb[0].mxu0
      %v6755 = vadd.f32 0.0, %v6754
      %v6756 = vpop.f32.mrb[0].mxu0
      %6757 = vmatprep.mubr.f32.mxu0 0.0
      %6758 = vmatmul.mubr.f32.gmra.mrb[0].mxu0 %v6554
      %v6759 = vpop.f32.mrb[0].mxu0
      %v6760 = vadd.f32 0.0, %v6759
      %v6761 = vpop.f32.mrb[0].mxu0
      %6762 = vmatprep.mubr.f32.mxu0 0.0
      %6763 = vmatmul.mubr.f32.gmra.mrb[0].mxu0 %v6557
      %v6764 = vpop.f32.mrb[0].mxu0
      %v6765 = vadd.f32 0.0, %v6764
      %v6766 = vpop.f32.mrb[0].mxu0
      %6767 = vmatprep.mubr.f32.mxu0 0.0
      %6768 = vmatmul.mubr.f32.gmra.mrb[0].mxu0 %v6560
      %v6769 = vpop.f32.mrb[0].mxu0
      %v6770 = vadd.f32 0.0, %v6769
      %v6771 = vpop.f32.mrb[0].mxu0
      %6772 = vmatprep.mubr.f32.mxu0 0.0
      %6773 = vmatmul.mubr.f32.gmra.mrb[0].mxu0 %v6563
      %v6774 = vpop.f32.mrb[0].mxu0
      %v6775 = vadd.f32 0.0, %v6774
      %v6776 = vpop.f32.mrb[0].mxu0
      %6777 = vmatprep.mubr.f32.mxu0 0.0
      %6778 = vmatmul.mubr.f32.gmra.mrb[0].mxu0 %v6566
      %v6779 = vpop.f32.mrb[0].mxu0
      %v6780 = vadd.f32 0.0, %v6779
      %v6781 = vpop.f32.mrb[0].mxu0
      %6782 = vmatprep.mubr.f32.mxu0 0.0
      %6783 = vmatmul.mubr.f32.gmra.mrb[0].mxu0 %v6569
      %v6784 = vpop.f32.mrb[0].mxu0
      %v6785 = vadd.f32 0.0, %v6784
      %v6786 = vpop.f32.mrb[0].mxu0
      %6787 = vmatprep.mubr.f32.mxu0 0.0
      %6788 = vmatmul.mubr.f32.gmra.mrb[0].mxu0 %v6572
      %v6789 = vpop.f32.mrb[0].mxu0
      %v6790 = vadd.f32 0.0, %v6789
      %v6791 = vpop.f32.mrb[0].mxu0
      %6792 = vmatprep.mubr.f32.mxu0 0.0
      %6793 = vmatmul.mubr.f32.gmra.mrb[0].mxu0 %v6575
      %v6794 = vpop.f32.mrb[0].mxu0
      %v6795 = vadd.f32 0.0, %v6794
      %v6796 = vpop.f32.mrb[0].mxu0
      %6797 = vmatprep.mubr.f32.mxu0 0.0
      %6798 = vmatmul.mubr.f32.gmra.mrb[0].mxu0 %v6578
      %v6799 = vpop.f32.mrb[0].mxu0
      %v6800 = vadd.f32 0.0, %v6799
      %v6801 = vpop.f32.mrb[0].mxu0
      %6802 = vmatprep.mubr.f32.mxu0 0.0
      %6803 = vmatmul.mubr.f32.gmra.mrb[0].mxu0 %v6581
      %v6804 = vpop.f32.mrb[0].mxu0
      %v6805 = vadd.f32 0.0, %v6804
      %v6806 = vpop.f32.mrb[0].mxu0
      %6807 = vmatprep.mubr.f32.mxu0 0.0
      %6808 = vmatmul.mubr.f32.gmra.mrb[0].mxu0 %v6584
      %v6809 = vpop.f32.mrb[0].mxu0
      %v6810 = vadd.f32 0.0, %v6809
      %v6811 = vpop.f32.mrb[0].mxu0
      %6812 = vmatprep.mubr.f32.mxu0 0.0
      %6813 = vmatmul.mubr.f32.gmra.mrb[0].mxu0 %v6587
      %v6814 = vpop.f32.mrb[0].mxu0
      %v6815 = vadd.f32 0.0, %v6814
      %v6816 = vpop.f32.mrb[0].mxu0
      %6817 = vmatprep.mubr.f32.mxu0 0.0
      %6818 = vmatmul.mubr.f32.gmra.mrb[0].mxu0 %v6590
      %v6819 = vpop.f32.mrb[0].mxu0
      %v6820 = vadd.f32 0.0, %v6819
      %v6821 = vpop.f32.mrb[0].mxu0
      %6822 = vmatprep.mubr.f32.mxu0 0.0
      %6823 = vmatmul.mubr.f32.gmra.mrb[0].mxu0 %v6593
      %v6824 = vpop.f32.mrb[0].mxu0
      %v6825 = vadd.f32 0.0, %v6824
      %v6826 = vpop.f32.mrb[0].mxu0
      %6827 = vmatprep.mubr.f32.mxu0 0.0
      %6828 = vmatmul.mubr.f32.gmra.mrb[0].mxu0 %v6596
      %v6829 = vpop.f32.mrb[0].mxu0
      %v6830 = vadd.f32 0.0, %v6829
      %v6831 = vpop.f32.mrb[0].mxu0
      %6832 = vmatprep.mubr.f32.mxu0 0.0
      %6833 = vmatmul.mubr.f32.gmra.mrb[0].mxu0 %v6599
      %v6834 = vpop.f32.mrb[0].mxu0
      %v6835 = vadd.f32 0.0, %v6834
      %v6836 = vpop.f32.mrb[0].mxu0
      %6837 = vmatprep.mubr.f32.mxu0 0.0
      %6838 = vmatmul.mubr.f32.gmra.mrb[0].mxu0 %v6602
      %v6839 = vpop.f32.mrb[0].mxu0
      %v6840 = vadd.f32 0.0, %v6839
      %v6841 = vpop.f32.mrb[0].mxu0
      %6842 = vmatprep.mubr.f32.mxu0 0.0
      %6843 = vmatmul.mubr.f32.gmra.mrb[0].mxu0 %v6605
      %v6844 = vpop.f32.mrb[0].mxu0
      %v6845 = vadd.f32 0.0, %v6844
      %v6846 = vpop.f32.mrb[0].mxu0
      %6847 = vmatprep.mubr.f32.mxu0 0.0
      %6848 = vmatmul.mubr.f32.gmra.mrb[0].mxu0 %v6608
      %v6849 = vpop.f32.mrb[0].mxu0
      %v6850 = vadd.f32 0.0, %v6849
      %v6851 = vpop.f32.mrb[0].mxu0
      %6852 = vmatprep.mubr.f32.mxu0 0.0
      %6853 = vmatmul.mubr.f32.gmra.mrb[0].mxu0 %v6611
      %v6854 = vpop.f32.mrb[0].mxu0
      %v6855 = vadd.f32 0.0, %v6854
      %v6856 = vpop.f32.mrb[0].mxu0
      %6857 = vdwg.mxu0
      %v6858 = vadd.f32 %v6429, %v6680
      %v6859 = vadd.f32 %v6430, %v6685
      %v6860 = vadd.f32 %v6431, %v6690
      %v6861 = vadd.f32 %v6432, %v6695
      %v6862 = vadd.f32 %v6433, %v6700
      %v6863 = vadd.f32 %v6434, %v6705
      %v6864 = vadd.f32 %v6435, %v6710
      %v6865 = vadd.f32 %v6436, %v6715
      %v6866 = vadd.f32 %v6437, %v6720
      %v6867 = vadd.f32 %v6438, %v6725
      %v6868 = vadd.f32 %v6439, %v6730
      %v6869 = vadd.f32 %v6440, %v6735
      %v6870 = vadd.f32 %v6441, %v6740
      %v6871 = vadd.f32 %v6442, %v6745
      %v6872 = vadd.f32 %v6443, %v6750
      %v6873 = vadd.f32 %v6444, %v6755
      %v6874 = vadd.f32 %v6445, %v6760
      %v6875 = vadd.f32 %v6446, %v6765
      %v6876 = vadd.f32 %v6447, %v6770
      %v6877 = vadd.f32 %v6448, %v6775
      %v6878 = vadd.f32 %v6449, %v6780
      %v6879 = vadd.f32 %v6450, %v6785
      %v6880 = vadd.f32 %v6451, %v6790
      %v6881 = vadd.f32 %v6452, %v6795
      %v6882 = vadd.f32 %v6453, %v6800
      %v6883 = vadd.f32 %v6454, %v6805
      %v6884 = vadd.f32 %v6455, %v6810
      %v6885 = vadd.f32 %v6456, %v6815
      %v6886 = vadd.f32 %v6457, %v6820
      %v6887 = vadd.f32 %v6458, %v6825
      %v6888 = vadd.f32 %v6459, %v6830
      %v6889 = vadd.f32 %v6460, %v6835
      %v6890 = vadd.f32 %v6461, %v6840
      %v6891 = vadd.f32 %v6462, %v6845
      %v6892 = vadd.f32 %v6463, %v6850
      %v6893 = vadd.f32 %v6464, %v6855
      %v6894 = vld [vmem:[#allocation2 + $0x19] sm:$0xff]
      %v6895 = vld [vmem:[#allocation2 + $0x21] sm:$0xff]
      %v6896 = vld [vmem:[#allocation2 + $0x29] sm:$0xff]
      %v6897 = vld [vmem:[#allocation2 + $0x31] sm:$0xff]
      %v6898 = vld [vmem:[#allocation2 + $0x39] sm:$0xff]
      %v6899 = vld [vmem:[#allocation2 + $0x41] sm:$0xff]
      %v6900 = vld [vmem:[#allocation2 + $0x49] sm:$0xff]
      %v6901 = vld [vmem:[#allocation2 + $0x51] sm:$0xff]
      %v6902 = vld [vmem:[#allocation2 + $0x59] sm:$0xff]
      %v6903 = vld [vmem:[#allocation2 + $0x61] sm:$0xff]
      %v6904 = vld [vmem:[#allocation2 + $0x69] sm:$0xff]
      %v6905 = vld [vmem:[#allocation2 + $0x71] sm:$0xff]
      %v6906 = vld [vmem:[#allocation2 + $0x79] sm:$0xff]
      %v6907 = vld [vmem:[#allocation2 + $0x81] sm:$0xff]
      %v6908 = vld [vmem:[#allocation2 + $0x89] sm:$0xff]
      %v6909 = vld [vmem:[#allocation2 + $0x91] sm:$0xff]
      %v6910 = vld [vmem:[#allocation2 + $0x99] sm:$0xff]
      %v6911 = vld [vmem:[#allocation2 + $0xa1] sm:$0xff]
      %v6912 = vld [vmem:[#allocation2 + $0xa9] sm:$0xff]
      %v6913 = vld [vmem:[#allocation2 + $0xb1] sm:$0xff]
      %v6914 = vld [vmem:[#allocation2 + $0xb9] sm:$0xff]
      %v6915 = vld [vmem:[#allocation2 + $0xc1] sm:$0xff]
      %v6916 = vld [vmem:[#allocation2 + $0xc9] sm:$0xff]
      %v6917 = vld [vmem:[#allocation2 + $0xd1] sm:$0xff]
      %v6918 = vld [vmem:[#allocation2 + $0xd9] sm:$0xff]
      %v6919 = vld [vmem:[#allocation2 + $0xe1] sm:$0xff]
      %v6920 = vld [vmem:[#allocation2 + $0xe9] sm:$0xff]
      %v6921 = vld [vmem:[#allocation2 + $0xf1] sm:$0xff]
      %v6922 = vld [vmem:[#allocation2 + $0xf9] sm:$0xff]
      %v6923 = vld [vmem:[#allocation2 + $0x101] sm:$0xff]
      %v6924 = vld [vmem:[#allocation2 + $0x109] sm:$0xff]
      %v6925 = vld [vmem:[#allocation2 + $0x111] sm:$0xff]
      %v6926 = vld [vmem:[#allocation2 + $0x119] sm:$0xff]
      %v6927 = vld [vmem:[#allocation2 + $0x121] sm:$0xff]
      %v6928 = vld [vmem:[#allocation2 + $0x129] sm:$0xff]
      %v6929 = vld [vmem:[#allocation2 + $0x131] sm:$0xff]
      %v6930 = vld [vmem:[%s2 + $0xa0] sm:$0xff]
      %v6931 = vld [vmem:[%s2 + $0xa8] sm:$0xff]
      %v6932 = vld [vmem:[%s2 + $0xb0] sm:$0xff]
      %v6933 = vld [vmem:[%s2 + $0xb8] sm:$0xff]
      %v6935 = vsel %vm305, %v6894, 0
      %v6938 = vsel %vm305, %v6895, 0
      %v6941 = vsel %vm305, %v6896, 0
      %v6944 = vsel %vm305, %v6897, 0
      %v6947 = vsel %vm305, %v6898, 0
      %v6950 = vsel %vm305, %v6899, 0
      %v6953 = vsel %vm305, %v6900, 0
      %v6956 = vsel %vm305, %v6901, 0
      %v6959 = vsel %vm305, %v6902, 0
      %v6962 = vsel %vm305, %v6903, 0
      %v6965 = vsel %vm305, %v6904, 0
      %v6968 = vsel %vm305, %v6905, 0
      %v6971 = vsel %vm305, %v6906, 0
      %v6974 = vsel %vm305, %v6907, 0
      %v6977 = vsel %vm305, %v6908, 0
      %v6980 = vsel %vm305, %v6909, 0
      %v6983 = vsel %vm305, %v6910, 0
      %v6986 = vsel %vm305, %v6911, 0
      %v6989 = vsel %vm305, %v6912, 0
      %v6992 = vsel %vm305, %v6913, 0
      %v6995 = vsel %vm305, %v6914, 0
      %v6998 = vsel %vm305, %v6915, 0
      %v7001 = vsel %vm305, %v6916, 0
      %v7004 = vsel %vm305, %v6917, 0
      %v7007 = vsel %vm305, %v6918, 0
      %v7010 = vsel %vm305, %v6919, 0
      %v7013 = vsel %vm305, %v6920, 0
      %v7016 = vsel %vm305, %v6921, 0
      %v7019 = vsel %vm305, %v6922, 0
      %v7022 = vsel %vm305, %v6923, 0
      %v7025 = vsel %vm305, %v6924, 0
      %v7028 = vsel %vm305, %v6925, 0
      %v7031 = vsel %vm305, %v6926, 0
      %v7034 = vsel %vm305, %v6927, 0
      %v7037 = vsel %vm305, %v6928, 0
      %v7040 = vsel %vm305, %v6929, 0
      %7042 = vmatprep.subr.mxu0 0.0
      %7043 = vmatpush1.msra.mxu0 %v6930
      %7044 = vmatprep.subr.mxu0 0.0
      %7045 = vmatpush1.msra.mxu0 %v6931
      %7046 = vmatprep.subr.mxu0 0.0
      %7047 = vmatpush1.msra.mxu0 %v6932
      %7048 = vmatprep.subr.mxu0 0.0
      %7049 = vmatpush1.msra.mxu0 %v6933
      %7050 = vmatprep.subr.mxu0 0.0
      %7051 = vmatpush1.msra.mxu0 0.0
      %7052 = vmatprep.subr.mxu0 0.0
      %7053 = vmatpush1.msra.mxu0 0.0
      %7054 = vmatprep.subr.mxu0 0.0
      %7055 = vmatpush1.msra.mxu0 0.0
      %7056 = vmatprep.subr.mxu0 0.0
      %7057 = vmatpush1.msra.mxu0 0.0
      %7058 = vmatprep.subr.mxu0 0.0
      %7059 = vmatpush1.msra.mxu0 0.0
      %7060 = vmatprep.subr.mxu0 0.0
      %7061 = vmatpush1.msra.mxu0 0.0
      %7062 = vmatprep.subr.mxu0 0.0
      %7063 = vmatpush1.msra.mxu0 0.0
      %7064 = vmatprep.subr.mxu0 0.0
      %7065 = vmatpush1.msra.mxu0 0.0
      %7066 = vmatprep.subr.mxu0 0.0
      %7067 = vmatpush1.msra.mxu0 0.0
      %7068 = vmatprep.subr.mxu0 0.0
      %7069 = vmatpush1.msra.mxu0 0.0
      %7070 = vmatprep.subr.mxu0 0.0
      %7071 = vmatpush1.msra.mxu0 0.0
      %7072 = vmatprep.subr.mxu0 0.0
      %7073 = vmatpush1.msra.mxu0 0.0
      %7074 = vmatprep.subr.mxu0 0.0
      %7075 = vmatpush1.msra.mxu0 0.0
      %7076 = vmatprep.subr.mxu0 0.0
      %7077 = vmatpush1.msra.mxu0 0.0
      %7078 = vmatprep.subr.mxu0 0.0
      %7079 = vmatpush1.msra.mxu0 0.0
      %7080 = vmatprep.subr.mxu0 0.0
      %7081 = vmatpush1.msra.mxu0 0.0
      %7082 = vmatprep.subr.mxu0 0.0
      %7083 = vmatpush1.msra.mxu0 0.0
      %7084 = vmatprep.subr.mxu0 0.0
      %7085 = vmatpush1.msra.mxu0 0.0
      %7086 = vmatprep.subr.mxu0 0.0
      %7087 = vmatpush1.msra.mxu0 0.0
      %7088 = vmatprep.subr.mxu0 0.0
      %7089 = vmatpush1.msra.mxu0 0.0
      %7090 = vmatprep.subr.mxu0 0.0
      %7091 = vmatpush1.msra.mxu0 0.0
      %7092 = vmatprep.subr.mxu0 0.0
      %7093 = vmatpush1.msra.mxu0 0.0
      %7094 = vmatprep.subr.mxu0 0.0
      %7095 = vmatpush1.msra.mxu0 0.0
      %7096 = vmatprep.subr.mxu0 0.0
      %7097 = vmatpush1.msra.mxu0 0.0
      %7098 = vmatprep.subr.mxu0 0.0
      %7099 = vmatpush1.msra.mxu0 0.0
      %7100 = vmatprep.subr.mxu0 0.0
      %7101 = vmatpush1.msra.mxu0 0.0
      %7102 = vmatprep.subr.mxu0 0.0
      %7103 = vmatpush1.msra.mxu0 0.0
      %7104 = vmatprep.subr.mxu0 0.0
      %7105 = vmatpush1.msra.mxu0 0.0
      %7106 = vmatprep.mubr.f32.mxu0 0.0
      %7107 = vmatmul.mubr.f32.gmra.mrb[0].mxu0 %v6935
      %v7108 = vpop.f32.mrb[0].mxu0
      %v7109 = vadd.f32 0.0, %v7108
      %v7110 = vpop.f32.mrb[0].mxu0
      %7111 = vmatprep.mubr.f32.mxu0 0.0
      %7112 = vmatmul.mubr.f32.gmra.mrb[0].mxu0 %v6938
      %v7113 = vpop.f32.mrb[0].mxu0
      %v7114 = vadd.f32 0.0, %v7113
      %v7115 = vpop.f32.mrb[0].mxu0
      %7116 = vmatprep.mubr.f32.mxu0 0.0
      %7117 = vmatmul.mubr.f32.gmra.mrb[0].mxu0 %v6941
      %v7118 = vpop.f32.mrb[0].mxu0
      %v7119 = vadd.f32 0.0, %v7118
      %v7120 = vpop.f32.mrb[0].mxu0
      %7121 = vmatprep.mubr.f32.mxu0 0.0
      %7122 = vmatmul.mubr.f32.gmra.mrb[0].mxu0 %v6944
      %v7123 = vpop.f32.mrb[0].mxu0
      %v7124 = vadd.f32 0.0, %v7123
      %v7125 = vpop.f32.mrb[0].mxu0
      %7126 = vmatprep.mubr.f32.mxu0 0.0
      %7127 = vmatmul.mubr.f32.gmra.mrb[0].mxu0 %v6947
      %v7128 = vpop.f32.mrb[0].mxu0
      %v7129 = vadd.f32 0.0, %v7128
      %v7130 = vpop.f32.mrb[0].mxu0
      %7131 = vmatprep.mubr.f32.mxu0 0.0
      %7132 = vmatmul.mubr.f32.gmra.mrb[0].mxu0 %v6950
      %v7133 = vpop.f32.mrb[0].mxu0
      %v7134 = vadd.f32 0.0, %v7133
      %v7135 = vpop.f32.mrb[0].mxu0
      %7136 = vmatprep.mubr.f32.mxu0 0.0
      %7137 = vmatmul.mubr.f32.gmra.mrb[0].mxu0 %v6953
      %v7138 = vpop.f32.mrb[0].mxu0
      %v7139 = vadd.f32 0.0, %v7138
      %v7140 = vpop.f32.mrb[0].mxu0
      %7141 = vmatprep.mubr.f32.mxu0 0.0
      %7142 = vmatmul.mubr.f32.gmra.mrb[0].mxu0 %v6956
      %v7143 = vpop.f32.mrb[0].mxu0
      %v7144 = vadd.f32 0.0, %v7143
      %v7145 = vpop.f32.mrb[0].mxu0
      %7146 = vmatprep.mubr.f32.mxu0 0.0
      %7147 = vmatmul.mubr.f32.gmra.mrb[0].mxu0 %v6959
      %v7148 = vpop.f32.mrb[0].mxu0
      %v7149 = vadd.f32 0.0, %v7148
      %v7150 = vpop.f32.mrb[0].mxu0
      %7151 = vmatprep.mubr.f32.mxu0 0.0
      %7152 = vmatmul.mubr.f32.gmra.mrb[0].mxu0 %v6962
      %v7153 = vpop.f32.mrb[0].mxu0
      %v7154 = vadd.f32 0.0, %v7153
      %v7155 = vpop.f32.mrb[0].mxu0
      %7156 = vmatprep.mubr.f32.mxu0 0.0
      %7157 = vmatmul.mubr.f32.gmra.mrb[0].mxu0 %v6965
      %v7158 = vpop.f32.mrb[0].mxu0
      %v7159 = vadd.f32 0.0, %v7158
      %v7160 = vpop.f32.mrb[0].mxu0
      %7161 = vmatprep.mubr.f32.mxu0 0.0
      %7162 = vmatmul.mubr.f32.gmra.mrb[0].mxu0 %v6968
      %v7163 = vpop.f32.mrb[0].mxu0
      %v7164 = vadd.f32 0.0, %v7163
      %v7165 = vpop.f32.mrb[0].mxu0
      %7166 = vmatprep.mubr.f32.mxu0 0.0
      %7167 = vmatmul.mubr.f32.gmra.mrb[0].mxu0 %v6971
      %v7168 = vpop.f32.mrb[0].mxu0
      %v7169 = vadd.f32 0.0, %v7168
      %v7170 = vpop.f32.mrb[0].mxu0
      %7171 = vmatprep.mubr.f32.mxu0 0.0
      %7172 = vmatmul.mubr.f32.gmra.mrb[0].mxu0 %v6974
      %v7173 = vpop.f32.mrb[0].mxu0
      %v7174 = vadd.f32 0.0, %v7173
      %v7175 = vpop.f32.mrb[0].mxu0
      %7176 = vmatprep.mubr.f32.mxu0 0.0
      %7177 = vmatmul.mubr.f32.gmra.mrb[0].mxu0 %v6977
      %v7178 = vpop.f32.mrb[0].mxu0
      %v7179 = vadd.f32 0.0, %v7178
      %v7180 = vpop.f32.mrb[0].mxu0
      %7181 = vmatprep.mubr.f32.mxu0 0.0
      %7182 = vmatmul.mubr.f32.gmra.mrb[0].mxu0 %v6980
      %v7183 = vpop.f32.mrb[0].mxu0
      %v7184 = vadd.f32 0.0, %v7183
      %v7185 = vpop.f32.mrb[0].mxu0
      %7186 = vmatprep.mubr.f32.mxu0 0.0
      %7187 = vmatmul.mubr.f32.gmra.mrb[0].mxu0 %v6983
      %v7188 = vpop.f32.mrb[0].mxu0
      %v7189 = vadd.f32 0.0, %v7188
      %v7190 = vpop.f32.mrb[0].mxu0
      %7191 = vmatprep.mubr.f32.mxu0 0.0
      %7192 = vmatmul.mubr.f32.gmra.mrb[0].mxu0 %v6986
      %v7193 = vpop.f32.mrb[0].mxu0
      %v7194 = vadd.f32 0.0, %v7193
      %v7195 = vpop.f32.mrb[0].mxu0
      %7196 = vmatprep.mubr.f32.mxu0 0.0
      %7197 = vmatmul.mubr.f32.gmra.mrb[0].mxu0 %v6989
      %v7198 = vpop.f32.mrb[0].mxu0
      %v7199 = vadd.f32 0.0, %v7198
      %v7200 = vpop.f32.mrb[0].mxu0
      %7201 = vmatprep.mubr.f32.mxu0 0.0
      %7202 = vmatmul.mubr.f32.gmra.mrb[0].mxu0 %v6992
      %v7203 = vpop.f32.mrb[0].mxu0
      %v7204 = vadd.f32 0.0, %v7203
      %v7205 = vpop.f32.mrb[0].mxu0
      %7206 = vmatprep.mubr.f32.mxu0 0.0
      %7207 = vmatmul.mubr.f32.gmra.mrb[0].mxu0 %v6995
      %v7208 = vpop.f32.mrb[0].mxu0
      %v7209 = vadd.f32 0.0, %v7208
      %v7210 = vpop.f32.mrb[0].mxu0
      %7211 = vmatprep.mubr.f32.mxu0 0.0
      %7212 = vmatmul.mubr.f32.gmra.mrb[0].mxu0 %v6998
      %v7213 = vpop.f32.mrb[0].mxu0
      %v7214 = vadd.f32 0.0, %v7213
      %v7215 = vpop.f32.mrb[0].mxu0
      %7216 = vmatprep.mubr.f32.mxu0 0.0
      %7217 = vmatmul.mubr.f32.gmra.mrb[0].mxu0 %v7001
      %v7218 = vpop.f32.mrb[0].mxu0
      %v7219 = vadd.f32 0.0, %v7218
      %v7220 = vpop.f32.mrb[0].mxu0
      %7221 = vmatprep.mubr.f32.mxu0 0.0
      %7222 = vmatmul.mubr.f32.gmra.mrb[0].mxu0 %v7004
      %v7223 = vpop.f32.mrb[0].mxu0
      %v7224 = vadd.f32 0.0, %v7223
      %v7225 = vpop.f32.mrb[0].mxu0
      %7226 = vmatprep.mubr.f32.mxu0 0.0
      %7227 = vmatmul.mubr.f32.gmra.mrb[0].mxu0 %v7007
      %v7228 = vpop.f32.mrb[0].mxu0
      %v7229 = vadd.f32 0.0, %v7228
      %v7230 = vpop.f32.mrb[0].mxu0
      %7231 = vmatprep.mubr.f32.mxu0 0.0
      %7232 = vmatmul.mubr.f32.gmra.mrb[0].mxu0 %v7010
      %v7233 = vpop.f32.mrb[0].mxu0
      %v7234 = vadd.f32 0.0, %v7233
      %v7235 = vpop.f32.mrb[0].mxu0
      %7236 = vmatprep.mubr.f32.mxu0 0.0
      %7237 = vmatmul.mubr.f32.gmra.mrb[0].mxu0 %v7013
      %v7238 = vpop.f32.mrb[0].mxu0
      %v7239 = vadd.f32 0.0, %v7238
      %v7240 = vpop.f32.mrb[0].mxu0
      %7241 = vmatprep.mubr.f32.mxu0 0.0
      %7242 = vmatmul.mubr.f32.gmra.mrb[0].mxu0 %v7016
      %v7243 = vpop.f32.mrb[0].mxu0
      %v7244 = vadd.f32 0.0, %v7243
      %v7245 = vpop.f32.mrb[0].mxu0
      %7246 = vmatprep.mubr.f32.mxu0 0.0
      %7247 = vmatmul.mubr.f32.gmra.mrb[0].mxu0 %v7019
      %v7248 = vpop.f32.mrb[0].mxu0
      %v7249 = vadd.f32 0.0, %v7248
      %v7250 = vpop.f32.mrb[0].mxu0
      %7251 = vmatprep.mubr.f32.mxu0 0.0
      %7252 = vmatmul.mubr.f32.gmra.mrb[0].mxu0 %v7022
      %v7253 = vpop.f32.mrb[0].mxu0
      %v7254 = vadd.f32 0.0, %v7253
      %v7255 = vpop.f32.mrb[0].mxu0
      %7256 = vmatprep.mubr.f32.mxu0 0.0
      %7257 = vmatmul.mubr.f32.gmra.mrb[0].mxu0 %v7025
      %v7258 = vpop.f32.mrb[0].mxu0
      %v7259 = vadd.f32 0.0, %v7258
      %v7260 = vpop.f32.mrb[0].mxu0
      %7261 = vmatprep.mubr.f32.mxu0 0.0
      %7262 = vmatmul.mubr.f32.gmra.mrb[0].mxu0 %v7028
      %v7263 = vpop.f32.mrb[0].mxu0
      %v7264 = vadd.f32 0.0, %v7263
      %v7265 = vpop.f32.mrb[0].mxu0
      %7266 = vmatprep.mubr.f32.mxu0 0.0
      %7267 = vmatmul.mubr.f32.gmra.mrb[0].mxu0 %v7031
      %v7268 = vpop.f32.mrb[0].mxu0
      %v7269 = vadd.f32 0.0, %v7268
      %v7270 = vpop.f32.mrb[0].mxu0
      %7271 = vmatprep.mubr.f32.mxu0 0.0
      %7272 = vmatmul.mubr.f32.gmra.mrb[0].mxu0 %v7034
      %v7273 = vpop.f32.mrb[0].mxu0
      %v7274 = vadd.f32 0.0, %v7273
      %v7275 = vpop.f32.mrb[0].mxu0
      %7276 = vmatprep.mubr.f32.mxu0 0.0
      %7277 = vmatmul.mubr.f32.gmra.mrb[0].mxu0 %v7037
      %v7278 = vpop.f32.mrb[0].mxu0
      %v7279 = vadd.f32 0.0, %v7278
      %v7280 = vpop.f32.mrb[0].mxu0
      %7281 = vmatprep.mubr.f32.mxu0 0.0
      %7282 = vmatmul.mubr.f32.gmra.mrb[0].mxu0 %v7040
      %v7283 = vpop.f32.mrb[0].mxu0
      %v7284 = vadd.f32 0.0, %v7283
      %v7285 = vpop.f32.mrb[0].mxu0
      %7286 = vdwg.mxu0
      %v7287 = vadd.f32 %v6858, %v7109
      %v7288 = vadd.f32 %v6859, %v7114
      %v7289 = vadd.f32 %v6860, %v7119
      %v7290 = vadd.f32 %v6861, %v7124
      %v7291 = vadd.f32 %v6862, %v7129
      %v7292 = vadd.f32 %v6863, %v7134
      %v7293 = vadd.f32 %v6864, %v7139
      %v7294 = vadd.f32 %v6865, %v7144
      %v7295 = vadd.f32 %v6866, %v7149
      %v7296 = vadd.f32 %v6867, %v7154
      %v7297 = vadd.f32 %v6868, %v7159
      %v7298 = vadd.f32 %v6869, %v7164
      %v7299 = vadd.f32 %v6870, %v7169
      %v7300 = vadd.f32 %v6871, %v7174
      %v7301 = vadd.f32 %v6872, %v7179
      %v7302 = vadd.f32 %v6873, %v7184
      %v7303 = vadd.f32 %v6874, %v7189
      %v7304 = vadd.f32 %v6875, %v7194
      %v7305 = vadd.f32 %v6876, %v7199
      %v7306 = vadd.f32 %v6877, %v7204
      %v7307 = vadd.f32 %v6878, %v7209
      %v7308 = vadd.f32 %v6879, %v7214
      %v7309 = vadd.f32 %v6880, %v7219
      %v7310 = vadd.f32 %v6881, %v7224
      %v7311 = vadd.f32 %v6882, %v7229
      %v7312 = vadd.f32 %v6883, %v7234
      %v7313 = vadd.f32 %v6884, %v7239
      %v7314 = vadd.f32 %v6885, %v7244
      %v7315 = vadd.f32 %v6886, %v7249
      %v7316 = vadd.f32 %v6887, %v7254
      %v7317 = vadd.f32 %v6888, %v7259
      %v7318 = vadd.f32 %v6889, %v7264
      %v7319 = vadd.f32 %v6890, %v7269
      %v7320 = vadd.f32 %v6891, %v7274
      %v7321 = vadd.f32 %v6892, %v7279
      %v7322 = vadd.f32 %v6893, %v7284
      %v7323 = vld [vmem:[#allocation2 + $0x29] sm:$0xff]
      %v7324 = vld [vmem:[#allocation2 + $0x31] sm:$0xff]
      %v7325 = vld [vmem:[#allocation2 + $0x39] sm:$0xff]
      %v7326 = vld [vmem:[#allocation2 + $0x41] sm:$0xff]
      %v7327 = vld [vmem:[#allocation2 + $0x49] sm:$0xff]
      %v7328 = vld [vmem:[#allocation2 + $0x51] sm:$0xff]
      %v7329 = vld [vmem:[#allocation2 + $0x59] sm:$0xff]
      %v7330 = vld [vmem:[#allocation2 + $0x61] sm:$0xff]
      %v7331 = vld [vmem:[#allocation2 + $0x69] sm:$0xff]
      %v7332 = vld [vmem:[#allocation2 + $0x71] sm:$0xff]
      %v7333 = vld [vmem:[#allocation2 + $0x79] sm:$0xff]
      %v7334 = vld [vmem:[#allocation2 + $0x81] sm:$0xff]
      %v7335 = vld [vmem:[#allocation2 + $0x89] sm:$0xff]
      %v7336 = vld [vmem:[#allocation2 + $0x91] sm:$0xff]
      %v7337 = vld [vmem:[#allocation2 + $0x99] sm:$0xff]
      %v7338 = vld [vmem:[#allocation2 + $0xa1] sm:$0xff]
      %v7339 = vld [vmem:[#allocation2 + $0xa9] sm:$0xff]
      %v7340 = vld [vmem:[#allocation2 + $0xb1] sm:$0xff]
      %v7341 = vld [vmem:[#allocation2 + $0xb9] sm:$0xff]
      %v7342 = vld [vmem:[#allocation2 + $0xc1] sm:$0xff]
      %v7343 = vld [vmem:[#allocation2 + $0xc9] sm:$0xff]
      %v7344 = vld [vmem:[#allocation2 + $0xd1] sm:$0xff]
      %v7345 = vld [vmem:[#allocation2 + $0xd9] sm:$0xff]
      %v7346 = vld [vmem:[#allocation2 + $0xe1] sm:$0xff]
      %v7347 = vld [vmem:[#allocation2 + $0xe9] sm:$0xff]
      %v7348 = vld [vmem:[#allocation2 + $0xf1] sm:$0xff]
      %v7349 = vld [vmem:[#allocation2 + $0xf9] sm:$0xff]
      %v7350 = vld [vmem:[#allocation2 + $0x101] sm:$0xff]
      %v7351 = vld [vmem:[#allocation2 + $0x109] sm:$0xff]
      %v7352 = vld [vmem:[#allocation2 + $0x111] sm:$0xff]
      %v7353 = vld [vmem:[#allocation2 + $0x119] sm:$0xff]
      %v7354 = vld [vmem:[#allocation2 + $0x121] sm:$0xff]
      %v7355 = vld [vmem:[#allocation2 + $0x129] sm:$0xff]
      %v7356 = vld [vmem:[#allocation2 + $0x131] sm:$0xff]
      %v7357 = vld [vmem:[#allocation2 + $0x139] sm:$0xff]
      %v7358 = vld [vmem:[#allocation2 + $0x141] sm:$0xff]
      %v7359 = vld [vmem:[%s2 + $0xc0] sm:$0xff]
      %v7360 = vld [vmem:[%s2 + $0xc8] sm:$0xff]
      %v7361 = vld [vmem:[%s2 + $0xd0] sm:$0xff]
      %v7362 = vld [vmem:[%s2 + $0xd8] sm:$0xff]
      %v7364 = vsel %vm305, %v7323, 0
      %v7367 = vsel %vm305, %v7324, 0
      %v7370 = vsel %vm305, %v7325, 0
      %v7373 = vsel %vm305, %v7326, 0
      %v7376 = vsel %vm305, %v7327, 0
      %v7379 = vsel %vm305, %v7328, 0
      %v7382 = vsel %vm305, %v7329, 0
      %v7385 = vsel %vm305, %v7330, 0
      %v7388 = vsel %vm305, %v7331, 0
      %v7391 = vsel %vm305, %v7332, 0
      %v7394 = vsel %vm305, %v7333, 0
      %v7397 = vsel %vm305, %v7334, 0
      %v7400 = vsel %vm305, %v7335, 0
      %v7403 = vsel %vm305, %v7336, 0
      %v7406 = vsel %vm305, %v7337, 0
      %v7409 = vsel %vm305, %v7338, 0
      %v7412 = vsel %vm305, %v7339, 0
      %v7415 = vsel %vm305, %v7340, 0
      %v7418 = vsel %vm305, %v7341, 0
      %v7421 = vsel %vm305, %v7342, 0
      %v7424 = vsel %vm305, %v7343, 0
      %v7427 = vsel %vm305, %v7344, 0
      %v7430 = vsel %vm305, %v7345, 0
      %v7433 = vsel %vm305, %v7346, 0
      %v7436 = vsel %vm305, %v7347, 0
      %v7439 = vsel %vm305, %v7348, 0
      %v7442 = vsel %vm305, %v7349, 0
      %v7445 = vsel %vm305, %v7350, 0
      %v7448 = vsel %vm305, %v7351, 0
      %v7451 = vsel %vm305, %v7352, 0
      %v7454 = vsel %vm305, %v7353, 0
      %v7457 = vsel %vm305, %v7354, 0
      %v7460 = vsel %vm305, %v7355, 0
      %v7463 = vsel %vm305, %v7356, 0
      %v7466 = vsel %vm305, %v7357, 0
      %v7469 = vsel %vm305, %v7358, 0
      %7471 = vmatprep.subr.mxu0 0.0
      %7472 = vmatpush1.msra.mxu0 %v7359
      %7473 = vmatprep.subr.mxu0 0.0
      %7474 = vmatpush1.msra.mxu0 %v7360
      %7475 = vmatprep.subr.mxu0 0.0
      %7476 = vmatpush1.msra.mxu0 %v7361
      %7477 = vmatprep.subr.mxu0 0.0
      %7478 = vmatpush1.msra.mxu0 %v7362
      %7479 = vmatprep.subr.mxu0 0.0
      %7480 = vmatpush1.msra.mxu0 0.0
      %7481 = vmatprep.subr.mxu0 0.0
      %7482 = vmatpush1.msra.mxu0 0.0
      %7483 = vmatprep.subr.mxu0 0.0
      %7484 = vmatpush1.msra.mxu0 0.0
      %7485 = vmatprep.subr.mxu0 0.0
      %7486 = vmatpush1.msra.mxu0 0.0
      %7487 = vmatprep.subr.mxu0 0.0
      %7488 = vmatpush1.msra.mxu0 0.0
      %7489 = vmatprep.subr.mxu0 0.0
      %7490 = vmatpush1.msra.mxu0 0.0
      %7491 = vmatprep.subr.mxu0 0.0
      %7492 = vmatpush1.msra.mxu0 0.0
      %7493 = vmatprep.subr.mxu0 0.0
      %7494 = vmatpush1.msra.mxu0 0.0
      %7495 = vmatprep.subr.mxu0 0.0
      %7496 = vmatpush1.msra.mxu0 0.0
      %7497 = vmatprep.subr.mxu0 0.0
      %7498 = vmatpush1.msra.mxu0 0.0
      %7499 = vmatprep.subr.mxu0 0.0
      %7500 = vmatpush1.msra.mxu0 0.0
      %7501 = vmatprep.subr.mxu0 0.0
      %7502 = vmatpush1.msra.mxu0 0.0
      %7503 = vmatprep.subr.mxu0 0.0
      %7504 = vmatpush1.msra.mxu0 0.0
      %7505 = vmatprep.subr.mxu0 0.0
      %7506 = vmatpush1.msra.mxu0 0.0
      %7507 = vmatprep.subr.mxu0 0.0
      %7508 = vmatpush1.msra.mxu0 0.0
      %7509 = vmatprep.subr.mxu0 0.0
      %7510 = vmatpush1.msra.mxu0 0.0
      %7511 = vmatprep.subr.mxu0 0.0
      %7512 = vmatpush1.msra.mxu0 0.0
      %7513 = vmatprep.subr.mxu0 0.0
      %7514 = vmatpush1.msra.mxu0 0.0
      %7515 = vmatprep.subr.mxu0 0.0
      %7516 = vmatpush1.msra.mxu0 0.0
      %7517 = vmatprep.subr.mxu0 0.0
      %7518 = vmatpush1.msra.mxu0 0.0
      %7519 = vmatprep.subr.mxu0 0.0
      %7520 = vmatpush1.msra.mxu0 0.0
      %7521 = vmatprep.subr.mxu0 0.0
      %7522 = vmatpush1.msra.mxu0 0.0
      %7523 = vmatprep.subr.mxu0 0.0
      %7524 = vmatpush1.msra.mxu0 0.0
      %7525 = vmatprep.subr.mxu0 0.0
      %7526 = vmatpush1.msra.mxu0 0.0
      %7527 = vmatprep.subr.mxu0 0.0
      %7528 = vmatpush1.msra.mxu0 0.0
      %7529 = vmatprep.subr.mxu0 0.0
      %7530 = vmatpush1.msra.mxu0 0.0
      %7531 = vmatprep.subr.mxu0 0.0
      %7532 = vmatpush1.msra.mxu0 0.0
      %7533 = vmatprep.subr.mxu0 0.0
      %7534 = vmatpush1.msra.mxu0 0.0
      %7535 = vmatprep.mubr.f32.mxu0 0.0
      %7536 = vmatmul.mubr.f32.gmra.mrb[0].mxu0 %v7364
      %v7537 = vpop.f32.mrb[0].mxu0
      %v7538 = vadd.f32 0.0, %v7537
      %v7539 = vpop.f32.mrb[0].mxu0
      %7540 = vmatprep.mubr.f32.mxu0 0.0
      %7541 = vmatmul.mubr.f32.gmra.mrb[0].mxu0 %v7367
      %v7542 = vpop.f32.mrb[0].mxu0
      %v7543 = vadd.f32 0.0, %v7542
      %v7544 = vpop.f32.mrb[0].mxu0
      %7545 = vmatprep.mubr.f32.mxu0 0.0
      %7546 = vmatmul.mubr.f32.gmra.mrb[0].mxu0 %v7370
      %v7547 = vpop.f32.mrb[0].mxu0
      %v7548 = vadd.f32 0.0, %v7547
      %v7549 = vpop.f32.mrb[0].mxu0
      %7550 = vmatprep.mubr.f32.mxu0 0.0
      %7551 = vmatmul.mubr.f32.gmra.mrb[0].mxu0 %v7373
      %v7552 = vpop.f32.mrb[0].mxu0
      %v7553 = vadd.f32 0.0, %v7552
      %v7554 = vpop.f32.mrb[0].mxu0
      %7555 = vmatprep.mubr.f32.mxu0 0.0
      %7556 = vmatmul.mubr.f32.gmra.mrb[0].mxu0 %v7376
      %v7557 = vpop.f32.mrb[0].mxu0
      %v7558 = vadd.f32 0.0, %v7557
      %v7559 = vpop.f32.mrb[0].mxu0
      %7560 = vmatprep.mubr.f32.mxu0 0.0
      %7561 = vmatmul.mubr.f32.gmra.mrb[0].mxu0 %v7379
      %v7562 = vpop.f32.mrb[0].mxu0
      %v7563 = vadd.f32 0.0, %v7562
      %v7564 = vpop.f32.mrb[0].mxu0
      %7565 = vmatprep.mubr.f32.mxu0 0.0
      %7566 = vmatmul.mubr.f32.gmra.mrb[0].mxu0 %v7382
      %v7567 = vpop.f32.mrb[0].mxu0
      %v7568 = vadd.f32 0.0, %v7567
      %v7569 = vpop.f32.mrb[0].mxu0
      %7570 = vmatprep.mubr.f32.mxu0 0.0
      %7571 = vmatmul.mubr.f32.gmra.mrb[0].mxu0 %v7385
      %v7572 = vpop.f32.mrb[0].mxu0
      %v7573 = vadd.f32 0.0, %v7572
      %v7574 = vpop.f32.mrb[0].mxu0
      %7575 = vmatprep.mubr.f32.mxu0 0.0
      %7576 = vmatmul.mubr.f32.gmra.mrb[0].mxu0 %v7388
      %v7577 = vpop.f32.mrb[0].mxu0
      %v7578 = vadd.f32 0.0, %v7577
      %v7579 = vpop.f32.mrb[0].mxu0
      %7580 = vmatprep.mubr.f32.mxu0 0.0
      %7581 = vmatmul.mubr.f32.gmra.mrb[0].mxu0 %v7391
      %v7582 = vpop.f32.mrb[0].mxu0
      %v7583 = vadd.f32 0.0, %v7582
      %v7584 = vpop.f32.mrb[0].mxu0
      %7585 = vmatprep.mubr.f32.mxu0 0.0
      %7586 = vmatmul.mubr.f32.gmra.mrb[0].mxu0 %v7394
      %v7587 = vpop.f32.mrb[0].mxu0
      %v7588 = vadd.f32 0.0, %v7587
      %v7589 = vpop.f32.mrb[0].mxu0
      %7590 = vmatprep.mubr.f32.mxu0 0.0
      %7591 = vmatmul.mubr.f32.gmra.mrb[0].mxu0 %v7397
      %v7592 = vpop.f32.mrb[0].mxu0
      %v7593 = vadd.f32 0.0, %v7592
      %v7594 = vpop.f32.mrb[0].mxu0
      %7595 = vmatprep.mubr.f32.mxu0 0.0
      %7596 = vmatmul.mubr.f32.gmra.mrb[0].mxu0 %v7400
      %v7597 = vpop.f32.mrb[0].mxu0
      %v7598 = vadd.f32 0.0, %v7597
      %v7599 = vpop.f32.mrb[0].mxu0
      %7600 = vmatprep.mubr.f32.mxu0 0.0
      %7601 = vmatmul.mubr.f32.gmra.mrb[0].mxu0 %v7403
      %v7602 = vpop.f32.mrb[0].mxu0
      %v7603 = vadd.f32 0.0, %v7602
      %v7604 = vpop.f32.mrb[0].mxu0
      %7605 = vmatprep.mubr.f32.mxu0 0.0
      %7606 = vmatmul.mubr.f32.gmra.mrb[0].mxu0 %v7406
      %v7607 = vpop.f32.mrb[0].mxu0
      %v7608 = vadd.f32 0.0, %v7607
      %v7609 = vpop.f32.mrb[0].mxu0
      %7610 = vmatprep.mubr.f32.mxu0 0.0
      %7611 = vmatmul.mubr.f32.gmra.mrb[0].mxu0 %v7409
      %v7612 = vpop.f32.mrb[0].mxu0
      %v7613 = vadd.f32 0.0, %v7612
      %v7614 = vpop.f32.mrb[0].mxu0
      %7615 = vmatprep.mubr.f32.mxu0 0.0
      %7616 = vmatmul.mubr.f32.gmra.mrb[0].mxu0 %v7412
      %v7617 = vpop.f32.mrb[0].mxu0
      %v7618 = vadd.f32 0.0, %v7617
      %v7619 = vpop.f32.mrb[0].mxu0
      %7620 = vmatprep.mubr.f32.mxu0 0.0
      %7621 = vmatmul.mubr.f32.gmra.mrb[0].mxu0 %v7415
      %v7622 = vpop.f32.mrb[0].mxu0
      %v7623 = vadd.f32 0.0, %v7622
      %v7624 = vpop.f32.mrb[0].mxu0
      %7625 = vmatprep.mubr.f32.mxu0 0.0
      %7626 = vmatmul.mubr.f32.gmra.mrb[0].mxu0 %v7418
      %v7627 = vpop.f32.mrb[0].mxu0
      %v7628 = vadd.f32 0.0, %v7627
      %v7629 = vpop.f32.mrb[0].mxu0
      %7630 = vmatprep.mubr.f32.mxu0 0.0
      %7631 = vmatmul.mubr.f32.gmra.mrb[0].mxu0 %v7421
      %v7632 = vpop.f32.mrb[0].mxu0
      %v7633 = vadd.f32 0.0, %v7632
      %v7634 = vpop.f32.mrb[0].mxu0
      %7635 = vmatprep.mubr.f32.mxu0 0.0
      %7636 = vmatmul.mubr.f32.gmra.mrb[0].mxu0 %v7424
      %v7637 = vpop.f32.mrb[0].mxu0
      %v7638 = vadd.f32 0.0, %v7637
      %v7639 = vpop.f32.mrb[0].mxu0
      %7640 = vmatprep.mubr.f32.mxu0 0.0
      %7641 = vmatmul.mubr.f32.gmra.mrb[0].mxu0 %v7427
      %v7642 = vpop.f32.mrb[0].mxu0
      %v7643 = vadd.f32 0.0, %v7642
      %v7644 = vpop.f32.mrb[0].mxu0
      %7645 = vmatprep.mubr.f32.mxu0 0.0
      %7646 = vmatmul.mubr.f32.gmra.mrb[0].mxu0 %v7430
      %v7647 = vpop.f32.mrb[0].mxu0
      %v7648 = vadd.f32 0.0, %v7647
      %v7649 = vpop.f32.mrb[0].mxu0
      %7650 = vmatprep.mubr.f32.mxu0 0.0
      %7651 = vmatmul.mubr.f32.gmra.mrb[0].mxu0 %v7433
      %v7652 = vpop.f32.mrb[0].mxu0
      %v7653 = vadd.f32 0.0, %v7652
      %v7654 = vpop.f32.mrb[0].mxu0
      %7655 = vmatprep.mubr.f32.mxu0 0.0
      %7656 = vmatmul.mubr.f32.gmra.mrb[0].mxu0 %v7436
      %v7657 = vpop.f32.mrb[0].mxu0
      %v7658 = vadd.f32 0.0, %v7657
      %v7659 = vpop.f32.mrb[0].mxu0
      %7660 = vmatprep.mubr.f32.mxu0 0.0
      %7661 = vmatmul.mubr.f32.gmra.mrb[0].mxu0 %v7439
      %v7662 = vpop.f32.mrb[0].mxu0
      %v7663 = vadd.f32 0.0, %v7662
      %v7664 = vpop.f32.mrb[0].mxu0
      %7665 = vmatprep.mubr.f32.mxu0 0.0
      %7666 = vmatmul.mubr.f32.gmra.mrb[0].mxu0 %v7442
      %v7667 = vpop.f32.mrb[0].mxu0
      %v7668 = vadd.f32 0.0, %v7667
      %v7669 = vpop.f32.mrb[0].mxu0
      %7670 = vmatprep.mubr.f32.mxu0 0.0
      %7671 = vmatmul.mubr.f32.gmra.mrb[0].mxu0 %v7445
      %v7672 = vpop.f32.mrb[0].mxu0
      %v7673 = vadd.f32 0.0, %v7672
      %v7674 = vpop.f32.mrb[0].mxu0
      %7675 = vmatprep.mubr.f32.mxu0 0.0
      %7676 = vmatmul.mubr.f32.gmra.mrb[0].mxu0 %v7448
      %v7677 = vpop.f32.mrb[0].mxu0
      %v7678 = vadd.f32 0.0, %v7677
      %v7679 = vpop.f32.mrb[0].mxu0
      %7680 = vmatprep.mubr.f32.mxu0 0.0
      %7681 = vmatmul.mubr.f32.gmra.mrb[0].mxu0 %v7451
      %v7682 = vpop.f32.mrb[0].mxu0
      %v7683 = vadd.f32 0.0, %v7682
      %v7684 = vpop.f32.mrb[0].mxu0
      %7685 = vmatprep.mubr.f32.mxu0 0.0
      %7686 = vmatmul.mubr.f32.gmra.mrb[0].mxu0 %v7454
      %v7687 = vpop.f32.mrb[0].mxu0
      %v7688 = vadd.f32 0.0, %v7687
      %v7689 = vpop.f32.mrb[0].mxu0
      %7690 = vmatprep.mubr.f32.mxu0 0.0
      %7691 = vmatmul.mubr.f32.gmra.mrb[0].mxu0 %v7457
      %v7692 = vpop.f32.mrb[0].mxu0
      %v7693 = vadd.f32 0.0, %v7692
      %v7694 = vpop.f32.mrb[0].mxu0
      %7695 = vmatprep.mubr.f32.mxu0 0.0
      %7696 = vmatmul.mubr.f32.gmra.mrb[0].mxu0 %v7460
      %v7697 = vpop.f32.mrb[0].mxu0
      %v7698 = vadd.f32 0.0, %v7697
      %v7699 = vpop.f32.mrb[0].mxu0
      %7700 = vmatprep.mubr.f32.mxu0 0.0
      %7701 = vmatmul.mubr.f32.gmra.mrb[0].mxu0 %v7463
      %v7702 = vpop.f32.mrb[0].mxu0
      %v7703 = vadd.f32 0.0, %v7702
      %v7704 = vpop.f32.mrb[0].mxu0
      %7705 = vmatprep.mubr.f32.mxu0 0.0
      %7706 = vmatmul.mubr.f32.gmra.mrb[0].mxu0 %v7466
      %v7707 = vpop.f32.mrb[0].mxu0
      %v7708 = vadd.f32 0.0, %v7707
      %v7709 = vpop.f32.mrb[0].mxu0
      %7710 = vmatprep.mubr.f32.mxu0 0.0
      %7711 = vmatmul.mubr.f32.gmra.mrb[0].mxu0 %v7469
      %v7712 = vpop.f32.mrb[0].mxu0
      %v7713 = vadd.f32 0.0, %v7712
      %v7714 = vpop.f32.mrb[0].mxu0
      %7715 = vdwg.mxu0
      %v7716 = vadd.f32 %v7287, %v7538
      %v7717 = vadd.f32 %v7288, %v7543
      %v7718 = vadd.f32 %v7289, %v7548
      %v7719 = vadd.f32 %v7290, %v7553
      %v7720 = vadd.f32 %v7291, %v7558
      %v7721 = vadd.f32 %v7292, %v7563
      %v7722 = vadd.f32 %v7293, %v7568
      %v7723 = vadd.f32 %v7294, %v7573
      %v7724 = vadd.f32 %v7295, %v7578
      %v7725 = vadd.f32 %v7296, %v7583
      %v7726 = vadd.f32 %v7297, %v7588
      %v7727 = vadd.f32 %v7298, %v7593
      %v7728 = vadd.f32 %v7299, %v7598
      %v7729 = vadd.f32 %v7300, %v7603
      %v7730 = vadd.f32 %v7301, %v7608
      %v7731 = vadd.f32 %v7302, %v7613
      %v7732 = vadd.f32 %v7303, %v7618
      %v7733 = vadd.f32 %v7304, %v7623
      %v7734 = vadd.f32 %v7305, %v7628
      %v7735 = vadd.f32 %v7306, %v7633
      %v7736 = vadd.f32 %v7307, %v7638
      %v7737 = vadd.f32 %v7308, %v7643
      %v7738 = vadd.f32 %v7309, %v7648
      %v7739 = vadd.f32 %v7310, %v7653
      %v7740 = vadd.f32 %v7311, %v7658
      %v7741 = vadd.f32 %v7312, %v7663
      %v7742 = vadd.f32 %v7313, %v7668
      %v7743 = vadd.f32 %v7314, %v7673
      %v7744 = vadd.f32 %v7315, %v7678
      %v7745 = vadd.f32 %v7316, %v7683
      %v7746 = vadd.f32 %v7317, %v7688
      %v7747 = vadd.f32 %v7318, %v7693
      %v7748 = vadd.f32 %v7319, %v7698
      %v7749 = vadd.f32 %v7320, %v7703
      %v7750 = vadd.f32 %v7321, %v7708
      %v7751 = vadd.f32 %v7322, %v7713
      %v7752 = vld [vmem:[#allocation2 + $0x2a] sm:$0xff]
      %v7753 = vld [vmem:[#allocation2 + $0x32] sm:$0xff]
      %v7754 = vld [vmem:[#allocation2 + $0x3a] sm:$0xff]
      %v7755 = vld [vmem:[#allocation2 + $0x42] sm:$0xff]
      %v7756 = vld [vmem:[#allocation2 + $0x4a] sm:$0xff]
      %v7757 = vld [vmem:[#allocation2 + $0x52] sm:$0xff]
      %v7758 = vld [vmem:[#allocation2 + $0x5a] sm:$0xff]
      %v7759 = vld [vmem:[#allocation2 + $0x62] sm:$0xff]
      %v7760 = vld [vmem:[#allocation2 + $0x6a] sm:$0xff]
      %v7761 = vld [vmem:[#allocation2 + $0x72] sm:$0xff]
      %v7762 = vld [vmem:[#allocation2 + $0x7a] sm:$0xff]
      %v7763 = vld [vmem:[#allocation2 + $0x82] sm:$0xff]
      %v7764 = vld [vmem:[#allocation2 + $0x8a] sm:$0xff]
      %v7765 = vld [vmem:[#allocation2 + $0x92] sm:$0xff]
      %v7766 = vld [vmem:[#allocation2 + $0x9a] sm:$0xff]
      %v7767 = vld [vmem:[#allocation2 + $0xa2] sm:$0xff]
      %v7768 = vld [vmem:[#allocation2 + $0xaa] sm:$0xff]
      %v7769 = vld [vmem:[#allocation2 + $0xb2] sm:$0xff]
      %v7770 = vld [vmem:[#allocation2 + $0xba] sm:$0xff]
      %v7771 = vld [vmem:[#allocation2 + $0xc2] sm:$0xff]
      %v7772 = vld [vmem:[#allocation2 + $0xca] sm:$0xff]
      %v7773 = vld [vmem:[#allocation2 + $0xd2] sm:$0xff]
      %v7774 = vld [vmem:[#allocation2 + $0xda] sm:$0xff]
      %v7775 = vld [vmem:[#allocation2 + $0xe2] sm:$0xff]
      %v7776 = vld [vmem:[#allocation2 + $0xea] sm:$0xff]
      %v7777 = vld [vmem:[#allocation2 + $0xf2] sm:$0xff]
      %v7778 = vld [vmem:[#allocation2 + $0xfa] sm:$0xff]
      %v7779 = vld [vmem:[#allocation2 + $0x102] sm:$0xff]
      %v7780 = vld [vmem:[#allocation2 + $0x10a] sm:$0xff]
      %v7781 = vld [vmem:[#allocation2 + $0x112] sm:$0xff]
      %v7782 = vld [vmem:[#allocation2 + $0x11a] sm:$0xff]
      %v7783 = vld [vmem:[#allocation2 + $0x122] sm:$0xff]
      %v7784 = vld [vmem:[#allocation2 + $0x12a] sm:$0xff]
      %v7785 = vld [vmem:[#allocation2 + $0x132] sm:$0xff]
      %v7786 = vld [vmem:[#allocation2 + $0x13a] sm:$0xff]
      %v7787 = vld [vmem:[#allocation2 + $0x142] sm:$0xff]
      %v7788 = vld [vmem:[%s2 + $0xe0] sm:$0xff]
      %v7789 = vld [vmem:[%s2 + $0xe8] sm:$0xff]
      %v7790 = vld [vmem:[%s2 + $0xf0] sm:$0xff]
      %v7791 = vld [vmem:[%s2 + $0xf8] sm:$0xff]
      %v7793 = vsel %vm305, %v7752, 0
      %v7796 = vsel %vm305, %v7753, 0
      %v7799 = vsel %vm305, %v7754, 0
      %v7802 = vsel %vm305, %v7755, 0
      %v7805 = vsel %vm305, %v7756, 0
      %v7808 = vsel %vm305, %v7757, 0
      %v7811 = vsel %vm305, %v7758, 0
      %v7814 = vsel %vm305, %v7759, 0
      %v7817 = vsel %vm305, %v7760, 0
      %v7820 = vsel %vm305, %v7761, 0
      %v7823 = vsel %vm305, %v7762, 0
      %v7826 = vsel %vm305, %v7763, 0
      %v7829 = vsel %vm305, %v7764, 0
      %v7832 = vsel %vm305, %v7765, 0
      %v7835 = vsel %vm305, %v7766, 0
      %v7838 = vsel %vm305, %v7767, 0
      %v7841 = vsel %vm305, %v7768, 0
      %v7844 = vsel %vm305, %v7769, 0
      %v7847 = vsel %vm305, %v7770, 0
      %v7850 = vsel %vm305, %v7771, 0
      %v7853 = vsel %vm305, %v7772, 0
      %v7856 = vsel %vm305, %v7773, 0
      %v7859 = vsel %vm305, %v7774, 0
      %v7862 = vsel %vm305, %v7775, 0
      %v7865 = vsel %vm305, %v7776, 0
      %v7868 = vsel %vm305, %v7777, 0
      %v7871 = vsel %vm305, %v7778, 0
      %v7874 = vsel %vm305, %v7779, 0
      %v7877 = vsel %vm305, %v7780, 0
      %v7880 = vsel %vm305, %v7781, 0
      %v7883 = vsel %vm305, %v7782, 0
      %v7886 = vsel %vm305, %v7783, 0
      %v7889 = vsel %vm305, %v7784, 0
      %v7892 = vsel %vm305, %v7785, 0
      %v7895 = vsel %vm305, %v7786, 0
      %v7898 = vsel %vm305, %v7787, 0
      %7900 = vmatprep.subr.mxu0 0.0
      %7901 = vmatpush1.msra.mxu0 %v7788
      %7902 = vmatprep.subr.mxu0 0.0
      %7903 = vmatpush1.msra.mxu0 %v7789
      %7904 = vmatprep.subr.mxu0 0.0
      %7905 = vmatpush1.msra.mxu0 %v7790
      %7906 = vmatprep.subr.mxu0 0.0
      %7907 = vmatpush1.msra.mxu0 %v7791
      %7908 = vmatprep.subr.mxu0 0.0
      %7909 = vmatpush1.msra.mxu0 0.0
      %7910 = vmatprep.subr.mxu0 0.0
      %7911 = vmatpush1.msra.mxu0 0.0
      %7912 = vmatprep.subr.mxu0 0.0
      %7913 = vmatpush1.msra.mxu0 0.0
      %7914 = vmatprep.subr.mxu0 0.0
      %7915 = vmatpush1.msra.mxu0 0.0
      %7916 = vmatprep.subr.mxu0 0.0
      %7917 = vmatpush1.msra.mxu0 0.0
      %7918 = vmatprep.subr.mxu0 0.0
      %7919 = vmatpush1.msra.mxu0 0.0
      %7920 = vmatprep.subr.mxu0 0.0
      %7921 = vmatpush1.msra.mxu0 0.0
      %7922 = vmatprep.subr.mxu0 0.0
      %7923 = vmatpush1.msra.mxu0 0.0
      %7924 = vmatprep.subr.mxu0 0.0
      %7925 = vmatpush1.msra.mxu0 0.0
      %7926 = vmatprep.subr.mxu0 0.0
      %7927 = vmatpush1.msra.mxu0 0.0
      %7928 = vmatprep.subr.mxu0 0.0
      %7929 = vmatpush1.msra.mxu0 0.0
      %7930 = vmatprep.subr.mxu0 0.0
      %7931 = vmatpush1.msra.mxu0 0.0
      %7932 = vmatprep.subr.mxu0 0.0
      %7933 = vmatpush1.msra.mxu0 0.0
      %7934 = vmatprep.subr.mxu0 0.0
      %7935 = vmatpush1.msra.mxu0 0.0
      %7936 = vmatprep.subr.mxu0 0.0
      %7937 = vmatpush1.msra.mxu0 0.0
      %7938 = vmatprep.subr.mxu0 0.0
      %7939 = vmatpush1.msra.mxu0 0.0
      %7940 = vmatprep.subr.mxu0 0.0
      %7941 = vmatpush1.msra.mxu0 0.0
      %7942 = vmatprep.subr.mxu0 0.0
      %7943 = vmatpush1.msra.mxu0 0.0
      %7944 = vmatprep.subr.mxu0 0.0
      %7945 = vmatpush1.msra.mxu0 0.0
      %7946 = vmatprep.subr.mxu0 0.0
      %7947 = vmatpush1.msra.mxu0 0.0
      %7948 = vmatprep.subr.mxu0 0.0
      %7949 = vmatpush1.msra.mxu0 0.0
      %7950 = vmatprep.subr.mxu0 0.0
      %7951 = vmatpush1.msra.mxu0 0.0
      %7952 = vmatprep.subr.mxu0 0.0
      %7953 = vmatpush1.msra.mxu0 0.0
      %7954 = vmatprep.subr.mxu0 0.0
      %7955 = vmatpush1.msra.mxu0 0.0
      %7956 = vmatprep.subr.mxu0 0.0
      %7957 = vmatpush1.msra.mxu0 0.0
      %7958 = vmatprep.subr.mxu0 0.0
      %7959 = vmatpush1.msra.mxu0 0.0
      %7960 = vmatprep.subr.mxu0 0.0
      %7961 = vmatpush1.msra.mxu0 0.0
      %7962 = vmatprep.subr.mxu0 0.0
      %7963 = vmatpush1.msra.mxu0 0.0
      %7964 = vmatprep.mubr.f32.mxu0 0.0
      %7965 = vmatmul.mubr.f32.gmra.mrb[0].mxu0 %v7793
      %v7966 = vpop.f32.mrb[0].mxu0
      %v7967 = vadd.f32 0.0, %v7966
      %v7968 = vpop.f32.mrb[0].mxu0
      %7969 = vmatprep.mubr.f32.mxu0 0.0
      %7970 = vmatmul.mubr.f32.gmra.mrb[0].mxu0 %v7796
      %v7971 = vpop.f32.mrb[0].mxu0
      %v7972 = vadd.f32 0.0, %v7971
      %v7973 = vpop.f32.mrb[0].mxu0
      %7974 = vmatprep.mubr.f32.mxu0 0.0
      %7975 = vmatmul.mubr.f32.gmra.mrb[0].mxu0 %v7799
      %v7976 = vpop.f32.mrb[0].mxu0
      %v7977 = vadd.f32 0.0, %v7976
      %v7978 = vpop.f32.mrb[0].mxu0
      %7979 = vmatprep.mubr.f32.mxu0 0.0
      %7980 = vmatmul.mubr.f32.gmra.mrb[0].mxu0 %v7802
      %v7981 = vpop.f32.mrb[0].mxu0
      %v7982 = vadd.f32 0.0, %v7981
      %v7983 = vpop.f32.mrb[0].mxu0
      %7984 = vmatprep.mubr.f32.mxu0 0.0
      %7985 = vmatmul.mubr.f32.gmra.mrb[0].mxu0 %v7805
      %v7986 = vpop.f32.mrb[0].mxu0
      %v7987 = vadd.f32 0.0, %v7986
      %v7988 = vpop.f32.mrb[0].mxu0
      %7989 = vmatprep.mubr.f32.mxu0 0.0
      %7990 = vmatmul.mubr.f32.gmra.mrb[0].mxu0 %v7808
      %v7991 = vpop.f32.mrb[0].mxu0
      %v7992 = vadd.f32 0.0, %v7991
      %v7993 = vpop.f32.mrb[0].mxu0
      %7994 = vmatprep.mubr.f32.mxu0 0.0
      %7995 = vmatmul.mubr.f32.gmra.mrb[0].mxu0 %v7811
      %v7996 = vpop.f32.mrb[0].mxu0
      %v7997 = vadd.f32 0.0, %v7996
      %v7998 = vpop.f32.mrb[0].mxu0
      %7999 = vmatprep.mubr.f32.mxu0 0.0
      %8000 = vmatmul.mubr.f32.gmra.mrb[0].mxu0 %v7814
      %v8001 = vpop.f32.mrb[0].mxu0
      %v8002 = vadd.f32 0.0, %v8001
      %v8003 = vpop.f32.mrb[0].mxu0
      %8004 = vmatprep.mubr.f32.mxu0 0.0
      %8005 = vmatmul.mubr.f32.gmra.mrb[0].mxu0 %v7817
      %v8006 = vpop.f32.mrb[0].mxu0
      %v8007 = vadd.f32 0.0, %v8006
      %v8008 = vpop.f32.mrb[0].mxu0
      %8009 = vmatprep.mubr.f32.mxu0 0.0
      %8010 = vmatmul.mubr.f32.gmra.mrb[0].mxu0 %v7820
      %v8011 = vpop.f32.mrb[0].mxu0
      %v8012 = vadd.f32 0.0, %v8011
      %v8013 = vpop.f32.mrb[0].mxu0
      %8014 = vmatprep.mubr.f32.mxu0 0.0
      %8015 = vmatmul.mubr.f32.gmra.mrb[0].mxu0 %v7823
      %v8016 = vpop.f32.mrb[0].mxu0
      %v8017 = vadd.f32 0.0, %v8016
      %v8018 = vpop.f32.mrb[0].mxu0
      %8019 = vmatprep.mubr.f32.mxu0 0.0
      %8020 = vmatmul.mubr.f32.gmra.mrb[0].mxu0 %v7826
      %v8021 = vpop.f32.mrb[0].mxu0
      %v8022 = vadd.f32 0.0, %v8021
      %v8023 = vpop.f32.mrb[0].mxu0
      %8024 = vmatprep.mubr.f32.mxu0 0.0
      %8025 = vmatmul.mubr.f32.gmra.mrb[0].mxu0 %v7829
      %v8026 = vpop.f32.mrb[0].mxu0
      %v8027 = vadd.f32 0.0, %v8026
      %v8028 = vpop.f32.mrb[0].mxu0
      %8029 = vmatprep.mubr.f32.mxu0 0.0
      %8030 = vmatmul.mubr.f32.gmra.mrb[0].mxu0 %v7832
      %v8031 = vpop.f32.mrb[0].mxu0
      %v8032 = vadd.f32 0.0, %v8031
      %v8033 = vpop.f32.mrb[0].mxu0
      %8034 = vmatprep.mubr.f32.mxu0 0.0
      %8035 = vmatmul.mubr.f32.gmra.mrb[0].mxu0 %v7835
      %v8036 = vpop.f32.mrb[0].mxu0
      %v8037 = vadd.f32 0.0, %v8036
      %v8038 = vpop.f32.mrb[0].mxu0
      %8039 = vmatprep.mubr.f32.mxu0 0.0
      %8040 = vmatmul.mubr.f32.gmra.mrb[0].mxu0 %v7838
      %v8041 = vpop.f32.mrb[0].mxu0
      %v8042 = vadd.f32 0.0, %v8041
      %v8043 = vpop.f32.mrb[0].mxu0
      %8044 = vmatprep.mubr.f32.mxu0 0.0
      %8045 = vmatmul.mubr.f32.gmra.mrb[0].mxu0 %v7841
      %v8046 = vpop.f32.mrb[0].mxu0
      %v8047 = vadd.f32 0.0, %v8046
      %v8048 = vpop.f32.mrb[0].mxu0
      %8049 = vmatprep.mubr.f32.mxu0 0.0
      %8050 = vmatmul.mubr.f32.gmra.mrb[0].mxu0 %v7844
      %v8051 = vpop.f32.mrb[0].mxu0
      %v8052 = vadd.f32 0.0, %v8051
      %v8053 = vpop.f32.mrb[0].mxu0
      %8054 = vmatprep.mubr.f32.mxu0 0.0
      %8055 = vmatmul.mubr.f32.gmra.mrb[0].mxu0 %v7847
      %v8056 = vpop.f32.mrb[0].mxu0
      %v8057 = vadd.f32 0.0, %v8056
      %v8058 = vpop.f32.mrb[0].mxu0
      %8059 = vmatprep.mubr.f32.mxu0 0.0
      %8060 = vmatmul.mubr.f32.gmra.mrb[0].mxu0 %v7850
      %v8061 = vpop.f32.mrb[0].mxu0
      %v8062 = vadd.f32 0.0, %v8061
      %v8063 = vpop.f32.mrb[0].mxu0
      %8064 = vmatprep.mubr.f32.mxu0 0.0
      %8065 = vmatmul.mubr.f32.gmra.mrb[0].mxu0 %v7853
      %v8066 = vpop.f32.mrb[0].mxu0
      %v8067 = vadd.f32 0.0, %v8066
      %v8068 = vpop.f32.mrb[0].mxu0
      %8069 = vmatprep.mubr.f32.mxu0 0.0
      %8070 = vmatmul.mubr.f32.gmra.mrb[0].mxu0 %v7856
      %v8071 = vpop.f32.mrb[0].mxu0
      %v8072 = vadd.f32 0.0, %v8071
      %v8073 = vpop.f32.mrb[0].mxu0
      %8074 = vmatprep.mubr.f32.mxu0 0.0
      %8075 = vmatmul.mubr.f32.gmra.mrb[0].mxu0 %v7859
      %v8076 = vpop.f32.mrb[0].mxu0
      %v8077 = vadd.f32 0.0, %v8076
      %v8078 = vpop.f32.mrb[0].mxu0
      %8079 = vmatprep.mubr.f32.mxu0 0.0
      %8080 = vmatmul.mubr.f32.gmra.mrb[0].mxu0 %v7862
      %v8081 = vpop.f32.mrb[0].mxu0
      %v8082 = vadd.f32 0.0, %v8081
      %v8083 = vpop.f32.mrb[0].mxu0
      %8084 = vmatprep.mubr.f32.mxu0 0.0
      %8085 = vmatmul.mubr.f32.gmra.mrb[0].mxu0 %v7865
      %v8086 = vpop.f32.mrb[0].mxu0
      %v8087 = vadd.f32 0.0, %v8086
      %v8088 = vpop.f32.mrb[0].mxu0
      %8089 = vmatprep.mubr.f32.mxu0 0.0
      %8090 = vmatmul.mubr.f32.gmra.mrb[0].mxu0 %v7868
      %v8091 = vpop.f32.mrb[0].mxu0
      %v8092 = vadd.f32 0.0, %v8091
      %v8093 = vpop.f32.mrb[0].mxu0
      %8094 = vmatprep.mubr.f32.mxu0 0.0
      %8095 = vmatmul.mubr.f32.gmra.mrb[0].mxu0 %v7871
      %v8096 = vpop.f32.mrb[0].mxu0
      %v8097 = vadd.f32 0.0, %v8096
      %v8098 = vpop.f32.mrb[0].mxu0
      %8099 = vmatprep.mubr.f32.mxu0 0.0
      %8100 = vmatmul.mubr.f32.gmra.mrb[0].mxu0 %v7874
      %v8101 = vpop.f32.mrb[0].mxu0
      %v8102 = vadd.f32 0.0, %v8101
      %v8103 = vpop.f32.mrb[0].mxu0
      %8104 = vmatprep.mubr.f32.mxu0 0.0
      %8105 = vmatmul.mubr.f32.gmra.mrb[0].mxu0 %v7877
      %v8106 = vpop.f32.mrb[0].mxu0
      %v8107 = vadd.f32 0.0, %v8106
      %v8108 = vpop.f32.mrb[0].mxu0
      %8109 = vmatprep.mubr.f32.mxu0 0.0
      %8110 = vmatmul.mubr.f32.gmra.mrb[0].mxu0 %v7880
      %v8111 = vpop.f32.mrb[0].mxu0
      %v8112 = vadd.f32 0.0, %v8111
      %v8113 = vpop.f32.mrb[0].mxu0
      %8114 = vmatprep.mubr.f32.mxu0 0.0
      %8115 = vmatmul.mubr.f32.gmra.mrb[0].mxu0 %v7883
      %v8116 = vpop.f32.mrb[0].mxu0
      %v8117 = vadd.f32 0.0, %v8116
      %v8118 = vpop.f32.mrb[0].mxu0
      %8119 = vmatprep.mubr.f32.mxu0 0.0
      %8120 = vmatmul.mubr.f32.gmra.mrb[0].mxu0 %v7886
      %v8121 = vpop.f32.mrb[0].mxu0
      %v8122 = vadd.f32 0.0, %v8121
      %v8123 = vpop.f32.mrb[0].mxu0
      %8124 = vmatprep.mubr.f32.mxu0 0.0
      %8125 = vmatmul.mubr.f32.gmra.mrb[0].mxu0 %v7889
      %v8126 = vpop.f32.mrb[0].mxu0
      %v8127 = vadd.f32 0.0, %v8126
      %v8128 = vpop.f32.mrb[0].mxu0
      %8129 = vmatprep.mubr.f32.mxu0 0.0
      %8130 = vmatmul.mubr.f32.gmra.mrb[0].mxu0 %v7892
      %v8131 = vpop.f32.mrb[0].mxu0
      %v8132 = vadd.f32 0.0, %v8131
      %v8133 = vpop.f32.mrb[0].mxu0
      %8134 = vmatprep.mubr.f32.mxu0 0.0
      %8135 = vmatmul.mubr.f32.gmra.mrb[0].mxu0 %v7895
      %v8136 = vpop.f32.mrb[0].mxu0
      %v8137 = vadd.f32 0.0, %v8136
      %v8138 = vpop.f32.mrb[0].mxu0
      %8139 = vmatprep.mubr.f32.mxu0 0.0
      %8140 = vmatmul.mubr.f32.gmra.mrb[0].mxu0 %v7898
      %v8141 = vpop.f32.mrb[0].mxu0
      %v8142 = vadd.f32 0.0, %v8141
      %v8143 = vpop.f32.mrb[0].mxu0
      %8144 = vdwg.mxu0
      %v8145 = vadd.f32 %v7716, %v7967
      %v8146 = vadd.f32 %v7717, %v7972
      %v8147 = vadd.f32 %v7718, %v7977
      %v8148 = vadd.f32 %v7719, %v7982
      %v8149 = vadd.f32 %v7720, %v7987
      %v8150 = vadd.f32 %v7721, %v7992
      %v8151 = vadd.f32 %v7722, %v7997
      %v8152 = vadd.f32 %v7723, %v8002
      %v8153 = vadd.f32 %v7724, %v8007
      %v8154 = vadd.f32 %v7725, %v8012
      %v8155 = vadd.f32 %v7726, %v8017
      %v8156 = vadd.f32 %v7727, %v8022
      %v8157 = vadd.f32 %v7728, %v8027
      %v8158 = vadd.f32 %v7729, %v8032
      %v8159 = vadd.f32 %v7730, %v8037
      %v8160 = vadd.f32 %v7731, %v8042
      %v8161 = vadd.f32 %v7732, %v8047
      %v8162 = vadd.f32 %v7733, %v8052
      %v8163 = vadd.f32 %v7734, %v8057
      %v8164 = vadd.f32 %v7735, %v8062
      %v8165 = vadd.f32 %v7736, %v8067
      %v8166 = vadd.f32 %v7737, %v8072
      %v8167 = vadd.f32 %v7738, %v8077
      %v8168 = vadd.f32 %v7739, %v8082
      %v8169 = vadd.f32 %v7740, %v8087
      %v8170 = vadd.f32 %v7741, %v8092
      %v8171 = vadd.f32 %v7742, %v8097
      %v8172 = vadd.f32 %v7743, %v8102
      %v8173 = vadd.f32 %v7744, %v8107
      %v8174 = vadd.f32 %v7745, %v8112
      %v8175 = vadd.f32 %v7746, %v8117
      %v8176 = vadd.f32 %v7747, %v8122
      %v8177 = vadd.f32 %v7748, %v8127
      %v8178 = vadd.f32 %v7749, %v8132
      %v8179 = vadd.f32 %v7750, %v8137
      %v8180 = vadd.f32 %v7751, %v8142
      %v8181 = vld [vmem:[#allocation2 + $0x2b] sm:$0xff]
      %v8182 = vld [vmem:[#allocation2 + $0x33] sm:$0xff]
      %v8183 = vld [vmem:[#allocation2 + $0x3b] sm:$0xff]
      %v8184 = vld [vmem:[#allocation2 + $0x43] sm:$0xff]
      %v8185 = vld [vmem:[#allocation2 + $0x4b] sm:$0xff]
      %v8186 = vld [vmem:[#allocation2 + $0x53] sm:$0xff]
      %v8187 = vld [vmem:[#allocation2 + $0x5b] sm:$0xff]
      %v8188 = vld [vmem:[#allocation2 + $0x63] sm:$0xff]
      %v8189 = vld [vmem:[#allocation2 + $0x6b] sm:$0xff]
      %v8190 = vld [vmem:[#allocation2 + $0x73] sm:$0xff]
      %v8191 = vld [vmem:[#allocation2 + $0x7b] sm:$0xff]
      %v8192 = vld [vmem:[#allocation2 + $0x83] sm:$0xff]
      %v8193 = vld [vmem:[#allocation2 + $0x8b] sm:$0xff]
      %v8194 = vld [vmem:[#allocation2 + $0x93] sm:$0xff]
      %v8195 = vld [vmem:[#allocation2 + $0x9b] sm:$0xff]
      %v8196 = vld [vmem:[#allocation2 + $0xa3] sm:$0xff]
      %v8197 = vld [vmem:[#allocation2 + $0xab] sm:$0xff]
      %v8198 = vld [vmem:[#allocation2 + $0xb3] sm:$0xff]
      %v8199 = vld [vmem:[#allocation2 + $0xbb] sm:$0xff]
      %v8200 = vld [vmem:[#allocation2 + $0xc3] sm:$0xff]
      %v8201 = vld [vmem:[#allocation2 + $0xcb] sm:$0xff]
      %v8202 = vld [vmem:[#allocation2 + $0xd3] sm:$0xff]
      %v8203 = vld [vmem:[#allocation2 + $0xdb] sm:$0xff]
      %v8204 = vld [vmem:[#allocation2 + $0xe3] sm:$0xff]
      %v8205 = vld [vmem:[#allocation2 + $0xeb] sm:$0xff]
      %v8206 = vld [vmem:[#allocation2 + $0xf3] sm:$0xff]
      %v8207 = vld [vmem:[#allocation2 + $0xfb] sm:$0xff]
      %v8208 = vld [vmem:[#allocation2 + $0x103] sm:$0xff]
      %v8209 = vld [vmem:[#allocation2 + $0x10b] sm:$0xff]
      %v8210 = vld [vmem:[#allocation2 + $0x113] sm:$0xff]
      %v8211 = vld [vmem:[#allocation2 + $0x11b] sm:$0xff]
      %v8212 = vld [vmem:[#allocation2 + $0x123] sm:$0xff]
      %v8213 = vld [vmem:[#allocation2 + $0x12b] sm:$0xff]
      %v8214 = vld [vmem:[#allocation2 + $0x133] sm:$0xff]
      %v8215 = vld [vmem:[#allocation2 + $0x13b] sm:$0xff]
      %v8216 = vld [vmem:[#allocation2 + $0x143] sm:$0xff]
      %v8217 = vld [vmem:[%s2 + $0x100] sm:$0xff]
      %v8218 = vld [vmem:[%s2 + $0x108] sm:$0xff]
      %v8219 = vld [vmem:[%s2 + $0x110] sm:$0xff]
      %v8220 = vld [vmem:[%s2 + $0x118] sm:$0xff]
      %v8222 = vsel %vm305, %v8181, 0
      %v8225 = vsel %vm305, %v8182, 0
      %v8228 = vsel %vm305, %v8183, 0
      %v8231 = vsel %vm305, %v8184, 0
      %v8234 = vsel %vm305, %v8185, 0
      %v8237 = vsel %vm305, %v8186, 0
      %v8240 = vsel %vm305, %v8187, 0
      %v8243 = vsel %vm305, %v8188, 0
      %v8246 = vsel %vm305, %v8189, 0
      %v8249 = vsel %vm305, %v8190, 0
      %v8252 = vsel %vm305, %v8191, 0
      %v8255 = vsel %vm305, %v8192, 0
      %v8258 = vsel %vm305, %v8193, 0
      %v8261 = vsel %vm305, %v8194, 0
      %v8264 = vsel %vm305, %v8195, 0
      %v8267 = vsel %vm305, %v8196, 0
      %v8270 = vsel %vm305, %v8197, 0
      %v8273 = vsel %vm305, %v8198, 0
      %v8276 = vsel %vm305, %v8199, 0
      %v8279 = vsel %vm305, %v8200, 0
      %v8282 = vsel %vm305, %v8201, 0
      %v8285 = vsel %vm305, %v8202, 0
      %v8288 = vsel %vm305, %v8203, 0
      %v8291 = vsel %vm305, %v8204, 0
      %v8294 = vsel %vm305, %v8205, 0
      %v8297 = vsel %vm305, %v8206, 0
      %v8300 = vsel %vm305, %v8207, 0
      %v8303 = vsel %vm305, %v8208, 0
      %v8306 = vsel %vm305, %v8209, 0
      %v8309 = vsel %vm305, %v8210, 0
      %v8312 = vsel %vm305, %v8211, 0
      %v8315 = vsel %vm305, %v8212, 0
      %v8318 = vsel %vm305, %v8213, 0
      %v8321 = vsel %vm305, %v8214, 0
      %v8324 = vsel %vm305, %v8215, 0
      %v8327 = vsel %vm305, %v8216, 0
      %8329 = vmatprep.subr.mxu0 0.0
      %8330 = vmatpush1.msra.mxu0 %v8217
      %8331 = vmatprep.subr.mxu0 0.0
      %8332 = vmatpush1.msra.mxu0 %v8218
      %8333 = vmatprep.subr.mxu0 0.0
      %8334 = vmatpush1.msra.mxu0 %v8219
      %8335 = vmatprep.subr.mxu0 0.0
      %8336 = vmatpush1.msra.mxu0 %v8220
      %8337 = vmatprep.subr.mxu0 0.0
      %8338 = vmatpush1.msra.mxu0 0.0
      %8339 = vmatprep.subr.mxu0 0.0
      %8340 = vmatpush1.msra.mxu0 0.0
      %8341 = vmatprep.subr.mxu0 0.0
      %8342 = vmatpush1.msra.mxu0 0.0
      %8343 = vmatprep.subr.mxu0 0.0
      %8344 = vmatpush1.msra.mxu0 0.0
      %8345 = vmatprep.subr.mxu0 0.0
      %8346 = vmatpush1.msra.mxu0 0.0
      %8347 = vmatprep.subr.mxu0 0.0
      %8348 = vmatpush1.msra.mxu0 0.0
      %8349 = vmatprep.subr.mxu0 0.0
      %8350 = vmatpush1.msra.mxu0 0.0
      %8351 = vmatprep.subr.mxu0 0.0
      %8352 = vmatpush1.msra.mxu0 0.0
      %8353 = vmatprep.subr.mxu0 0.0
      %8354 = vmatpush1.msra.mxu0 0.0
      %8355 = vmatprep.subr.mxu0 0.0
      %8356 = vmatpush1.msra.mxu0 0.0
      %8357 = vmatprep.subr.mxu0 0.0
      %8358 = vmatpush1.msra.mxu0 0.0
      %8359 = vmatprep.subr.mxu0 0.0
      %8360 = vmatpush1.msra.mxu0 0.0
      %8361 = vmatprep.subr.mxu0 0.0
      %8362 = vmatpush1.msra.mxu0 0.0
      %8363 = vmatprep.subr.mxu0 0.0
      %8364 = vmatpush1.msra.mxu0 0.0
      %8365 = vmatprep.subr.mxu0 0.0
      %8366 = vmatpush1.msra.mxu0 0.0
      %8367 = vmatprep.subr.mxu0 0.0
      %8368 = vmatpush1.msra.mxu0 0.0
      %8369 = vmatprep.subr.mxu0 0.0
      %8370 = vmatpush1.msra.mxu0 0.0
      %8371 = vmatprep.subr.mxu0 0.0
      %8372 = vmatpush1.msra.mxu0 0.0
      %8373 = vmatprep.subr.mxu0 0.0
      %8374 = vmatpush1.msra.mxu0 0.0
      %8375 = vmatprep.subr.mxu0 0.0
      %8376 = vmatpush1.msra.mxu0 0.0
      %8377 = vmatprep.subr.mxu0 0.0
      %8378 = vmatpush1.msra.mxu0 0.0
      %8379 = vmatprep.subr.mxu0 0.0
      %8380 = vmatpush1.msra.mxu0 0.0
      %8381 = vmatprep.subr.mxu0 0.0
      %8382 = vmatpush1.msra.mxu0 0.0
      %8383 = vmatprep.subr.mxu0 0.0
      %8384 = vmatpush1.msra.mxu0 0.0
      %8385 = vmatprep.subr.mxu0 0.0
      %8386 = vmatpush1.msra.mxu0 0.0
      %8387 = vmatprep.subr.mxu0 0.0
      %8388 = vmatpush1.msra.mxu0 0.0
      %8389 = vmatprep.subr.mxu0 0.0
      %8390 = vmatpush1.msra.mxu0 0.0
      %8391 = vmatprep.subr.mxu0 0.0
      %8392 = vmatpush1.msra.mxu0 0.0
      %8393 = vmatprep.mubr.f32.mxu0 0.0
      %8394 = vmatmul.mubr.f32.gmra.mrb[0].mxu0 %v8222
      %v8395 = vpop.f32.mrb[0].mxu0
      %v8396 = vadd.f32 0.0, %v8395
      %v8397 = vpop.f32.mrb[0].mxu0
      %8398 = vmatprep.mubr.f32.mxu0 0.0
      %8399 = vmatmul.mubr.f32.gmra.mrb[0].mxu0 %v8225
      %v8400 = vpop.f32.mrb[0].mxu0
      %v8401 = vadd.f32 0.0, %v8400
      %v8402 = vpop.f32.mrb[0].mxu0
      %8403 = vmatprep.mubr.f32.mxu0 0.0
      %8404 = vmatmul.mubr.f32.gmra.mrb[0].mxu0 %v8228
      %v8405 = vpop.f32.mrb[0].mxu0
      %v8406 = vadd.f32 0.0, %v8405
      %v8407 = vpop.f32.mrb[0].mxu0
      %8408 = vmatprep.mubr.f32.mxu0 0.0
      %8409 = vmatmul.mubr.f32.gmra.mrb[0].mxu0 %v8231
      %v8410 = vpop.f32.mrb[0].mxu0
      %v8411 = vadd.f32 0.0, %v8410
      %v8412 = vpop.f32.mrb[0].mxu0
      %8413 = vmatprep.mubr.f32.mxu0 0.0
      %8414 = vmatmul.mubr.f32.gmra.mrb[0].mxu0 %v8234
      %v8415 = vpop.f32.mrb[0].mxu0
      %v8416 = vadd.f32 0.0, %v8415
      %v8417 = vpop.f32.mrb[0].mxu0
      %8418 = vmatprep.mubr.f32.mxu0 0.0
      %8419 = vmatmul.mubr.f32.gmra.mrb[0].mxu0 %v8237
      %v8420 = vpop.f32.mrb[0].mxu0
      %v8421 = vadd.f32 0.0, %v8420
      %v8422 = vpop.f32.mrb[0].mxu0
      %8423 = vmatprep.mubr.f32.mxu0 0.0
      %8424 = vmatmul.mubr.f32.gmra.mrb[0].mxu0 %v8240
      %v8425 = vpop.f32.mrb[0].mxu0
      %v8426 = vadd.f32 0.0, %v8425
      %v8427 = vpop.f32.mrb[0].mxu0
      %8428 = vmatprep.mubr.f32.mxu0 0.0
      %8429 = vmatmul.mubr.f32.gmra.mrb[0].mxu0 %v8243
      %v8430 = vpop.f32.mrb[0].mxu0
      %v8431 = vadd.f32 0.0, %v8430
      %v8432 = vpop.f32.mrb[0].mxu0
      %8433 = vmatprep.mubr.f32.mxu0 0.0
      %8434 = vmatmul.mubr.f32.gmra.mrb[0].mxu0 %v8246
      %v8435 = vpop.f32.mrb[0].mxu0
      %v8436 = vadd.f32 0.0, %v8435
      %v8437 = vpop.f32.mrb[0].mxu0
      %8438 = vmatprep.mubr.f32.mxu0 0.0
      %8439 = vmatmul.mubr.f32.gmra.mrb[0].mxu0 %v8249
      %v8440 = vpop.f32.mrb[0].mxu0
      %v8441 = vadd.f32 0.0, %v8440
      %v8442 = vpop.f32.mrb[0].mxu0
      %8443 = vmatprep.mubr.f32.mxu0 0.0
      %8444 = vmatmul.mubr.f32.gmra.mrb[0].mxu0 %v8252
      %v8445 = vpop.f32.mrb[0].mxu0
      %v8446 = vadd.f32 0.0, %v8445
      %v8447 = vpop.f32.mrb[0].mxu0
      %8448 = vmatprep.mubr.f32.mxu0 0.0
      %8449 = vmatmul.mubr.f32.gmra.mrb[0].mxu0 %v8255
      %v8450 = vpop.f32.mrb[0].mxu0
      %v8451 = vadd.f32 0.0, %v8450
      %v8452 = vpop.f32.mrb[0].mxu0
      %8453 = vmatprep.mubr.f32.mxu0 0.0
      %8454 = vmatmul.mubr.f32.gmra.mrb[0].mxu0 %v8258
      %v8455 = vpop.f32.mrb[0].mxu0
      %v8456 = vadd.f32 0.0, %v8455
      %v8457 = vpop.f32.mrb[0].mxu0
      %8458 = vmatprep.mubr.f32.mxu0 0.0
      %8459 = vmatmul.mubr.f32.gmra.mrb[0].mxu0 %v8261
      %v8460 = vpop.f32.mrb[0].mxu0
      %v8461 = vadd.f32 0.0, %v8460
      %v8462 = vpop.f32.mrb[0].mxu0
      %8463 = vmatprep.mubr.f32.mxu0 0.0
      %8464 = vmatmul.mubr.f32.gmra.mrb[0].mxu0 %v8264
      %v8465 = vpop.f32.mrb[0].mxu0
      %v8466 = vadd.f32 0.0, %v8465
      %v8467 = vpop.f32.mrb[0].mxu0
      %8468 = vmatprep.mubr.f32.mxu0 0.0
      %8469 = vmatmul.mubr.f32.gmra.mrb[0].mxu0 %v8267
      %v8470 = vpop.f32.mrb[0].mxu0
      %v8471 = vadd.f32 0.0, %v8470
      %v8472 = vpop.f32.mrb[0].mxu0
      %8473 = vmatprep.mubr.f32.mxu0 0.0
      %8474 = vmatmul.mubr.f32.gmra.mrb[0].mxu0 %v8270
      %v8475 = vpop.f32.mrb[0].mxu0
      %v8476 = vadd.f32 0.0, %v8475
      %v8477 = vpop.f32.mrb[0].mxu0
      %8478 = vmatprep.mubr.f32.mxu0 0.0
      %8479 = vmatmul.mubr.f32.gmra.mrb[0].mxu0 %v8273
      %v8480 = vpop.f32.mrb[0].mxu0
      %v8481 = vadd.f32 0.0, %v8480
      %v8482 = vpop.f32.mrb[0].mxu0
      %8483 = vmatprep.mubr.f32.mxu0 0.0
      %8484 = vmatmul.mubr.f32.gmra.mrb[0].mxu0 %v8276
      %v8485 = vpop.f32.mrb[0].mxu0
      %v8486 = vadd.f32 0.0, %v8485
      %v8487 = vpop.f32.mrb[0].mxu0
      %8488 = vmatprep.mubr.f32.mxu0 0.0
      %8489 = vmatmul.mubr.f32.gmra.mrb[0].mxu0 %v8279
      %v8490 = vpop.f32.mrb[0].mxu0
      %v8491 = vadd.f32 0.0, %v8490
      %v8492 = vpop.f32.mrb[0].mxu0
      %8493 = vmatprep.mubr.f32.mxu0 0.0
      %8494 = vmatmul.mubr.f32.gmra.mrb[0].mxu0 %v8282
      %v8495 = vpop.f32.mrb[0].mxu0
      %v8496 = vadd.f32 0.0, %v8495
      %v8497 = vpop.f32.mrb[0].mxu0
      %8498 = vmatprep.mubr.f32.mxu0 0.0
      %8499 = vmatmul.mubr.f32.gmra.mrb[0].mxu0 %v8285
      %v8500 = vpop.f32.mrb[0].mxu0
      %v8501 = vadd.f32 0.0, %v8500
      %v8502 = vpop.f32.mrb[0].mxu0
      %8503 = vmatprep.mubr.f32.mxu0 0.0
      %8504 = vmatmul.mubr.f32.gmra.mrb[0].mxu0 %v8288
      %v8505 = vpop.f32.mrb[0].mxu0
      %v8506 = vadd.f32 0.0, %v8505
      %v8507 = vpop.f32.mrb[0].mxu0
      %8508 = vmatprep.mubr.f32.mxu0 0.0
      %8509 = vmatmul.mubr.f32.gmra.mrb[0].mxu0 %v8291
      %v8510 = vpop.f32.mrb[0].mxu0
      %v8511 = vadd.f32 0.0, %v8510
      %v8512 = vpop.f32.mrb[0].mxu0
      %8513 = vmatprep.mubr.f32.mxu0 0.0
      %8514 = vmatmul.mubr.f32.gmra.mrb[0].mxu0 %v8294
      %v8515 = vpop.f32.mrb[0].mxu0
      %v8516 = vadd.f32 0.0, %v8515
      %v8517 = vpop.f32.mrb[0].mxu0
      %8518 = vmatprep.mubr.f32.mxu0 0.0
      %8519 = vmatmul.mubr.f32.gmra.mrb[0].mxu0 %v8297
      %v8520 = vpop.f32.mrb[0].mxu0
      %v8521 = vadd.f32 0.0, %v8520
      %v8522 = vpop.f32.mrb[0].mxu0
      %8523 = vmatprep.mubr.f32.mxu0 0.0
      %8524 = vmatmul.mubr.f32.gmra.mrb[0].mxu0 %v8300
      %v8525 = vpop.f32.mrb[0].mxu0
      %v8526 = vadd.f32 0.0, %v8525
      %v8527 = vpop.f32.mrb[0].mxu0
      %8528 = vmatprep.mubr.f32.mxu0 0.0
      %8529 = vmatmul.mubr.f32.gmra.mrb[0].mxu0 %v8303
      %v8530 = vpop.f32.mrb[0].mxu0
      %v8531 = vadd.f32 0.0, %v8530
      %v8532 = vpop.f32.mrb[0].mxu0
      %8533 = vmatprep.mubr.f32.mxu0 0.0
      %8534 = vmatmul.mubr.f32.gmra.mrb[0].mxu0 %v8306
      %v8535 = vpop.f32.mrb[0].mxu0
      %v8536 = vadd.f32 0.0, %v8535
      %v8537 = vpop.f32.mrb[0].mxu0
      %8538 = vmatprep.mubr.f32.mxu0 0.0
      %8539 = vmatmul.mubr.f32.gmra.mrb[0].mxu0 %v8309
      %v8540 = vpop.f32.mrb[0].mxu0
      %v8541 = vadd.f32 0.0, %v8540
      %v8542 = vpop.f32.mrb[0].mxu0
      %8543 = vmatprep.mubr.f32.mxu0 0.0
      %8544 = vmatmul.mubr.f32.gmra.mrb[0].mxu0 %v8312
      %v8545 = vpop.f32.mrb[0].mxu0
      %v8546 = vadd.f32 0.0, %v8545
      %v8547 = vpop.f32.mrb[0].mxu0
      %8548 = vmatprep.mubr.f32.mxu0 0.0
      %8549 = vmatmul.mubr.f32.gmra.mrb[0].mxu0 %v8315
      %v8550 = vpop.f32.mrb[0].mxu0
      %v8551 = vadd.f32 0.0, %v8550
      %v8552 = vpop.f32.mrb[0].mxu0
      %8553 = vmatprep.mubr.f32.mxu0 0.0
      %8554 = vmatmul.mubr.f32.gmra.mrb[0].mxu0 %v8318
      %v8555 = vpop.f32.mrb[0].mxu0
      %v8556 = vadd.f32 0.0, %v8555
      %v8557 = vpop.f32.mrb[0].mxu0
      %8558 = vmatprep.mubr.f32.mxu0 0.0
      %8559 = vmatmul.mubr.f32.gmra.mrb[0].mxu0 %v8321
      %v8560 = vpop.f32.mrb[0].mxu0
      %v8561 = vadd.f32 0.0, %v8560
      %v8562 = vpop.f32.mrb[0].mxu0
      %8563 = vmatprep.mubr.f32.mxu0 0.0
      %8564 = vmatmul.mubr.f32.gmra.mrb[0].mxu0 %v8324
      %v8565 = vpop.f32.mrb[0].mxu0
      %v8566 = vadd.f32 0.0, %v8565
      %v8567 = vpop.f32.mrb[0].mxu0
      %8568 = vmatprep.mubr.f32.mxu0 0.0
      %8569 = vmatmul.mubr.f32.gmra.mrb[0].mxu0 %v8327
      %v8570 = vpop.f32.mrb[0].mxu0
      %v8571 = vadd.f32 0.0, %v8570
      %v8572 = vpop.f32.mrb[0].mxu0
      %8573 = vdwg.mxu0
      %v8574 = vadd.f32 %v8145, %v8396
      %v8575 = vadd.f32 %v8146, %v8401
      %v8576 = vadd.f32 %v8147, %v8406
      %v8577 = vadd.f32 %v8148, %v8411
      %v8578 = vadd.f32 %v8149, %v8416
      %v8579 = vadd.f32 %v8150, %v8421
      %v8580 = vadd.f32 %v8151, %v8426
      %v8581 = vadd.f32 %v8152, %v8431
      %v8582 = vadd.f32 %v8153, %v8436
      %v8583 = vadd.f32 %v8154, %v8441
      %v8584 = vadd.f32 %v8155, %v8446
      %v8585 = vadd.f32 %v8156, %v8451
      %v8586 = vadd.f32 %v8157, %v8456
      %v8587 = vadd.f32 %v8158, %v8461
      %v8588 = vadd.f32 %v8159, %v8466
      %v8589 = vadd.f32 %v8160, %v8471
      %v8590 = vadd.f32 %v8161, %v8476
      %v8591 = vadd.f32 %v8162, %v8481
      %v8592 = vadd.f32 %v8163, %v8486
      %v8593 = vadd.f32 %v8164, %v8491
      %v8594 = vadd.f32 %v8165, %v8496
      %v8595 = vadd.f32 %v8166, %v8501
      %v8596 = vadd.f32 %v8167, %v8506
      %v8597 = vadd.f32 %v8168, %v8511
      %v8598 = vadd.f32 %v8169, %v8516
      %v8599 = vadd.f32 %v8170, %v8521
      %v8600 = vadd.f32 %v8171, %v8526
      %v8601 = vadd.f32 %v8172, %v8531
      %v8602 = vadd.f32 %v8173, %v8536
      %v8603 = vadd.f32 %v8174, %v8541
      %v8604 = vadd.f32 %v8175, %v8546
      %v8605 = vadd.f32 %v8176, %v8551
      %v8606 = vadd.f32 %v8177, %v8556
      %v8607 = vadd.f32 %v8178, %v8561
      %v8608 = vadd.f32 %v8179, %v8566
      %v8609 = vadd.f32 %v8180, %v8571
      %v8610 = vld [vmem:[%s4] sm:$0x1]
      %v8612 = vlaneseq
      %v8613 = vshrl.u32 %v8612, 7
      %v8614 = vsub.s32 0, %v8613
      %v8615 = vrot.slane %v8610, %v8614
      %v8617 = vadd.f32 %v8574, %v8615
      %v8618 = vadd.f32 %v8575, %v8615
      %v8619 = vadd.f32 %v8576, %v8615
      %v8620 = vadd.f32 %v8577, %v8615
      %v8621 = vadd.f32 %v8578, %v8615
      %v8622 = vadd.f32 %v8579, %v8615
      %v8623 = vadd.f32 %v8580, %v8615
      %v8624 = vadd.f32 %v8581, %v8615
      %v8625 = vadd.f32 %v8582, %v8615
      %v8626 = vadd.f32 %v8583, %v8615
      %v8627 = vadd.f32 %v8584, %v8615
      %v8628 = vadd.f32 %v8585, %v8615
      %v8629 = vadd.f32 %v8586, %v8615
      %v8630 = vadd.f32 %v8587, %v8615
      %v8631 = vadd.f32 %v8588, %v8615
      %v8632 = vadd.f32 %v8589, %v8615
      %v8633 = vadd.f32 %v8590, %v8615
      %v8634 = vadd.f32 %v8591, %v8615
      %v8635 = vadd.f32 %v8592, %v8615
      %v8636 = vadd.f32 %v8593, %v8615
      %v8637 = vadd.f32 %v8594, %v8615
      %v8638 = vadd.f32 %v8595, %v8615
      %v8639 = vadd.f32 %v8596, %v8615
      %v8640 = vadd.f32 %v8597, %v8615
      %v8641 = vadd.f32 %v8598, %v8615
      %v8642 = vadd.f32 %v8599, %v8615
      %v8643 = vadd.f32 %v8600, %v8615
      %v8644 = vadd.f32 %v8601, %v8615
      %v8645 = vadd.f32 %v8602, %v8615
      %v8646 = vadd.f32 %v8603, %v8615
      %v8647 = vadd.f32 %v8604, %v8615
      %v8648 = vadd.f32 %v8605, %v8615
      %v8649 = vadd.f32 %v8606, %v8615
      %v8650 = vadd.f32 %v8607, %v8615
      %v8651 = vadd.f32 %v8608, %v8615
      %v8652 = vadd.f32 %v8609, %v8615
      %v8653 = vld [vmem:[%s219 + $0x13] sm:$0xff]
      %v8654 = vld [vmem:[%s219 + $0x1b] sm:$0xff]
      %v8655 = vld [vmem:[%s219 + $0x23] sm:$0xff]
      %v8656 = vld [vmem:[%s219 + $0x2b] sm:$0xff]
      %v8657 = vld [vmem:[%s219 + $0x33] sm:$0xff]
      %v8658 = vld [vmem:[%s219 + $0x3b] sm:$0xff]
      %v8659 = vld [vmem:[%s219 + $0x43] sm:$0xff]
      %v8660 = vld [vmem:[%s219 + $0x4b] sm:$0xff]
      %v8661 = vld [vmem:[%s219 + $0x53] sm:$0xff]
      %v8662 = vld [vmem:[%s219 + $0x5b] sm:$0xff]
      %v8663 = vld [vmem:[%s219 + $0x63] sm:$0xff]
      %v8664 = vld [vmem:[%s219 + $0x6b] sm:$0xff]
      %v8665 = vld [vmem:[%s219 + $0x73] sm:$0xff]
      %v8666 = vld [vmem:[%s219 + $0x7b] sm:$0xff]
      %v8667 = vld [vmem:[%s219 + $0x83] sm:$0xff]
      %v8668 = vld [vmem:[%s219 + $0x8b] sm:$0xff]
      %v8669 = vld [vmem:[%s219 + $0x93] sm:$0xff]
      %v8670 = vld [vmem:[%s219 + $0x9b] sm:$0xff]
      %v8671 = vld [vmem:[%s219 + $0xa3] sm:$0xff]
      %v8672 = vld [vmem:[%s219 + $0xab] sm:$0xff]
      %v8673 = vld [vmem:[%s219 + $0xb3] sm:$0xff]
      %v8674 = vld [vmem:[%s219 + $0xbb] sm:$0xff]
      %v8675 = vld [vmem:[%s219 + $0xc3] sm:$0xff]
      %v8676 = vld [vmem:[%s219 + $0xcb] sm:$0xff]
      %v8677 = vld [vmem:[%s219 + $0xd3] sm:$0xff]
      %v8678 = vld [vmem:[%s219 + $0xdb] sm:$0xff]
      %v8679 = vld [vmem:[%s219 + $0xe3] sm:$0xff]
      %v8680 = vld [vmem:[%s219 + $0xeb] sm:$0xff]
      %v8681 = vld [vmem:[%s219 + $0xf3] sm:$0xff]
      %v8682 = vld [vmem:[%s219 + $0xfb] sm:$0xff]
      %v8683 = vld [vmem:[%s219 + $0x103] sm:$0xff]
      %v8684 = vld [vmem:[%s219 + $0x10b] sm:$0xff]
      %v8685 = vld [vmem:[%s219 + $0x113] sm:$0xff]
      %v8686 = vld [vmem:[%s219 + $0x11b] sm:$0xff]
      %v8687 = vld [vmem:[%s219 + $0x123] sm:$0xff]
      %v8688 = vld [vmem:[%s219 + $0x12b] sm:$0xff]
      %v8689 = vadd.f32 %v8617, %v8653
      %v8690 = vadd.f32 %v8618, %v8654
      %v8691 = vadd.f32 %v8619, %v8655
      %v8692 = vadd.f32 %v8620, %v8656
      %v8693 = vadd.f32 %v8621, %v8657
      %v8694 = vadd.f32 %v8622, %v8658
      %v8695 = vadd.f32 %v8623, %v8659
      %v8696 = vadd.f32 %v8624, %v8660
      %v8697 = vadd.f32 %v8625, %v8661
      %v8698 = vadd.f32 %v8626, %v8662
      %v8699 = vadd.f32 %v8627, %v8663
      %v8700 = vadd.f32 %v8628, %v8664
      %v8701 = vadd.f32 %v8629, %v8665
      %v8702 = vadd.f32 %v8630, %v8666
      %v8703 = vadd.f32 %v8631, %v8667
      %v8704 = vadd.f32 %v8632, %v8668
      %v8705 = vadd.f32 %v8633, %v8669
      %v8706 = vadd.f32 %v8634, %v8670
      %v8707 = vadd.f32 %v8635, %v8671
      %v8708 = vadd.f32 %v8636, %v8672
      %v8709 = vadd.f32 %v8637, %v8673
      %v8710 = vadd.f32 %v8638, %v8674
      %v8711 = vadd.f32 %v8639, %v8675
      %v8712 = vadd.f32 %v8640, %v8676
      %v8713 = vadd.f32 %v8641, %v8677
      %v8714 = vadd.f32 %v8642, %v8678
      %v8715 = vadd.f32 %v8643, %v8679
      %v8716 = vadd.f32 %v8644, %v8680
      %v8717 = vadd.f32 %v8645, %v8681
      %v8718 = vadd.f32 %v8646, %v8682
      %v8719 = vadd.f32 %v8647, %v8683
      %v8720 = vadd.f32 %v8648, %v8684
      %v8721 = vadd.f32 %v8649, %v8685
      %v8722 = vadd.f32 %v8650, %v8686
      %v8723 = vadd.f32 %v8651, %v8687
      %v8724 = vadd.f32 %v8652, %v8688
      %8725 = vst.msk [vmem:[%s224] sm:$0xff] %vm305, %v8689
      %8726 = vst.msk [vmem:[%s224 + $0x8] sm:$0xff] %vm305, %v8690
      %8727 = vst.msk [vmem:[%s224 + $0x10] sm:$0xff] %vm305, %v8691
      %8728 = vst.msk [vmem:[%s224 + $0x18] sm:$0xff] %vm305, %v8692
      %8729 = vst.msk [vmem:[%s224 + $0x20] sm:$0xff] %vm305, %v8693
      %8730 = vst.msk [vmem:[%s224 + $0x28] sm:$0xff] %vm305, %v8694
      %8731 = vst.msk [vmem:[%s224 + $0x30] sm:$0xff] %vm305, %v8695
      %8732 = vst.msk [vmem:[%s224 + $0x38] sm:$0xff] %vm305, %v8696
      %8733 = vst.msk [vmem:[%s224 + $0x40] sm:$0xff] %vm305, %v8697
      %8734 = vst.msk [vmem:[%s224 + $0x48] sm:$0xff] %vm305, %v8698
      %8735 = vst.msk [vmem:[%s224 + $0x50] sm:$0xff] %vm305, %v8699
      %8736 = vst.msk [vmem:[%s224 + $0x58] sm:$0xff] %vm305, %v8700
      %8737 = vst.msk [vmem:[%s224 + $0x60] sm:$0xff] %vm305, %v8701
      %8738 = vst.msk [vmem:[%s224 + $0x68] sm:$0xff] %vm305, %v8702
      %8739 = vst.msk [vmem:[%s224 + $0x70] sm:$0xff] %vm305, %v8703
      %8740 = vst.msk [vmem:[%s224 + $0x78] sm:$0xff] %vm305, %v8704
      %8741 = vst.msk [vmem:[%s224 + $0x80] sm:$0xff] %vm305, %v8705
      %8742 = vst.msk [vmem:[%s224 + $0x88] sm:$0xff] %vm305, %v8706
      %8743 = vst.msk [vmem:[%s224 + $0x90] sm:$0xff] %vm305, %v8707
      %8744 = vst.msk [vmem:[%s224 + $0x98] sm:$0xff] %vm305, %v8708
      %8745 = vst.msk [vmem:[%s224 + $0xa0] sm:$0xff] %vm305, %v8709
      %8746 = vst.msk [vmem:[%s224 + $0xa8] sm:$0xff] %vm305, %v8710
      %8747 = vst.msk [vmem:[%s224 + $0xb0] sm:$0xff] %vm305, %v8711
      %8748 = vst.msk [vmem:[%s224 + $0xb8] sm:$0xff] %vm305, %v8712
      %8749 = vst.msk [vmem:[%s224 + $0xc0] sm:$0xff] %vm305, %v8713
      %8750 = vst.msk [vmem:[%s224 + $0xc8] sm:$0xff] %vm305, %v8714
      %8751 = vst.msk [vmem:[%s224 + $0xd0] sm:$0xff] %vm305, %v8715
      %8752 = vst.msk [vmem:[%s224 + $0xd8] sm:$0xff] %vm305, %v8716
      %8753 = vst.msk [vmem:[%s224 + $0xe0] sm:$0xff] %vm305, %v8717
      %8754 = vst.msk [vmem:[%s224 + $0xe8] sm:$0xff] %vm305, %v8718
      %8755 = vst.msk [vmem:[%s224 + $0xf0] sm:$0xff] %vm305, %v8719
      %8756 = vst.msk [vmem:[%s224 + $0xf8] sm:$0xff] %vm305, %v8720
      %8757 = vst.msk [vmem:[%s224 + $0x100] sm:$0xff] %vm305, %v8721
      %8758 = vst.msk [vmem:[%s224 + $0x108] sm:$0xff] %vm305, %v8722
      %8759 = vst.msk [vmem:[%s224 + $0x110] sm:$0xff] %vm305, %v8723
      %8760 = vst.msk [vmem:[%s224 + $0x118] sm:$0xff] %vm305, %v8724
      %p8761 = scmp.lt.s32.totalorder %s16, 1
      %s8762 = scalar_select %p8761, %s16, 1
      %s8763 = smul.addr %s8762, 36
      %s8764 = smul.addr %s8763, 8
      %s8765 = scalar_lea.vmem %s5, %s8764
      // Predicated region
      $region41: #{resblock_forward.1} parent=39 // pred_check
        %p8766 = pneg %p144
      $region42: #{resblock_forward.1} parent=39 // pred_check_branch
        %8768 = sbr.rel (%p8766) target = $region44
      $region43: #{resblock_forward.1} parent=39 // pred_region
        _
      $region44: #{resblock_forward.1} parent=39 // pred_fallthru
        _
    $region40: #{resblock_forward.1} parent=5 // pred_fallthru
      _
    %p8769 = scmp.le.s32.totalorder 2, %s11
    // Predicated region
    $region45: #{resblock_forward.1} parent=5 // pred_check
      %p8770 = pneg %p8769
    $region46: #{resblock_forward.1} parent=5 // pred_check_branch
      %8772 = sbr.rel (%p8770) target = $region48
    $region47: #{resblock_forward.1} parent=5 // pred_region
      %s8773 = ssub.s32 %s11, 2
      // Predicated region
      $region49: #{resblock_forward.1} parent=47 // pred_check
        %p8774 = pneg %p150
      $region50: #{resblock_forward.1} parent=47 // pred_check_branch
        %8776 = sbr.rel (%p8774) target = $region52
      $region51: #{resblock_forward.1} parent=47 // pred_region
        %p8777 = scmp.lt.s32.totalorder %s17, 1
        %s8778 = scalar_select %p8777, %s17, 1
        %s8779 = smul.addr %s8778, 36
        %s8780 = smul.addr %s8779, 8
        %s8781 = scalar_lea.vmem %s5, %s8780
      $region52: #{resblock_forward.1} parent=47 // pred_fallthru
        _
    $region48: #{resblock_forward.1} parent=5 // pred_fallthru
      _
  $region6: #{resblock_forward.1} parent=0 // loop_footer
    %s15 = sadd.s32 1, %s11
  $region7: #{resblock_forward.1} parent=0 // loop_footer_branch
    %10 = sbr.rel target = $region3
  $region8: #{resblock_forward.1} parent=0 // loop_exit
    _

</llo_original>
